<compile_context>
chip_gen: v7x
topology: tpu7x:2x2x1
jax: 0.10.0
libtpu: 0.0.40
codegen_flags: <defaults>
</compile_context>

<pallas_src>
import functools

import jax
import jax.numpy as jnp
from jax.experimental import pallas as pl
from jax.experimental.pallas import tpu as pltpu

_LANE = 128
# Post-M-tiling worst case at real ResNet shapes is ~12 MiB per step (packed
# weights 2x4.7 MiB at Cin=Cout=512, image block 2x0.9 MiB, slab scratch ~4 MiB),
# so 40 MiB leaves headroom under v7x's 64 MiB/TC without throttling v5e/v6e.
_VMEM_LIMIT = 40 * 1024 * 1024


def _round_up(x, m):
    return (x + m - 1) // m * m


def _pick_tile_rows(ho, wo, target_rows=512):
    """Largest divisor of Ho whose row tile has at most ~target_rows output rows."""
    th = 1
    for cand in range(1, ho + 1):
        if ho % cand == 0 and cand * wo <= target_rows:
            th = cand
    return th


def _pick_tn(cin_p, cout_p, weight_budget=12 * 1024 * 1024):
    """Full Cout when the packed weight block fits VMEM (always true for ResNet)."""
    tn = cout_p
    while tn > _LANE and 9 * cin_p * tn * 2 > weight_budget:
        half = tn // 2
        if half % _LANE:
            break
        tn = half
    return tn


# ----------------------------- Pallas kernel ----------------------------------
def _conv3x3_kernel(*refs, th, Wo, stride, relu, res_mode, res_off):
    """One (cout-tile, batch, row-tile) step: 3x3 conv + folded BN [+shortcut] [+ReLU].

    refs (in order):
      x_ref    : (s*s, Hq, Wq, Cin_p)  bf16  phase-decomposed padded input image
      w_ref    : (9*Cin_p, tn)         bf16  BN-folded, tap-major packed weights
      b_ref    : (1, tn)               f32   folded BN bias
      [xs_ref] : (1, Hr, Wr, Cr)       bf16  shortcut source (centre-tap phase plane)
      [ws_ref] : (Cr, tn)              bf16  1x1 projection weights (BN folded)
      [bs_ref] : (1, tn)               f32   projection BN bias
      o_ref    : (1, th, Wo, tn)             output row tile
      slab_ref : (th*Wo, 9*Cin_p)      bf16  VMEM scratch: in-kernel im2col slab
    """
    slab_ref = refs[-1]
    o_ref = refs[-2]
    x_ref, w_ref, b_ref = refs[:3]
    xs_ref = refs[3] if res_mode != "none" else None
    ws_ref, bs_ref = (refs[4], refs[5]) if res_mode == "proj" else (None, None)

    s = stride
    cin_p = x_ref.shape[-1]
    tn = o_ref.shape[-1]
    row0 = pl.multiple_of(pl.program_id(2) * th, th)

    # In-VMEM im2col: 9 shifted taps of the resident image block packed along
    # channels -> a single MXU matmul with K = 9*Cin_p.
    for kh in range(3):
        for kw in range(3):
            tap = kh * 3 + kw
            phase = (kh % s) * s + (kw % s)
            oh, ow = kh // s, kw // s
            piece = x_ref[phase, pl.ds(row0 + oh, th), ow:ow + Wo, :]
            slab_ref[:, tap * cin_p:(tap + 1) * cin_p] = piece.reshape(th * Wo, cin_p)

    acc = jnp.dot(slab_ref[...], w_ref[...], preferred_element_type=jnp.float32)
    acc = acc + b_ref[...]

    if res_mode != "none":
        r_oh, r_ow = res_off
        xs = xs_ref[0, pl.ds(row0 + r_oh, th), r_ow:r_ow + Wo, :]
        xs = xs.reshape(th * Wo, xs.shape[-1])
        if res_mode == "proj":            # fused 1x1 conv + BN shortcut
            acc = acc + jnp.dot(xs, ws_ref[...],
                                preferred_element_type=jnp.float32) + bs_ref[...]
        else:                             # identity shortcut
            acc = acc + xs.astype(jnp.float32)

    if relu:
        acc = jnp.maximum(acc, 0.0)
    o_ref[0] = acc.reshape(th, Wo, tn).astype(o_ref.dtype)


# ------------------------------ wrappers ---------------------------------------
def _phase_decompose(x_nhwc, s):
    """padding=1 zero pad + stride-phase decomposition (pure permutation, bf16).

    Returns xph, Hq, Wq with
      xph[n*s*s + a*s + b, i, j, c] == x_padded[n, i*s + a, j*s + b, c].
    """
    n, h, w, c = x_nhwc.shape
    xp = jnp.pad(x_nhwc, ((0, 0), (1, 1), (1, 1), (0, 0)))
    hp, wp = h + 2, w + 2
    hq, wq = -(-hp // s), -(-wp // s)
    xp = jnp.pad(xp, ((0, 0), (0, hq * s - hp), (0, wq * s - wp), (0, 0)))
    xph = xp.reshape(n, hq, s, wq, s, c).transpose(0, 2, 4, 1, 3, 5)
    return xph.reshape(n * s * s, hq, wq, c), hq, wq


def _fold_bn(gamma, beta, mean, var, eps=1e-5):
    scale = gamma / jnp.sqrt(var + eps)
    return scale, beta - mean * scale


def _pack_conv3x3(w_oihw, bn_scale, cin_p, cout_p):
    """(O,I,3,3) f32 -> (9*Cin_p, Cout_p) bf16, BN scale folded, tap-major K order."""
    o, i = w_oihw.shape[:2]
    w = jnp.transpose(w_oihw, (2, 3, 1, 0)) * bn_scale[None, None, None, :]
    w = jnp.pad(w, ((0, 0), (0, 0), (0, cin_p - i), (0, cout_p - o)))
    return w.reshape(9 * cin_p, cout_p).astype(jnp.bfloat16)


def conv3x3_bn_act(xph, stride, Hq, Wq, Ho, Wo, w_packed, bias, *, relu=True,
                   residual=None, out_dtype=jnp.bfloat16, tile_rows=None):
    """3x3 conv (+folded BN) [+fused shortcut] [+ReLU] on a phase-decomposed image.

    xph      : (N*s*s, Hq, Wq, Cin_p) bf16
    w_packed : (9*Cin_p, Cout_p) bf16 ; bias : (1, Cout_p) f32
    residual : None | dict(src, plane_stride, plane_index, row_off, col_off, proj)
    returns  : (N, Ho, Wo, Cout_p) out_dtype
    """
    s = int(stride)
    cin_p = xph.shape[-1]
    n = xph.shape[0] // (s * s)
    cout_p = w_packed.shape[-1]

    th = tile_rows if tile_rows is not None else _pick_tile_rows(Ho, Wo)
    assert Ho % th == 0, (Ho, th)
    tn = _pick_tn(cin_p, cout_p)
    # Cout tiles outermost: weights are DMA'd cout_p//tn times total and stay
    # resident; the per-image x block stays resident across all row tiles.
    grid = (cout_p // tn, n, Ho // th)

    in_specs = [
        pl.BlockSpec((s * s, Hq, Wq, cin_p), lambda j, b, m: (b, 0, 0, 0)),
        pl.BlockSpec((9 * cin_p, tn), lambda j, b, m: (0, j)),
        pl.BlockSpec((1, tn), lambda j, b, m: (0, j)),
    ]
    args = [xph, w_packed, bias]

    res_mode, res_off = "none", (0, 0)
    if residual is not None:
        src = residual["src"]
        ps, pi = residual["plane_stride"], residual["plane_index"]
        hr, wr, cr = src.shape[1:]
        res_off = (residual["row_off"], residual["col_off"])
        if residual["proj"] is not None:
            res_mode = "proj"
            wsm, bsp = residual["proj"]
            in_specs.append(pl.BlockSpec((1, hr, wr, cr),
                                         lambda j, b, m: (b * ps + pi, 0, 0, 0)))
            in_specs.append(pl.BlockSpec((cr, tn), lambda j, b, m: (0, j)))
            in_specs.append(pl.BlockSpec((1, tn), lambda j, b, m: (0, j)))
            args += [src, wsm, bsp]
        else:
            res_mode = "identity"
            in_specs.append(pl.BlockSpec((1, hr, wr, tn),
                                         lambda j, b, m: (b * ps + pi, 0, 0, j)))
            args.append(src)

    kernel = functools.partial(_conv3x3_kernel, th=th, Wo=Wo, stride=s,
                               relu=relu, res_mode=res_mode, res_off=res_off)
    return pl.pallas_call(
        kernel,
        out_shape=jax.ShapeDtypeStruct((n, Ho, Wo, cout_p), out_dtype),
        grid=grid,
        in_specs=in_specs,
        out_specs=pl.BlockSpec((1, th, Wo, tn), lambda j, b, m: (b, m, 0, j)),
        scratch_shapes=[pltpu.VMEM((th * Wo, 9 * cin_p), jnp.bfloat16)],
        compiler_params=pltpu.CompilerParams(
            dimension_semantics=("parallel", "parallel", "parallel"),
            vmem_limit_bytes=_VMEM_LIMIT),
    )(*args)


def basic_block_forward(x_nchw, params, stride, *, tile_rows=None, nchw_f32_out=True):
    """Pallas BasicBlock.forward (inference-mode BatchNorm, PyTorch .eval())."""
    n, cin, h, w = x_nchw.shape
    planes = params["w1"].shape[0]
    s = int(stride)
    has_proj = (s != 1) or (cin != planes)
    cin_p = _round_up(cin, _LANE)
    cpl = _round_up(planes, _LANE)
    ho, wo = (h - 1) // s + 1, (w - 1) // s + 1

    # bf16 + NHWC + channel pad BEFORE all pads/permutes (halves their HBM traffic).
    x = jnp.transpose(x_nchw.astype(jnp.bfloat16), (0, 2, 3, 1))
    x = jnp.pad(x, ((0, 0), (0, 0), (0, 0), (0, cin_p - cin)))
    xph, hq, wq = _phase_decompose(x, s)

    # conv1 + bn1 + relu -> bf16 padded-NHWC intermediate.
    sc1, sh1 = _fold_bn(*params["bn1"])
    w1 = _pack_conv3x3(params["w1"], sc1, cin_p, cpl)
    b1 = jnp.pad(sh1, (0, cpl - planes)).reshape(1, cpl).astype(jnp.float32)
    hmid = conv3x3_bn_act(xph, s, hq, wq, ho, wo, w1, b1, relu=True,
                          out_dtype=jnp.bfloat16, tile_rows=tile_rows)

    # conv2 input: spatial pad only (stride-1 phase decomposition is the identity).
    hph, hq2, wq2 = _phase_decompose(hmid, 1)

    sc2, sh2 = _fold_bn(*params["bn2"])
    w2 = _pack_conv3x3(params["w2"], sc2, cpl, cpl)
    b2 = jnp.pad(sh2, (0, cpl - planes)).reshape(1, cpl).astype(jnp.float32)

    # Shortcut, fused into the conv2 kernel.  The residual source is the ORIGINAL
    # phase-decomposed input at its centre-tap phase/offset == x[:, ::s, ::s, :].
    if has_proj:
        scs, shs = _fold_bn(*params["bns"])
        wsm = jnp.transpose(params["ws"], (2, 3, 1, 0)).reshape(cin, planes) * scs[None, :]
        wsm = jnp.pad(wsm, ((0, cin_p - cin), (0, cpl - planes))).astype(jnp.bfloat16)
        bsp = jnp.pad(shs, (0, cpl - planes)).reshape(1, cpl).astype(jnp.float32)
        proj = (wsm, bsp)
    else:
        proj = None
    residual = dict(src=xph, plane_stride=s * s, plane_index=s * s - 1,
                    row_off=1 // s, col_off=1 // s, proj=proj)

    out = conv3x3_bn_act(hph, 1, hq2, wq2, ho, wo, w2, b2, relu=True,
                         residual=residual,
                         out_dtype=jnp.float32 if nchw_f32_out else jnp.bfloat16,
                         tile_rows=tile_rows)

    if not nchw_f32_out:
        # Padded NHWC bf16, directly consumable by the next BasicBlock without
        # re-padding / re-transposing (cuts inter-block HBM traffic >2x).
        return out
    out = out[:, :, :, :planes]
    return jnp.transpose(out, (0, 3, 1, 2))                              # NCHW f32


# -------------------------- pure-JAX reference ---------------------------------
def reference_forward(x, params, stride):
    def conv(x, w, s, pad):
        return jax.lax.conv_general_dilated(
            x, w, (s, s), [(pad, pad), (pad, pad)],
            dimension_numbers=("NCHW", "OIHW", "NCHW"))

    def bn(x, stats):
        g, b, m, v = stats
        g, b, m, v = (t[None, :, None, None] for t in (g, b, m, v))
        return (x - m) / jnp.sqrt(v + 1e-5) * g + b

    in_planes = x.shape[1]
    planes = params["w1"].shape[0]
    has_shortcut = (stride != 1) or (in_planes != planes)

    out = jax.nn.relu(bn(conv(x, params["w1"], stride, 1), params["bn1"]))
    out = bn(conv(out, params["w2"], 1, 1), params["bn2"])
    sc = bn(conv(x, params["ws"], stride, 0), params["bns"]) if has_shortcut else x
    return jax.nn.relu(out + sc)


# --------------------------- deterministic init --------------------------------
def init_params(key, in_planes, planes, stride):
    ks = jax.random.split(key, 16)
    rn = lambda k, shape: jax.random.normal(k, shape, jnp.float32)

    def bn_stats(k):
        k0, k1, k2, k3 = jax.random.split(k, 4)
        gamma = 1.0 + 0.1 * rn(k0, (planes,))
        beta = 0.1 * rn(k1, (planes,))
        mean = 0.1 * rn(k2, (planes,))
        var = 1.0 + 0.05 * jnp.abs(rn(k3, (planes,)))
        return (gamma, beta, mean, var)

    p = {
        "w1": 0.1 * rn(ks[0], (planes, in_planes, 3, 3)),
        "w2": 0.1 * rn(ks[1], (planes, planes, 3, 3)),
        "bn1": bn_stats(ks[2]),
        "bn2": bn_stats(ks[3]),
    }
    if stride != 1 or in_planes != planes:
        p["ws"] = 0.1 * rn(ks[4], (planes, in_planes, 1, 1))
        p["bns"] = bn_stats(ks[5])
    return p


# ------------------------------------ main --------------------------------------
if __name__ == "__main__":
    key = jax.random.PRNGKey(0)
    kx1, kx3, kp1, kp2, kp3 = jax.random.split(key, 5)

    fwd = jax.jit(basic_block_forward, static_argnums=(2,),
                  static_argnames=("tile_rows",))

    # bf16 matmuls with f32 accumulation vs f32 reference.
    RTOL, ATOL = 3e-2, 3e-2

    # config 1: channel change, stride 1  (fused 1x1-conv+BN projection shortcut)
    x1 = jax.random.normal(kx1, (2, 4, 16, 16), jnp.float32)
    p1 = init_params(kp1, in_planes=4, planes=8, stride=1)
    o1 = jax.block_until_ready(fwd(x1, p1, 1))
    r1 = reference_forward(x1, p1, 1)
    assert o1.shape == (2, 8, 16, 16)
    assert jnp.allclose(o1, r1, rtol=RTOL, atol=ATOL), "mismatch (config 1)"

    # config 2: downsampling block, stride 2 (projection shortcut + phase decomposition)
    p2 = init_params(kp2, in_planes=4, planes=8, stride=2)
    o2 = jax.block_until_ready(fwd(x1, p2, 2))
    r2 = reference_forward(x1, p2, 2)
    assert o2.shape == (2, 8, 8, 8)
    assert jnp.allclose(o2, r2, rtol=RTOL, atol=ATOL), "mismatch (config 2)"

    # config 3: identity shortcut + forced row tiling (exercises the M-tile path)
    x3 = jax.random.normal(kx3, (2, 8, 16, 16), jnp.float32)
    p3 = init_params(kp3, in_planes=8, planes=8, stride=1)
    o3 = jax.block_until_ready(fwd(x3, p3, 1, tile_rows=4))
    r3 = reference_forward(x3, p3, 1)
    assert o3.shape == (2, 8, 16, 16)
    assert jnp.allclose(o3, r3, rtol=RTOL, atol=ATOL), "mismatch (config 3)"

    print("KERNEL_OK")
</pallas_src>

<mosaic_0001>
module attributes {stable_mosaic.version = 11 : i64} {
  func.func @_conv3x3_kernel(%arg0: i32, %arg1: i32, %arg2: i32, %arg3: memref<1x18x18x128xbf16, #tpu.memory_space<vmem>>, %arg4: memref<1152x128xbf16, #tpu.memory_space<vmem>>, %arg5: memref<1x128xf32, #tpu.memory_space<vmem>>, %arg6: memref<1x16x16x128xbf16, #tpu.memory_space<vmem>>, %arg7: memref<256x1152xbf16, #tpu.memory_space<vmem>>) attributes {dimension_semantics = [#tpu.dimension_semantics<parallel>, #tpu.dimension_semantics<parallel>, #tpu.dimension_semantics<parallel>], iteration_bounds = array<i64: 1, 2, 1>, scalar_prefetch = 0 : i64, scratch_operands = 1 : i64, tpu.core_type = #tpu.core_type<tc>, window_params = [{transform_indices = @transform_0, window_bounds = array<i64: 1, 18, 18, 128>}, {transform_indices = @transform_1, window_bounds = array<i64: 1152, 128>}, {transform_indices = @transform_2, window_bounds = array<i64: 1, 128>}, {transform_indices = @transform_3, window_bounds = array<i64: 1, 16, 16, 128>}]} {
    %c16_i32 = arith.constant 16 : i32
    %0 = arith.muli %arg2, %c16_i32 : i32
    %1 = tpu.assume_multiple %0, 16 : i32
    %c0_i32 = arith.constant 0 : i32
    %2 = arith.addi %1, %c0_i32 : i32
    %c0 = arith.constant 0 : index
    %3 = arith.index_cast %2 : i32 to index
    %c0_0 = arith.constant 0 : index
    %c0_1 = arith.constant 0 : index
    %4 = vector.load %arg3[%c0, %3, %c0_0, %c0_1] : memref<1x18x18x128xbf16, #tpu.memory_space<vmem>>, vector<1x16x16x128xbf16>
    %5 = vector.shape_cast %4 : vector<1x16x16x128xbf16> to vector<16x16x128xbf16>
    %6 = vector.shape_cast %5 : vector<16x16x128xbf16> to vector<256x128xbf16>
    %c0_2 = arith.constant 0 : index
    %c0_3 = arith.constant 0 : index
    %7 = vector.load %arg7[%c0_2, %c0_3] : memref<256x1152xbf16, #tpu.memory_space<vmem>>, vector<256x128xbf16>
    tpu.vector_store %arg7[%c0_2, %c0_3], %6 {strides = array<i32>} : memref<256x1152xbf16, #tpu.memory_space<vmem>>, vector<256x128xbf16>,
    %c0_i32_4 = arith.constant 0 : i32
    %8 = arith.addi %1, %c0_i32_4 : i32
    %c0_5 = arith.constant 0 : index
    %9 = arith.index_cast %8 : i32 to index
    %c1 = arith.constant 1 : index
    %c0_6 = arith.constant 0 : index
    %10 = vector.load %arg3[%c0_5, %9, %c1, %c0_6] : memref<1x18x18x128xbf16, #tpu.memory_space<vmem>>, vector<1x16x16x128xbf16>
    %11 = vector.shape_cast %10 : vector<1x16x16x128xbf16> to vector<16x16x128xbf16>
    %12 = vector.shape_cast %11 : vector<16x16x128xbf16> to vector<256x128xbf16>
    %c0_7 = arith.constant 0 : index
    %c128 = arith.constant 128 : index
    %13 = vector.load %arg7[%c0_7, %c128] : memref<256x1152xbf16, #tpu.memory_space<vmem>>, vector<256x128xbf16>
    tpu.vector_store %arg7[%c0_7, %c128], %12 {strides = array<i32>} : memref<256x1152xbf16, #tpu.memory_space<vmem>>, vector<256x128xbf16>,
    %c0_i32_8 = arith.constant 0 : i32
    %14 = arith.addi %1, %c0_i32_8 : i32
    %c0_9 = arith.constant 0 : index
    %15 = arith.index_cast %14 : i32 to index
    %c2 = arith.constant 2 : index
    %c0_10 = arith.constant 0 : index
    %16 = vector.load %arg3[%c0_9, %15, %c2, %c0_10] : memref<1x18x18x128xbf16, #tpu.memory_space<vmem>>, vector<1x16x16x128xbf16>
    %17 = vector.shape_cast %16 : vector<1x16x16x128xbf16> to vector<16x16x128xbf16>
    %18 = vector.shape_cast %17 : vector<16x16x128xbf16> to vector<256x128xbf16>
    %c0_11 = arith.constant 0 : index
    %c256 = arith.constant 256 : index
    %19 = vector.load %arg7[%c0_11, %c256] : memref<256x1152xbf16, #tpu.memory_space<vmem>>, vector<256x128xbf16>
    tpu.vector_store %arg7[%c0_11, %c256], %18 {strides = array<i32>} : memref<256x1152xbf16, #tpu.memory_space<vmem>>, vector<256x128xbf16>,
    %c1_i32 = arith.constant 1 : i32
    %20 = arith.addi %1, %c1_i32 : i32
    %c0_12 = arith.constant 0 : index
    %21 = arith.index_cast %20 : i32 to index
    %c0_13 = arith.constant 0 : index
    %c0_14 = arith.constant 0 : index
    %22 = vector.load %arg3[%c0_12, %21, %c0_13, %c0_14] : memref<1x18x18x128xbf16, #tpu.memory_space<vmem>>, vector<1x16x16x128xbf16>
    %23 = vector.shape_cast %22 : vector<1x16x16x128xbf16> to vector<16x16x128xbf16>
    %24 = vector.shape_cast %23 : vector<16x16x128xbf16> to vector<256x128xbf16>
    %c0_15 = arith.constant 0 : index
    %c384 = arith.constant 384 : index
    %25 = vector.load %arg7[%c0_15, %c384] : memref<256x1152xbf16, #tpu.memory_space<vmem>>, vector<256x128xbf16>
    tpu.vector_store %arg7[%c0_15, %c384], %24 {strides = array<i32>} : memref<256x1152xbf16, #tpu.memory_space<vmem>>, vector<256x128xbf16>,
    %c1_i32_16 = arith.constant 1 : i32
    %26 = arith.addi %1, %c1_i32_16 : i32
    %c0_17 = arith.constant 0 : index
    %27 = arith.index_cast %26 : i32 to index
    %c1_18 = arith.constant 1 : index
    %c0_19 = arith.constant 0 : index
    %28 = vector.load %arg3[%c0_17, %27, %c1_18, %c0_19] : memref<1x18x18x128xbf16, #tpu.memory_space<vmem>>, vector<1x16x16x128xbf16>
    %29 = vector.shape_cast %28 : vector<1x16x16x128xbf16> to vector<16x16x128xbf16>
    %30 = vector.shape_cast %29 : vector<16x16x128xbf16> to vector<256x128xbf16>
    %c0_20 = arith.constant 0 : index
    %c512 = arith.constant 512 : index
    %31 = vector.load %arg7[%c0_20, %c512] : memref<256x1152xbf16, #tpu.memory_space<vmem>>, vector<256x128xbf16>
    tpu.vector_store %arg7[%c0_20, %c512], %30 {strides = array<i32>} : memref<256x1152xbf16, #tpu.memory_space<vmem>>, vector<256x128xbf16>,
    %c1_i32_21 = arith.constant 1 : i32
    %32 = arith.addi %1, %c1_i32_21 : i32
    %c0_22 = arith.constant 0 : index
    %33 = arith.index_cast %32 : i32 to index
    %c2_23 = arith.constant 2 : index
    %c0_24 = arith.constant 0 : index
    %34 = vector.load %arg3[%c0_22, %33, %c2_23, %c0_24] : memref<1x18x18x128xbf16, #tpu.memory_space<vmem>>, vector<1x16x16x128xbf16>
    %35 = vector.shape_cast %34 : vector<1x16x16x128xbf16> to vector<16x16x128xbf16>
    %36 = vector.shape_cast %35 : vector<16x16x128xbf16> to vector<256x128xbf16>
    %c0_25 = arith.constant 0 : index
    %c640 = arith.constant 640 : index
    %37 = vector.load %arg7[%c0_25, %c640] : memref<256x1152xbf16, #tpu.memory_space<vmem>>, vector<256x128xbf16>
    tpu.vector_store %arg7[%c0_25, %c640], %36 {strides = array<i32>} : memref<256x1152xbf16, #tpu.memory_space<vmem>>, vector<256x128xbf16>,
    %c2_i32 = arith.constant 2 : i32
    %38 = arith.addi %1, %c2_i32 : i32
    %c0_26 = arith.constant 0 : index
    %39 = arith.index_cast %38 : i32 to index
    %c0_27 = arith.constant 0 : index
    %c0_28 = arith.constant 0 : index
    %40 = vector.load %arg3[%c0_26, %39, %c0_27, %c0_28] : memref<1x18x18x128xbf16, #tpu.memory_space<vmem>>, vector<1x16x16x128xbf16>
    %41 = vector.shape_cast %40 : vector<1x16x16x128xbf16> to vector<16x16x128xbf16>
    %42 = vector.shape_cast %41 : vector<16x16x128xbf16> to vector<256x128xbf16>
    %c0_29 = arith.constant 0 : index
    %c768 = arith.constant 768 : index
    %43 = vector.load %arg7[%c0_29, %c768] : memref<256x1152xbf16, #tpu.memory_space<vmem>>, vector<256x128xbf16>
    tpu.vector_store %arg7[%c0_29, %c768], %42 {strides = array<i32>} : memref<256x1152xbf16, #tpu.memory_space<vmem>>, vector<256x128xbf16>,
    %c2_i32_30 = arith.constant 2 : i32
    %44 = arith.addi %1, %c2_i32_30 : i32
    %c0_31 = arith.constant 0 : index
    %45 = arith.index_cast %44 : i32 to index
    %c1_32 = arith.constant 1 : index
    %c0_33 = arith.constant 0 : index
    %46 = vector.load %arg3[%c0_31, %45, %c1_32, %c0_33] : memref<1x18x18x128xbf16, #tpu.memory_space<vmem>>, vector<1x16x16x128xbf16>
    %47 = vector.shape_cast %46 : vector<1x16x16x128xbf16> to vector<16x16x128xbf16>
    %48 = vector.shape_cast %47 : vector<16x16x128xbf16> to vector<256x128xbf16>
    %c0_34 = arith.constant 0 : index
    %c896 = arith.constant 896 : index
    %49 = vector.load %arg7[%c0_34, %c896] : memref<256x1152xbf16, #tpu.memory_space<vmem>>, vector<256x128xbf16>
    tpu.vector_store %arg7[%c0_34, %c896], %48 {strides = array<i32>} : memref<256x1152xbf16, #tpu.memory_space<vmem>>, vector<256x128xbf16>,
    %c2_i32_35 = arith.constant 2 : i32
    %50 = arith.addi %1, %c2_i32_35 : i32
    %c0_36 = arith.constant 0 : index
    %51 = arith.index_cast %50 : i32 to index
    %c2_37 = arith.constant 2 : index
    %c0_38 = arith.constant 0 : index
    %52 = vector.load %arg3[%c0_36, %51, %c2_37, %c0_38] : memref<1x18x18x128xbf16, #tpu.memory_space<vmem>>, vector<1x16x16x128xbf16>
    %53 = vector.shape_cast %52 : vector<1x16x16x128xbf16> to vector<16x16x128xbf16>
    %54 = vector.shape_cast %53 : vector<16x16x128xbf16> to vector<256x128xbf16>
    %c0_39 = arith.constant 0 : index
    %c1024 = arith.constant 1024 : index
    %55 = vector.load %arg7[%c0_39, %c1024] : memref<256x1152xbf16, #tpu.memory_space<vmem>>, vector<256x128xbf16>
    tpu.vector_store %arg7[%c0_39, %c1024], %54 {strides = array<i32>} : memref<256x1152xbf16, #tpu.memory_space<vmem>>, vector<256x128xbf16>,
    %c0_40 = arith.constant 0 : index
    %c0_41 = arith.constant 0 : index
    %56 = vector.load %arg7[%c0_40, %c0_41] : memref<256x1152xbf16, #tpu.memory_space<vmem>>, vector<256x1152xbf16>
    %c0_42 = arith.constant 0 : index
    %c0_43 = arith.constant 0 : index
    %57 = vector.load %arg4[%c0_42, %c0_43] : memref<1152x128xbf16, #tpu.memory_space<vmem>>, vector<1152x128xbf16>
    %cst = arith.constant dense<0.000000e+00> : vector<256x128xf32>
    %58 = tpu.matmul %56, %57, %cst {dimension_numbers = #tpu.dot_dimension_numbers<[1], [0], [0], [1], [0, 0, 1, 1], [], []>} : vector<256x1152xbf16>, vector<1152x128xbf16>, vector<256x128xf32> -> vector<256x128xf32>
    %c0_44 = arith.constant 0 : index
    %c0_45 = arith.constant 0 : index
    %59 = vector.load %arg5[%c0_44, %c0_45] : memref<1x128xf32, #tpu.memory_space<vmem>>, vector<1x128xf32>
    %60 = vector.broadcast %59 : vector<1x128xf32> to vector<256x128xf32>
    %61 = arith.addf %58, %60 : vector<256x128xf32>
    %cst_46 = arith.constant 0.000000e+00 : f32
    %62 = vector.broadcast %cst_46 : f32 to vector<256x128xf32>
    %63 = arith.maximumf %61, %62 : vector<256x128xf32>
    %64 = vector.shape_cast %63 : vector<256x128xf32> to vector<16x16x128xf32>
    %65 = arith.truncf %64 : vector<16x16x128xf32> to vector<16x16x128xbf16>
    %c0_47 = arith.constant 0 : index
    %c0_48 = arith.constant 0 : index
    %c0_49 = arith.constant 0 : index
    %c0_50 = arith.constant 0 : index
    %66 = vector.load %arg6[%c0_47, %c0_48, %c0_49, %c0_50] : memref<1x16x16x128xbf16, #tpu.memory_space<vmem>>, vector<1x16x16x128xbf16>
    %67 = vector.shape_cast %66 : vector<1x16x16x128xbf16> to vector<16x16x128xbf16>
    %68 = vector.shape_cast %65 : vector<16x16x128xbf16> to vector<1x16x16x128xbf16>
    tpu.vector_store %arg6[%c0_47, %c0_48, %c0_49, %c0_50], %68 {strides = array<i32>} : memref<1x16x16x128xbf16, #tpu.memory_space<vmem>>, vector<1x16x16x128xbf16>,
    return
  }
  func.func @transform_0(%arg0: i32, %arg1: i32, %arg2: i32) -> (i32, i32, i32, i32) {
    %c0_i32 = arith.constant 0 : i32
    %c0_i32_0 = arith.constant 0 : i32
    %c0_i32_1 = arith.constant 0 : i32
    %c0_i32_2 = arith.constant 0 : i32
    return %arg1, %c0_i32, %c0_i32_0, %c0_i32_1 : i32, i32, i32, i32
  }
  func.func @transform_1(%arg0: i32, %arg1: i32, %arg2: i32) -> (i32, i32) {
    %c0_i32 = arith.constant 0 : i32
    %c0_i32_0 = arith.constant 0 : i32
    return %c0_i32, %arg0 : i32, i32
  }
  func.func @transform_2(%arg0: i32, %arg1: i32, %arg2: i32) -> (i32, i32) {
    %c0_i32 = arith.constant 0 : i32
    %c0_i32_0 = arith.constant 0 : i32
    return %c0_i32, %arg0 : i32, i32
  }
  func.func @transform_3(%arg0: i32, %arg1: i32, %arg2: i32) -> (i32, i32, i32, i32) {
    %c0_i32 = arith.constant 0 : i32
    %c0_i32_0 = arith.constant 0 : i32
    return %arg1, %arg2, %c0_i32, %arg0 : i32, i32, i32, i32
  }
}

module attributes {stable_mosaic.version = 11 : i64} {
  func.func @_conv3x3_kernel(%arg0: i32, %arg1: i32, %arg2: i32, %arg3: memref<1x18x18x128xbf16, #tpu.memory_space<vmem>>, %arg4: memref<1152x128xbf16, #tpu.memory_space<vmem>>, %arg5: memref<1x128xf32, #tpu.memory_space<vmem>>, %arg6: memref<1x18x18x128xbf16, #tpu.memory_space<vmem>>, %arg7: memref<128x128xbf16, #tpu.memory_space<vmem>>, %arg8: memref<1x128xf32, #tpu.memory_space<vmem>>, %arg9: memref<1x16x16x128xf32, #tpu.memory_space<vmem>>, %arg10: memref<256x1152xbf16, #tpu.memory_space<vmem>>) attributes {dimension_semantics = [#tpu.dimension_semantics<parallel>, #tpu.dimension_semantics<parallel>, #tpu.dimension_semantics<parallel>], iteration_bounds = array<i64: 1, 2, 1>, scalar_prefetch = 0 : i64, scratch_operands = 1 : i64, tpu.core_type = #tpu.core_type<tc>, window_params = [{transform_indices = @transform_0, window_bounds = array<i64: 1, 18, 18, 128>}, {transform_indices = @transform_1, window_bounds = array<i64: 1152, 128>}, {transform_indices = @transform_2, window_bounds = array<i64: 1, 128>}, {transform_indices = @transform_3, window_bounds = array<i64: 1, 18, 18, 128>}, {transform_indices = @transform_4, window_bounds = array<i64: 128, 128>}, {transform_indices = @transform_5, window_bounds = array<i64: 1, 128>}, {transform_indices = @transform_6, window_bounds = array<i64: 1, 16, 16, 128>}]} {
    %c16_i32 = arith.constant 16 : i32
    %0 = arith.muli %arg2, %c16_i32 : i32
    %1 = tpu.assume_multiple %0, 16 : i32
    %c0_i32 = arith.constant 0 : i32
    %2 = arith.addi %1, %c0_i32 : i32
    %c0 = arith.constant 0 : index
    %3 = arith.index_cast %2 : i32 to index
    %c0_0 = arith.constant 0 : index
    %c0_1 = arith.constant 0 : index
    %4 = vector.load %arg3[%c0, %3, %c0_0, %c0_1] : memref<1x18x18x128xbf16, #tpu.memory_space<vmem>>, vector<1x16x16x128xbf16>
    %5 = vector.shape_cast %4 : vector<1x16x16x128xbf16> to vector<16x16x128xbf16>
    %6 = vector.shape_cast %5 : vector<16x16x128xbf16> to vector<256x128xbf16>
    %c0_2 = arith.constant 0 : index
    %c0_3 = arith.constant 0 : index
    %7 = vector.load %arg10[%c0_2, %c0_3] : memref<256x1152xbf16, #tpu.memory_space<vmem>>, vector<256x128xbf16>
    tpu.vector_store %arg10[%c0_2, %c0_3], %6 {strides = array<i32>} : memref<256x1152xbf16, #tpu.memory_space<vmem>>, vector<256x128xbf16>,
    %c0_i32_4 = arith.constant 0 : i32
    %8 = arith.addi %1, %c0_i32_4 : i32
    %c0_5 = arith.constant 0 : index
    %9 = arith.index_cast %8 : i32 to index
    %c1 = arith.constant 1 : index
    %c0_6 = arith.constant 0 : index
    %10 = vector.load %arg3[%c0_5, %9, %c1, %c0_6] : memref<1x18x18x128xbf16, #tpu.memory_space<vmem>>, vector<1x16x16x128xbf16>
    %11 = vector.shape_cast %10 : vector<1x16x16x128xbf16> to vector<16x16x128xbf16>
    %12 = vector.shape_cast %11 : vector<16x16x128xbf16> to vector<256x128xbf16>
    %c0_7 = arith.constant 0 : index
    %c128 = arith.constant 128 : index
    %13 = vector.load %arg10[%c0_7, %c128] : memref<256x1152xbf16, #tpu.memory_space<vmem>>, vector<256x128xbf16>
    tpu.vector_store %arg10[%c0_7, %c128], %12 {strides = array<i32>} : memref<256x1152xbf16, #tpu.memory_space<vmem>>, vector<256x128xbf16>,
    %c0_i32_8 = arith.constant 0 : i32
    %14 = arith.addi %1, %c0_i32_8 : i32
    %c0_9 = arith.constant 0 : index
    %15 = arith.index_cast %14 : i32 to index
    %c2 = arith.constant 2 : index
    %c0_10 = arith.constant 0 : index
    %16 = vector.load %arg3[%c0_9, %15, %c2, %c0_10] : memref<1x18x18x128xbf16, #tpu.memory_space<vmem>>, vector<1x16x16x128xbf16>
    %17 = vector.shape_cast %16 : vector<1x16x16x128xbf16> to vector<16x16x128xbf16>
    %18 = vector.shape_cast %17 : vector<16x16x128xbf16> to vector<256x128xbf16>
    %c0_11 = arith.constant 0 : index
    %c256 = arith.constant 256 : index
    %19 = vector.load %arg10[%c0_11, %c256] : memref<256x1152xbf16, #tpu.memory_space<vmem>>, vector<256x128xbf16>
    tpu.vector_store %arg10[%c0_11, %c256], %18 {strides = array<i32>} : memref<256x1152xbf16, #tpu.memory_space<vmem>>, vector<256x128xbf16>,
    %c1_i32 = arith.constant 1 : i32
    %20 = arith.addi %1, %c1_i32 : i32
    %c0_12 = arith.constant 0 : index
    %21 = arith.index_cast %20 : i32 to index
    %c0_13 = arith.constant 0 : index
    %c0_14 = arith.constant 0 : index
    %22 = vector.load %arg3[%c0_12, %21, %c0_13, %c0_14] : memref<1x18x18x128xbf16, #tpu.memory_space<vmem>>, vector<1x16x16x128xbf16>
    %23 = vector.shape_cast %22 : vector<1x16x16x128xbf16> to vector<16x16x128xbf16>
    %24 = vector.shape_cast %23 : vector<16x16x128xbf16> to vector<256x128xbf16>
    %c0_15 = arith.constant 0 : index
    %c384 = arith.constant 384 : index
    %25 = vector.load %arg10[%c0_15, %c384] : memref<256x1152xbf16, #tpu.memory_space<vmem>>, vector<256x128xbf16>
    tpu.vector_store %arg10[%c0_15, %c384], %24 {strides = array<i32>} : memref<256x1152xbf16, #tpu.memory_space<vmem>>, vector<256x128xbf16>,
    %c1_i32_16 = arith.constant 1 : i32
    %26 = arith.addi %1, %c1_i32_16 : i32
    %c0_17 = arith.constant 0 : index
    %27 = arith.index_cast %26 : i32 to index
    %c1_18 = arith.constant 1 : index
    %c0_19 = arith.constant 0 : index
    %28 = vector.load %arg3[%c0_17, %27, %c1_18, %c0_19] : memref<1x18x18x128xbf16, #tpu.memory_space<vmem>>, vector<1x16x16x128xbf16>
    %29 = vector.shape_cast %28 : vector<1x16x16x128xbf16> to vector<16x16x128xbf16>
    %30 = vector.shape_cast %29 : vector<16x16x128xbf16> to vector<256x128xbf16>
    %c0_20 = arith.constant 0 : index
    %c512 = arith.constant 512 : index
    %31 = vector.load %arg10[%c0_20, %c512] : memref<256x1152xbf16, #tpu.memory_space<vmem>>, vector<256x128xbf16>
    tpu.vector_store %arg10[%c0_20, %c512], %30 {strides = array<i32>} : memref<256x1152xbf16, #tpu.memory_space<vmem>>, vector<256x128xbf16>,
    %c1_i32_21 = arith.constant 1 : i32
    %32 = arith.addi %1, %c1_i32_21 : i32
    %c0_22 = arith.constant 0 : index
    %33 = arith.index_cast %32 : i32 to index
    %c2_23 = arith.constant 2 : index
    %c0_24 = arith.constant 0 : index
    %34 = vector.load %arg3[%c0_22, %33, %c2_23, %c0_24] : memref<1x18x18x128xbf16, #tpu.memory_space<vmem>>, vector<1x16x16x128xbf16>
    %35 = vector.shape_cast %34 : vector<1x16x16x128xbf16> to vector<16x16x128xbf16>
    %36 = vector.shape_cast %35 : vector<16x16x128xbf16> to vector<256x128xbf16>
    %c0_25 = arith.constant 0 : index
    %c640 = arith.constant 640 : index
    %37 = vector.load %arg10[%c0_25, %c640] : memref<256x1152xbf16, #tpu.memory_space<vmem>>, vector<256x128xbf16>
    tpu.vector_store %arg10[%c0_25, %c640], %36 {strides = array<i32>} : memref<256x1152xbf16, #tpu.memory_space<vmem>>, vector<256x128xbf16>,
    %c2_i32 = arith.constant 2 : i32
    %38 = arith.addi %1, %c2_i32 : i32
    %c0_26 = arith.constant 0 : index
    %39 = arith.index_cast %38 : i32 to index
    %c0_27 = arith.constant 0 : index
    %c0_28 = arith.constant 0 : index
    %40 = vector.load %arg3[%c0_26, %39, %c0_27, %c0_28] : memref<1x18x18x128xbf16, #tpu.memory_space<vmem>>, vector<1x16x16x128xbf16>
    %41 = vector.shape_cast %40 : vector<1x16x16x128xbf16> to vector<16x16x128xbf16>
    %42 = vector.shape_cast %41 : vector<16x16x128xbf16> to vector<256x128xbf16>
    %c0_29 = arith.constant 0 : index
    %c768 = arith.constant 768 : index
    %43 = vector.load %arg10[%c0_29, %c768] : memref<256x1152xbf16, #tpu.memory_space<vmem>>, vector<256x128xbf16>
    tpu.vector_store %arg10[%c0_29, %c768], %42 {strides = array<i32>} : memref<256x1152xbf16, #tpu.memory_space<vmem>>, vector<256x128xbf16>,
    %c2_i32_30 = arith.constant 2 : i32
    %44 = arith.addi %1, %c2_i32_30 : i32
    %c0_31 = arith.constant 0 : index
    %45 = arith.index_cast %44 : i32 to index
    %c1_32 = arith.constant 1 : index
    %c0_33 = arith.constant 0 : index
    %46 = vector.load %arg3[%c0_31, %45, %c1_32, %c0_33] : memref<1x18x18x128xbf16, #tpu.memory_space<vmem>>, vector<1x16x16x128xbf16>
    %47 = vector.shape_cast %46 : vector<1x16x16x128xbf16> to vector<16x16x128xbf16>
    %48 = vector.shape_cast %47 : vector<16x16x128xbf16> to vector<256x128xbf16>
    %c0_34 = arith.constant 0 : index
    %c896 = arith.constant 896 : index
    %49 = vector.load %arg10[%c0_34, %c896] : memref<256x1152xbf16, #tpu.memory_space<vmem>>, vector<256x128xbf16>
    tpu.vector_store %arg10[%c0_34, %c896], %48 {strides = array<i32>} : memref<256x1152xbf16, #tpu.memory_space<vmem>>, vector<256x128xbf16>,
    %c2_i32_35 = arith.constant 2 : i32
    %50 = arith.addi %1, %c2_i32_35 : i32
    %c0_36 = arith.constant 0 : index
    %51 = arith.index_cast %50 : i32 to index
    %c2_37 = arith.constant 2 : index
    %c0_38 = arith.constant 0 : index
    %52 = vector.load %arg3[%c0_36, %51, %c2_37, %c0_38] : memref<1x18x18x128xbf16, #tpu.memory_space<vmem>>, vector<1x16x16x128xbf16>
    %53 = vector.shape_cast %52 : vector<1x16x16x128xbf16> to vector<16x16x128xbf16>
    %54 = vector.shape_cast %53 : vector<16x16x128xbf16> to vector<256x128xbf16>
    %c0_39 = arith.constant 0 : index
    %c1024 = arith.constant 1024 : index
    %55 = vector.load %arg10[%c0_39, %c1024] : memref<256x1152xbf16, #tpu.memory_space<vmem>>, vector<256x128xbf16>
    tpu.vector_store %arg10[%c0_39, %c1024], %54 {strides = array<i32>} : memref<256x1152xbf16, #tpu.memory_space<vmem>>, vector<256x128xbf16>,
    %c0_40 = arith.constant 0 : index
    %c0_41 = arith.constant 0 : index
    %56 = vector.load %arg10[%c0_40, %c0_41] : memref<256x1152xbf16, #tpu.memory_space<vmem>>, vector<256x1152xbf16>
    %c0_42 = arith.constant 0 : index
    %c0_43 = arith.constant 0 : index
    %57 = vector.load %arg4[%c0_42, %c0_43] : memref<1152x128xbf16, #tpu.memory_space<vmem>>, vector<1152x128xbf16>
    %cst = arith.constant dense<0.000000e+00> : vector<256x128xf32>
    %58 = tpu.matmul %56, %57, %cst {dimension_numbers = #tpu.dot_dimension_numbers<[1], [0], [0], [1], [0, 0, 1, 1], [], []>} : vector<256x1152xbf16>, vector<1152x128xbf16>, vector<256x128xf32> -> vector<256x128xf32>
    %c0_44 = arith.constant 0 : index
    %c0_45 = arith.constant 0 : index
    %59 = vector.load %arg5[%c0_44, %c0_45] : memref<1x128xf32, #tpu.memory_space<vmem>>, vector<1x128xf32>
    %60 = vector.broadcast %59 : vector<1x128xf32> to vector<256x128xf32>
    %61 = arith.addf %58, %60 : vector<256x128xf32>
    %c1_i32_46 = arith.constant 1 : i32
    %62 = arith.addi %1, %c1_i32_46 : i32
    %c0_47 = arith.constant 0 : index
    %63 = arith.index_cast %62 : i32 to index
    %c1_48 = arith.constant 1 : index
    %c0_49 = arith.constant 0 : index
    %64 = vector.load %arg6[%c0_47, %63, %c1_48, %c0_49] : memref<1x18x18x128xbf16, #tpu.memory_space<vmem>>, vector<1x16x16x128xbf16>
    %65 = vector.shape_cast %64 : vector<1x16x16x128xbf16> to vector<16x16x128xbf16>
    %66 = vector.shape_cast %65 : vector<16x16x128xbf16> to vector<256x128xbf16>
    %c0_50 = arith.constant 0 : index
    %c0_51 = arith.constant 0 : index
    %67 = vector.load %arg7[%c0_50, %c0_51] : memref<128x128xbf16, #tpu.memory_space<vmem>>, vector<128x128xbf16>
    %cst_52 = arith.constant dense<0.000000e+00> : vector<256x128xf32>
    %68 = tpu.matmul %66, %67, %cst_52 {dimension_numbers = #tpu.dot_dimension_numbers<[1], [0], [0], [1], [0, 0, 1, 1], [], []>} : vector<256x128xbf16>, vector<128x128xbf16>, vector<256x128xf32> -> vector<256x128xf32>
    %69 = arith.addf %61, %68 : vector<256x128xf32>
    %c0_53 = arith.constant 0 : index
    %c0_54 = arith.constant 0 : index
    %70 = vector.load %arg8[%c0_53, %c0_54] : memref<1x128xf32, #tpu.memory_space<vmem>>, vector<1x128xf32>
    %71 = vector.broadcast %70 : vector<1x128xf32> to vector<256x128xf32>
    %72 = arith.addf %69, %71 : vector<256x128xf32>
    %cst_55 = arith.constant 0.000000e+00 : f32
    %73 = vector.broadcast %cst_55 : f32 to vector<256x128xf32>
    %74 = arith.maximumf %72, %73 : vector<256x128xf32>
    %75 = vector.shape_cast %74 : vector<256x128xf32> to vector<16x16x128xf32>
    %c0_56 = arith.constant 0 : index
    %c0_57 = arith.constant 0 : index
    %c0_58 = arith.constant 0 : index
    %c0_59 = arith.constant 0 : index
    %76 = vector.load %arg9[%c0_56, %c0_57, %c0_58, %c0_59] : memref<1x16x16x128xf32, #tpu.memory_space<vmem>>, vector<1x16x16x128xf32>
    %77 = vector.shape_cast %76 : vector<1x16x16x128xf32> to vector<16x16x128xf32>
    %78 = vector.shape_cast %75 : vector<16x16x128xf32> to vector<1x16x16x128xf32>
    tpu.vector_store %arg9[%c0_56, %c0_57, %c0_58, %c0_59], %78 {strides = array<i32>} : memref<1x16x16x128xf32, #tpu.memory_space<vmem>>, vector<1x16x16x128xf32>,
    return
  }
  func.func @transform_0(%arg0: i32, %arg1: i32, %arg2: i32) -> (i32, i32, i32, i32) {
    %c0_i32 = arith.constant 0 : i32
    %c0_i32_0 = arith.constant 0 : i32
    %c0_i32_1 = arith.constant 0 : i32
    %c0_i32_2 = arith.constant 0 : i32
    return %arg1, %c0_i32, %c0_i32_0, %c0_i32_1 : i32, i32, i32, i32
  }
  func.func @transform_1(%arg0: i32, %arg1: i32, %arg2: i32) -> (i32, i32) {
    %c0_i32 = arith.constant 0 : i32
    %c0_i32_0 = arith.constant 0 : i32
    return %c0_i32, %arg0 : i32, i32
  }
  func.func @transform_2(%arg0: i32, %arg1: i32, %arg2: i32) -> (i32, i32) {
    %c0_i32 = arith.constant 0 : i32
    %c0_i32_0 = arith.constant 0 : i32
    return %c0_i32, %arg0 : i32, i32
  }
  func.func @transform_3(%arg0: i32, %arg1: i32, %arg2: i32) -> (i32, i32, i32, i32) {
    %c1_i32 = arith.constant 1 : i32
    %0 = arith.muli %arg1, %c1_i32 : i32
    %c0_i32 = arith.constant 0 : i32
    %1 = arith.addi %0, %c0_i32 : i32
    %c0_i32_0 = arith.constant 0 : i32
    %c0_i32_1 = arith.constant 0 : i32
    %c0_i32_2 = arith.constant 0 : i32
    %c0_i32_3 = arith.constant 0 : i32
    return %1, %c0_i32_0, %c0_i32_1, %c0_i32_2 : i32, i32, i32, i32
  }
  func.func @transform_4(%arg0: i32, %arg1: i32, %arg2: i32) -> (i32, i32) {
    %c0_i32 = arith.constant 0 : i32
    %c0_i32_0 = arith.constant 0 : i32
    return %c0_i32, %arg0 : i32, i32
  }
  func.func @transform_5(%arg0: i32, %arg1: i32, %arg2: i32) -> (i32, i32) {
    %c0_i32 = arith.constant 0 : i32
    %c0_i32_0 = arith.constant 0 : i32
    return %c0_i32, %arg0 : i32, i32
  }
  func.func @transform_6(%arg0: i32, %arg1: i32, %arg2: i32) -> (i32, i32, i32, i32) {
    %c0_i32 = arith.constant 0 : i32
    %c0_i32_0 = arith.constant 0 : i32
    return %arg1, %arg2, %c0_i32, %arg0 : i32, i32, i32, i32
  }
}

</mosaic_0001>

<llo_original>
// kernel: basic_block_forward.2
$region0: #{basic_block_forward.2}
  #allocation0 [shape = 'u32[]', space=smem, size = 0x4, offset = 0x4, fixed_abs, tag = 'smem constant byte address 0x4 - core index']
  #allocation1 [shape = 'u32[144,128]{1,0:T(1,128)}', space=vmem, size = 0x12000, scoped, tag = 'internal scratch']
  #allocation2 [shape = 'bf16[256,1152]{1,0:T(16,128)(2,1)}', space=vmem, size = 0x90000, scoped, tag = 'scratch operand']
  %s0 = inlined_call_operand.vmem [shape: bf16[2,18,18,128], index: 0, kind: input, shape index: {}]
  %s1 = inlined_call_operand.vmem [shape: bf16[1152,128], index: 1, kind: input, shape index: {}]
  %s2 = inlined_call_operand.vmem [shape: f32[1,128], index: 2, kind: input, shape index: {}]
  %s3 = inlined_call_operand.vmem [shape: bf16[2,16,16,128], index: 3, kind: output, shape index: {}]
  %s4 = sld [smem:[#allocation0]]
  $region45: #{basic_block_forward.2} parent=0
    _
  %s6 = ssub.s32 1, %s4
  %s7 = scalar_select 0, %s6, %s4
  loop: start=0, step=1, limit=4
  $region2: #{basic_block_forward.2} parent=0 // loop_pre_header
    _
  $region3: #{basic_block_forward.2} parent=0 // loop_header
    %s9 = sphi 0, %s13
    %p10 = scmp.ge.s32.totalorder %s9, 4
    %s16 = sphi 0, %s35
    %s17 = sphi 0, %s31
    %s18 = sphi 0, %s27
    %s19 = sphi 0, %s16
    %s20 = sphi 0, %s17
    %s21 = sphi 0, %s18
    %s22 = sphi 0, %s19
    %s23 = sphi 0, %s20
    %s24 = sphi 0, %s21
    %s38 = sphi 0, %s40
    %s41 = sphi 0, %s38
    %s42 = sphi 0, %s41
    %s58 = sphi 0, %s42
    %s64 = sphi 0, %s66
    %s67 = sphi 0, %s64
    %s68 = sphi 0, %s67
    %s84 = sphi 0, %s68
    %s90 = sphi 0, %s92
    %s93 = sphi 0, %s90
    %s94 = sphi 0, %s93
    %s110 = sphi 0, %s94
    %s120 = sphi 0, %s122
    %s123 = sphi 0, %s120
    %s124 = sphi 0, %s123
    %s140 = sphi 0, %s124
  $region4: #{basic_block_forward.2} parent=0 // loop_header_branch
    %12 = sbr.rel (%p10) target = $region8
  $region5: #{basic_block_forward.2} parent=0 // loop_body
    %s14 = ssub.s32 %s9, 1
    %s15 = ssub.s32 %s9, 2
    %s25 = sadd.s32 1, %s18
    %p26 = scmp.ge.s32.totalorder %s25, 1
    %s27 = scalar_select %p26, 0, %s25
    %s28 = sadd.s32 1, %s17
    %s29 = scalar_select %p26, %s28, %s17
    %p30 = scmp.ge.s32.totalorder %s29, 2
    %s31 = scalar_select %p30, 0, %s29
    %s32 = sadd.s32 1, %s16
    %s33 = scalar_select %p30, %s32, %s16
    %p34 = scmp.ge.s32.totalorder %s33, 1
    %s35 = scalar_select %p34, 0, %s33
    %s36 = ssub.s32 %s17, %s31
    %p37 = scmp.eq.s32.totalorder %s36, 0
    %s39 = sadd.s32 %s38, 1
    %s40 = scalar_select %p37, %s38, %s39
    %p43 = pneg %p37
    %p44 = scmp.eq.s32.totalorder %s9, 1
    %p45 = por %p43, %p44
    %p46 = scmp.ne.s32.totalorder %s38, %s41
    %p47 = scmp.eq.s32.totalorder %s9, 0
    %p48 = por %p46, %p47
    %p49 = scmp.ne.s32.totalorder %s38, %s41
    %p50 = scmp.eq.s32.totalorder %s14, 1
    %p51 = por %p49, %p50
    %p52 = scmp.ne.s32.totalorder %s41, %s42
    %p53 = scmp.eq.s32.totalorder %s14, 0
    %p54 = por %p52, %p53
    %p55 = scmp.ne.s32.totalorder %s41, %s42
    %p56 = scmp.eq.s32.totalorder %s15, 1
    %p57 = por %p55, %p56
    %p59 = scmp.ne.s32.totalorder %s42, %s58
    %p60 = scmp.eq.s32.totalorder %s15, 0
    %p61 = por %p59, %p60
    %s62 = ssub.s32 %s16, %s35
    %p63 = scmp.eq.s32.totalorder %s62, 0
    %s65 = sadd.s32 %s64, 1
    %s66 = scalar_select %p63, %s64, %s65
    %p69 = pneg %p63
    %p70 = scmp.eq.s32.totalorder %s9, 1
    %p71 = por %p69, %p70
    %p72 = scmp.ne.s32.totalorder %s64, %s67
    %p73 = scmp.eq.s32.totalorder %s9, 0
    %p74 = por %p72, %p73
    %p75 = scmp.ne.s32.totalorder %s64, %s67
    %p76 = scmp.eq.s32.totalorder %s14, 1
    %p77 = por %p75, %p76
    %p78 = scmp.ne.s32.totalorder %s67, %s68
    %p79 = scmp.eq.s32.totalorder %s14, 0
    %p80 = por %p78, %p79
    %p81 = scmp.ne.s32.totalorder %s67, %s68
    %p82 = scmp.eq.s32.totalorder %s15, 1
    %p83 = por %p81, %p82
    %p85 = scmp.ne.s32.totalorder %s68, %s84
    %p86 = scmp.eq.s32.totalorder %s15, 0
    %p87 = por %p85, %p86
    %s88 = ssub.s32 %s16, %s35
    %p89 = scmp.eq.s32.totalorder %s88, 0
    %s91 = sadd.s32 %s90, 1
    %s92 = scalar_select %p89, %s90, %s91
    %p95 = pneg %p89
    %p96 = scmp.eq.s32.totalorder %s9, 1
    %p97 = por %p95, %p96
    %p98 = scmp.ne.s32.totalorder %s90, %s93
    %p99 = scmp.eq.s32.totalorder %s9, 0
    %p100 = por %p98, %p99
    %p101 = scmp.ne.s32.totalorder %s90, %s93
    %p102 = scmp.eq.s32.totalorder %s14, 1
    %p103 = por %p101, %p102
    %p104 = scmp.ne.s32.totalorder %s93, %s94
    %p105 = scmp.eq.s32.totalorder %s14, 0
    %p106 = por %p104, %p105
    %p107 = scmp.ne.s32.totalorder %s93, %s94
    %p108 = scmp.eq.s32.totalorder %s15, 1
    %p109 = por %p107, %p108
    %p111 = scmp.ne.s32.totalorder %s94, %s110
    %p112 = scmp.eq.s32.totalorder %s15, 0
    %p113 = por %p111, %p112
    %s114 = ssub.s32 %s17, %s31
    %s115 = ssub.s32 %s18, %s27
    %s116 = sor.u32 %s114, %s115
    %s117 = ssub.s32 %s16, %s35
    %s118 = sor.u32 %s116, %s117
    %p119 = scmp.eq.s32.totalorder %s118, 0
    %s121 = sadd.s32 %s120, 1
    %s122 = scalar_select %p119, %s120, %s121
    %p125 = pneg %p119
    %p126 = scmp.eq.s32.totalorder %s9, 1
    %p127 = por %p125, %p126
    %p128 = scmp.ne.s32.totalorder %s120, %s123
    %p129 = scmp.eq.s32.totalorder %s9, 0
    %p130 = por %p128, %p129
    %p131 = scmp.ne.s32.totalorder %s120, %s123
    %p132 = scmp.eq.s32.totalorder %s14, 1
    %p133 = por %p131, %p132
    %p134 = scmp.ne.s32.totalorder %s123, %s124
    %p135 = scmp.eq.s32.totalorder %s14, 0
    %p136 = por %p134, %p135
    %p137 = scmp.ne.s32.totalorder %s123, %s124
    %p138 = scmp.eq.s32.totalorder %s15, 1
    %p139 = por %p137, %p138
    %p141 = scmp.ne.s32.totalorder %s124, %s140
    %p142 = scmp.eq.s32.totalorder %s15, 0
    %p143 = por %p141, %p142
    %p144 = scmp.le.s32.totalorder 1, %s9
    %p145 = scmp.lt.s32.totalorder %s9, 3
    %p146 = pnand %p144, %p145
    %p147 = pneg %p146
    // Predicated region
    $region9: #{basic_block_forward.2} parent=5 // pred_check
      _
    $region10: #{basic_block_forward.2} parent=5 // pred_check_branch
      %149 = sbr.rel (%p146) target = $region12
    $region11: #{basic_block_forward.2} parent=5 // pred_region
      %s150 = ssub.s32 %s9, 1
      // Predicated region
      $region13: #{basic_block_forward.2} parent=11 // pred_check
        %p151 = pneg %p80
      $region14: #{basic_block_forward.2} parent=11 // pred_check_branch
        %153 = sbr.rel (%p151) target = $region16
      $region15: #{basic_block_forward.2} parent=11 // pred_region
        %p154 = scmp.lt.s32.totalorder %s19, 0
        %s155 = scalar_select %p154, %s19, 0
        %s156 = smul.addr %s155, 4
        %s157 = scalar_lea.vmem %s1, %s156
      $region16: #{basic_block_forward.2} parent=11 // pred_fallthru
        _
      // Predicated region
      $region17: #{basic_block_forward.2} parent=11 // pred_check
        %p158 = pneg %p106
      $region18: #{basic_block_forward.2} parent=11 // pred_check_branch
        %160 = sbr.rel (%p158) target = $region20
      $region19: #{basic_block_forward.2} parent=11 // pred_region
        %p161 = scmp.lt.s32.totalorder %s19, 0
        %s162 = scalar_select %p161, %s19, 0
        %s163 = scalar_lea.vmem %s2, %s162
      $region20: #{basic_block_forward.2} parent=11 // pred_fallthru
        _
    $region12: #{basic_block_forward.2} parent=5 // pred_fallthru
      _
    %p164 = scmp.lt.s32.totalorder %s9, 2
    // Predicated region
    $region21: #{basic_block_forward.2} parent=5 // pred_check
      %p165 = pneg %p164
    $region22: #{basic_block_forward.2} parent=5 // pred_check_branch
      %167 = sbr.rel (%p165) target = $region24
    $region23: #{basic_block_forward.2} parent=5 // pred_region
      // Predicated region
      $region25: #{basic_block_forward.2} parent=23 // pred_check
        %p168 = pneg %p48
      $region26: #{basic_block_forward.2} parent=23 // pred_check_branch
        %170 = sbr.rel (%p168) target = $region28
      $region27: #{basic_block_forward.2} parent=23 // pred_region
        %p171 = scmp.lt.s32.totalorder %s17, 1
        %s172 = scalar_select %p171, %s17, 1
        %s173 = smul.addr %s172, 54
        %s174 = smul.addr %s173, 4
        %s175 = scalar_lea.vmem %s0, %s174
      $region28: #{basic_block_forward.2} parent=23 // pred_fallthru
        _
    $region24: #{basic_block_forward.2} parent=5 // pred_fallthru
      _
    %p176 = scmp.le.s32.totalorder 1, %s9
    %p177 = scmp.lt.s32.totalorder %s9, 3
    %p178 = pnand %p176, %p177
    %p179 = pneg %p178
    // Predicated region
    $region29: #{basic_block_forward.2} parent=5 // pred_check
      _
    $region30: #{basic_block_forward.2} parent=5 // pred_check_branch
      %181 = sbr.rel (%p178) target = $region32
    $region31: #{basic_block_forward.2} parent=5 // pred_region
      %s182 = ssub.s32 %s9, 1
      %p183 = scmp.lt.s32.totalorder %s20, 1
      %s184 = scalar_select %p183, %s20, 1
      %s185 = smul.addr %s184, 54
      %s186 = smul.addr %s185, 4
      %s187 = scalar_lea.vmem %s0, %s186
      %p188 = pneg %p54
      %p189 = pneg %p51
      %p190 = scmp.lt.s32.totalorder %s19, 0
      %s191 = scalar_select %p190, %s19, 0
      %s192 = smul.addr %s191, 4
      %s193 = scalar_lea.vmem %s1, %s192
      %p194 = pneg %p80
      %p195 = pneg %p77
      %p196 = scmp.lt.s32.totalorder %s19, 0
      %s197 = scalar_select %p196, %s19, 0
      %s198 = scalar_lea.vmem %s2, %s197
      %p199 = pneg %p106
      %p200 = pneg %p103
      %p201 = pneg %p136
      %p202 = pneg %p133
      %s203 = smul.u32 16, %s21
      %p204 = scmp.lt.s32.totalorder %s20, 1
      %s205 = scalar_select %p204, %s20, 1
      %p206 = scmp.lt.s32.totalorder %s203, 15
      %s207 = scalar_select %p206, %s203, 15
      %p208 = scmp.lt.s32.totalorder %s19, 0
      %s209 = scalar_select %p208, %s19, 0
      %s210 = smul.addr %s207, 2
      %s211 = sadd.s32 %s209, %s210
      %s212 = smul.addr %s205, 32
      %s213 = sadd.s32 %s211, %s212
      %s214 = smul.addr %s213, 4
      %s215 = scalar_lea.vmem %s3, %s214
      %p216 = scmp.lt.s32.totalorder %s20, 1
      %s217 = scalar_select %p216, %s20, 1
      %s218 = smul.addr %s217, 54
      %s219 = smul.addr %s218, 4
      %s220 = scalar_lea.vmem %s0, %s219
      %p221 = scmp.lt.s32.totalorder %s19, 0
      %s222 = scalar_select %p221, %s19, 0
      %s223 = smul.addr %s222, 4
      %s224 = scalar_lea.vmem %s1, %s223
      %p225 = scmp.lt.s32.totalorder %s19, 0
      %s226 = scalar_select %p225, %s19, 0
      %s227 = scalar_lea.vmem %s2, %s226
      %s228 = smul.u32 16, %s21
      %p229 = scmp.lt.s32.totalorder %s20, 1
      %s230 = scalar_select %p229, %s20, 1
      %p231 = scmp.lt.s32.totalorder %s228, 15
      %s232 = scalar_select %p231, %s228, 15
      %p233 = scmp.lt.s32.totalorder %s19, 0
      %s234 = scalar_select %p233, %s19, 0
      %s235 = smul.addr %s232, 2
      %s236 = sadd.s32 %s234, %s235
      %s237 = smul.addr %s230, 32
      %s238 = sadd.s32 %s236, %s237
      %s239 = smul.addr %s238, 4
      %s240 = scalar_lea.vmem %s3, %s239
      %s241 = smul.u32 16, %s21
      %s243 = smul.u32 %s21, 16
      %s244 = smul.u32 %s243, 3
      %s245 = smul.addr %s244, 4
      %s246 = scalar_lea.vmem %s220, %s245
      %v247 = vld [vmem:[%s246] sm:$0xf]
      %v248 = vld [vmem:[%s246 + $0x4] sm:$0xf]
      %v249 = vld [vmem:[%s246 + $0xc] sm:$0xf]
      %v250 = vld [vmem:[%s246 + $0x10] sm:$0xf]
      %v251 = vld [vmem:[%s246 + $0x18] sm:$0xf]
      %v252 = vld [vmem:[%s246 + $0x1c] sm:$0xf]
      %v253 = vld [vmem:[%s246 + $0x24] sm:$0xf]
      %v254 = vld [vmem:[%s246 + $0x28] sm:$0xf]
      %v255 = vld [vmem:[%s246 + $0x30] sm:$0xf]
      %v256 = vld [vmem:[%s246 + $0x34] sm:$0xf]
      %v257 = vld [vmem:[%s246 + $0x3c] sm:$0xf]
      %v258 = vld [vmem:[%s246 + $0x40] sm:$0xf]
      %v259 = vld [vmem:[%s246 + $0x48] sm:$0xf]
      %v260 = vld [vmem:[%s246 + $0x4c] sm:$0xf]
      %v261 = vld [vmem:[%s246 + $0x54] sm:$0xf]
      %v262 = vld [vmem:[%s246 + $0x58] sm:$0xf]
      %v263 = vld [vmem:[%s246 + $0x60] sm:$0xf]
      %v264 = vld [vmem:[%s246 + $0x64] sm:$0xf]
      %v265 = vld [vmem:[%s246 + $0x6c] sm:$0xf]
      %v266 = vld [vmem:[%s246 + $0x70] sm:$0xf]
      %v267 = vld [vmem:[%s246 + $0x78] sm:$0xf]
      %v268 = vld [vmem:[%s246 + $0x7c] sm:$0xf]
      %v269 = vld [vmem:[%s246 + $0x84] sm:$0xf]
      %v270 = vld [vmem:[%s246 + $0x88] sm:$0xf]
      %v271 = vld [vmem:[%s246 + $0x90] sm:$0xf]
      %v272 = vld [vmem:[%s246 + $0x94] sm:$0xf]
      %v273 = vld [vmem:[%s246 + $0x9c] sm:$0xf]
      %v274 = vld [vmem:[%s246 + $0xa0] sm:$0xf]
      %v275 = vld [vmem:[%s246 + $0xa8] sm:$0xf]
      %v276 = vld [vmem:[%s246 + $0xac] sm:$0xf]
      %v277 = vld [vmem:[%s246 + $0xb4] sm:$0xf]
      %v278 = vld [vmem:[%s246 + $0xb8] sm:$0xf]
      %v311 = vunpack.c.l.b16 %v247
      %v312 = vunpack.c.l.b16 %v248
      %v313 = vunpack.c.l.b16 %v249
      %v314 = vunpack.c.l.b16 %v250
      %v315 = vunpack.c.l.b16 %v251
      %v316 = vunpack.c.l.b16 %v252
      %v317 = vunpack.c.l.b16 %v253
      %v318 = vunpack.c.l.b16 %v254
      %v319 = vunpack.c.l.b16 %v255
      %v320 = vunpack.c.l.b16 %v256
      %v321 = vunpack.c.l.b16 %v257
      %v322 = vunpack.c.l.b16 %v258
      %v323 = vunpack.c.l.b16 %v259
      %v324 = vunpack.c.l.b16 %v260
      %v325 = vunpack.c.l.b16 %v261
      %v326 = vunpack.c.l.b16 %v262
      %v327 = vunpack.c.l.b16 %v263
      %v328 = vunpack.c.l.b16 %v264
      %v329 = vunpack.c.l.b16 %v265
      %v330 = vunpack.c.l.b16 %v266
      %v331 = vunpack.c.l.b16 %v267
      %v332 = vunpack.c.l.b16 %v268
      %v333 = vunpack.c.l.b16 %v269
      %v334 = vunpack.c.l.b16 %v270
      %v335 = vunpack.c.l.b16 %v271
      %v336 = vunpack.c.l.b16 %v272
      %v337 = vunpack.c.l.b16 %v273
      %v338 = vunpack.c.l.b16 %v274
      %v339 = vunpack.c.l.b16 %v275
      %v340 = vunpack.c.l.b16 %v276
      %v341 = vunpack.c.l.b16 %v277
      %v342 = vunpack.c.l.b16 %v278
      %v343 = vpack.c.b16 %v312, %v311
      %v344 = vpack.c.b16 %v314, %v313
      %v345 = vpack.c.b16 %v316, %v315
      %v346 = vpack.c.b16 %v318, %v317
      %v347 = vpack.c.b16 %v320, %v319
      %v348 = vpack.c.b16 %v322, %v321
      %v349 = vpack.c.b16 %v324, %v323
      %v350 = vpack.c.b16 %v326, %v325
      %v351 = vpack.c.b16 %v328, %v327
      %v352 = vpack.c.b16 %v330, %v329
      %v353 = vpack.c.b16 %v332, %v331
      %v354 = vpack.c.b16 %v334, %v333
      %v355 = vpack.c.b16 %v336, %v335
      %v356 = vpack.c.b16 %v338, %v337
      %v357 = vpack.c.b16 %v340, %v339
      %v358 = vpack.c.b16 %v342, %v341
      %375 = vst [vmem:[#allocation2] sm:$0xff] %v343
      %376 = vst [vmem:[#allocation2 + $0x48] sm:$0xff] %v344
      %377 = vst [vmem:[#allocation2 + $0x90] sm:$0xff] %v345
      %378 = vst [vmem:[#allocation2 + $0xd8] sm:$0xff] %v346
      %379 = vst [vmem:[#allocation2 + $0x120] sm:$0xff] %v347
      %380 = vst [vmem:[#allocation2 + $0x168] sm:$0xff] %v348
      %381 = vst [vmem:[#allocation2 + $0x1b0] sm:$0xff] %v349
      %382 = vst [vmem:[#allocation2 + $0x1f8] sm:$0xff] %v350
      %383 = vst [vmem:[#allocation2 + $0x240] sm:$0xff] %v351
      %384 = vst [vmem:[#allocation2 + $0x288] sm:$0xff] %v352
      %385 = vst [vmem:[#allocation2 + $0x2d0] sm:$0xff] %v353
      %386 = vst [vmem:[#allocation2 + $0x318] sm:$0xff] %v354
      %387 = vst [vmem:[#allocation2 + $0x360] sm:$0xff] %v355
      %388 = vst [vmem:[#allocation2 + $0x3a8] sm:$0xff] %v356
      %389 = vst [vmem:[#allocation2 + $0x3f0] sm:$0xff] %v357
      %390 = vst [vmem:[#allocation2 + $0x438] sm:$0xff] %v358
      %v391 = vld [vmem:[%s246] sm:$0xf]
      %v392 = vld [vmem:[%s246 + $0x4] sm:$0xf]
      %v393 = vld [vmem:[%s246 + $0x8] sm:$0x1]
      %v394 = vld [vmem:[%s246 + $0xc] sm:$0xf]
      %v395 = vld [vmem:[%s246 + $0x10] sm:$0xf]
      %v396 = vld [vmem:[%s246 + $0x14] sm:$0x1]
      %v397 = vld [vmem:[%s246 + $0x18] sm:$0xf]
      %v398 = vld [vmem:[%s246 + $0x1c] sm:$0xf]
      %v399 = vld [vmem:[%s246 + $0x20] sm:$0x1]
      %v400 = vld [vmem:[%s246 + $0x24] sm:$0xf]
      %v401 = vld [vmem:[%s246 + $0x28] sm:$0xf]
      %v402 = vld [vmem:[%s246 + $0x2c] sm:$0x1]
      %v403 = vld [vmem:[%s246 + $0x30] sm:$0xf]
      %v404 = vld [vmem:[%s246 + $0x34] sm:$0xf]
      %v405 = vld [vmem:[%s246 + $0x38] sm:$0x1]
      %v406 = vld [vmem:[%s246 + $0x3c] sm:$0xf]
      %v407 = vld [vmem:[%s246 + $0x40] sm:$0xf]
      %v408 = vld [vmem:[%s246 + $0x44] sm:$0x1]
      %v409 = vld [vmem:[%s246 + $0x48] sm:$0xf]
      %v410 = vld [vmem:[%s246 + $0x4c] sm:$0xf]
      %v411 = vld [vmem:[%s246 + $0x50] sm:$0x1]
      %v412 = vld [vmem:[%s246 + $0x54] sm:$0xf]
      %v413 = vld [vmem:[%s246 + $0x58] sm:$0xf]
      %v414 = vld [vmem:[%s246 + $0x5c] sm:$0x1]
      %v415 = vld [vmem:[%s246 + $0x60] sm:$0xf]
      %v416 = vld [vmem:[%s246 + $0x64] sm:$0xf]
      %v417 = vld [vmem:[%s246 + $0x68] sm:$0x1]
      %v418 = vld [vmem:[%s246 + $0x6c] sm:$0xf]
      %v419 = vld [vmem:[%s246 + $0x70] sm:$0xf]
      %v420 = vld [vmem:[%s246 + $0x74] sm:$0x1]
      %v421 = vld [vmem:[%s246 + $0x78] sm:$0xf]
      %v422 = vld [vmem:[%s246 + $0x7c] sm:$0xf]
      %v423 = vld [vmem:[%s246 + $0x80] sm:$0x1]
      %v424 = vld [vmem:[%s246 + $0x84] sm:$0xf]
      %v425 = vld [vmem:[%s246 + $0x88] sm:$0xf]
      %v426 = vld [vmem:[%s246 + $0x8c] sm:$0x1]
      %v427 = vld [vmem:[%s246 + $0x90] sm:$0xf]
      %v428 = vld [vmem:[%s246 + $0x94] sm:$0xf]
      %v429 = vld [vmem:[%s246 + $0x98] sm:$0x1]
      %v430 = vld [vmem:[%s246 + $0x9c] sm:$0xf]
      %v431 = vld [vmem:[%s246 + $0xa0] sm:$0xf]
      %v432 = vld [vmem:[%s246 + $0xa4] sm:$0x1]
      %v433 = vld [vmem:[%s246 + $0xa8] sm:$0xf]
      %v434 = vld [vmem:[%s246 + $0xac] sm:$0xf]
      %v435 = vld [vmem:[%s246 + $0xb0] sm:$0x1]
      %v436 = vld [vmem:[%s246 + $0xb4] sm:$0xf]
      %v437 = vld [vmem:[%s246 + $0xb8] sm:$0xf]
      %v438 = vld [vmem:[%s246 + $0xbc] sm:$0x1]
      %vm439 = vsmask.f32 3328
      %vm440 = vsmask.f32 7440
      %vm441 = vmor %vm439, %vm440
      %v443 = vshrl.u32 %v391, 16
      %v445 = vrot.slane %v443, 4
      %v446 = vshll.u32 %v391, 16
      %v448 = vrot.slane %v446, 5
      %v449 = vor.u32 %v445, %v448
      %v450 = vrot.slane %v449, 4
      %v452 = vshll.u32 %v392, 16
      %v454 = vrot.slane %v452, 5
      %v455 = vsel %vm441, %v450, %v454
      %v456 = vshrl.u32 %v392, 16
      %v458 = vrot.slane %v456, 4
      %v459 = vor.u32 %v458, %v454
      %v460 = vrot.slane %v459, 4
      %v462 = vshll.u32 %v393, 16
      %v464 = vrot.slane %v462, 5
      %v465 = vsel %vm441, %v460, %v464
      %v467 = vshrl.u32 %v394, 16
      %v469 = vrot.slane %v467, 4
      %v470 = vshll.u32 %v394, 16
      %v472 = vrot.slane %v470, 5
      %v473 = vor.u32 %v469, %v472
      %v474 = vrot.slane %v473, 4
      %v476 = vshll.u32 %v395, 16
      %v478 = vrot.slane %v476, 5
      %v479 = vsel %vm441, %v474, %v478
      %v480 = vshrl.u32 %v395, 16
      %v482 = vrot.slane %v480, 4
      %v483 = vor.u32 %v482, %v478
      %v484 = vrot.slane %v483, 4
      %v486 = vshll.u32 %v396, 16
      %v488 = vrot.slane %v486, 5
      %v489 = vsel %vm441, %v484, %v488
      %v491 = vshrl.u32 %v397, 16
      %v493 = vrot.slane %v491, 4
      %v494 = vshll.u32 %v397, 16
      %v496 = vrot.slane %v494, 5
      %v497 = vor.u32 %v493, %v496
      %v498 = vrot.slane %v497, 4
      %v500 = vshll.u32 %v398, 16
      %v502 = vrot.slane %v500, 5
      %v503 = vsel %vm441, %v498, %v502
      %v504 = vshrl.u32 %v398, 16
      %v506 = vrot.slane %v504, 4
      %v507 = vor.u32 %v506, %v502
      %v508 = vrot.slane %v507, 4
      %v510 = vshll.u32 %v399, 16
      %v512 = vrot.slane %v510, 5
      %v513 = vsel %vm441, %v508, %v512
      %v515 = vshrl.u32 %v400, 16
      %v517 = vrot.slane %v515, 4
      %v518 = vshll.u32 %v400, 16
      %v520 = vrot.slane %v518, 5
      %v521 = vor.u32 %v517, %v520
      %v522 = vrot.slane %v521, 4
      %v524 = vshll.u32 %v401, 16
      %v526 = vrot.slane %v524, 5
      %v527 = vsel %vm441, %v522, %v526
      %v528 = vshrl.u32 %v401, 16
      %v530 = vrot.slane %v528, 4
      %v531 = vor.u32 %v530, %v526
      %v532 = vrot.slane %v531, 4
      %v534 = vshll.u32 %v402, 16
      %v536 = vrot.slane %v534, 5
      %v537 = vsel %vm441, %v532, %v536
      %v539 = vshrl.u32 %v403, 16
      %v541 = vrot.slane %v539, 4
      %v542 = vshll.u32 %v403, 16
      %v544 = vrot.slane %v542, 5
      %v545 = vor.u32 %v541, %v544
      %v546 = vrot.slane %v545, 4
      %v548 = vshll.u32 %v404, 16
      %v550 = vrot.slane %v548, 5
      %v551 = vsel %vm441, %v546, %v550
      %v552 = vshrl.u32 %v404, 16
      %v554 = vrot.slane %v552, 4
      %v555 = vor.u32 %v554, %v550
      %v556 = vrot.slane %v555, 4
      %v558 = vshll.u32 %v405, 16
      %v560 = vrot.slane %v558, 5
      %v561 = vsel %vm441, %v556, %v560
      %v563 = vshrl.u32 %v406, 16
      %v565 = vrot.slane %v563, 4
      %v566 = vshll.u32 %v406, 16
      %v568 = vrot.slane %v566, 5
      %v569 = vor.u32 %v565, %v568
      %v570 = vrot.slane %v569, 4
      %v572 = vshll.u32 %v407, 16
      %v574 = vrot.slane %v572, 5
      %v575 = vsel %vm441, %v570, %v574
      %v576 = vshrl.u32 %v407, 16
      %v578 = vrot.slane %v576, 4
      %v579 = vor.u32 %v578, %v574
      %v580 = vrot.slane %v579, 4
      %v582 = vshll.u32 %v408, 16
      %v584 = vrot.slane %v582, 5
      %v585 = vsel %vm441, %v580, %v584
      %v587 = vshrl.u32 %v409, 16
      %v589 = vrot.slane %v587, 4
      %v590 = vshll.u32 %v409, 16
      %v592 = vrot.slane %v590, 5
      %v593 = vor.u32 %v589, %v592
      %v594 = vrot.slane %v593, 4
      %v596 = vshll.u32 %v410, 16
      %v598 = vrot.slane %v596, 5
      %v599 = vsel %vm441, %v594, %v598
      %v600 = vshrl.u32 %v410, 16
      %v602 = vrot.slane %v600, 4
      %v603 = vor.u32 %v602, %v598
      %v604 = vrot.slane %v603, 4
      %v606 = vshll.u32 %v411, 16
      %v608 = vrot.slane %v606, 5
      %v609 = vsel %vm441, %v604, %v608
      %v611 = vshrl.u32 %v412, 16
      %v613 = vrot.slane %v611, 4
      %v614 = vshll.u32 %v412, 16
      %v616 = vrot.slane %v614, 5
      %v617 = vor.u32 %v613, %v616
      %v618 = vrot.slane %v617, 4
      %v620 = vshll.u32 %v413, 16
      %v622 = vrot.slane %v620, 5
      %v623 = vsel %vm441, %v618, %v622
      %v624 = vshrl.u32 %v413, 16
      %v626 = vrot.slane %v624, 4
      %v627 = vor.u32 %v626, %v622
      %v628 = vrot.slane %v627, 4
      %v630 = vshll.u32 %v414, 16
      %v632 = vrot.slane %v630, 5
      %v633 = vsel %vm441, %v628, %v632
      %v635 = vshrl.u32 %v415, 16
      %v637 = vrot.slane %v635, 4
      %v638 = vshll.u32 %v415, 16
      %v640 = vrot.slane %v638, 5
      %v641 = vor.u32 %v637, %v640
      %v642 = vrot.slane %v641, 4
      %v644 = vshll.u32 %v416, 16
      %v646 = vrot.slane %v644, 5
      %v647 = vsel %vm441, %v642, %v646
      %v648 = vshrl.u32 %v416, 16
      %v650 = vrot.slane %v648, 4
      %v651 = vor.u32 %v650, %v646
      %v652 = vrot.slane %v651, 4
      %v654 = vshll.u32 %v417, 16
      %v656 = vrot.slane %v654, 5
      %v657 = vsel %vm441, %v652, %v656
      %v659 = vshrl.u32 %v418, 16
      %v661 = vrot.slane %v659, 4
      %v662 = vshll.u32 %v418, 16
      %v664 = vrot.slane %v662, 5
      %v665 = vor.u32 %v661, %v664
      %v666 = vrot.slane %v665, 4
      %v668 = vshll.u32 %v419, 16
      %v670 = vrot.slane %v668, 5
      %v671 = vsel %vm441, %v666, %v670
      %v672 = vshrl.u32 %v419, 16
      %v674 = vrot.slane %v672, 4
      %v675 = vor.u32 %v674, %v670
      %v676 = vrot.slane %v675, 4
      %v678 = vshll.u32 %v420, 16
      %v680 = vrot.slane %v678, 5
      %v681 = vsel %vm441, %v676, %v680
      %v683 = vshrl.u32 %v421, 16
      %v685 = vrot.slane %v683, 4
      %v686 = vshll.u32 %v421, 16
      %v688 = vrot.slane %v686, 5
      %v689 = vor.u32 %v685, %v688
      %v690 = vrot.slane %v689, 4
      %v692 = vshll.u32 %v422, 16
      %v694 = vrot.slane %v692, 5
      %v695 = vsel %vm441, %v690, %v694
      %v696 = vshrl.u32 %v422, 16
      %v698 = vrot.slane %v696, 4
      %v699 = vor.u32 %v698, %v694
      %v700 = vrot.slane %v699, 4
      %v702 = vshll.u32 %v423, 16
      %v704 = vrot.slane %v702, 5
      %v705 = vsel %vm441, %v700, %v704
      %v707 = vshrl.u32 %v424, 16
      %v709 = vrot.slane %v707, 4
      %v710 = vshll.u32 %v424, 16
      %v712 = vrot.slane %v710, 5
      %v713 = vor.u32 %v709, %v712
      %v714 = vrot.slane %v713, 4
      %v716 = vshll.u32 %v425, 16
      %v718 = vrot.slane %v716, 5
      %v719 = vsel %vm441, %v714, %v718
      %v720 = vshrl.u32 %v425, 16
      %v722 = vrot.slane %v720, 4
      %v723 = vor.u32 %v722, %v718
      %v724 = vrot.slane %v723, 4
      %v726 = vshll.u32 %v426, 16
      %v728 = vrot.slane %v726, 5
      %v729 = vsel %vm441, %v724, %v728
      %v731 = vshrl.u32 %v427, 16
      %v733 = vrot.slane %v731, 4
      %v734 = vshll.u32 %v427, 16
      %v736 = vrot.slane %v734, 5
      %v737 = vor.u32 %v733, %v736
      %v738 = vrot.slane %v737, 4
      %v740 = vshll.u32 %v428, 16
      %v742 = vrot.slane %v740, 5
      %v743 = vsel %vm441, %v738, %v742
      %v744 = vshrl.u32 %v428, 16
      %v746 = vrot.slane %v744, 4
      %v747 = vor.u32 %v746, %v742
      %v748 = vrot.slane %v747, 4
      %v750 = vshll.u32 %v429, 16
      %v752 = vrot.slane %v750, 5
      %v753 = vsel %vm441, %v748, %v752
      %v755 = vshrl.u32 %v430, 16
      %v757 = vrot.slane %v755, 4
      %v758 = vshll.u32 %v430, 16
      %v760 = vrot.slane %v758, 5
      %v761 = vor.u32 %v757, %v760
      %v762 = vrot.slane %v761, 4
      %v764 = vshll.u32 %v431, 16
      %v766 = vrot.slane %v764, 5
      %v767 = vsel %vm441, %v762, %v766
      %v768 = vshrl.u32 %v431, 16
      %v770 = vrot.slane %v768, 4
      %v771 = vor.u32 %v770, %v766
      %v772 = vrot.slane %v771, 4
      %v774 = vshll.u32 %v432, 16
      %v776 = vrot.slane %v774, 5
      %v777 = vsel %vm441, %v772, %v776
      %v779 = vshrl.u32 %v433, 16
      %v781 = vrot.slane %v779, 4
      %v782 = vshll.u32 %v433, 16
      %v784 = vrot.slane %v782, 5
      %v785 = vor.u32 %v781, %v784
      %v786 = vrot.slane %v785, 4
      %v788 = vshll.u32 %v434, 16
      %v790 = vrot.slane %v788, 5
      %v791 = vsel %vm441, %v786, %v790
      %v792 = vshrl.u32 %v434, 16
      %v794 = vrot.slane %v792, 4
      %v795 = vor.u32 %v794, %v790
      %v796 = vrot.slane %v795, 4
      %v798 = vshll.u32 %v435, 16
      %v800 = vrot.slane %v798, 5
      %v801 = vsel %vm441, %v796, %v800
      %v803 = vshrl.u32 %v436, 16
      %v805 = vrot.slane %v803, 4
      %v806 = vshll.u32 %v436, 16
      %v808 = vrot.slane %v806, 5
      %v809 = vor.u32 %v805, %v808
      %v810 = vrot.slane %v809, 4
      %v812 = vshll.u32 %v437, 16
      %v814 = vrot.slane %v812, 5
      %v815 = vsel %vm441, %v810, %v814
      %v816 = vshrl.u32 %v437, 16
      %v818 = vrot.slane %v816, 4
      %v819 = vor.u32 %v818, %v814
      %v820 = vrot.slane %v819, 4
      %v822 = vshll.u32 %v438, 16
      %v824 = vrot.slane %v822, 5
      %v825 = vsel %vm441, %v820, %v824
      %v826 = vunpack.c.l.b16 %v455
      %v827 = vunpack.c.l.b16 %v465
      %v828 = vunpack.c.l.b16 %v479
      %v829 = vunpack.c.l.b16 %v489
      %v830 = vunpack.c.l.b16 %v503
      %v831 = vunpack.c.l.b16 %v513
      %v832 = vunpack.c.l.b16 %v527
      %v833 = vunpack.c.l.b16 %v537
      %v834 = vunpack.c.l.b16 %v551
      %v835 = vunpack.c.l.b16 %v561
      %v836 = vunpack.c.l.b16 %v575
      %v837 = vunpack.c.l.b16 %v585
      %v838 = vunpack.c.l.b16 %v599
      %v839 = vunpack.c.l.b16 %v609
      %v840 = vunpack.c.l.b16 %v623
      %v841 = vunpack.c.l.b16 %v633
      %v842 = vunpack.c.l.b16 %v647
      %v843 = vunpack.c.l.b16 %v657
      %v844 = vunpack.c.l.b16 %v671
      %v845 = vunpack.c.l.b16 %v681
      %v846 = vunpack.c.l.b16 %v695
      %v847 = vunpack.c.l.b16 %v705
      %v848 = vunpack.c.l.b16 %v719
      %v849 = vunpack.c.l.b16 %v729
      %v850 = vunpack.c.l.b16 %v743
      %v851 = vunpack.c.l.b16 %v753
      %v852 = vunpack.c.l.b16 %v767
      %v853 = vunpack.c.l.b16 %v777
      %v854 = vunpack.c.l.b16 %v791
      %v855 = vunpack.c.l.b16 %v801
      %v856 = vunpack.c.l.b16 %v815
      %v857 = vunpack.c.l.b16 %v825
      %v858 = vpack.c.b16 %v827, %v826
      %v859 = vpack.c.b16 %v829, %v828
      %v860 = vpack.c.b16 %v831, %v830
      %v861 = vpack.c.b16 %v833, %v832
      %v862 = vpack.c.b16 %v835, %v834
      %v863 = vpack.c.b16 %v837, %v836
      %v864 = vpack.c.b16 %v839, %v838
      %v865 = vpack.c.b16 %v841, %v840
      %v866 = vpack.c.b16 %v843, %v842
      %v867 = vpack.c.b16 %v845, %v844
      %v868 = vpack.c.b16 %v847, %v846
      %v869 = vpack.c.b16 %v849, %v848
      %v870 = vpack.c.b16 %v851, %v850
      %v871 = vpack.c.b16 %v853, %v852
      %v872 = vpack.c.b16 %v855, %v854
      %v873 = vpack.c.b16 %v857, %v856
      %890 = vst [vmem:[#allocation2 + $0x8] sm:$0xff] %v858
      %891 = vst [vmem:[#allocation2 + $0x50] sm:$0xff] %v859
      %892 = vst [vmem:[#allocation2 + $0x98] sm:$0xff] %v860
      %893 = vst [vmem:[#allocation2 + $0xe0] sm:$0xff] %v861
      %894 = vst [vmem:[#allocation2 + $0x128] sm:$0xff] %v862
      %895 = vst [vmem:[#allocation2 + $0x170] sm:$0xff] %v863
      %896 = vst [vmem:[#allocation2 + $0x1b8] sm:$0xff] %v864
      %897 = vst [vmem:[#allocation2 + $0x200] sm:$0xff] %v865
      %898 = vst [vmem:[#allocation2 + $0x248] sm:$0xff] %v866
      %899 = vst [vmem:[#allocation2 + $0x290] sm:$0xff] %v867
      %900 = vst [vmem:[#allocation2 + $0x2d8] sm:$0xff] %v868
      %901 = vst [vmem:[#allocation2 + $0x320] sm:$0xff] %v869
      %902 = vst [vmem:[#allocation2 + $0x368] sm:$0xff] %v870
      %903 = vst [vmem:[#allocation2 + $0x3b0] sm:$0xff] %v871
      %904 = vst [vmem:[#allocation2 + $0x3f8] sm:$0xff] %v872
      %905 = vst [vmem:[#allocation2 + $0x440] sm:$0xff] %v873
      %v906 = vld [vmem:[%s246] sm:$0xe]
      %v907 = vld [vmem:[%s246 + $0x4] sm:$0xf]
      %v908 = vld [vmem:[%s246 + $0x8] sm:$0x1]
      %v909 = vld [vmem:[%s246 + $0xc] sm:$0xe]
      %v910 = vld [vmem:[%s246 + $0x10] sm:$0xf]
      %v911 = vld [vmem:[%s246 + $0x14] sm:$0x1]
      %v912 = vld [vmem:[%s246 + $0x18] sm:$0xe]
      %v913 = vld [vmem:[%s246 + $0x1c] sm:$0xf]
      %v914 = vld [vmem:[%s246 + $0x20] sm:$0x1]
      %v915 = vld [vmem:[%s246 + $0x24] sm:$0xe]
      %v916 = vld [vmem:[%s246 + $0x28] sm:$0xf]
      %v917 = vld [vmem:[%s246 + $0x2c] sm:$0x1]
      %v918 = vld [vmem:[%s246 + $0x30] sm:$0xe]
      %v919 = vld [vmem:[%s246 + $0x34] sm:$0xf]
      %v920 = vld [vmem:[%s246 + $0x38] sm:$0x1]
      %v921 = vld [vmem:[%s246 + $0x3c] sm:$0xe]
      %v922 = vld [vmem:[%s246 + $0x40] sm:$0xf]
      %v923 = vld [vmem:[%s246 + $0x44] sm:$0x1]
      %v924 = vld [vmem:[%s246 + $0x48] sm:$0xe]
      %v925 = vld [vmem:[%s246 + $0x4c] sm:$0xf]
      %v926 = vld [vmem:[%s246 + $0x50] sm:$0x1]
      %v927 = vld [vmem:[%s246 + $0x54] sm:$0xe]
      %v928 = vld [vmem:[%s246 + $0x58] sm:$0xf]
      %v929 = vld [vmem:[%s246 + $0x5c] sm:$0x1]
      %v930 = vld [vmem:[%s246 + $0x60] sm:$0xe]
      %v931 = vld [vmem:[%s246 + $0x64] sm:$0xf]
      %v932 = vld [vmem:[%s246 + $0x68] sm:$0x1]
      %v933 = vld [vmem:[%s246 + $0x6c] sm:$0xe]
      %v934 = vld [vmem:[%s246 + $0x70] sm:$0xf]
      %v935 = vld [vmem:[%s246 + $0x74] sm:$0x1]
      %v936 = vld [vmem:[%s246 + $0x78] sm:$0xe]
      %v937 = vld [vmem:[%s246 + $0x7c] sm:$0xf]
      %v938 = vld [vmem:[%s246 + $0x80] sm:$0x1]
      %v939 = vld [vmem:[%s246 + $0x84] sm:$0xe]
      %v940 = vld [vmem:[%s246 + $0x88] sm:$0xf]
      %v941 = vld [vmem:[%s246 + $0x8c] sm:$0x1]
      %v942 = vld [vmem:[%s246 + $0x90] sm:$0xe]
      %v943 = vld [vmem:[%s246 + $0x94] sm:$0xf]
      %v944 = vld [vmem:[%s246 + $0x98] sm:$0x1]
      %v945 = vld [vmem:[%s246 + $0x9c] sm:$0xe]
      %v946 = vld [vmem:[%s246 + $0xa0] sm:$0xf]
      %v947 = vld [vmem:[%s246 + $0xa4] sm:$0x1]
      %v948 = vld [vmem:[%s246 + $0xa8] sm:$0xe]
      %v949 = vld [vmem:[%s246 + $0xac] sm:$0xf]
      %v950 = vld [vmem:[%s246 + $0xb0] sm:$0x1]
      %v951 = vld [vmem:[%s246 + $0xb4] sm:$0xe]
      %v952 = vld [vmem:[%s246 + $0xb8] sm:$0xf]
      %v953 = vld [vmem:[%s246 + $0xbc] sm:$0x1]
      %vm1002 = vcmask 1042432
      %vm1003 = vcmask 1046532
      %vm1004 = vmor %vm1002, %vm1003
      %v1005 = vrot.slane %v906, 5
      %v1006 = vrot.slane %v1005, 4
      %v1007 = vrot.slane %v907, 5
      %v1008 = vsel %vm1004, %v1006, %v1007
      %v1009 = vrot.slane %v1007, 4
      %v1010 = vrot.slane %v908, 5
      %v1011 = vsel %vm1004, %v1009, %v1010
      %v1012 = vrot.slane %v909, 5
      %v1013 = vrot.slane %v1012, 4
      %v1014 = vrot.slane %v910, 5
      %v1015 = vsel %vm1004, %v1013, %v1014
      %v1016 = vrot.slane %v1014, 4
      %v1017 = vrot.slane %v911, 5
      %v1018 = vsel %vm1004, %v1016, %v1017
      %v1019 = vrot.slane %v912, 5
      %v1020 = vrot.slane %v1019, 4
      %v1021 = vrot.slane %v913, 5
      %v1022 = vsel %vm1004, %v1020, %v1021
      %v1023 = vrot.slane %v1021, 4
      %v1024 = vrot.slane %v914, 5
      %v1025 = vsel %vm1004, %v1023, %v1024
      %v1026 = vrot.slane %v915, 5
      %v1027 = vrot.slane %v1026, 4
      %v1028 = vrot.slane %v916, 5
      %v1029 = vsel %vm1004, %v1027, %v1028
      %v1030 = vrot.slane %v1028, 4
      %v1031 = vrot.slane %v917, 5
      %v1032 = vsel %vm1004, %v1030, %v1031
      %v1033 = vrot.slane %v918, 5
      %v1034 = vrot.slane %v1033, 4
      %v1035 = vrot.slane %v919, 5
      %v1036 = vsel %vm1004, %v1034, %v1035
      %v1037 = vrot.slane %v1035, 4
      %v1038 = vrot.slane %v920, 5
      %v1039 = vsel %vm1004, %v1037, %v1038
      %v1040 = vrot.slane %v921, 5
      %v1041 = vrot.slane %v1040, 4
      %v1042 = vrot.slane %v922, 5
      %v1043 = vsel %vm1004, %v1041, %v1042
      %v1044 = vrot.slane %v1042, 4
      %v1045 = vrot.slane %v923, 5
      %v1046 = vsel %vm1004, %v1044, %v1045
      %v1047 = vrot.slane %v924, 5
      %v1048 = vrot.slane %v1047, 4
      %v1049 = vrot.slane %v925, 5
      %v1050 = vsel %vm1004, %v1048, %v1049
      %v1051 = vrot.slane %v1049, 4
      %v1052 = vrot.slane %v926, 5
      %v1053 = vsel %vm1004, %v1051, %v1052
      %v1054 = vrot.slane %v927, 5
      %v1055 = vrot.slane %v1054, 4
      %v1056 = vrot.slane %v928, 5
      %v1057 = vsel %vm1004, %v1055, %v1056
      %v1058 = vrot.slane %v1056, 4
      %v1059 = vrot.slane %v929, 5
      %v1060 = vsel %vm1004, %v1058, %v1059
      %v1061 = vrot.slane %v930, 5
      %v1062 = vrot.slane %v1061, 4
      %v1063 = vrot.slane %v931, 5
      %v1064 = vsel %vm1004, %v1062, %v1063
      %v1065 = vrot.slane %v1063, 4
      %v1066 = vrot.slane %v932, 5
      %v1067 = vsel %vm1004, %v1065, %v1066
      %v1068 = vrot.slane %v933, 5
      %v1069 = vrot.slane %v1068, 4
      %v1070 = vrot.slane %v934, 5
      %v1071 = vsel %vm1004, %v1069, %v1070
      %v1072 = vrot.slane %v1070, 4
      %v1073 = vrot.slane %v935, 5
      %v1074 = vsel %vm1004, %v1072, %v1073
      %v1075 = vrot.slane %v936, 5
      %v1076 = vrot.slane %v1075, 4
      %v1077 = vrot.slane %v937, 5
      %v1078 = vsel %vm1004, %v1076, %v1077
      %v1079 = vrot.slane %v1077, 4
      %v1080 = vrot.slane %v938, 5
      %v1081 = vsel %vm1004, %v1079, %v1080
      %v1082 = vrot.slane %v939, 5
      %v1083 = vrot.slane %v1082, 4
      %v1084 = vrot.slane %v940, 5
      %v1085 = vsel %vm1004, %v1083, %v1084
      %v1086 = vrot.slane %v1084, 4
      %v1087 = vrot.slane %v941, 5
      %v1088 = vsel %vm1004, %v1086, %v1087
      %v1089 = vrot.slane %v942, 5
      %v1090 = vrot.slane %v1089, 4
      %v1091 = vrot.slane %v943, 5
      %v1092 = vsel %vm1004, %v1090, %v1091
      %v1093 = vrot.slane %v1091, 4
      %v1094 = vrot.slane %v944, 5
      %v1095 = vsel %vm1004, %v1093, %v1094
      %v1096 = vrot.slane %v945, 5
      %v1097 = vrot.slane %v1096, 4
      %v1098 = vrot.slane %v946, 5
      %v1099 = vsel %vm1004, %v1097, %v1098
      %v1100 = vrot.slane %v1098, 4
      %v1101 = vrot.slane %v947, 5
      %v1102 = vsel %vm1004, %v1100, %v1101
      %v1103 = vrot.slane %v948, 5
      %v1104 = vrot.slane %v1103, 4
      %v1105 = vrot.slane %v949, 5
      %v1106 = vsel %vm1004, %v1104, %v1105
      %v1107 = vrot.slane %v1105, 4
      %v1108 = vrot.slane %v950, 5
      %v1109 = vsel %vm1004, %v1107, %v1108
      %v1110 = vrot.slane %v951, 5
      %v1111 = vrot.slane %v1110, 4
      %v1112 = vrot.slane %v952, 5
      %v1113 = vsel %vm1004, %v1111, %v1112
      %v1114 = vrot.slane %v1112, 4
      %v1115 = vrot.slane %v953, 5
      %v1116 = vsel %vm1004, %v1114, %v1115
      %v1117 = vunpack.c.l.b16 %v1008
      %v1118 = vunpack.c.l.b16 %v1011
      %v1119 = vunpack.c.l.b16 %v1015
      %v1120 = vunpack.c.l.b16 %v1018
      %v1121 = vunpack.c.l.b16 %v1022
      %v1122 = vunpack.c.l.b16 %v1025
      %v1123 = vunpack.c.l.b16 %v1029
      %v1124 = vunpack.c.l.b16 %v1032
      %v1125 = vunpack.c.l.b16 %v1036
      %v1126 = vunpack.c.l.b16 %v1039
      %v1127 = vunpack.c.l.b16 %v1043
      %v1128 = vunpack.c.l.b16 %v1046
      %v1129 = vunpack.c.l.b16 %v1050
      %v1130 = vunpack.c.l.b16 %v1053
      %v1131 = vunpack.c.l.b16 %v1057
      %v1132 = vunpack.c.l.b16 %v1060
      %v1133 = vunpack.c.l.b16 %v1064
      %v1134 = vunpack.c.l.b16 %v1067
      %v1135 = vunpack.c.l.b16 %v1071
      %v1136 = vunpack.c.l.b16 %v1074
      %v1137 = vunpack.c.l.b16 %v1078
      %v1138 = vunpack.c.l.b16 %v1081
      %v1139 = vunpack.c.l.b16 %v1085
      %v1140 = vunpack.c.l.b16 %v1088
      %v1141 = vunpack.c.l.b16 %v1092
      %v1142 = vunpack.c.l.b16 %v1095
      %v1143 = vunpack.c.l.b16 %v1099
      %v1144 = vunpack.c.l.b16 %v1102
      %v1145 = vunpack.c.l.b16 %v1106
      %v1146 = vunpack.c.l.b16 %v1109
      %v1147 = vunpack.c.l.b16 %v1113
      %v1148 = vunpack.c.l.b16 %v1116
      %v1149 = vpack.c.b16 %v1118, %v1117
      %v1150 = vpack.c.b16 %v1120, %v1119
      %v1151 = vpack.c.b16 %v1122, %v1121
      %v1152 = vpack.c.b16 %v1124, %v1123
      %v1153 = vpack.c.b16 %v1126, %v1125
      %v1154 = vpack.c.b16 %v1128, %v1127
      %v1155 = vpack.c.b16 %v1130, %v1129
      %v1156 = vpack.c.b16 %v1132, %v1131
      %v1157 = vpack.c.b16 %v1134, %v1133
      %v1158 = vpack.c.b16 %v1136, %v1135
      %v1159 = vpack.c.b16 %v1138, %v1137
      %v1160 = vpack.c.b16 %v1140, %v1139
      %v1161 = vpack.c.b16 %v1142, %v1141
      %v1162 = vpack.c.b16 %v1144, %v1143
      %v1163 = vpack.c.b16 %v1146, %v1145
      %v1164 = vpack.c.b16 %v1148, %v1147
      %1181 = vst [vmem:[#allocation2 + $0x10] sm:$0xff] %v1149
      %1182 = vst [vmem:[#allocation2 + $0x58] sm:$0xff] %v1150
      %1183 = vst [vmem:[#allocation2 + $0xa0] sm:$0xff] %v1151
      %1184 = vst [vmem:[#allocation2 + $0xe8] sm:$0xff] %v1152
      %1185 = vst [vmem:[#allocation2 + $0x130] sm:$0xff] %v1153
      %1186 = vst [vmem:[#allocation2 + $0x178] sm:$0xff] %v1154
      %1187 = vst [vmem:[#allocation2 + $0x1c0] sm:$0xff] %v1155
      %1188 = vst [vmem:[#allocation2 + $0x208] sm:$0xff] %v1156
      %1189 = vst [vmem:[#allocation2 + $0x250] sm:$0xff] %v1157
      %1190 = vst [vmem:[#allocation2 + $0x298] sm:$0xff] %v1158
      %1191 = vst [vmem:[#allocation2 + $0x2e0] sm:$0xff] %v1159
      %1192 = vst [vmem:[#allocation2 + $0x328] sm:$0xff] %v1160
      %1193 = vst [vmem:[#allocation2 + $0x370] sm:$0xff] %v1161
      %1194 = vst [vmem:[#allocation2 + $0x3b8] sm:$0xff] %v1162
      %1195 = vst [vmem:[#allocation2 + $0x400] sm:$0xff] %v1163
      %1196 = vst [vmem:[#allocation2 + $0x448] sm:$0xff] %v1164
      %s1197 = sadd.s32 %s243, 1
      %s1198 = smul.u32 %s1197, 3
      %s1199 = smul.addr %s1198, 4
      %s1200 = scalar_lea.vmem %s220, %s1199
      %v1201 = vld [vmem:[%s1200] sm:$0xf]
      %v1202 = vld [vmem:[%s1200 + $0x4] sm:$0xf]
      %v1203 = vld [vmem:[%s1200 + $0xc] sm:$0xf]
      %v1204 = vld [vmem:[%s1200 + $0x10] sm:$0xf]
      %v1205 = vld [vmem:[%s1200 + $0x18] sm:$0xf]
      %v1206 = vld [vmem:[%s1200 + $0x1c] sm:$0xf]
      %v1207 = vld [vmem:[%s1200 + $0x24] sm:$0xf]
      %v1208 = vld [vmem:[%s1200 + $0x28] sm:$0xf]
      %v1209 = vld [vmem:[%s1200 + $0x30] sm:$0xf]
      %v1210 = vld [vmem:[%s1200 + $0x34] sm:$0xf]
      %v1211 = vld [vmem:[%s1200 + $0x3c] sm:$0xf]
      %v1212 = vld [vmem:[%s1200 + $0x40] sm:$0xf]
      %v1213 = vld [vmem:[%s1200 + $0x48] sm:$0xf]
      %v1214 = vld [vmem:[%s1200 + $0x4c] sm:$0xf]
      %v1215 = vld [vmem:[%s1200 + $0x54] sm:$0xf]
      %v1216 = vld [vmem:[%s1200 + $0x58] sm:$0xf]
      %v1217 = vld [vmem:[%s1200 + $0x60] sm:$0xf]
      %v1218 = vld [vmem:[%s1200 + $0x64] sm:$0xf]
      %v1219 = vld [vmem:[%s1200 + $0x6c] sm:$0xf]
      %v1220 = vld [vmem:[%s1200 + $0x70] sm:$0xf]
      %v1221 = vld [vmem:[%s1200 + $0x78] sm:$0xf]
      %v1222 = vld [vmem:[%s1200 + $0x7c] sm:$0xf]
      %v1223 = vld [vmem:[%s1200 + $0x84] sm:$0xf]
      %v1224 = vld [vmem:[%s1200 + $0x88] sm:$0xf]
      %v1225 = vld [vmem:[%s1200 + $0x90] sm:$0xf]
      %v1226 = vld [vmem:[%s1200 + $0x94] sm:$0xf]
      %v1227 = vld [vmem:[%s1200 + $0x9c] sm:$0xf]
      %v1228 = vld [vmem:[%s1200 + $0xa0] sm:$0xf]
      %v1229 = vld [vmem:[%s1200 + $0xa8] sm:$0xf]
      %v1230 = vld [vmem:[%s1200 + $0xac] sm:$0xf]
      %v1231 = vld [vmem:[%s1200 + $0xb4] sm:$0xf]
      %v1232 = vld [vmem:[%s1200 + $0xb8] sm:$0xf]
      %v1265 = vunpack.c.l.b16 %v1201
      %v1266 = vunpack.c.l.b16 %v1202
      %v1267 = vunpack.c.l.b16 %v1203
      %v1268 = vunpack.c.l.b16 %v1204
      %v1269 = vunpack.c.l.b16 %v1205
      %v1270 = vunpack.c.l.b16 %v1206
      %v1271 = vunpack.c.l.b16 %v1207
      %v1272 = vunpack.c.l.b16 %v1208
      %v1273 = vunpack.c.l.b16 %v1209
      %v1274 = vunpack.c.l.b16 %v1210
      %v1275 = vunpack.c.l.b16 %v1211
      %v1276 = vunpack.c.l.b16 %v1212
      %v1277 = vunpack.c.l.b16 %v1213
      %v1278 = vunpack.c.l.b16 %v1214
      %v1279 = vunpack.c.l.b16 %v1215
      %v1280 = vunpack.c.l.b16 %v1216
      %v1281 = vunpack.c.l.b16 %v1217
      %v1282 = vunpack.c.l.b16 %v1218
      %v1283 = vunpack.c.l.b16 %v1219
      %v1284 = vunpack.c.l.b16 %v1220
      %v1285 = vunpack.c.l.b16 %v1221
      %v1286 = vunpack.c.l.b16 %v1222
      %v1287 = vunpack.c.l.b16 %v1223
      %v1288 = vunpack.c.l.b16 %v1224
      %v1289 = vunpack.c.l.b16 %v1225
      %v1290 = vunpack.c.l.b16 %v1226
      %v1291 = vunpack.c.l.b16 %v1227
      %v1292 = vunpack.c.l.b16 %v1228
      %v1293 = vunpack.c.l.b16 %v1229
      %v1294 = vunpack.c.l.b16 %v1230
      %v1295 = vunpack.c.l.b16 %v1231
      %v1296 = vunpack.c.l.b16 %v1232
      %v1297 = vpack.c.b16 %v1266, %v1265
      %v1298 = vpack.c.b16 %v1268, %v1267
      %v1299 = vpack.c.b16 %v1270, %v1269
      %v1300 = vpack.c.b16 %v1272, %v1271
      %v1301 = vpack.c.b16 %v1274, %v1273
      %v1302 = vpack.c.b16 %v1276, %v1275
      %v1303 = vpack.c.b16 %v1278, %v1277
      %v1304 = vpack.c.b16 %v1280, %v1279
      %v1305 = vpack.c.b16 %v1282, %v1281
      %v1306 = vpack.c.b16 %v1284, %v1283
      %v1307 = vpack.c.b16 %v1286, %v1285
      %v1308 = vpack.c.b16 %v1288, %v1287
      %v1309 = vpack.c.b16 %v1290, %v1289
      %v1310 = vpack.c.b16 %v1292, %v1291
      %v1311 = vpack.c.b16 %v1294, %v1293
      %v1312 = vpack.c.b16 %v1296, %v1295
      %1329 = vst [vmem:[#allocation2 + $0x18] sm:$0xff] %v1297
      %1330 = vst [vmem:[#allocation2 + $0x60] sm:$0xff] %v1298
      %1331 = vst [vmem:[#allocation2 + $0xa8] sm:$0xff] %v1299
      %1332 = vst [vmem:[#allocation2 + $0xf0] sm:$0xff] %v1300
      %1333 = vst [vmem:[#allocation2 + $0x138] sm:$0xff] %v1301
      %1334 = vst [vmem:[#allocation2 + $0x180] sm:$0xff] %v1302
      %1335 = vst [vmem:[#allocation2 + $0x1c8] sm:$0xff] %v1303
      %1336 = vst [vmem:[#allocation2 + $0x210] sm:$0xff] %v1304
      %1337 = vst [vmem:[#allocation2 + $0x258] sm:$0xff] %v1305
      %1338 = vst [vmem:[#allocation2 + $0x2a0] sm:$0xff] %v1306
      %1339 = vst [vmem:[#allocation2 + $0x2e8] sm:$0xff] %v1307
      %1340 = vst [vmem:[#allocation2 + $0x330] sm:$0xff] %v1308
      %1341 = vst [vmem:[#allocation2 + $0x378] sm:$0xff] %v1309
      %1342 = vst [vmem:[#allocation2 + $0x3c0] sm:$0xff] %v1310
      %1343 = vst [vmem:[#allocation2 + $0x408] sm:$0xff] %v1311
      %1344 = vst [vmem:[#allocation2 + $0x450] sm:$0xff] %v1312
      %v1345 = vld [vmem:[%s1200] sm:$0xf]
      %v1346 = vld [vmem:[%s1200 + $0x4] sm:$0xf]
      %v1347 = vld [vmem:[%s1200 + $0x8] sm:$0x1]
      %v1348 = vld [vmem:[%s1200 + $0xc] sm:$0xf]
      %v1349 = vld [vmem:[%s1200 + $0x10] sm:$0xf]
      %v1350 = vld [vmem:[%s1200 + $0x14] sm:$0x1]
      %v1351 = vld [vmem:[%s1200 + $0x18] sm:$0xf]
      %v1352 = vld [vmem:[%s1200 + $0x1c] sm:$0xf]
      %v1353 = vld [vmem:[%s1200 + $0x20] sm:$0x1]
      %v1354 = vld [vmem:[%s1200 + $0x24] sm:$0xf]
      %v1355 = vld [vmem:[%s1200 + $0x28] sm:$0xf]
      %v1356 = vld [vmem:[%s1200 + $0x2c] sm:$0x1]
      %v1357 = vld [vmem:[%s1200 + $0x30] sm:$0xf]
      %v1358 = vld [vmem:[%s1200 + $0x34] sm:$0xf]
      %v1359 = vld [vmem:[%s1200 + $0x38] sm:$0x1]
      %v1360 = vld [vmem:[%s1200 + $0x3c] sm:$0xf]
      %v1361 = vld [vmem:[%s1200 + $0x40] sm:$0xf]
      %v1362 = vld [vmem:[%s1200 + $0x44] sm:$0x1]
      %v1363 = vld [vmem:[%s1200 + $0x48] sm:$0xf]
      %v1364 = vld [vmem:[%s1200 + $0x4c] sm:$0xf]
      %v1365 = vld [vmem:[%s1200 + $0x50] sm:$0x1]
      %v1366 = vld [vmem:[%s1200 + $0x54] sm:$0xf]
      %v1367 = vld [vmem:[%s1200 + $0x58] sm:$0xf]
      %v1368 = vld [vmem:[%s1200 + $0x5c] sm:$0x1]
      %v1369 = vld [vmem:[%s1200 + $0x60] sm:$0xf]
      %v1370 = vld [vmem:[%s1200 + $0x64] sm:$0xf]
      %v1371 = vld [vmem:[%s1200 + $0x68] sm:$0x1]
      %v1372 = vld [vmem:[%s1200 + $0x6c] sm:$0xf]
      %v1373 = vld [vmem:[%s1200 + $0x70] sm:$0xf]
      %v1374 = vld [vmem:[%s1200 + $0x74] sm:$0x1]
      %v1375 = vld [vmem:[%s1200 + $0x78] sm:$0xf]
      %v1376 = vld [vmem:[%s1200 + $0x7c] sm:$0xf]
      %v1377 = vld [vmem:[%s1200 + $0x80] sm:$0x1]
      %v1378 = vld [vmem:[%s1200 + $0x84] sm:$0xf]
      %v1379 = vld [vmem:[%s1200 + $0x88] sm:$0xf]
      %v1380 = vld [vmem:[%s1200 + $0x8c] sm:$0x1]
      %v1381 = vld [vmem:[%s1200 + $0x90] sm:$0xf]
      %v1382 = vld [vmem:[%s1200 + $0x94] sm:$0xf]
      %v1383 = vld [vmem:[%s1200 + $0x98] sm:$0x1]
      %v1384 = vld [vmem:[%s1200 + $0x9c] sm:$0xf]
      %v1385 = vld [vmem:[%s1200 + $0xa0] sm:$0xf]
      %v1386 = vld [vmem:[%s1200 + $0xa4] sm:$0x1]
      %v1387 = vld [vmem:[%s1200 + $0xa8] sm:$0xf]
      %v1388 = vld [vmem:[%s1200 + $0xac] sm:$0xf]
      %v1389 = vld [vmem:[%s1200 + $0xb0] sm:$0x1]
      %v1390 = vld [vmem:[%s1200 + $0xb4] sm:$0xf]
      %v1391 = vld [vmem:[%s1200 + $0xb8] sm:$0xf]
      %v1392 = vld [vmem:[%s1200 + $0xbc] sm:$0x1]
      %v1394 = vshrl.u32 %v1345, 16
      %v1396 = vrot.slane %v1394, 4
      %v1397 = vshll.u32 %v1345, 16
      %v1399 = vrot.slane %v1397, 5
      %v1400 = vor.u32 %v1396, %v1399
      %v1401 = vrot.slane %v1400, 4
      %v1403 = vshll.u32 %v1346, 16
      %v1405 = vrot.slane %v1403, 5
      %v1406 = vsel %vm441, %v1401, %v1405
      %v1407 = vshrl.u32 %v1346, 16
      %v1409 = vrot.slane %v1407, 4
      %v1410 = vor.u32 %v1409, %v1405
      %v1411 = vrot.slane %v1410, 4
      %v1413 = vshll.u32 %v1347, 16
      %v1415 = vrot.slane %v1413, 5
      %v1416 = vsel %vm441, %v1411, %v1415
      %v1418 = vshrl.u32 %v1348, 16
      %v1420 = vrot.slane %v1418, 4
      %v1421 = vshll.u32 %v1348, 16
      %v1423 = vrot.slane %v1421, 5
      %v1424 = vor.u32 %v1420, %v1423
      %v1425 = vrot.slane %v1424, 4
      %v1427 = vshll.u32 %v1349, 16
      %v1429 = vrot.slane %v1427, 5
      %v1430 = vsel %vm441, %v1425, %v1429
      %v1431 = vshrl.u32 %v1349, 16
      %v1433 = vrot.slane %v1431, 4
      %v1434 = vor.u32 %v1433, %v1429
      %v1435 = vrot.slane %v1434, 4
      %v1437 = vshll.u32 %v1350, 16
      %v1439 = vrot.slane %v1437, 5
      %v1440 = vsel %vm441, %v1435, %v1439
      %v1442 = vshrl.u32 %v1351, 16
      %v1444 = vrot.slane %v1442, 4
      %v1445 = vshll.u32 %v1351, 16
      %v1447 = vrot.slane %v1445, 5
      %v1448 = vor.u32 %v1444, %v1447
      %v1449 = vrot.slane %v1448, 4
      %v1451 = vshll.u32 %v1352, 16
      %v1453 = vrot.slane %v1451, 5
      %v1454 = vsel %vm441, %v1449, %v1453
      %v1455 = vshrl.u32 %v1352, 16
      %v1457 = vrot.slane %v1455, 4
      %v1458 = vor.u32 %v1457, %v1453
      %v1459 = vrot.slane %v1458, 4
      %v1461 = vshll.u32 %v1353, 16
      %v1463 = vrot.slane %v1461, 5
      %v1464 = vsel %vm441, %v1459, %v1463
      %v1466 = vshrl.u32 %v1354, 16
      %v1468 = vrot.slane %v1466, 4
      %v1469 = vshll.u32 %v1354, 16
      %v1471 = vrot.slane %v1469, 5
      %v1472 = vor.u32 %v1468, %v1471
      %v1473 = vrot.slane %v1472, 4
      %v1475 = vshll.u32 %v1355, 16
      %v1477 = vrot.slane %v1475, 5
      %v1478 = vsel %vm441, %v1473, %v1477
      %v1479 = vshrl.u32 %v1355, 16
      %v1481 = vrot.slane %v1479, 4
      %v1482 = vor.u32 %v1481, %v1477
      %v1483 = vrot.slane %v1482, 4
      %v1485 = vshll.u32 %v1356, 16
      %v1487 = vrot.slane %v1485, 5
      %v1488 = vsel %vm441, %v1483, %v1487
      %v1490 = vshrl.u32 %v1357, 16
      %v1492 = vrot.slane %v1490, 4
      %v1493 = vshll.u32 %v1357, 16
      %v1495 = vrot.slane %v1493, 5
      %v1496 = vor.u32 %v1492, %v1495
      %v1497 = vrot.slane %v1496, 4
      %v1499 = vshll.u32 %v1358, 16
      %v1501 = vrot.slane %v1499, 5
      %v1502 = vsel %vm441, %v1497, %v1501
      %v1503 = vshrl.u32 %v1358, 16
      %v1505 = vrot.slane %v1503, 4
      %v1506 = vor.u32 %v1505, %v1501
      %v1507 = vrot.slane %v1506, 4
      %v1509 = vshll.u32 %v1359, 16
      %v1511 = vrot.slane %v1509, 5
      %v1512 = vsel %vm441, %v1507, %v1511
      %v1514 = vshrl.u32 %v1360, 16
      %v1516 = vrot.slane %v1514, 4
      %v1517 = vshll.u32 %v1360, 16
      %v1519 = vrot.slane %v1517, 5
      %v1520 = vor.u32 %v1516, %v1519
      %v1521 = vrot.slane %v1520, 4
      %v1523 = vshll.u32 %v1361, 16
      %v1525 = vrot.slane %v1523, 5
      %v1526 = vsel %vm441, %v1521, %v1525
      %v1527 = vshrl.u32 %v1361, 16
      %v1529 = vrot.slane %v1527, 4
      %v1530 = vor.u32 %v1529, %v1525
      %v1531 = vrot.slane %v1530, 4
      %v1533 = vshll.u32 %v1362, 16
      %v1535 = vrot.slane %v1533, 5
      %v1536 = vsel %vm441, %v1531, %v1535
      %v1538 = vshrl.u32 %v1363, 16
      %v1540 = vrot.slane %v1538, 4
      %v1541 = vshll.u32 %v1363, 16
      %v1543 = vrot.slane %v1541, 5
      %v1544 = vor.u32 %v1540, %v1543
      %v1545 = vrot.slane %v1544, 4
      %v1547 = vshll.u32 %v1364, 16
      %v1549 = vrot.slane %v1547, 5
      %v1550 = vsel %vm441, %v1545, %v1549
      %v1551 = vshrl.u32 %v1364, 16
      %v1553 = vrot.slane %v1551, 4
      %v1554 = vor.u32 %v1553, %v1549
      %v1555 = vrot.slane %v1554, 4
      %v1557 = vshll.u32 %v1365, 16
      %v1559 = vrot.slane %v1557, 5
      %v1560 = vsel %vm441, %v1555, %v1559
      %v1562 = vshrl.u32 %v1366, 16
      %v1564 = vrot.slane %v1562, 4
      %v1565 = vshll.u32 %v1366, 16
      %v1567 = vrot.slane %v1565, 5
      %v1568 = vor.u32 %v1564, %v1567
      %v1569 = vrot.slane %v1568, 4
      %v1571 = vshll.u32 %v1367, 16
      %v1573 = vrot.slane %v1571, 5
      %v1574 = vsel %vm441, %v1569, %v1573
      %v1575 = vshrl.u32 %v1367, 16
      %v1577 = vrot.slane %v1575, 4
      %v1578 = vor.u32 %v1577, %v1573
      %v1579 = vrot.slane %v1578, 4
      %v1581 = vshll.u32 %v1368, 16
      %v1583 = vrot.slane %v1581, 5
      %v1584 = vsel %vm441, %v1579, %v1583
      %v1586 = vshrl.u32 %v1369, 16
      %v1588 = vrot.slane %v1586, 4
      %v1589 = vshll.u32 %v1369, 16
      %v1591 = vrot.slane %v1589, 5
      %v1592 = vor.u32 %v1588, %v1591
      %v1593 = vrot.slane %v1592, 4
      %v1595 = vshll.u32 %v1370, 16
      %v1597 = vrot.slane %v1595, 5
      %v1598 = vsel %vm441, %v1593, %v1597
      %v1599 = vshrl.u32 %v1370, 16
      %v1601 = vrot.slane %v1599, 4
      %v1602 = vor.u32 %v1601, %v1597
      %v1603 = vrot.slane %v1602, 4
      %v1605 = vshll.u32 %v1371, 16
      %v1607 = vrot.slane %v1605, 5
      %v1608 = vsel %vm441, %v1603, %v1607
      %v1610 = vshrl.u32 %v1372, 16
      %v1612 = vrot.slane %v1610, 4
      %v1613 = vshll.u32 %v1372, 16
      %v1615 = vrot.slane %v1613, 5
      %v1616 = vor.u32 %v1612, %v1615
      %v1617 = vrot.slane %v1616, 4
      %v1619 = vshll.u32 %v1373, 16
      %v1621 = vrot.slane %v1619, 5
      %v1622 = vsel %vm441, %v1617, %v1621
      %v1623 = vshrl.u32 %v1373, 16
      %v1625 = vrot.slane %v1623, 4
      %v1626 = vor.u32 %v1625, %v1621
      %v1627 = vrot.slane %v1626, 4
      %v1629 = vshll.u32 %v1374, 16
      %v1631 = vrot.slane %v1629, 5
      %v1632 = vsel %vm441, %v1627, %v1631
      %v1634 = vshrl.u32 %v1375, 16
      %v1636 = vrot.slane %v1634, 4
      %v1637 = vshll.u32 %v1375, 16
      %v1639 = vrot.slane %v1637, 5
      %v1640 = vor.u32 %v1636, %v1639
      %v1641 = vrot.slane %v1640, 4
      %v1643 = vshll.u32 %v1376, 16
      %v1645 = vrot.slane %v1643, 5
      %v1646 = vsel %vm441, %v1641, %v1645
      %v1647 = vshrl.u32 %v1376, 16
      %v1649 = vrot.slane %v1647, 4
      %v1650 = vor.u32 %v1649, %v1645
      %v1651 = vrot.slane %v1650, 4
      %v1653 = vshll.u32 %v1377, 16
      %v1655 = vrot.slane %v1653, 5
      %v1656 = vsel %vm441, %v1651, %v1655
      %v1658 = vshrl.u32 %v1378, 16
      %v1660 = vrot.slane %v1658, 4
      %v1661 = vshll.u32 %v1378, 16
      %v1663 = vrot.slane %v1661, 5
      %v1664 = vor.u32 %v1660, %v1663
      %v1665 = vrot.slane %v1664, 4
      %v1667 = vshll.u32 %v1379, 16
      %v1669 = vrot.slane %v1667, 5
      %v1670 = vsel %vm441, %v1665, %v1669
      %v1671 = vshrl.u32 %v1379, 16
      %v1673 = vrot.slane %v1671, 4
      %v1674 = vor.u32 %v1673, %v1669
      %v1675 = vrot.slane %v1674, 4
      %v1677 = vshll.u32 %v1380, 16
      %v1679 = vrot.slane %v1677, 5
      %v1680 = vsel %vm441, %v1675, %v1679
      %v1682 = vshrl.u32 %v1381, 16
      %v1684 = vrot.slane %v1682, 4
      %v1685 = vshll.u32 %v1381, 16
      %v1687 = vrot.slane %v1685, 5
      %v1688 = vor.u32 %v1684, %v1687
      %v1689 = vrot.slane %v1688, 4
      %v1691 = vshll.u32 %v1382, 16
      %v1693 = vrot.slane %v1691, 5
      %v1694 = vsel %vm441, %v1689, %v1693
      %v1695 = vshrl.u32 %v1382, 16
      %v1697 = vrot.slane %v1695, 4
      %v1698 = vor.u32 %v1697, %v1693
      %v1699 = vrot.slane %v1698, 4
      %v1701 = vshll.u32 %v1383, 16
      %v1703 = vrot.slane %v1701, 5
      %v1704 = vsel %vm441, %v1699, %v1703
      %v1706 = vshrl.u32 %v1384, 16
      %v1708 = vrot.slane %v1706, 4
      %v1709 = vshll.u32 %v1384, 16
      %v1711 = vrot.slane %v1709, 5
      %v1712 = vor.u32 %v1708, %v1711
      %v1713 = vrot.slane %v1712, 4
      %v1715 = vshll.u32 %v1385, 16
      %v1717 = vrot.slane %v1715, 5
      %v1718 = vsel %vm441, %v1713, %v1717
      %v1719 = vshrl.u32 %v1385, 16
      %v1721 = vrot.slane %v1719, 4
      %v1722 = vor.u32 %v1721, %v1717
      %v1723 = vrot.slane %v1722, 4
      %v1725 = vshll.u32 %v1386, 16
      %v1727 = vrot.slane %v1725, 5
      %v1728 = vsel %vm441, %v1723, %v1727
      %v1730 = vshrl.u32 %v1387, 16
      %v1732 = vrot.slane %v1730, 4
      %v1733 = vshll.u32 %v1387, 16
      %v1735 = vrot.slane %v1733, 5
      %v1736 = vor.u32 %v1732, %v1735
      %v1737 = vrot.slane %v1736, 4
      %v1739 = vshll.u32 %v1388, 16
      %v1741 = vrot.slane %v1739, 5
      %v1742 = vsel %vm441, %v1737, %v1741
      %v1743 = vshrl.u32 %v1388, 16
      %v1745 = vrot.slane %v1743, 4
      %v1746 = vor.u32 %v1745, %v1741
      %v1747 = vrot.slane %v1746, 4
      %v1749 = vshll.u32 %v1389, 16
      %v1751 = vrot.slane %v1749, 5
      %v1752 = vsel %vm441, %v1747, %v1751
      %v1754 = vshrl.u32 %v1390, 16
      %v1756 = vrot.slane %v1754, 4
      %v1757 = vshll.u32 %v1390, 16
      %v1759 = vrot.slane %v1757, 5
      %v1760 = vor.u32 %v1756, %v1759
      %v1761 = vrot.slane %v1760, 4
      %v1763 = vshll.u32 %v1391, 16
      %v1765 = vrot.slane %v1763, 5
      %v1766 = vsel %vm441, %v1761, %v1765
      %v1767 = vshrl.u32 %v1391, 16
      %v1769 = vrot.slane %v1767, 4
      %v1770 = vor.u32 %v1769, %v1765
      %v1771 = vrot.slane %v1770, 4
      %v1773 = vshll.u32 %v1392, 16
      %v1775 = vrot.slane %v1773, 5
      %v1776 = vsel %vm441, %v1771, %v1775
      %v1777 = vunpack.c.l.b16 %v1406
      %v1778 = vunpack.c.l.b16 %v1416
      %v1779 = vunpack.c.l.b16 %v1430
      %v1780 = vunpack.c.l.b16 %v1440
      %v1781 = vunpack.c.l.b16 %v1454
      %v1782 = vunpack.c.l.b16 %v1464
      %v1783 = vunpack.c.l.b16 %v1478
      %v1784 = vunpack.c.l.b16 %v1488
      %v1785 = vunpack.c.l.b16 %v1502
      %v1786 = vunpack.c.l.b16 %v1512
      %v1787 = vunpack.c.l.b16 %v1526
      %v1788 = vunpack.c.l.b16 %v1536
      %v1789 = vunpack.c.l.b16 %v1550
      %v1790 = vunpack.c.l.b16 %v1560
      %v1791 = vunpack.c.l.b16 %v1574
      %v1792 = vunpack.c.l.b16 %v1584
      %v1793 = vunpack.c.l.b16 %v1598
      %v1794 = vunpack.c.l.b16 %v1608
      %v1795 = vunpack.c.l.b16 %v1622
      %v1796 = vunpack.c.l.b16 %v1632
      %v1797 = vunpack.c.l.b16 %v1646
      %v1798 = vunpack.c.l.b16 %v1656
      %v1799 = vunpack.c.l.b16 %v1670
      %v1800 = vunpack.c.l.b16 %v1680
      %v1801 = vunpack.c.l.b16 %v1694
      %v1802 = vunpack.c.l.b16 %v1704
      %v1803 = vunpack.c.l.b16 %v1718
      %v1804 = vunpack.c.l.b16 %v1728
      %v1805 = vunpack.c.l.b16 %v1742
      %v1806 = vunpack.c.l.b16 %v1752
      %v1807 = vunpack.c.l.b16 %v1766
      %v1808 = vunpack.c.l.b16 %v1776
      %v1809 = vpack.c.b16 %v1778, %v1777
      %v1810 = vpack.c.b16 %v1780, %v1779
      %v1811 = vpack.c.b16 %v1782, %v1781
      %v1812 = vpack.c.b16 %v1784, %v1783
      %v1813 = vpack.c.b16 %v1786, %v1785
      %v1814 = vpack.c.b16 %v1788, %v1787
      %v1815 = vpack.c.b16 %v1790, %v1789
      %v1816 = vpack.c.b16 %v1792, %v1791
      %v1817 = vpack.c.b16 %v1794, %v1793
      %v1818 = vpack.c.b16 %v1796, %v1795
      %v1819 = vpack.c.b16 %v1798, %v1797
      %v1820 = vpack.c.b16 %v1800, %v1799
      %v1821 = vpack.c.b16 %v1802, %v1801
      %v1822 = vpack.c.b16 %v1804, %v1803
      %v1823 = vpack.c.b16 %v1806, %v1805
      %v1824 = vpack.c.b16 %v1808, %v1807
      %1841 = vst [vmem:[#allocation2 + $0x20] sm:$0xff] %v1809
      %1842 = vst [vmem:[#allocation2 + $0x68] sm:$0xff] %v1810
      %1843 = vst [vmem:[#allocation2 + $0xb0] sm:$0xff] %v1811
      %1844 = vst [vmem:[#allocation2 + $0xf8] sm:$0xff] %v1812
      %1845 = vst [vmem:[#allocation2 + $0x140] sm:$0xff] %v1813
      %1846 = vst [vmem:[#allocation2 + $0x188] sm:$0xff] %v1814
      %1847 = vst [vmem:[#allocation2 + $0x1d0] sm:$0xff] %v1815
      %1848 = vst [vmem:[#allocation2 + $0x218] sm:$0xff] %v1816
      %1849 = vst [vmem:[#allocation2 + $0x260] sm:$0xff] %v1817
      %1850 = vst [vmem:[#allocation2 + $0x2a8] sm:$0xff] %v1818
      %1851 = vst [vmem:[#allocation2 + $0x2f0] sm:$0xff] %v1819
      %1852 = vst [vmem:[#allocation2 + $0x338] sm:$0xff] %v1820
      %1853 = vst [vmem:[#allocation2 + $0x380] sm:$0xff] %v1821
      %1854 = vst [vmem:[#allocation2 + $0x3c8] sm:$0xff] %v1822
      %1855 = vst [vmem:[#allocation2 + $0x410] sm:$0xff] %v1823
      %1856 = vst [vmem:[#allocation2 + $0x458] sm:$0xff] %v1824
      %v1857 = vld [vmem:[%s1200] sm:$0xe]
      %v1858 = vld [vmem:[%s1200 + $0x4] sm:$0xf]
      %v1859 = vld [vmem:[%s1200 + $0x8] sm:$0x1]
      %v1860 = vld [vmem:[%s1200 + $0xc] sm:$0xe]
      %v1861 = vld [vmem:[%s1200 + $0x10] sm:$0xf]
      %v1862 = vld [vmem:[%s1200 + $0x14] sm:$0x1]
      %v1863 = vld [vmem:[%s1200 + $0x18] sm:$0xe]
      %v1864 = vld [vmem:[%s1200 + $0x1c] sm:$0xf]
      %v1865 = vld [vmem:[%s1200 + $0x20] sm:$0x1]
      %v1866 = vld [vmem:[%s1200 + $0x24] sm:$0xe]
      %v1867 = vld [vmem:[%s1200 + $0x28] sm:$0xf]
      %v1868 = vld [vmem:[%s1200 + $0x2c] sm:$0x1]
      %v1869 = vld [vmem:[%s1200 + $0x30] sm:$0xe]
      %v1870 = vld [vmem:[%s1200 + $0x34] sm:$0xf]
      %v1871 = vld [vmem:[%s1200 + $0x38] sm:$0x1]
      %v1872 = vld [vmem:[%s1200 + $0x3c] sm:$0xe]
      %v1873 = vld [vmem:[%s1200 + $0x40] sm:$0xf]
      %v1874 = vld [vmem:[%s1200 + $0x44] sm:$0x1]
      %v1875 = vld [vmem:[%s1200 + $0x48] sm:$0xe]
      %v1876 = vld [vmem:[%s1200 + $0x4c] sm:$0xf]
      %v1877 = vld [vmem:[%s1200 + $0x50] sm:$0x1]
      %v1878 = vld [vmem:[%s1200 + $0x54] sm:$0xe]
      %v1879 = vld [vmem:[%s1200 + $0x58] sm:$0xf]
      %v1880 = vld [vmem:[%s1200 + $0x5c] sm:$0x1]
      %v1881 = vld [vmem:[%s1200 + $0x60] sm:$0xe]
      %v1882 = vld [vmem:[%s1200 + $0x64] sm:$0xf]
      %v1883 = vld [vmem:[%s1200 + $0x68] sm:$0x1]
      %v1884 = vld [vmem:[%s1200 + $0x6c] sm:$0xe]
      %v1885 = vld [vmem:[%s1200 + $0x70] sm:$0xf]
      %v1886 = vld [vmem:[%s1200 + $0x74] sm:$0x1]
      %v1887 = vld [vmem:[%s1200 + $0x78] sm:$0xe]
      %v1888 = vld [vmem:[%s1200 + $0x7c] sm:$0xf]
      %v1889 = vld [vmem:[%s1200 + $0x80] sm:$0x1]
      %v1890 = vld [vmem:[%s1200 + $0x84] sm:$0xe]
      %v1891 = vld [vmem:[%s1200 + $0x88] sm:$0xf]
      %v1892 = vld [vmem:[%s1200 + $0x8c] sm:$0x1]
      %v1893 = vld [vmem:[%s1200 + $0x90] sm:$0xe]
      %v1894 = vld [vmem:[%s1200 + $0x94] sm:$0xf]
      %v1895 = vld [vmem:[%s1200 + $0x98] sm:$0x1]
      %v1896 = vld [vmem:[%s1200 + $0x9c] sm:$0xe]
      %v1897 = vld [vmem:[%s1200 + $0xa0] sm:$0xf]
      %v1898 = vld [vmem:[%s1200 + $0xa4] sm:$0x1]
      %v1899 = vld [vmem:[%s1200 + $0xa8] sm:$0xe]
      %v1900 = vld [vmem:[%s1200 + $0xac] sm:$0xf]
      %v1901 = vld [vmem:[%s1200 + $0xb0] sm:$0x1]
      %v1902 = vld [vmem:[%s1200 + $0xb4] sm:$0xe]
      %v1903 = vld [vmem:[%s1200 + $0xb8] sm:$0xf]
      %v1904 = vld [vmem:[%s1200 + $0xbc] sm:$0x1]
      %v1953 = vrot.slane %v1857, 5
      %v1954 = vrot.slane %v1953, 4
      %v1955 = vrot.slane %v1858, 5
      %v1956 = vsel %vm1004, %v1954, %v1955
      %v1957 = vrot.slane %v1955, 4
      %v1958 = vrot.slane %v1859, 5
      %v1959 = vsel %vm1004, %v1957, %v1958
      %v1960 = vrot.slane %v1860, 5
      %v1961 = vrot.slane %v1960, 4
      %v1962 = vrot.slane %v1861, 5
      %v1963 = vsel %vm1004, %v1961, %v1962
      %v1964 = vrot.slane %v1962, 4
      %v1965 = vrot.slane %v1862, 5
      %v1966 = vsel %vm1004, %v1964, %v1965
      %v1967 = vrot.slane %v1863, 5
      %v1968 = vrot.slane %v1967, 4
      %v1969 = vrot.slane %v1864, 5
      %v1970 = vsel %vm1004, %v1968, %v1969
      %v1971 = vrot.slane %v1969, 4
      %v1972 = vrot.slane %v1865, 5
      %v1973 = vsel %vm1004, %v1971, %v1972
      %v1974 = vrot.slane %v1866, 5
      %v1975 = vrot.slane %v1974, 4
      %v1976 = vrot.slane %v1867, 5
      %v1977 = vsel %vm1004, %v1975, %v1976
      %v1978 = vrot.slane %v1976, 4
      %v1979 = vrot.slane %v1868, 5
      %v1980 = vsel %vm1004, %v1978, %v1979
      %v1981 = vrot.slane %v1869, 5
      %v1982 = vrot.slane %v1981, 4
      %v1983 = vrot.slane %v1870, 5
      %v1984 = vsel %vm1004, %v1982, %v1983
      %v1985 = vrot.slane %v1983, 4
      %v1986 = vrot.slane %v1871, 5
      %v1987 = vsel %vm1004, %v1985, %v1986
      %v1988 = vrot.slane %v1872, 5
      %v1989 = vrot.slane %v1988, 4
      %v1990 = vrot.slane %v1873, 5
      %v1991 = vsel %vm1004, %v1989, %v1990
      %v1992 = vrot.slane %v1990, 4
      %v1993 = vrot.slane %v1874, 5
      %v1994 = vsel %vm1004, %v1992, %v1993
      %v1995 = vrot.slane %v1875, 5
      %v1996 = vrot.slane %v1995, 4
      %v1997 = vrot.slane %v1876, 5
      %v1998 = vsel %vm1004, %v1996, %v1997
      %v1999 = vrot.slane %v1997, 4
      %v2000 = vrot.slane %v1877, 5
      %v2001 = vsel %vm1004, %v1999, %v2000
      %v2002 = vrot.slane %v1878, 5
      %v2003 = vrot.slane %v2002, 4
      %v2004 = vrot.slane %v1879, 5
      %v2005 = vsel %vm1004, %v2003, %v2004
      %v2006 = vrot.slane %v2004, 4
      %v2007 = vrot.slane %v1880, 5
      %v2008 = vsel %vm1004, %v2006, %v2007
      %v2009 = vrot.slane %v1881, 5
      %v2010 = vrot.slane %v2009, 4
      %v2011 = vrot.slane %v1882, 5
      %v2012 = vsel %vm1004, %v2010, %v2011
      %v2013 = vrot.slane %v2011, 4
      %v2014 = vrot.slane %v1883, 5
      %v2015 = vsel %vm1004, %v2013, %v2014
      %v2016 = vrot.slane %v1884, 5
      %v2017 = vrot.slane %v2016, 4
      %v2018 = vrot.slane %v1885, 5
      %v2019 = vsel %vm1004, %v2017, %v2018
      %v2020 = vrot.slane %v2018, 4
      %v2021 = vrot.slane %v1886, 5
      %v2022 = vsel %vm1004, %v2020, %v2021
      %v2023 = vrot.slane %v1887, 5
      %v2024 = vrot.slane %v2023, 4
      %v2025 = vrot.slane %v1888, 5
      %v2026 = vsel %vm1004, %v2024, %v2025
      %v2027 = vrot.slane %v2025, 4
      %v2028 = vrot.slane %v1889, 5
      %v2029 = vsel %vm1004, %v2027, %v2028
      %v2030 = vrot.slane %v1890, 5
      %v2031 = vrot.slane %v2030, 4
      %v2032 = vrot.slane %v1891, 5
      %v2033 = vsel %vm1004, %v2031, %v2032
      %v2034 = vrot.slane %v2032, 4
      %v2035 = vrot.slane %v1892, 5
      %v2036 = vsel %vm1004, %v2034, %v2035
      %v2037 = vrot.slane %v1893, 5
      %v2038 = vrot.slane %v2037, 4
      %v2039 = vrot.slane %v1894, 5
      %v2040 = vsel %vm1004, %v2038, %v2039
      %v2041 = vrot.slane %v2039, 4
      %v2042 = vrot.slane %v1895, 5
      %v2043 = vsel %vm1004, %v2041, %v2042
      %v2044 = vrot.slane %v1896, 5
      %v2045 = vrot.slane %v2044, 4
      %v2046 = vrot.slane %v1897, 5
      %v2047 = vsel %vm1004, %v2045, %v2046
      %v2048 = vrot.slane %v2046, 4
      %v2049 = vrot.slane %v1898, 5
      %v2050 = vsel %vm1004, %v2048, %v2049
      %v2051 = vrot.slane %v1899, 5
      %v2052 = vrot.slane %v2051, 4
      %v2053 = vrot.slane %v1900, 5
      %v2054 = vsel %vm1004, %v2052, %v2053
      %v2055 = vrot.slane %v2053, 4
      %v2056 = vrot.slane %v1901, 5
      %v2057 = vsel %vm1004, %v2055, %v2056
      %v2058 = vrot.slane %v1902, 5
      %v2059 = vrot.slane %v2058, 4
      %v2060 = vrot.slane %v1903, 5
      %v2061 = vsel %vm1004, %v2059, %v2060
      %v2062 = vrot.slane %v2060, 4
      %v2063 = vrot.slane %v1904, 5
      %v2064 = vsel %vm1004, %v2062, %v2063
      %v2065 = vunpack.c.l.b16 %v1956
      %v2066 = vunpack.c.l.b16 %v1959
      %v2067 = vunpack.c.l.b16 %v1963
      %v2068 = vunpack.c.l.b16 %v1966
      %v2069 = vunpack.c.l.b16 %v1970
      %v2070 = vunpack.c.l.b16 %v1973
      %v2071 = vunpack.c.l.b16 %v1977
      %v2072 = vunpack.c.l.b16 %v1980
      %v2073 = vunpack.c.l.b16 %v1984
      %v2074 = vunpack.c.l.b16 %v1987
      %v2075 = vunpack.c.l.b16 %v1991
      %v2076 = vunpack.c.l.b16 %v1994
      %v2077 = vunpack.c.l.b16 %v1998
      %v2078 = vunpack.c.l.b16 %v2001
      %v2079 = vunpack.c.l.b16 %v2005
      %v2080 = vunpack.c.l.b16 %v2008
      %v2081 = vunpack.c.l.b16 %v2012
      %v2082 = vunpack.c.l.b16 %v2015
      %v2083 = vunpack.c.l.b16 %v2019
      %v2084 = vunpack.c.l.b16 %v2022
      %v2085 = vunpack.c.l.b16 %v2026
      %v2086 = vunpack.c.l.b16 %v2029
      %v2087 = vunpack.c.l.b16 %v2033
      %v2088 = vunpack.c.l.b16 %v2036
      %v2089 = vunpack.c.l.b16 %v2040
      %v2090 = vunpack.c.l.b16 %v2043
      %v2091 = vunpack.c.l.b16 %v2047
      %v2092 = vunpack.c.l.b16 %v2050
      %v2093 = vunpack.c.l.b16 %v2054
      %v2094 = vunpack.c.l.b16 %v2057
      %v2095 = vunpack.c.l.b16 %v2061
      %v2096 = vunpack.c.l.b16 %v2064
      %v2097 = vpack.c.b16 %v2066, %v2065
      %v2098 = vpack.c.b16 %v2068, %v2067
      %v2099 = vpack.c.b16 %v2070, %v2069
      %v2100 = vpack.c.b16 %v2072, %v2071
      %v2101 = vpack.c.b16 %v2074, %v2073
      %v2102 = vpack.c.b16 %v2076, %v2075
      %v2103 = vpack.c.b16 %v2078, %v2077
      %v2104 = vpack.c.b16 %v2080, %v2079
      %v2105 = vpack.c.b16 %v2082, %v2081
      %v2106 = vpack.c.b16 %v2084, %v2083
      %v2107 = vpack.c.b16 %v2086, %v2085
      %v2108 = vpack.c.b16 %v2088, %v2087
      %v2109 = vpack.c.b16 %v2090, %v2089
      %v2110 = vpack.c.b16 %v2092, %v2091
      %v2111 = vpack.c.b16 %v2094, %v2093
      %v2112 = vpack.c.b16 %v2096, %v2095
      %2129 = vst [vmem:[#allocation2 + $0x28] sm:$0xff] %v2097
      %2130 = vst [vmem:[#allocation2 + $0x70] sm:$0xff] %v2098
      %2131 = vst [vmem:[#allocation2 + $0xb8] sm:$0xff] %v2099
      %2132 = vst [vmem:[#allocation2 + $0x100] sm:$0xff] %v2100
      %2133 = vst [vmem:[#allocation2 + $0x148] sm:$0xff] %v2101
      %2134 = vst [vmem:[#allocation2 + $0x190] sm:$0xff] %v2102
      %2135 = vst [vmem:[#allocation2 + $0x1d8] sm:$0xff] %v2103
      %2136 = vst [vmem:[#allocation2 + $0x220] sm:$0xff] %v2104
      %2137 = vst [vmem:[#allocation2 + $0x268] sm:$0xff] %v2105
      %2138 = vst [vmem:[#allocation2 + $0x2b0] sm:$0xff] %v2106
      %2139 = vst [vmem:[#allocation2 + $0x2f8] sm:$0xff] %v2107
      %2140 = vst [vmem:[#allocation2 + $0x340] sm:$0xff] %v2108
      %2141 = vst [vmem:[#allocation2 + $0x388] sm:$0xff] %v2109
      %2142 = vst [vmem:[#allocation2 + $0x3d0] sm:$0xff] %v2110
      %2143 = vst [vmem:[#allocation2 + $0x418] sm:$0xff] %v2111
      %2144 = vst [vmem:[#allocation2 + $0x460] sm:$0xff] %v2112
      %s2145 = sadd.s32 %s243, 2
      %s2146 = smul.u32 %s2145, 3
      %s2147 = smul.addr %s2146, 4
      %s2148 = scalar_lea.vmem %s220, %s2147
      %v2149 = vld [vmem:[%s2148] sm:$0xf]
      %v2150 = vld [vmem:[%s2148 + $0x4] sm:$0xf]
      %v2151 = vld [vmem:[%s2148 + $0xc] sm:$0xf]
      %v2152 = vld [vmem:[%s2148 + $0x10] sm:$0xf]
      %v2153 = vld [vmem:[%s2148 + $0x18] sm:$0xf]
      %v2154 = vld [vmem:[%s2148 + $0x1c] sm:$0xf]
      %v2155 = vld [vmem:[%s2148 + $0x24] sm:$0xf]
      %v2156 = vld [vmem:[%s2148 + $0x28] sm:$0xf]
      %v2157 = vld [vmem:[%s2148 + $0x30] sm:$0xf]
      %v2158 = vld [vmem:[%s2148 + $0x34] sm:$0xf]
      %v2159 = vld [vmem:[%s2148 + $0x3c] sm:$0xf]
      %v2160 = vld [vmem:[%s2148 + $0x40] sm:$0xf]
      %v2161 = vld [vmem:[%s2148 + $0x48] sm:$0xf]
      %v2162 = vld [vmem:[%s2148 + $0x4c] sm:$0xf]
      %v2163 = vld [vmem:[%s2148 + $0x54] sm:$0xf]
      %v2164 = vld [vmem:[%s2148 + $0x58] sm:$0xf]
      %v2165 = vld [vmem:[%s2148 + $0x60] sm:$0xf]
      %v2166 = vld [vmem:[%s2148 + $0x64] sm:$0xf]
      %v2167 = vld [vmem:[%s2148 + $0x6c] sm:$0xf]
      %v2168 = vld [vmem:[%s2148 + $0x70] sm:$0xf]
      %v2169 = vld [vmem:[%s2148 + $0x78] sm:$0xf]
      %v2170 = vld [vmem:[%s2148 + $0x7c] sm:$0xf]
      %v2171 = vld [vmem:[%s2148 + $0x84] sm:$0xf]
      %v2172 = vld [vmem:[%s2148 + $0x88] sm:$0xf]
      %v2173 = vld [vmem:[%s2148 + $0x90] sm:$0xf]
      %v2174 = vld [vmem:[%s2148 + $0x94] sm:$0xf]
      %v2175 = vld [vmem:[%s2148 + $0x9c] sm:$0xf]
      %v2176 = vld [vmem:[%s2148 + $0xa0] sm:$0xf]
      %v2177 = vld [vmem:[%s2148 + $0xa8] sm:$0xf]
      %v2178 = vld [vmem:[%s2148 + $0xac] sm:$0xf]
      %v2179 = vld [vmem:[%s2148 + $0xb4] sm:$0xf]
      %v2180 = vld [vmem:[%s2148 + $0xb8] sm:$0xf]
      %v2213 = vunpack.c.l.b16 %v2149
      %v2214 = vunpack.c.l.b16 %v2150
      %v2215 = vunpack.c.l.b16 %v2151
      %v2216 = vunpack.c.l.b16 %v2152
      %v2217 = vunpack.c.l.b16 %v2153
      %v2218 = vunpack.c.l.b16 %v2154
      %v2219 = vunpack.c.l.b16 %v2155
      %v2220 = vunpack.c.l.b16 %v2156
      %v2221 = vunpack.c.l.b16 %v2157
      %v2222 = vunpack.c.l.b16 %v2158
      %v2223 = vunpack.c.l.b16 %v2159
      %v2224 = vunpack.c.l.b16 %v2160
      %v2225 = vunpack.c.l.b16 %v2161
      %v2226 = vunpack.c.l.b16 %v2162
      %v2227 = vunpack.c.l.b16 %v2163
      %v2228 = vunpack.c.l.b16 %v2164
      %v2229 = vunpack.c.l.b16 %v2165
      %v2230 = vunpack.c.l.b16 %v2166
      %v2231 = vunpack.c.l.b16 %v2167
      %v2232 = vunpack.c.l.b16 %v2168
      %v2233 = vunpack.c.l.b16 %v2169
      %v2234 = vunpack.c.l.b16 %v2170
      %v2235 = vunpack.c.l.b16 %v2171
      %v2236 = vunpack.c.l.b16 %v2172
      %v2237 = vunpack.c.l.b16 %v2173
      %v2238 = vunpack.c.l.b16 %v2174
      %v2239 = vunpack.c.l.b16 %v2175
      %v2240 = vunpack.c.l.b16 %v2176
      %v2241 = vunpack.c.l.b16 %v2177
      %v2242 = vunpack.c.l.b16 %v2178
      %v2243 = vunpack.c.l.b16 %v2179
      %v2244 = vunpack.c.l.b16 %v2180
      %v2245 = vpack.c.b16 %v2214, %v2213
      %v2246 = vpack.c.b16 %v2216, %v2215
      %v2247 = vpack.c.b16 %v2218, %v2217
      %v2248 = vpack.c.b16 %v2220, %v2219
      %v2249 = vpack.c.b16 %v2222, %v2221
      %v2250 = vpack.c.b16 %v2224, %v2223
      %v2251 = vpack.c.b16 %v2226, %v2225
      %v2252 = vpack.c.b16 %v2228, %v2227
      %v2253 = vpack.c.b16 %v2230, %v2229
      %v2254 = vpack.c.b16 %v2232, %v2231
      %v2255 = vpack.c.b16 %v2234, %v2233
      %v2256 = vpack.c.b16 %v2236, %v2235
      %v2257 = vpack.c.b16 %v2238, %v2237
      %v2258 = vpack.c.b16 %v2240, %v2239
      %v2259 = vpack.c.b16 %v2242, %v2241
      %v2260 = vpack.c.b16 %v2244, %v2243
      %2277 = vst [vmem:[#allocation2 + $0x30] sm:$0xff] %v2245
      %2278 = vst [vmem:[#allocation2 + $0x78] sm:$0xff] %v2246
      %2279 = vst [vmem:[#allocation2 + $0xc0] sm:$0xff] %v2247
      %2280 = vst [vmem:[#allocation2 + $0x108] sm:$0xff] %v2248
      %2281 = vst [vmem:[#allocation2 + $0x150] sm:$0xff] %v2249
      %2282 = vst [vmem:[#allocation2 + $0x198] sm:$0xff] %v2250
      %2283 = vst [vmem:[#allocation2 + $0x1e0] sm:$0xff] %v2251
      %2284 = vst [vmem:[#allocation2 + $0x228] sm:$0xff] %v2252
      %2285 = vst [vmem:[#allocation2 + $0x270] sm:$0xff] %v2253
      %2286 = vst [vmem:[#allocation2 + $0x2b8] sm:$0xff] %v2254
      %2287 = vst [vmem:[#allocation2 + $0x300] sm:$0xff] %v2255
      %2288 = vst [vmem:[#allocation2 + $0x348] sm:$0xff] %v2256
      %2289 = vst [vmem:[#allocation2 + $0x390] sm:$0xff] %v2257
      %2290 = vst [vmem:[#allocation2 + $0x3d8] sm:$0xff] %v2258
      %2291 = vst [vmem:[#allocation2 + $0x420] sm:$0xff] %v2259
      %2292 = vst [vmem:[#allocation2 + $0x468] sm:$0xff] %v2260
      %v2293 = vld [vmem:[%s2148] sm:$0xf]
      %v2294 = vld [vmem:[%s2148 + $0x4] sm:$0xf]
      %v2295 = vld [vmem:[%s2148 + $0x8] sm:$0x1]
      %v2296 = vld [vmem:[%s2148 + $0xc] sm:$0xf]
      %v2297 = vld [vmem:[%s2148 + $0x10] sm:$0xf]
      %v2298 = vld [vmem:[%s2148 + $0x14] sm:$0x1]
      %v2299 = vld [vmem:[%s2148 + $0x18] sm:$0xf]
      %v2300 = vld [vmem:[%s2148 + $0x1c] sm:$0xf]
      %v2301 = vld [vmem:[%s2148 + $0x20] sm:$0x1]
      %v2302 = vld [vmem:[%s2148 + $0x24] sm:$0xf]
      %v2303 = vld [vmem:[%s2148 + $0x28] sm:$0xf]
      %v2304 = vld [vmem:[%s2148 + $0x2c] sm:$0x1]
      %v2305 = vld [vmem:[%s2148 + $0x30] sm:$0xf]
      %v2306 = vld [vmem:[%s2148 + $0x34] sm:$0xf]
      %v2307 = vld [vmem:[%s2148 + $0x38] sm:$0x1]
      %v2308 = vld [vmem:[%s2148 + $0x3c] sm:$0xf]
      %v2309 = vld [vmem:[%s2148 + $0x40] sm:$0xf]
      %v2310 = vld [vmem:[%s2148 + $0x44] sm:$0x1]
      %v2311 = vld [vmem:[%s2148 + $0x48] sm:$0xf]
      %v2312 = vld [vmem:[%s2148 + $0x4c] sm:$0xf]
      %v2313 = vld [vmem:[%s2148 + $0x50] sm:$0x1]
      %v2314 = vld [vmem:[%s2148 + $0x54] sm:$0xf]
      %v2315 = vld [vmem:[%s2148 + $0x58] sm:$0xf]
      %v2316 = vld [vmem:[%s2148 + $0x5c] sm:$0x1]
      %v2317 = vld [vmem:[%s2148 + $0x60] sm:$0xf]
      %v2318 = vld [vmem:[%s2148 + $0x64] sm:$0xf]
      %v2319 = vld [vmem:[%s2148 + $0x68] sm:$0x1]
      %v2320 = vld [vmem:[%s2148 + $0x6c] sm:$0xf]
      %v2321 = vld [vmem:[%s2148 + $0x70] sm:$0xf]
      %v2322 = vld [vmem:[%s2148 + $0x74] sm:$0x1]
      %v2323 = vld [vmem:[%s2148 + $0x78] sm:$0xf]
      %v2324 = vld [vmem:[%s2148 + $0x7c] sm:$0xf]
      %v2325 = vld [vmem:[%s2148 + $0x80] sm:$0x1]
      %v2326 = vld [vmem:[%s2148 + $0x84] sm:$0xf]
      %v2327 = vld [vmem:[%s2148 + $0x88] sm:$0xf]
      %v2328 = vld [vmem:[%s2148 + $0x8c] sm:$0x1]
      %v2329 = vld [vmem:[%s2148 + $0x90] sm:$0xf]
      %v2330 = vld [vmem:[%s2148 + $0x94] sm:$0xf]
      %v2331 = vld [vmem:[%s2148 + $0x98] sm:$0x1]
      %v2332 = vld [vmem:[%s2148 + $0x9c] sm:$0xf]
      %v2333 = vld [vmem:[%s2148 + $0xa0] sm:$0xf]
      %v2334 = vld [vmem:[%s2148 + $0xa4] sm:$0x1]
      %v2335 = vld [vmem:[%s2148 + $0xa8] sm:$0xf]
      %v2336 = vld [vmem:[%s2148 + $0xac] sm:$0xf]
      %v2337 = vld [vmem:[%s2148 + $0xb0] sm:$0x1]
      %v2338 = vld [vmem:[%s2148 + $0xb4] sm:$0xf]
      %v2339 = vld [vmem:[%s2148 + $0xb8] sm:$0xf]
      %v2340 = vld [vmem:[%s2148 + $0xbc] sm:$0x1]
      %v2342 = vshrl.u32 %v2293, 16
      %v2344 = vrot.slane %v2342, 4
      %v2345 = vshll.u32 %v2293, 16
      %v2347 = vrot.slane %v2345, 5
      %v2348 = vor.u32 %v2344, %v2347
      %v2349 = vrot.slane %v2348, 4
      %v2351 = vshll.u32 %v2294, 16
      %v2353 = vrot.slane %v2351, 5
      %v2354 = vsel %vm441, %v2349, %v2353
      %v2355 = vshrl.u32 %v2294, 16
      %v2357 = vrot.slane %v2355, 4
      %v2358 = vor.u32 %v2357, %v2353
      %v2359 = vrot.slane %v2358, 4
      %v2361 = vshll.u32 %v2295, 16
      %v2363 = vrot.slane %v2361, 5
      %v2364 = vsel %vm441, %v2359, %v2363
      %v2366 = vshrl.u32 %v2296, 16
      %v2368 = vrot.slane %v2366, 4
      %v2369 = vshll.u32 %v2296, 16
      %v2371 = vrot.slane %v2369, 5
      %v2372 = vor.u32 %v2368, %v2371
      %v2373 = vrot.slane %v2372, 4
      %v2375 = vshll.u32 %v2297, 16
      %v2377 = vrot.slane %v2375, 5
      %v2378 = vsel %vm441, %v2373, %v2377
      %v2379 = vshrl.u32 %v2297, 16
      %v2381 = vrot.slane %v2379, 4
      %v2382 = vor.u32 %v2381, %v2377
      %v2383 = vrot.slane %v2382, 4
      %v2385 = vshll.u32 %v2298, 16
      %v2387 = vrot.slane %v2385, 5
      %v2388 = vsel %vm441, %v2383, %v2387
      %v2390 = vshrl.u32 %v2299, 16
      %v2392 = vrot.slane %v2390, 4
      %v2393 = vshll.u32 %v2299, 16
      %v2395 = vrot.slane %v2393, 5
      %v2396 = vor.u32 %v2392, %v2395
      %v2397 = vrot.slane %v2396, 4
      %v2399 = vshll.u32 %v2300, 16
      %v2401 = vrot.slane %v2399, 5
      %v2402 = vsel %vm441, %v2397, %v2401
      %v2403 = vshrl.u32 %v2300, 16
      %v2405 = vrot.slane %v2403, 4
      %v2406 = vor.u32 %v2405, %v2401
      %v2407 = vrot.slane %v2406, 4
      %v2409 = vshll.u32 %v2301, 16
      %v2411 = vrot.slane %v2409, 5
      %v2412 = vsel %vm441, %v2407, %v2411
      %v2414 = vshrl.u32 %v2302, 16
      %v2416 = vrot.slane %v2414, 4
      %v2417 = vshll.u32 %v2302, 16
      %v2419 = vrot.slane %v2417, 5
      %v2420 = vor.u32 %v2416, %v2419
      %v2421 = vrot.slane %v2420, 4
      %v2423 = vshll.u32 %v2303, 16
      %v2425 = vrot.slane %v2423, 5
      %v2426 = vsel %vm441, %v2421, %v2425
      %v2427 = vshrl.u32 %v2303, 16
      %v2429 = vrot.slane %v2427, 4
      %v2430 = vor.u32 %v2429, %v2425
      %v2431 = vrot.slane %v2430, 4
      %v2433 = vshll.u32 %v2304, 16
      %v2435 = vrot.slane %v2433, 5
      %v2436 = vsel %vm441, %v2431, %v2435
      %v2438 = vshrl.u32 %v2305, 16
      %v2440 = vrot.slane %v2438, 4
      %v2441 = vshll.u32 %v2305, 16
      %v2443 = vrot.slane %v2441, 5
      %v2444 = vor.u32 %v2440, %v2443
      %v2445 = vrot.slane %v2444, 4
      %v2447 = vshll.u32 %v2306, 16
      %v2449 = vrot.slane %v2447, 5
      %v2450 = vsel %vm441, %v2445, %v2449
      %v2451 = vshrl.u32 %v2306, 16
      %v2453 = vrot.slane %v2451, 4
      %v2454 = vor.u32 %v2453, %v2449
      %v2455 = vrot.slane %v2454, 4
      %v2457 = vshll.u32 %v2307, 16
      %v2459 = vrot.slane %v2457, 5
      %v2460 = vsel %vm441, %v2455, %v2459
      %v2462 = vshrl.u32 %v2308, 16
      %v2464 = vrot.slane %v2462, 4
      %v2465 = vshll.u32 %v2308, 16
      %v2467 = vrot.slane %v2465, 5
      %v2468 = vor.u32 %v2464, %v2467
      %v2469 = vrot.slane %v2468, 4
      %v2471 = vshll.u32 %v2309, 16
      %v2473 = vrot.slane %v2471, 5
      %v2474 = vsel %vm441, %v2469, %v2473
      %v2475 = vshrl.u32 %v2309, 16
      %v2477 = vrot.slane %v2475, 4
      %v2478 = vor.u32 %v2477, %v2473
      %v2479 = vrot.slane %v2478, 4
      %v2481 = vshll.u32 %v2310, 16
      %v2483 = vrot.slane %v2481, 5
      %v2484 = vsel %vm441, %v2479, %v2483
      %v2486 = vshrl.u32 %v2311, 16
      %v2488 = vrot.slane %v2486, 4
      %v2489 = vshll.u32 %v2311, 16
      %v2491 = vrot.slane %v2489, 5
      %v2492 = vor.u32 %v2488, %v2491
      %v2493 = vrot.slane %v2492, 4
      %v2495 = vshll.u32 %v2312, 16
      %v2497 = vrot.slane %v2495, 5
      %v2498 = vsel %vm441, %v2493, %v2497
      %v2499 = vshrl.u32 %v2312, 16
      %v2501 = vrot.slane %v2499, 4
      %v2502 = vor.u32 %v2501, %v2497
      %v2503 = vrot.slane %v2502, 4
      %v2505 = vshll.u32 %v2313, 16
      %v2507 = vrot.slane %v2505, 5
      %v2508 = vsel %vm441, %v2503, %v2507
      %v2510 = vshrl.u32 %v2314, 16
      %v2512 = vrot.slane %v2510, 4
      %v2513 = vshll.u32 %v2314, 16
      %v2515 = vrot.slane %v2513, 5
      %v2516 = vor.u32 %v2512, %v2515
      %v2517 = vrot.slane %v2516, 4
      %v2519 = vshll.u32 %v2315, 16
      %v2521 = vrot.slane %v2519, 5
      %v2522 = vsel %vm441, %v2517, %v2521
      %v2523 = vshrl.u32 %v2315, 16
      %v2525 = vrot.slane %v2523, 4
      %v2526 = vor.u32 %v2525, %v2521
      %v2527 = vrot.slane %v2526, 4
      %v2529 = vshll.u32 %v2316, 16
      %v2531 = vrot.slane %v2529, 5
      %v2532 = vsel %vm441, %v2527, %v2531
      %v2534 = vshrl.u32 %v2317, 16
      %v2536 = vrot.slane %v2534, 4
      %v2537 = vshll.u32 %v2317, 16
      %v2539 = vrot.slane %v2537, 5
      %v2540 = vor.u32 %v2536, %v2539
      %v2541 = vrot.slane %v2540, 4
      %v2543 = vshll.u32 %v2318, 16
      %v2545 = vrot.slane %v2543, 5
      %v2546 = vsel %vm441, %v2541, %v2545
      %v2547 = vshrl.u32 %v2318, 16
      %v2549 = vrot.slane %v2547, 4
      %v2550 = vor.u32 %v2549, %v2545
      %v2551 = vrot.slane %v2550, 4
      %v2553 = vshll.u32 %v2319, 16
      %v2555 = vrot.slane %v2553, 5
      %v2556 = vsel %vm441, %v2551, %v2555
      %v2558 = vshrl.u32 %v2320, 16
      %v2560 = vrot.slane %v2558, 4
      %v2561 = vshll.u32 %v2320, 16
      %v2563 = vrot.slane %v2561, 5
      %v2564 = vor.u32 %v2560, %v2563
      %v2565 = vrot.slane %v2564, 4
      %v2567 = vshll.u32 %v2321, 16
      %v2569 = vrot.slane %v2567, 5
      %v2570 = vsel %vm441, %v2565, %v2569
      %v2571 = vshrl.u32 %v2321, 16
      %v2573 = vrot.slane %v2571, 4
      %v2574 = vor.u32 %v2573, %v2569
      %v2575 = vrot.slane %v2574, 4
      %v2577 = vshll.u32 %v2322, 16
      %v2579 = vrot.slane %v2577, 5
      %v2580 = vsel %vm441, %v2575, %v2579
      %v2582 = vshrl.u32 %v2323, 16
      %v2584 = vrot.slane %v2582, 4
      %v2585 = vshll.u32 %v2323, 16
      %v2587 = vrot.slane %v2585, 5
      %v2588 = vor.u32 %v2584, %v2587
      %v2589 = vrot.slane %v2588, 4
      %v2591 = vshll.u32 %v2324, 16
      %v2593 = vrot.slane %v2591, 5
      %v2594 = vsel %vm441, %v2589, %v2593
      %v2595 = vshrl.u32 %v2324, 16
      %v2597 = vrot.slane %v2595, 4
      %v2598 = vor.u32 %v2597, %v2593
      %v2599 = vrot.slane %v2598, 4
      %v2601 = vshll.u32 %v2325, 16
      %v2603 = vrot.slane %v2601, 5
      %v2604 = vsel %vm441, %v2599, %v2603
      %v2606 = vshrl.u32 %v2326, 16
      %v2608 = vrot.slane %v2606, 4
      %v2609 = vshll.u32 %v2326, 16
      %v2611 = vrot.slane %v2609, 5
      %v2612 = vor.u32 %v2608, %v2611
      %v2613 = vrot.slane %v2612, 4
      %v2615 = vshll.u32 %v2327, 16
      %v2617 = vrot.slane %v2615, 5
      %v2618 = vsel %vm441, %v2613, %v2617
      %v2619 = vshrl.u32 %v2327, 16
      %v2621 = vrot.slane %v2619, 4
      %v2622 = vor.u32 %v2621, %v2617
      %v2623 = vrot.slane %v2622, 4
      %v2625 = vshll.u32 %v2328, 16
      %v2627 = vrot.slane %v2625, 5
      %v2628 = vsel %vm441, %v2623, %v2627
      %v2630 = vshrl.u32 %v2329, 16
      %v2632 = vrot.slane %v2630, 4
      %v2633 = vshll.u32 %v2329, 16
      %v2635 = vrot.slane %v2633, 5
      %v2636 = vor.u32 %v2632, %v2635
      %v2637 = vrot.slane %v2636, 4
      %v2639 = vshll.u32 %v2330, 16
      %v2641 = vrot.slane %v2639, 5
      %v2642 = vsel %vm441, %v2637, %v2641
      %v2643 = vshrl.u32 %v2330, 16
      %v2645 = vrot.slane %v2643, 4
      %v2646 = vor.u32 %v2645, %v2641
      %v2647 = vrot.slane %v2646, 4
      %v2649 = vshll.u32 %v2331, 16
      %v2651 = vrot.slane %v2649, 5
      %v2652 = vsel %vm441, %v2647, %v2651
      %v2654 = vshrl.u32 %v2332, 16
      %v2656 = vrot.slane %v2654, 4
      %v2657 = vshll.u32 %v2332, 16
      %v2659 = vrot.slane %v2657, 5
      %v2660 = vor.u32 %v2656, %v2659
      %v2661 = vrot.slane %v2660, 4
      %v2663 = vshll.u32 %v2333, 16
      %v2665 = vrot.slane %v2663, 5
      %v2666 = vsel %vm441, %v2661, %v2665
      %v2667 = vshrl.u32 %v2333, 16
      %v2669 = vrot.slane %v2667, 4
      %v2670 = vor.u32 %v2669, %v2665
      %v2671 = vrot.slane %v2670, 4
      %v2673 = vshll.u32 %v2334, 16
      %v2675 = vrot.slane %v2673, 5
      %v2676 = vsel %vm441, %v2671, %v2675
      %v2678 = vshrl.u32 %v2335, 16
      %v2680 = vrot.slane %v2678, 4
      %v2681 = vshll.u32 %v2335, 16
      %v2683 = vrot.slane %v2681, 5
      %v2684 = vor.u32 %v2680, %v2683
      %v2685 = vrot.slane %v2684, 4
      %v2687 = vshll.u32 %v2336, 16
      %v2689 = vrot.slane %v2687, 5
      %v2690 = vsel %vm441, %v2685, %v2689
      %v2691 = vshrl.u32 %v2336, 16
      %v2693 = vrot.slane %v2691, 4
      %v2694 = vor.u32 %v2693, %v2689
      %v2695 = vrot.slane %v2694, 4
      %v2697 = vshll.u32 %v2337, 16
      %v2699 = vrot.slane %v2697, 5
      %v2700 = vsel %vm441, %v2695, %v2699
      %v2702 = vshrl.u32 %v2338, 16
      %v2704 = vrot.slane %v2702, 4
      %v2705 = vshll.u32 %v2338, 16
      %v2707 = vrot.slane %v2705, 5
      %v2708 = vor.u32 %v2704, %v2707
      %v2709 = vrot.slane %v2708, 4
      %v2711 = vshll.u32 %v2339, 16
      %v2713 = vrot.slane %v2711, 5
      %v2714 = vsel %vm441, %v2709, %v2713
      %v2715 = vshrl.u32 %v2339, 16
      %v2717 = vrot.slane %v2715, 4
      %v2718 = vor.u32 %v2717, %v2713
      %v2719 = vrot.slane %v2718, 4
      %v2721 = vshll.u32 %v2340, 16
      %v2723 = vrot.slane %v2721, 5
      %v2724 = vsel %vm441, %v2719, %v2723
      %v2725 = vunpack.c.l.b16 %v2354
      %v2726 = vunpack.c.l.b16 %v2364
      %v2727 = vunpack.c.l.b16 %v2378
      %v2728 = vunpack.c.l.b16 %v2388
      %v2729 = vunpack.c.l.b16 %v2402
      %v2730 = vunpack.c.l.b16 %v2412
      %v2731 = vunpack.c.l.b16 %v2426
      %v2732 = vunpack.c.l.b16 %v2436
      %v2733 = vunpack.c.l.b16 %v2450
      %v2734 = vunpack.c.l.b16 %v2460
      %v2735 = vunpack.c.l.b16 %v2474
      %v2736 = vunpack.c.l.b16 %v2484
      %v2737 = vunpack.c.l.b16 %v2498
      %v2738 = vunpack.c.l.b16 %v2508
      %v2739 = vunpack.c.l.b16 %v2522
      %v2740 = vunpack.c.l.b16 %v2532
      %v2741 = vunpack.c.l.b16 %v2546
      %v2742 = vunpack.c.l.b16 %v2556
      %v2743 = vunpack.c.l.b16 %v2570
      %v2744 = vunpack.c.l.b16 %v2580
      %v2745 = vunpack.c.l.b16 %v2594
      %v2746 = vunpack.c.l.b16 %v2604
      %v2747 = vunpack.c.l.b16 %v2618
      %v2748 = vunpack.c.l.b16 %v2628
      %v2749 = vunpack.c.l.b16 %v2642
      %v2750 = vunpack.c.l.b16 %v2652
      %v2751 = vunpack.c.l.b16 %v2666
      %v2752 = vunpack.c.l.b16 %v2676
      %v2753 = vunpack.c.l.b16 %v2690
      %v2754 = vunpack.c.l.b16 %v2700
      %v2755 = vunpack.c.l.b16 %v2714
      %v2756 = vunpack.c.l.b16 %v2724
      %v2757 = vpack.c.b16 %v2726, %v2725
      %v2758 = vpack.c.b16 %v2728, %v2727
      %v2759 = vpack.c.b16 %v2730, %v2729
      %v2760 = vpack.c.b16 %v2732, %v2731
      %v2761 = vpack.c.b16 %v2734, %v2733
      %v2762 = vpack.c.b16 %v2736, %v2735
      %v2763 = vpack.c.b16 %v2738, %v2737
      %v2764 = vpack.c.b16 %v2740, %v2739
      %v2765 = vpack.c.b16 %v2742, %v2741
      %v2766 = vpack.c.b16 %v2744, %v2743
      %v2767 = vpack.c.b16 %v2746, %v2745
      %v2768 = vpack.c.b16 %v2748, %v2747
      %v2769 = vpack.c.b16 %v2750, %v2749
      %v2770 = vpack.c.b16 %v2752, %v2751
      %v2771 = vpack.c.b16 %v2754, %v2753
      %v2772 = vpack.c.b16 %v2756, %v2755
      %2789 = vst [vmem:[#allocation2 + $0x38] sm:$0xff] %v2757
      %2790 = vst [vmem:[#allocation2 + $0x80] sm:$0xff] %v2758
      %2791 = vst [vmem:[#allocation2 + $0xc8] sm:$0xff] %v2759
      %2792 = vst [vmem:[#allocation2 + $0x110] sm:$0xff] %v2760
      %2793 = vst [vmem:[#allocation2 + $0x158] sm:$0xff] %v2761
      %2794 = vst [vmem:[#allocation2 + $0x1a0] sm:$0xff] %v2762
      %2795 = vst [vmem:[#allocation2 + $0x1e8] sm:$0xff] %v2763
      %2796 = vst [vmem:[#allocation2 + $0x230] sm:$0xff] %v2764
      %2797 = vst [vmem:[#allocation2 + $0x278] sm:$0xff] %v2765
      %2798 = vst [vmem:[#allocation2 + $0x2c0] sm:$0xff] %v2766
      %2799 = vst [vmem:[#allocation2 + $0x308] sm:$0xff] %v2767
      %2800 = vst [vmem:[#allocation2 + $0x350] sm:$0xff] %v2768
      %2801 = vst [vmem:[#allocation2 + $0x398] sm:$0xff] %v2769
      %2802 = vst [vmem:[#allocation2 + $0x3e0] sm:$0xff] %v2770
      %2803 = vst [vmem:[#allocation2 + $0x428] sm:$0xff] %v2771
      %2804 = vst [vmem:[#allocation2 + $0x470] sm:$0xff] %v2772
      %v2805 = vld [vmem:[%s2148] sm:$0xe]
      %v2806 = vld [vmem:[%s2148 + $0x4] sm:$0xf]
      %v2807 = vld [vmem:[%s2148 + $0x8] sm:$0x1]
      %v2808 = vld [vmem:[%s2148 + $0xc] sm:$0xe]
      %v2809 = vld [vmem:[%s2148 + $0x10] sm:$0xf]
      %v2810 = vld [vmem:[%s2148 + $0x14] sm:$0x1]
      %v2811 = vld [vmem:[%s2148 + $0x18] sm:$0xe]
      %v2812 = vld [vmem:[%s2148 + $0x1c] sm:$0xf]
      %v2813 = vld [vmem:[%s2148 + $0x20] sm:$0x1]
      %v2814 = vld [vmem:[%s2148 + $0x24] sm:$0xe]
      %v2815 = vld [vmem:[%s2148 + $0x28] sm:$0xf]
      %v2816 = vld [vmem:[%s2148 + $0x2c] sm:$0x1]
      %v2817 = vld [vmem:[%s2148 + $0x30] sm:$0xe]
      %v2818 = vld [vmem:[%s2148 + $0x34] sm:$0xf]
      %v2819 = vld [vmem:[%s2148 + $0x38] sm:$0x1]
      %v2820 = vld [vmem:[%s2148 + $0x3c] sm:$0xe]
      %v2821 = vld [vmem:[%s2148 + $0x40] sm:$0xf]
      %v2822 = vld [vmem:[%s2148 + $0x44] sm:$0x1]
      %v2823 = vld [vmem:[%s2148 + $0x48] sm:$0xe]
      %v2824 = vld [vmem:[%s2148 + $0x4c] sm:$0xf]
      %v2825 = vld [vmem:[%s2148 + $0x50] sm:$0x1]
      %v2826 = vld [vmem:[%s2148 + $0x54] sm:$0xe]
      %v2827 = vld [vmem:[%s2148 + $0x58] sm:$0xf]
      %v2828 = vld [vmem:[%s2148 + $0x5c] sm:$0x1]
      %v2829 = vld [vmem:[%s2148 + $0x60] sm:$0xe]
      %v2830 = vld [vmem:[%s2148 + $0x64] sm:$0xf]
      %v2831 = vld [vmem:[%s2148 + $0x68] sm:$0x1]
      %v2832 = vld [vmem:[%s2148 + $0x6c] sm:$0xe]
      %v2833 = vld [vmem:[%s2148 + $0x70] sm:$0xf]
      %v2834 = vld [vmem:[%s2148 + $0x74] sm:$0x1]
      %v2835 = vld [vmem:[%s2148 + $0x78] sm:$0xe]
      %v2836 = vld [vmem:[%s2148 + $0x7c] sm:$0xf]
      %v2837 = vld [vmem:[%s2148 + $0x80] sm:$0x1]
      %v2838 = vld [vmem:[%s2148 + $0x84] sm:$0xe]
      %v2839 = vld [vmem:[%s2148 + $0x88] sm:$0xf]
      %v2840 = vld [vmem:[%s2148 + $0x8c] sm:$0x1]
      %v2841 = vld [vmem:[%s2148 + $0x90] sm:$0xe]
      %v2842 = vld [vmem:[%s2148 + $0x94] sm:$0xf]
      %v2843 = vld [vmem:[%s2148 + $0x98] sm:$0x1]
      %v2844 = vld [vmem:[%s2148 + $0x9c] sm:$0xe]
      %v2845 = vld [vmem:[%s2148 + $0xa0] sm:$0xf]
      %v2846 = vld [vmem:[%s2148 + $0xa4] sm:$0x1]
      %v2847 = vld [vmem:[%s2148 + $0xa8] sm:$0xe]
      %v2848 = vld [vmem:[%s2148 + $0xac] sm:$0xf]
      %v2849 = vld [vmem:[%s2148 + $0xb0] sm:$0x1]
      %v2850 = vld [vmem:[%s2148 + $0xb4] sm:$0xe]
      %v2851 = vld [vmem:[%s2148 + $0xb8] sm:$0xf]
      %v2852 = vld [vmem:[%s2148 + $0xbc] sm:$0x1]
      %v2901 = vrot.slane %v2805, 5
      %v2902 = vrot.slane %v2901, 4
      %v2903 = vrot.slane %v2806, 5
      %v2904 = vsel %vm1004, %v2902, %v2903
      %v2905 = vrot.slane %v2903, 4
      %v2906 = vrot.slane %v2807, 5
      %v2907 = vsel %vm1004, %v2905, %v2906
      %v2908 = vrot.slane %v2808, 5
      %v2909 = vrot.slane %v2908, 4
      %v2910 = vrot.slane %v2809, 5
      %v2911 = vsel %vm1004, %v2909, %v2910
      %v2912 = vrot.slane %v2910, 4
      %v2913 = vrot.slane %v2810, 5
      %v2914 = vsel %vm1004, %v2912, %v2913
      %v2915 = vrot.slane %v2811, 5
      %v2916 = vrot.slane %v2915, 4
      %v2917 = vrot.slane %v2812, 5
      %v2918 = vsel %vm1004, %v2916, %v2917
      %v2919 = vrot.slane %v2917, 4
      %v2920 = vrot.slane %v2813, 5
      %v2921 = vsel %vm1004, %v2919, %v2920
      %v2922 = vrot.slane %v2814, 5
      %v2923 = vrot.slane %v2922, 4
      %v2924 = vrot.slane %v2815, 5
      %v2925 = vsel %vm1004, %v2923, %v2924
      %v2926 = vrot.slane %v2924, 4
      %v2927 = vrot.slane %v2816, 5
      %v2928 = vsel %vm1004, %v2926, %v2927
      %v2929 = vrot.slane %v2817, 5
      %v2930 = vrot.slane %v2929, 4
      %v2931 = vrot.slane %v2818, 5
      %v2932 = vsel %vm1004, %v2930, %v2931
      %v2933 = vrot.slane %v2931, 4
      %v2934 = vrot.slane %v2819, 5
      %v2935 = vsel %vm1004, %v2933, %v2934
      %v2936 = vrot.slane %v2820, 5
      %v2937 = vrot.slane %v2936, 4
      %v2938 = vrot.slane %v2821, 5
      %v2939 = vsel %vm1004, %v2937, %v2938
      %v2940 = vrot.slane %v2938, 4
      %v2941 = vrot.slane %v2822, 5
      %v2942 = vsel %vm1004, %v2940, %v2941
      %v2943 = vrot.slane %v2823, 5
      %v2944 = vrot.slane %v2943, 4
      %v2945 = vrot.slane %v2824, 5
      %v2946 = vsel %vm1004, %v2944, %v2945
      %v2947 = vrot.slane %v2945, 4
      %v2948 = vrot.slane %v2825, 5
      %v2949 = vsel %vm1004, %v2947, %v2948
      %v2950 = vrot.slane %v2826, 5
      %v2951 = vrot.slane %v2950, 4
      %v2952 = vrot.slane %v2827, 5
      %v2953 = vsel %vm1004, %v2951, %v2952
      %v2954 = vrot.slane %v2952, 4
      %v2955 = vrot.slane %v2828, 5
      %v2956 = vsel %vm1004, %v2954, %v2955
      %v2957 = vrot.slane %v2829, 5
      %v2958 = vrot.slane %v2957, 4
      %v2959 = vrot.slane %v2830, 5
      %v2960 = vsel %vm1004, %v2958, %v2959
      %v2961 = vrot.slane %v2959, 4
      %v2962 = vrot.slane %v2831, 5
      %v2963 = vsel %vm1004, %v2961, %v2962
      %v2964 = vrot.slane %v2832, 5
      %v2965 = vrot.slane %v2964, 4
      %v2966 = vrot.slane %v2833, 5
      %v2967 = vsel %vm1004, %v2965, %v2966
      %v2968 = vrot.slane %v2966, 4
      %v2969 = vrot.slane %v2834, 5
      %v2970 = vsel %vm1004, %v2968, %v2969
      %v2971 = vrot.slane %v2835, 5
      %v2972 = vrot.slane %v2971, 4
      %v2973 = vrot.slane %v2836, 5
      %v2974 = vsel %vm1004, %v2972, %v2973
      %v2975 = vrot.slane %v2973, 4
      %v2976 = vrot.slane %v2837, 5
      %v2977 = vsel %vm1004, %v2975, %v2976
      %v2978 = vrot.slane %v2838, 5
      %v2979 = vrot.slane %v2978, 4
      %v2980 = vrot.slane %v2839, 5
      %v2981 = vsel %vm1004, %v2979, %v2980
      %v2982 = vrot.slane %v2980, 4
      %v2983 = vrot.slane %v2840, 5
      %v2984 = vsel %vm1004, %v2982, %v2983
      %v2985 = vrot.slane %v2841, 5
      %v2986 = vrot.slane %v2985, 4
      %v2987 = vrot.slane %v2842, 5
      %v2988 = vsel %vm1004, %v2986, %v2987
      %v2989 = vrot.slane %v2987, 4
      %v2990 = vrot.slane %v2843, 5
      %v2991 = vsel %vm1004, %v2989, %v2990
      %v2992 = vrot.slane %v2844, 5
      %v2993 = vrot.slane %v2992, 4
      %v2994 = vrot.slane %v2845, 5
      %v2995 = vsel %vm1004, %v2993, %v2994
      %v2996 = vrot.slane %v2994, 4
      %v2997 = vrot.slane %v2846, 5
      %v2998 = vsel %vm1004, %v2996, %v2997
      %v2999 = vrot.slane %v2847, 5
      %v3000 = vrot.slane %v2999, 4
      %v3001 = vrot.slane %v2848, 5
      %v3002 = vsel %vm1004, %v3000, %v3001
      %v3003 = vrot.slane %v3001, 4
      %v3004 = vrot.slane %v2849, 5
      %v3005 = vsel %vm1004, %v3003, %v3004
      %v3006 = vrot.slane %v2850, 5
      %v3007 = vrot.slane %v3006, 4
      %v3008 = vrot.slane %v2851, 5
      %v3009 = vsel %vm1004, %v3007, %v3008
      %v3010 = vrot.slane %v3008, 4
      %v3011 = vrot.slane %v2852, 5
      %v3012 = vsel %vm1004, %v3010, %v3011
      %v3013 = vunpack.c.l.b16 %v2904
      %v3014 = vunpack.c.l.b16 %v2907
      %v3015 = vunpack.c.l.b16 %v2911
      %v3016 = vunpack.c.l.b16 %v2914
      %v3017 = vunpack.c.l.b16 %v2918
      %v3018 = vunpack.c.l.b16 %v2921
      %v3019 = vunpack.c.l.b16 %v2925
      %v3020 = vunpack.c.l.b16 %v2928
      %v3021 = vunpack.c.l.b16 %v2932
      %v3022 = vunpack.c.l.b16 %v2935
      %v3023 = vunpack.c.l.b16 %v2939
      %v3024 = vunpack.c.l.b16 %v2942
      %v3025 = vunpack.c.l.b16 %v2946
      %v3026 = vunpack.c.l.b16 %v2949
      %v3027 = vunpack.c.l.b16 %v2953
      %v3028 = vunpack.c.l.b16 %v2956
      %v3029 = vunpack.c.l.b16 %v2960
      %v3030 = vunpack.c.l.b16 %v2963
      %v3031 = vunpack.c.l.b16 %v2967
      %v3032 = vunpack.c.l.b16 %v2970
      %v3033 = vunpack.c.l.b16 %v2974
      %v3034 = vunpack.c.l.b16 %v2977
      %v3035 = vunpack.c.l.b16 %v2981
      %v3036 = vunpack.c.l.b16 %v2984
      %v3037 = vunpack.c.l.b16 %v2988
      %v3038 = vunpack.c.l.b16 %v2991
      %v3039 = vunpack.c.l.b16 %v2995
      %v3040 = vunpack.c.l.b16 %v2998
      %v3041 = vunpack.c.l.b16 %v3002
      %v3042 = vunpack.c.l.b16 %v3005
      %v3043 = vunpack.c.l.b16 %v3009
      %v3044 = vunpack.c.l.b16 %v3012
      %v3045 = vpack.c.b16 %v3014, %v3013
      %v3046 = vpack.c.b16 %v3016, %v3015
      %v3047 = vpack.c.b16 %v3018, %v3017
      %v3048 = vpack.c.b16 %v3020, %v3019
      %v3049 = vpack.c.b16 %v3022, %v3021
      %v3050 = vpack.c.b16 %v3024, %v3023
      %v3051 = vpack.c.b16 %v3026, %v3025
      %v3052 = vpack.c.b16 %v3028, %v3027
      %v3053 = vpack.c.b16 %v3030, %v3029
      %v3054 = vpack.c.b16 %v3032, %v3031
      %v3055 = vpack.c.b16 %v3034, %v3033
      %v3056 = vpack.c.b16 %v3036, %v3035
      %v3057 = vpack.c.b16 %v3038, %v3037
      %v3058 = vpack.c.b16 %v3040, %v3039
      %v3059 = vpack.c.b16 %v3042, %v3041
      %v3060 = vpack.c.b16 %v3044, %v3043
      %3077 = vst [vmem:[#allocation2 + $0x40] sm:$0xff] %v3045
      %3078 = vst [vmem:[#allocation2 + $0x88] sm:$0xff] %v3046
      %3079 = vst [vmem:[#allocation2 + $0xd0] sm:$0xff] %v3047
      %3080 = vst [vmem:[#allocation2 + $0x118] sm:$0xff] %v3048
      %3081 = vst [vmem:[#allocation2 + $0x160] sm:$0xff] %v3049
      %3082 = vst [vmem:[#allocation2 + $0x1a8] sm:$0xff] %v3050
      %3083 = vst [vmem:[#allocation2 + $0x1f0] sm:$0xff] %v3051
      %3084 = vst [vmem:[#allocation2 + $0x238] sm:$0xff] %v3052
      %3085 = vst [vmem:[#allocation2 + $0x280] sm:$0xff] %v3053
      %3086 = vst [vmem:[#allocation2 + $0x2c8] sm:$0xff] %v3054
      %3087 = vst [vmem:[#allocation2 + $0x310] sm:$0xff] %v3055
      %3088 = vst [vmem:[#allocation2 + $0x358] sm:$0xff] %v3056
      %3089 = vst [vmem:[#allocation2 + $0x3a0] sm:$0xff] %v3057
      %3090 = vst [vmem:[#allocation2 + $0x3e8] sm:$0xff] %v3058
      %3091 = vst [vmem:[#allocation2 + $0x430] sm:$0xff] %v3059
      %3092 = vst [vmem:[#allocation2 + $0x478] sm:$0xff] %v3060
      %v3093 = vld [vmem:[#allocation2] sm:$0xff]
      %v3094 = vld [vmem:[#allocation2 + $0x8] sm:$0xff]
      %v3095 = vld [vmem:[#allocation2 + $0x10] sm:$0xff]
      %v3096 = vld [vmem:[#allocation2 + $0x18] sm:$0xff]
      %v3097 = vld [vmem:[#allocation2 + $0x20] sm:$0xff]
      %v3098 = vld [vmem:[#allocation2 + $0x28] sm:$0xff]
      %v3099 = vld [vmem:[#allocation2 + $0x30] sm:$0xff]
      %v3100 = vld [vmem:[#allocation2 + $0x38] sm:$0xff]
      %v3101 = vld [vmem:[#allocation2 + $0x40] sm:$0xff]
      %v3102 = vld [vmem:[#allocation2 + $0x48] sm:$0xff]
      %v3103 = vld [vmem:[#allocation2 + $0x50] sm:$0xff]
      %v3104 = vld [vmem:[#allocation2 + $0x58] sm:$0xff]
      %v3105 = vld [vmem:[#allocation2 + $0x60] sm:$0xff]
      %v3106 = vld [vmem:[#allocation2 + $0x68] sm:$0xff]
      %v3107 = vld [vmem:[#allocation2 + $0x70] sm:$0xff]
      %v3108 = vld [vmem:[#allocation2 + $0x78] sm:$0xff]
      %v3109 = vld [vmem:[#allocation2 + $0x80] sm:$0xff]
      %v3110 = vld [vmem:[#allocation2 + $0x88] sm:$0xff]
      %v3111 = vld [vmem:[#allocation2 + $0x90] sm:$0xff]
      %v3112 = vld [vmem:[#allocation2 + $0x98] sm:$0xff]
      %v3113 = vld [vmem:[#allocation2 + $0xa0] sm:$0xff]
      %v3114 = vld [vmem:[#allocation2 + $0xa8] sm:$0xff]
      %v3115 = vld [vmem:[#allocation2 + $0xb0] sm:$0xff]
      %v3116 = vld [vmem:[#allocation2 + $0xb8] sm:$0xff]
      %v3117 = vld [vmem:[#allocation2 + $0xc0] sm:$0xff]
      %v3118 = vld [vmem:[#allocation2 + $0xc8] sm:$0xff]
      %v3119 = vld [vmem:[#allocation2 + $0xd0] sm:$0xff]
      %v3120 = vld [vmem:[#allocation2 + $0xd8] sm:$0xff]
      %v3121 = vld [vmem:[#allocation2 + $0xe0] sm:$0xff]
      %v3122 = vld [vmem:[#allocation2 + $0xe8] sm:$0xff]
      %v3123 = vld [vmem:[#allocation2 + $0xf0] sm:$0xff]
      %v3124 = vld [vmem:[#allocation2 + $0xf8] sm:$0xff]
      %v3125 = vld [vmem:[#allocation2 + $0x100] sm:$0xff]
      %v3126 = vld [vmem:[#allocation2 + $0x108] sm:$0xff]
      %v3127 = vld [vmem:[#allocation2 + $0x110] sm:$0xff]
      %v3128 = vld [vmem:[#allocation2 + $0x118] sm:$0xff]
      %v3129 = vld [vmem:[#allocation2 + $0x120] sm:$0xff]
      %v3130 = vld [vmem:[#allocation2 + $0x128] sm:$0xff]
      %v3131 = vld [vmem:[#allocation2 + $0x130] sm:$0xff]
      %v3132 = vld [vmem:[#allocation2 + $0x138] sm:$0xff]
      %v3133 = vld [vmem:[#allocation2 + $0x140] sm:$0xff]
      %v3134 = vld [vmem:[#allocation2 + $0x148] sm:$0xff]
      %v3135 = vld [vmem:[#allocation2 + $0x150] sm:$0xff]
      %v3136 = vld [vmem:[#allocation2 + $0x158] sm:$0xff]
      %v3137 = vld [vmem:[#allocation2 + $0x160] sm:$0xff]
      %v3138 = vld [vmem:[#allocation2 + $0x168] sm:$0xff]
      %v3139 = vld [vmem:[#allocation2 + $0x170] sm:$0xff]
      %v3140 = vld [vmem:[#allocation2 + $0x178] sm:$0xff]
      %v3141 = vld [vmem:[#allocation2 + $0x180] sm:$0xff]
      %v3142 = vld [vmem:[#allocation2 + $0x188] sm:$0xff]
      %v3143 = vld [vmem:[#allocation2 + $0x190] sm:$0xff]
      %v3144 = vld [vmem:[#allocation2 + $0x198] sm:$0xff]
      %v3145 = vld [vmem:[#allocation2 + $0x1a0] sm:$0xff]
      %v3146 = vld [vmem:[#allocation2 + $0x1a8] sm:$0xff]
      %v3147 = vld [vmem:[#allocation2 + $0x1b0] sm:$0xff]
      %v3148 = vld [vmem:[#allocation2 + $0x1b8] sm:$0xff]
      %v3149 = vld [vmem:[#allocation2 + $0x1c0] sm:$0xff]
      %v3150 = vld [vmem:[#allocation2 + $0x1c8] sm:$0xff]
      %v3151 = vld [vmem:[#allocation2 + $0x1d0] sm:$0xff]
      %v3152 = vld [vmem:[#allocation2 + $0x1d8] sm:$0xff]
      %v3153 = vld [vmem:[#allocation2 + $0x1e0] sm:$0xff]
      %v3154 = vld [vmem:[#allocation2 + $0x1e8] sm:$0xff]
      %v3155 = vld [vmem:[#allocation2 + $0x1f0] sm:$0xff]
      %v3156 = vld [vmem:[#allocation2 + $0x1f8] sm:$0xff]
      %v3157 = vld [vmem:[#allocation2 + $0x200] sm:$0xff]
      %v3158 = vld [vmem:[#allocation2 + $0x208] sm:$0xff]
      %v3159 = vld [vmem:[#allocation2 + $0x210] sm:$0xff]
      %v3160 = vld [vmem:[#allocation2 + $0x218] sm:$0xff]
      %v3161 = vld [vmem:[#allocation2 + $0x220] sm:$0xff]
      %v3162 = vld [vmem:[#allocation2 + $0x228] sm:$0xff]
      %v3163 = vld [vmem:[#allocation2 + $0x230] sm:$0xff]
      %v3164 = vld [vmem:[#allocation2 + $0x238] sm:$0xff]
      %v3165 = vld [vmem:[#allocation2 + $0x240] sm:$0xff]
      %v3166 = vld [vmem:[#allocation2 + $0x248] sm:$0xff]
      %v3167 = vld [vmem:[#allocation2 + $0x250] sm:$0xff]
      %v3168 = vld [vmem:[#allocation2 + $0x258] sm:$0xff]
      %v3169 = vld [vmem:[#allocation2 + $0x260] sm:$0xff]
      %v3170 = vld [vmem:[#allocation2 + $0x268] sm:$0xff]
      %v3171 = vld [vmem:[#allocation2 + $0x270] sm:$0xff]
      %v3172 = vld [vmem:[#allocation2 + $0x278] sm:$0xff]
      %v3173 = vld [vmem:[#allocation2 + $0x280] sm:$0xff]
      %v3174 = vld [vmem:[#allocation2 + $0x288] sm:$0xff]
      %v3175 = vld [vmem:[#allocation2 + $0x290] sm:$0xff]
      %v3176 = vld [vmem:[#allocation2 + $0x298] sm:$0xff]
      %v3177 = vld [vmem:[#allocation2 + $0x2a0] sm:$0xff]
      %v3178 = vld [vmem:[#allocation2 + $0x2a8] sm:$0xff]
      %v3179 = vld [vmem:[#allocation2 + $0x2b0] sm:$0xff]
      %v3180 = vld [vmem:[#allocation2 + $0x2b8] sm:$0xff]
      %v3181 = vld [vmem:[#allocation2 + $0x2c0] sm:$0xff]
      %v3182 = vld [vmem:[#allocation2 + $0x2c8] sm:$0xff]
      %v3183 = vld [vmem:[#allocation2 + $0x2d0] sm:$0xff]
      %v3184 = vld [vmem:[#allocation2 + $0x2d8] sm:$0xff]
      %v3185 = vld [vmem:[#allocation2 + $0x2e0] sm:$0xff]
      %v3186 = vld [vmem:[#allocation2 + $0x2e8] sm:$0xff]
      %v3187 = vld [vmem:[#allocation2 + $0x2f0] sm:$0xff]
      %v3188 = vld [vmem:[#allocation2 + $0x2f8] sm:$0xff]
      %v3189 = vld [vmem:[#allocation2 + $0x300] sm:$0xff]
      %v3190 = vld [vmem:[#allocation2 + $0x308] sm:$0xff]
      %v3191 = vld [vmem:[#allocation2 + $0x310] sm:$0xff]
      %v3192 = vld [vmem:[#allocation2 + $0x318] sm:$0xff]
      %v3193 = vld [vmem:[#allocation2 + $0x320] sm:$0xff]
      %v3194 = vld [vmem:[#allocation2 + $0x328] sm:$0xff]
      %v3195 = vld [vmem:[#allocation2 + $0x330] sm:$0xff]
      %v3196 = vld [vmem:[#allocation2 + $0x338] sm:$0xff]
      %v3197 = vld [vmem:[#allocation2 + $0x340] sm:$0xff]
      %v3198 = vld [vmem:[#allocation2 + $0x348] sm:$0xff]
      %v3199 = vld [vmem:[#allocation2 + $0x350] sm:$0xff]
      %v3200 = vld [vmem:[#allocation2 + $0x358] sm:$0xff]
      %v3201 = vld [vmem:[#allocation2 + $0x360] sm:$0xff]
      %v3202 = vld [vmem:[#allocation2 + $0x368] sm:$0xff]
      %v3203 = vld [vmem:[#allocation2 + $0x370] sm:$0xff]
      %v3204 = vld [vmem:[#allocation2 + $0x378] sm:$0xff]
      %v3205 = vld [vmem:[#allocation2 + $0x380] sm:$0xff]
      %v3206 = vld [vmem:[#allocation2 + $0x388] sm:$0xff]
      %v3207 = vld [vmem:[#allocation2 + $0x390] sm:$0xff]
      %v3208 = vld [vmem:[#allocation2 + $0x398] sm:$0xff]
      %v3209 = vld [vmem:[#allocation2 + $0x3a0] sm:$0xff]
      %v3210 = vld [vmem:[#allocation2 + $0x3a8] sm:$0xff]
      %v3211 = vld [vmem:[#allocation2 + $0x3b0] sm:$0xff]
      %v3212 = vld [vmem:[#allocation2 + $0x3b8] sm:$0xff]
      %v3213 = vld [vmem:[#allocation2 + $0x3c0] sm:$0xff]
      %v3214 = vld [vmem:[#allocation2 + $0x3c8] sm:$0xff]
      %v3215 = vld [vmem:[#allocation2 + $0x3d0] sm:$0xff]
      %v3216 = vld [vmem:[#allocation2 + $0x3d8] sm:$0xff]
      %v3217 = vld [vmem:[#allocation2 + $0x3e0] sm:$0xff]
      %v3218 = vld [vmem:[#allocation2 + $0x3e8] sm:$0xff]
      %v3219 = vld [vmem:[#allocation2 + $0x3f0] sm:$0xff]
      %v3220 = vld [vmem:[#allocation2 + $0x3f8] sm:$0xff]
      %v3221 = vld [vmem:[#allocation2 + $0x400] sm:$0xff]
      %v3222 = vld [vmem:[#allocation2 + $0x408] sm:$0xff]
      %v3223 = vld [vmem:[#allocation2 + $0x410] sm:$0xff]
      %v3224 = vld [vmem:[#allocation2 + $0x418] sm:$0xff]
      %v3225 = vld [vmem:[#allocation2 + $0x420] sm:$0xff]
      %v3226 = vld [vmem:[#allocation2 + $0x428] sm:$0xff]
      %v3227 = vld [vmem:[#allocation2 + $0x430] sm:$0xff]
      %v3228 = vld [vmem:[#allocation2 + $0x438] sm:$0xff]
      %v3229 = vld [vmem:[#allocation2 + $0x440] sm:$0xff]
      %v3230 = vld [vmem:[#allocation2 + $0x448] sm:$0xff]
      %v3231 = vld [vmem:[#allocation2 + $0x450] sm:$0xff]
      %v3232 = vld [vmem:[#allocation2 + $0x458] sm:$0xff]
      %v3233 = vld [vmem:[#allocation2 + $0x460] sm:$0xff]
      %v3234 = vld [vmem:[#allocation2 + $0x468] sm:$0xff]
      %v3235 = vld [vmem:[#allocation2 + $0x470] sm:$0xff]
      %v3236 = vld [vmem:[#allocation2 + $0x478] sm:$0xff]
      %v3237 = vld [vmem:[%s224] sm:$0xf]
      %v3238 = vld [vmem:[%s224 + $0x4] sm:$0xf]
      %v3239 = vld [vmem:[%s224 + $0x8] sm:$0xf]
      %v3240 = vld [vmem:[%s224 + $0xc] sm:$0xf]
      %v3241 = vld [vmem:[%s224 + $0x10] sm:$0xf]
      %v3242 = vld [vmem:[%s224 + $0x14] sm:$0xf]
      %v3243 = vld [vmem:[%s224 + $0x18] sm:$0xf]
      %v3244 = vld [vmem:[%s224 + $0x1c] sm:$0xf]
      %v3245 = vld [vmem:[%s224 + $0x20] sm:$0xf]
      %v3246 = vld [vmem:[%s224 + $0x24] sm:$0xf]
      %v3247 = vld [vmem:[%s224 + $0x28] sm:$0xf]
      %v3248 = vld [vmem:[%s224 + $0x2c] sm:$0xf]
      %v3249 = vld [vmem:[%s224 + $0x30] sm:$0xf]
      %v3250 = vld [vmem:[%s224 + $0x34] sm:$0xf]
      %v3251 = vld [vmem:[%s224 + $0x38] sm:$0xf]
      %v3252 = vld [vmem:[%s224 + $0x3c] sm:$0xf]
      %v3253 = vld [vmem:[%s224 + $0x40] sm:$0xf]
      %v3254 = vld [vmem:[%s224 + $0x44] sm:$0xf]
      %v3255 = vld [vmem:[%s224 + $0x48] sm:$0xf]
      %v3256 = vld [vmem:[%s224 + $0x4c] sm:$0xf]
      %v3257 = vld [vmem:[%s224 + $0x50] sm:$0xf]
      %v3258 = vld [vmem:[%s224 + $0x54] sm:$0xf]
      %v3259 = vld [vmem:[%s224 + $0x58] sm:$0xf]
      %v3260 = vld [vmem:[%s224 + $0x5c] sm:$0xf]
      %v3261 = vld [vmem:[%s224 + $0x60] sm:$0xf]
      %v3262 = vld [vmem:[%s224 + $0x64] sm:$0xf]
      %v3263 = vld [vmem:[%s224 + $0x68] sm:$0xf]
      %v3264 = vld [vmem:[%s224 + $0x6c] sm:$0xf]
      %v3265 = vld [vmem:[%s224 + $0x70] sm:$0xf]
      %v3266 = vld [vmem:[%s224 + $0x74] sm:$0xf]
      %v3267 = vld [vmem:[%s224 + $0x78] sm:$0xf]
      %v3268 = vld [vmem:[%s224 + $0x7c] sm:$0xf]
      %v3269 = vld [vmem:[%s224 + $0x80] sm:$0xf]
      %v3270 = vld [vmem:[%s224 + $0x84] sm:$0xf]
      %v3271 = vld [vmem:[%s224 + $0x88] sm:$0xf]
      %v3272 = vld [vmem:[%s224 + $0x8c] sm:$0xf]
      %v3273 = vld [vmem:[%s224 + $0x90] sm:$0xf]
      %v3274 = vld [vmem:[%s224 + $0x94] sm:$0xf]
      %v3275 = vld [vmem:[%s224 + $0x98] sm:$0xf]
      %v3276 = vld [vmem:[%s224 + $0x9c] sm:$0xf]
      %v3277 = vld [vmem:[%s224 + $0xa0] sm:$0xf]
      %v3278 = vld [vmem:[%s224 + $0xa4] sm:$0xf]
      %v3279 = vld [vmem:[%s224 + $0xa8] sm:$0xf]
      %v3280 = vld [vmem:[%s224 + $0xac] sm:$0xf]
      %v3281 = vld [vmem:[%s224 + $0xb0] sm:$0xf]
      %v3282 = vld [vmem:[%s224 + $0xb4] sm:$0xf]
      %v3283 = vld [vmem:[%s224 + $0xb8] sm:$0xf]
      %v3284 = vld [vmem:[%s224 + $0xbc] sm:$0xf]
      %v3285 = vld [vmem:[%s224 + $0xc0] sm:$0xf]
      %v3286 = vld [vmem:[%s224 + $0xc4] sm:$0xf]
      %v3287 = vld [vmem:[%s224 + $0xc8] sm:$0xf]
      %v3288 = vld [vmem:[%s224 + $0xcc] sm:$0xf]
      %v3289 = vld [vmem:[%s224 + $0xd0] sm:$0xf]
      %v3290 = vld [vmem:[%s224 + $0xd4] sm:$0xf]
      %v3291 = vld [vmem:[%s224 + $0xd8] sm:$0xf]
      %v3292 = vld [vmem:[%s224 + $0xdc] sm:$0xf]
      %v3293 = vld [vmem:[%s224 + $0xe0] sm:$0xf]
      %v3294 = vld [vmem:[%s224 + $0xe4] sm:$0xf]
      %v3295 = vld [vmem:[%s224 + $0xe8] sm:$0xf]
      %v3296 = vld [vmem:[%s224 + $0xec] sm:$0xf]
      %v3297 = vld [vmem:[%s224 + $0xf0] sm:$0xf]
      %v3298 = vld [vmem:[%s224 + $0xf4] sm:$0xf]
      %v3299 = vld [vmem:[%s224 + $0xf8] sm:$0xf]
      %v3300 = vld [vmem:[%s224 + $0xfc] sm:$0xf]
      %v3301 = vld [vmem:[%s224 + $0x100] sm:$0xf]
      %v3302 = vld [vmem:[%s224 + $0x104] sm:$0xf]
      %v3303 = vld [vmem:[%s224 + $0x108] sm:$0xf]
      %v3304 = vld [vmem:[%s224 + $0x10c] sm:$0xf]
      %v3305 = vld [vmem:[%s224 + $0x110] sm:$0xf]
      %v3306 = vld [vmem:[%s224 + $0x114] sm:$0xf]
      %v3307 = vld [vmem:[%s224 + $0x118] sm:$0xf]
      %v3308 = vld [vmem:[%s224 + $0x11c] sm:$0xf]
      %v3309 = vld [vmem:[%s224 + $0x120] sm:$0xf]
      %v3310 = vld [vmem:[%s224 + $0x124] sm:$0xf]
      %v3311 = vld [vmem:[%s224 + $0x128] sm:$0xf]
      %v3312 = vld [vmem:[%s224 + $0x12c] sm:$0xf]
      %v3313 = vld [vmem:[%s224 + $0x130] sm:$0xf]
      %v3314 = vld [vmem:[%s224 + $0x134] sm:$0xf]
      %v3315 = vld [vmem:[%s224 + $0x138] sm:$0xf]
      %v3316 = vld [vmem:[%s224 + $0x13c] sm:$0xf]
      %v3317 = vld [vmem:[%s224 + $0x140] sm:$0xf]
      %v3318 = vld [vmem:[%s224 + $0x144] sm:$0xf]
      %v3319 = vld [vmem:[%s224 + $0x148] sm:$0xf]
      %v3320 = vld [vmem:[%s224 + $0x14c] sm:$0xf]
      %v3321 = vld [vmem:[%s224 + $0x150] sm:$0xf]
      %v3322 = vld [vmem:[%s224 + $0x154] sm:$0xf]
      %v3323 = vld [vmem:[%s224 + $0x158] sm:$0xf]
      %v3324 = vld [vmem:[%s224 + $0x15c] sm:$0xf]
      %v3325 = vld [vmem:[%s224 + $0x160] sm:$0xf]
      %v3326 = vld [vmem:[%s224 + $0x164] sm:$0xf]
      %v3327 = vld [vmem:[%s224 + $0x168] sm:$0xf]
      %v3328 = vld [vmem:[%s224 + $0x16c] sm:$0xf]
      %v3329 = vld [vmem:[%s224 + $0x170] sm:$0xf]
      %v3330 = vld [vmem:[%s224 + $0x174] sm:$0xf]
      %v3331 = vld [vmem:[%s224 + $0x178] sm:$0xf]
      %v3332 = vld [vmem:[%s224 + $0x17c] sm:$0xf]
      %v3333 = vld [vmem:[%s224 + $0x180] sm:$0xf]
      %v3334 = vld [vmem:[%s224 + $0x184] sm:$0xf]
      %v3335 = vld [vmem:[%s224 + $0x188] sm:$0xf]
      %v3336 = vld [vmem:[%s224 + $0x18c] sm:$0xf]
      %v3337 = vld [vmem:[%s224 + $0x190] sm:$0xf]
      %v3338 = vld [vmem:[%s224 + $0x194] sm:$0xf]
      %v3339 = vld [vmem:[%s224 + $0x198] sm:$0xf]
      %v3340 = vld [vmem:[%s224 + $0x19c] sm:$0xf]
      %v3341 = vld [vmem:[%s224 + $0x1a0] sm:$0xf]
      %v3342 = vld [vmem:[%s224 + $0x1a4] sm:$0xf]
      %v3343 = vld [vmem:[%s224 + $0x1a8] sm:$0xf]
      %v3344 = vld [vmem:[%s224 + $0x1ac] sm:$0xf]
      %v3345 = vld [vmem:[%s224 + $0x1b0] sm:$0xf]
      %v3346 = vld [vmem:[%s224 + $0x1b4] sm:$0xf]
      %v3347 = vld [vmem:[%s224 + $0x1b8] sm:$0xf]
      %v3348 = vld [vmem:[%s224 + $0x1bc] sm:$0xf]
      %v3349 = vld [vmem:[%s224 + $0x1c0] sm:$0xf]
      %v3350 = vld [vmem:[%s224 + $0x1c4] sm:$0xf]
      %v3351 = vld [vmem:[%s224 + $0x1c8] sm:$0xf]
      %v3352 = vld [vmem:[%s224 + $0x1cc] sm:$0xf]
      %v3353 = vld [vmem:[%s224 + $0x1d0] sm:$0xf]
      %v3354 = vld [vmem:[%s224 + $0x1d4] sm:$0xf]
      %v3355 = vld [vmem:[%s224 + $0x1d8] sm:$0xf]
      %v3356 = vld [vmem:[%s224 + $0x1dc] sm:$0xf]
      %v3357 = vld [vmem:[%s224 + $0x1e0] sm:$0xf]
      %v3358 = vld [vmem:[%s224 + $0x1e4] sm:$0xf]
      %v3359 = vld [vmem:[%s224 + $0x1e8] sm:$0xf]
      %v3360 = vld [vmem:[%s224 + $0x1ec] sm:$0xf]
      %v3361 = vld [vmem:[%s224 + $0x1f0] sm:$0xf]
      %v3362 = vld [vmem:[%s224 + $0x1f4] sm:$0xf]
      %v3363 = vld [vmem:[%s224 + $0x1f8] sm:$0xf]
      %v3364 = vld [vmem:[%s224 + $0x1fc] sm:$0xf]
      %v3365 = vld [vmem:[%s224 + $0x200] sm:$0xf]
      %v3366 = vld [vmem:[%s224 + $0x204] sm:$0xf]
      %v3367 = vld [vmem:[%s224 + $0x208] sm:$0xf]
      %v3368 = vld [vmem:[%s224 + $0x20c] sm:$0xf]
      %v3369 = vld [vmem:[%s224 + $0x210] sm:$0xf]
      %v3370 = vld [vmem:[%s224 + $0x214] sm:$0xf]
      %v3371 = vld [vmem:[%s224 + $0x218] sm:$0xf]
      %v3372 = vld [vmem:[%s224 + $0x21c] sm:$0xf]
      %v3373 = vld [vmem:[%s224 + $0x220] sm:$0xf]
      %v3374 = vld [vmem:[%s224 + $0x224] sm:$0xf]
      %v3375 = vld [vmem:[%s224 + $0x228] sm:$0xf]
      %v3376 = vld [vmem:[%s224 + $0x22c] sm:$0xf]
      %v3377 = vld [vmem:[%s224 + $0x230] sm:$0xf]
      %v3378 = vld [vmem:[%s224 + $0x234] sm:$0xf]
      %v3379 = vld [vmem:[%s224 + $0x238] sm:$0xf]
      %v3380 = vld [vmem:[%s224 + $0x23c] sm:$0xf]
      %v3381 = vld [vmem:[%s227] sm:$0x1]
      %v3383 = vlaneseq
      %v3384 = vshrl.u32 %v3383, 7
      %v3385 = vsub.s32 0, %v3384
      %v3386 = vrot.slane %v3381, %v3385
      %v3532 = vunpack.c.l.b16 %v3237
      %v3533 = vunpack.c.l.b16 %v3238
      %v3534 = vunpack.c.l.b16 %v3239
      %v3535 = vunpack.c.l.b16 %v3240
      %v3536 = vunpack.c.l.b16 %v3241
      %v3537 = vunpack.c.l.b16 %v3242
      %v3538 = vunpack.c.l.b16 %v3243
      %v3539 = vunpack.c.l.b16 %v3244
      %v3540 = vunpack.c.l.b16 %v3245
      %v3541 = vunpack.c.l.b16 %v3246
      %v3542 = vunpack.c.l.b16 %v3247
      %v3543 = vunpack.c.l.b16 %v3248
      %v3544 = vunpack.c.l.b16 %v3249
      %v3545 = vunpack.c.l.b16 %v3250
      %v3546 = vunpack.c.l.b16 %v3251
      %v3547 = vunpack.c.l.b16 %v3252
      %v3548 = vunpack.c.l.b16 %v3253
      %v3549 = vunpack.c.l.b16 %v3254
      %v3550 = vunpack.c.l.b16 %v3255
      %v3551 = vunpack.c.l.b16 %v3256
      %v3552 = vunpack.c.l.b16 %v3257
      %v3553 = vunpack.c.l.b16 %v3258
      %v3554 = vunpack.c.l.b16 %v3259
      %v3555 = vunpack.c.l.b16 %v3260
      %v3556 = vunpack.c.l.b16 %v3261
      %v3557 = vunpack.c.l.b16 %v3262
      %v3558 = vunpack.c.l.b16 %v3263
      %v3559 = vunpack.c.l.b16 %v3264
      %v3560 = vunpack.c.l.b16 %v3265
      %v3561 = vunpack.c.l.b16 %v3266
      %v3562 = vunpack.c.l.b16 %v3267
      %v3563 = vunpack.c.l.b16 %v3268
      %v3564 = vunpack.c.l.b16 %v3269
      %v3565 = vunpack.c.l.b16 %v3270
      %v3566 = vunpack.c.l.b16 %v3271
      %v3567 = vunpack.c.l.b16 %v3272
      %v3568 = vunpack.c.l.b16 %v3273
      %v3569 = vunpack.c.l.b16 %v3274
      %v3570 = vunpack.c.l.b16 %v3275
      %v3571 = vunpack.c.l.b16 %v3276
      %v3572 = vunpack.c.l.b16 %v3277
      %v3573 = vunpack.c.l.b16 %v3278
      %v3574 = vunpack.c.l.b16 %v3279
      %v3575 = vunpack.c.l.b16 %v3280
      %v3576 = vunpack.c.l.b16 %v3281
      %v3577 = vunpack.c.l.b16 %v3282
      %v3578 = vunpack.c.l.b16 %v3283
      %v3579 = vunpack.c.l.b16 %v3284
      %v3580 = vunpack.c.l.b16 %v3285
      %v3581 = vunpack.c.l.b16 %v3286
      %v3582 = vunpack.c.l.b16 %v3287
      %v3583 = vunpack.c.l.b16 %v3288
      %v3584 = vunpack.c.l.b16 %v3289
      %v3585 = vunpack.c.l.b16 %v3290
      %v3586 = vunpack.c.l.b16 %v3291
      %v3587 = vunpack.c.l.b16 %v3292
      %v3588 = vunpack.c.l.b16 %v3293
      %v3589 = vunpack.c.l.b16 %v3294
      %v3590 = vunpack.c.l.b16 %v3295
      %v3591 = vunpack.c.l.b16 %v3296
      %v3592 = vunpack.c.l.b16 %v3297
      %v3593 = vunpack.c.l.b16 %v3298
      %v3594 = vunpack.c.l.b16 %v3299
      %v3595 = vunpack.c.l.b16 %v3300
      %v3596 = vunpack.c.l.b16 %v3301
      %v3597 = vunpack.c.l.b16 %v3302
      %v3598 = vunpack.c.l.b16 %v3303
      %v3599 = vunpack.c.l.b16 %v3304
      %v3600 = vunpack.c.l.b16 %v3305
      %v3601 = vunpack.c.l.b16 %v3306
      %v3602 = vunpack.c.l.b16 %v3307
      %v3603 = vunpack.c.l.b16 %v3308
      %v3604 = vunpack.c.l.b16 %v3309
      %v3605 = vunpack.c.l.b16 %v3310
      %v3606 = vunpack.c.l.b16 %v3311
      %v3607 = vunpack.c.l.b16 %v3312
      %v3608 = vunpack.c.l.b16 %v3313
      %v3609 = vunpack.c.l.b16 %v3314
      %v3610 = vunpack.c.l.b16 %v3315
      %v3611 = vunpack.c.l.b16 %v3316
      %v3612 = vunpack.c.l.b16 %v3317
      %v3613 = vunpack.c.l.b16 %v3318
      %v3614 = vunpack.c.l.b16 %v3319
      %v3615 = vunpack.c.l.b16 %v3320
      %v3616 = vunpack.c.l.b16 %v3321
      %v3617 = vunpack.c.l.b16 %v3322
      %v3618 = vunpack.c.l.b16 %v3323
      %v3619 = vunpack.c.l.b16 %v3324
      %v3620 = vunpack.c.l.b16 %v3325
      %v3621 = vunpack.c.l.b16 %v3326
      %v3622 = vunpack.c.l.b16 %v3327
      %v3623 = vunpack.c.l.b16 %v3328
      %v3624 = vunpack.c.l.b16 %v3329
      %v3625 = vunpack.c.l.b16 %v3330
      %v3626 = vunpack.c.l.b16 %v3331
      %v3627 = vunpack.c.l.b16 %v3332
      %v3628 = vunpack.c.l.b16 %v3333
      %v3629 = vunpack.c.l.b16 %v3334
      %v3630 = vunpack.c.l.b16 %v3335
      %v3631 = vunpack.c.l.b16 %v3336
      %v3632 = vunpack.c.l.b16 %v3337
      %v3633 = vunpack.c.l.b16 %v3338
      %v3634 = vunpack.c.l.b16 %v3339
      %v3635 = vunpack.c.l.b16 %v3340
      %v3636 = vunpack.c.l.b16 %v3341
      %v3637 = vunpack.c.l.b16 %v3342
      %v3638 = vunpack.c.l.b16 %v3343
      %v3639 = vunpack.c.l.b16 %v3344
      %v3640 = vunpack.c.l.b16 %v3345
      %v3641 = vunpack.c.l.b16 %v3346
      %v3642 = vunpack.c.l.b16 %v3347
      %v3643 = vunpack.c.l.b16 %v3348
      %v3644 = vunpack.c.l.b16 %v3349
      %v3645 = vunpack.c.l.b16 %v3350
      %v3646 = vunpack.c.l.b16 %v3351
      %v3647 = vunpack.c.l.b16 %v3352
      %v3648 = vunpack.c.l.b16 %v3353
      %v3649 = vunpack.c.l.b16 %v3354
      %v3650 = vunpack.c.l.b16 %v3355
      %v3651 = vunpack.c.l.b16 %v3356
      %v3652 = vunpack.c.l.b16 %v3357
      %v3653 = vunpack.c.l.b16 %v3358
      %v3654 = vunpack.c.l.b16 %v3359
      %v3655 = vunpack.c.l.b16 %v3360
      %v3656 = vunpack.c.l.b16 %v3361
      %v3657 = vunpack.c.l.b16 %v3362
      %v3658 = vunpack.c.l.b16 %v3363
      %v3659 = vunpack.c.l.b16 %v3364
      %v3660 = vunpack.c.l.b16 %v3365
      %v3661 = vunpack.c.l.b16 %v3366
      %v3662 = vunpack.c.l.b16 %v3367
      %v3663 = vunpack.c.l.b16 %v3368
      %v3664 = vunpack.c.l.b16 %v3369
      %v3665 = vunpack.c.l.b16 %v3370
      %v3666 = vunpack.c.l.b16 %v3371
      %v3667 = vunpack.c.l.b16 %v3372
      %v3668 = vunpack.c.l.b16 %v3373
      %v3669 = vunpack.c.l.b16 %v3374
      %v3670 = vunpack.c.l.b16 %v3375
      %v3671 = vunpack.c.l.b16 %v3376
      %v3672 = vunpack.c.l.b16 %v3377
      %v3673 = vunpack.c.l.b16 %v3378
      %v3674 = vunpack.c.l.b16 %v3379
      %v3675 = vunpack.c.l.b16 %v3380
      %v3676 = vpack.c.b16 %v3533, %v3532
      %v3677 = vpack.c.b16 %v3535, %v3534
      %v3678 = vpack.c.b16 %v3537, %v3536
      %v3679 = vpack.c.b16 %v3539, %v3538
      %v3680 = vpack.c.b16 %v3541, %v3540
      %v3681 = vpack.c.b16 %v3543, %v3542
      %v3682 = vpack.c.b16 %v3545, %v3544
      %v3683 = vpack.c.b16 %v3547, %v3546
      %v3684 = vpack.c.b16 %v3549, %v3548
      %v3685 = vpack.c.b16 %v3551, %v3550
      %v3686 = vpack.c.b16 %v3553, %v3552
      %v3687 = vpack.c.b16 %v3555, %v3554
      %v3688 = vpack.c.b16 %v3557, %v3556
      %v3689 = vpack.c.b16 %v3559, %v3558
      %v3690 = vpack.c.b16 %v3561, %v3560
      %v3691 = vpack.c.b16 %v3563, %v3562
      %v3692 = vpack.c.b16 %v3565, %v3564
      %v3693 = vpack.c.b16 %v3567, %v3566
      %v3694 = vpack.c.b16 %v3569, %v3568
      %v3695 = vpack.c.b16 %v3571, %v3570
      %v3696 = vpack.c.b16 %v3573, %v3572
      %v3697 = vpack.c.b16 %v3575, %v3574
      %v3698 = vpack.c.b16 %v3577, %v3576
      %v3699 = vpack.c.b16 %v3579, %v3578
      %v3700 = vpack.c.b16 %v3581, %v3580
      %v3701 = vpack.c.b16 %v3583, %v3582
      %v3702 = vpack.c.b16 %v3585, %v3584
      %v3703 = vpack.c.b16 %v3587, %v3586
      %v3704 = vpack.c.b16 %v3589, %v3588
      %v3705 = vpack.c.b16 %v3591, %v3590
      %v3706 = vpack.c.b16 %v3593, %v3592
      %v3707 = vpack.c.b16 %v3595, %v3594
      %v3708 = vpack.c.b16 %v3597, %v3596
      %v3709 = vpack.c.b16 %v3599, %v3598
      %v3710 = vpack.c.b16 %v3601, %v3600
      %v3711 = vpack.c.b16 %v3603, %v3602
      %v3712 = vpack.c.b16 %v3605, %v3604
      %v3713 = vpack.c.b16 %v3607, %v3606
      %v3714 = vpack.c.b16 %v3609, %v3608
      %v3715 = vpack.c.b16 %v3611, %v3610
      %v3716 = vpack.c.b16 %v3613, %v3612
      %v3717 = vpack.c.b16 %v3615, %v3614
      %v3718 = vpack.c.b16 %v3617, %v3616
      %v3719 = vpack.c.b16 %v3619, %v3618
      %v3720 = vpack.c.b16 %v3621, %v3620
      %v3721 = vpack.c.b16 %v3623, %v3622
      %v3722 = vpack.c.b16 %v3625, %v3624
      %v3723 = vpack.c.b16 %v3627, %v3626
      %v3724 = vpack.c.b16 %v3629, %v3628
      %v3725 = vpack.c.b16 %v3631, %v3630
      %v3726 = vpack.c.b16 %v3633, %v3632
      %v3727 = vpack.c.b16 %v3635, %v3634
      %v3728 = vpack.c.b16 %v3637, %v3636
      %v3729 = vpack.c.b16 %v3639, %v3638
      %v3730 = vpack.c.b16 %v3641, %v3640
      %v3731 = vpack.c.b16 %v3643, %v3642
      %v3732 = vpack.c.b16 %v3645, %v3644
      %v3733 = vpack.c.b16 %v3647, %v3646
      %v3734 = vpack.c.b16 %v3649, %v3648
      %v3735 = vpack.c.b16 %v3651, %v3650
      %v3736 = vpack.c.b16 %v3653, %v3652
      %v3737 = vpack.c.b16 %v3655, %v3654
      %v3738 = vpack.c.b16 %v3657, %v3656
      %v3739 = vpack.c.b16 %v3659, %v3658
      %v3740 = vpack.c.b16 %v3661, %v3660
      %v3741 = vpack.c.b16 %v3663, %v3662
      %v3742 = vpack.c.b16 %v3665, %v3664
      %v3743 = vpack.c.b16 %v3667, %v3666
      %v3744 = vpack.c.b16 %v3669, %v3668
      %v3745 = vpack.c.b16 %v3671, %v3670
      %v3746 = vpack.c.b16 %v3673, %v3672
      %v3747 = vpack.c.b16 %v3675, %v3674
      %3820 = vmatprep.subr.bf16.mxu0 0
      %3821 = vmatpush1.bf16.msra.mxu0 %v3676
      %3822 = vmatprep.subr.bf16.mxu0 0
      %3823 = vmatpush1.bf16.msra.mxu0 %v3677
      %3824 = vmatprep.subr.bf16.mxu0 0
      %3825 = vmatpush1.bf16.msra.mxu0 %v3678
      %3826 = vmatprep.subr.bf16.mxu0 0
      %3827 = vmatpush1.bf16.msra.mxu0 %v3679
      %3828 = vmatprep.subr.bf16.mxu0 0
      %3829 = vmatpush1.bf16.msra.mxu0 %v3680
      %3830 = vmatprep.subr.bf16.mxu0 0
      %3831 = vmatpush1.bf16.msra.mxu0 %v3681
      %3832 = vmatprep.subr.bf16.mxu0 0
      %3833 = vmatpush1.bf16.msra.mxu0 %v3682
      %3834 = vmatprep.subr.bf16.mxu0 0
      %3835 = vmatpush1.bf16.msra.mxu0 %v3683
      %3836 = vmatprep.subr.bf16.mxu0 0
      %3837 = vmatpush1.bf16.msra.mxu0 %v3684
      %3838 = vmatprep.subr.bf16.mxu0 0
      %3839 = vmatpush1.bf16.msra.mxu0 %v3685
      %3840 = vmatprep.subr.bf16.mxu0 0
      %3841 = vmatpush1.bf16.msra.mxu0 %v3686
      %3842 = vmatprep.subr.bf16.mxu0 0
      %3843 = vmatpush1.bf16.msra.mxu0 %v3687
      %3844 = vmatprep.subr.bf16.mxu0 0
      %3845 = vmatpush1.bf16.msra.mxu0 %v3688
      %3846 = vmatprep.subr.bf16.mxu0 0
      %3847 = vmatpush1.bf16.msra.mxu0 %v3689
      %3848 = vmatprep.subr.bf16.mxu0 0
      %3849 = vmatpush1.bf16.msra.mxu0 %v3690
      %3850 = vmatprep.subr.bf16.mxu0 0
      %3851 = vmatpush1.bf16.msra.mxu0 %v3691
      %3852 = vmatprep.mubr.bf16.mxu0 %v3094
      %3853 = vmatmul.mubr.bf16.gmra.mrb[0].mxu0 %v3093
      %v3854 = vpop.f32.mrb[0].mxu0
      %v3855 = vadd.f32 %v3386, %v3854
      %v3856 = vpop.f32.mrb[0].mxu0
      %v3857 = vpop.f32.mrb[0].mxu0
      %v3858 = vadd.f32 %v3386, %v3857
      %v3859 = vpop.f32.mrb[0].mxu0
      %3860 = vmatprep.mubr.bf16.mxu0 %v3103
      %3861 = vmatmul.mubr.bf16.gmra.mrb[0].mxu0 %v3102
      %v3862 = vpop.f32.mrb[0].mxu0
      %v3863 = vadd.f32 %v3386, %v3862
      %v3864 = vpop.f32.mrb[0].mxu0
      %v3865 = vpop.f32.mrb[0].mxu0
      %v3866 = vadd.f32 %v3386, %v3865
      %v3867 = vpop.f32.mrb[0].mxu0
      %3868 = vmatprep.mubr.bf16.mxu0 %v3112
      %3869 = vmatmul.mubr.bf16.gmra.mrb[0].mxu0 %v3111
      %v3870 = vpop.f32.mrb[0].mxu0
      %v3871 = vadd.f32 %v3386, %v3870
      %v3872 = vpop.f32.mrb[0].mxu0
      %v3873 = vpop.f32.mrb[0].mxu0
      %v3874 = vadd.f32 %v3386, %v3873
      %v3875 = vpop.f32.mrb[0].mxu0
      %3876 = vmatprep.mubr.bf16.mxu0 %v3121
      %3877 = vmatmul.mubr.bf16.gmra.mrb[0].mxu0 %v3120
      %v3878 = vpop.f32.mrb[0].mxu0
      %v3879 = vadd.f32 %v3386, %v3878
      %v3880 = vpop.f32.mrb[0].mxu0
      %v3881 = vpop.f32.mrb[0].mxu0
      %v3882 = vadd.f32 %v3386, %v3881
      %v3883 = vpop.f32.mrb[0].mxu0
      %3884 = vmatprep.mubr.bf16.mxu0 %v3130
      %3885 = vmatmul.mubr.bf16.gmra.mrb[0].mxu0 %v3129
      %v3886 = vpop.f32.mrb[0].mxu0
      %v3887 = vadd.f32 %v3386, %v3886
      %v3888 = vpop.f32.mrb[0].mxu0
      %v3889 = vpop.f32.mrb[0].mxu0
      %v3890 = vadd.f32 %v3386, %v3889
      %v3891 = vpop.f32.mrb[0].mxu0
      %3892 = vmatprep.mubr.bf16.mxu0 %v3139
      %3893 = vmatmul.mubr.bf16.gmra.mrb[0].mxu0 %v3138
      %v3894 = vpop.f32.mrb[0].mxu0
      %v3895 = vadd.f32 %v3386, %v3894
      %v3896 = vpop.f32.mrb[0].mxu0
      %v3897 = vpop.f32.mrb[0].mxu0
      %v3898 = vadd.f32 %v3386, %v3897
      %v3899 = vpop.f32.mrb[0].mxu0
      %3900 = vmatprep.mubr.bf16.mxu0 %v3148
      %3901 = vmatmul.mubr.bf16.gmra.mrb[0].mxu0 %v3147
      %v3902 = vpop.f32.mrb[0].mxu0
      %v3903 = vadd.f32 %v3386, %v3902
      %v3904 = vpop.f32.mrb[0].mxu0
      %v3905 = vpop.f32.mrb[0].mxu0
      %v3906 = vadd.f32 %v3386, %v3905
      %v3907 = vpop.f32.mrb[0].mxu0
      %3908 = vmatprep.mubr.bf16.mxu0 %v3157
      %3909 = vmatmul.mubr.bf16.gmra.mrb[0].mxu0 %v3156
      %v3910 = vpop.f32.mrb[0].mxu0
      %v3911 = vadd.f32 %v3386, %v3910
      %v3912 = vpop.f32.mrb[0].mxu0
      %v3913 = vpop.f32.mrb[0].mxu0
      %v3914 = vadd.f32 %v3386, %v3913
      %v3915 = vpop.f32.mrb[0].mxu0
      %3916 = vmatprep.mubr.bf16.mxu0 %v3166
      %3917 = vmatmul.mubr.bf16.gmra.mrb[0].mxu0 %v3165
      %v3918 = vpop.f32.mrb[0].mxu0
      %v3919 = vadd.f32 %v3386, %v3918
      %v3920 = vpop.f32.mrb[0].mxu0
      %v3921 = vpop.f32.mrb[0].mxu0
      %v3922 = vadd.f32 %v3386, %v3921
      %v3923 = vpop.f32.mrb[0].mxu0
      %3924 = vmatprep.mubr.bf16.mxu0 %v3175
      %3925 = vmatmul.mubr.bf16.gmra.mrb[0].mxu0 %v3174
      %v3926 = vpop.f32.mrb[0].mxu0
      %v3927 = vadd.f32 %v3386, %v3926
      %v3928 = vpop.f32.mrb[0].mxu0
      %v3929 = vpop.f32.mrb[0].mxu0
      %v3930 = vadd.f32 %v3386, %v3929
      %v3931 = vpop.f32.mrb[0].mxu0
      %3932 = vmatprep.mubr.bf16.mxu0 %v3184
      %3933 = vmatmul.mubr.bf16.gmra.mrb[0].mxu0 %v3183
      %v3934 = vpop.f32.mrb[0].mxu0
      %v3935 = vadd.f32 %v3386, %v3934
      %v3936 = vpop.f32.mrb[0].mxu0
      %v3937 = vpop.f32.mrb[0].mxu0
      %v3938 = vadd.f32 %v3386, %v3937
      %v3939 = vpop.f32.mrb[0].mxu0
      %3940 = vmatprep.mubr.bf16.mxu0 %v3193
      %3941 = vmatmul.mubr.bf16.gmra.mrb[0].mxu0 %v3192
      %v3942 = vpop.f32.mrb[0].mxu0
      %v3943 = vadd.f32 %v3386, %v3942
      %v3944 = vpop.f32.mrb[0].mxu0
      %v3945 = vpop.f32.mrb[0].mxu0
      %v3946 = vadd.f32 %v3386, %v3945
      %v3947 = vpop.f32.mrb[0].mxu0
      %3948 = vmatprep.mubr.bf16.mxu0 %v3202
      %3949 = vmatmul.mubr.bf16.gmra.mrb[0].mxu0 %v3201
      %v3950 = vpop.f32.mrb[0].mxu0
      %v3951 = vadd.f32 %v3386, %v3950
      %v3952 = vpop.f32.mrb[0].mxu0
      %v3953 = vpop.f32.mrb[0].mxu0
      %v3954 = vadd.f32 %v3386, %v3953
      %v3955 = vpop.f32.mrb[0].mxu0
      %3956 = vmatprep.mubr.bf16.mxu0 %v3211
      %3957 = vmatmul.mubr.bf16.gmra.mrb[0].mxu0 %v3210
      %v3958 = vpop.f32.mrb[0].mxu0
      %v3959 = vadd.f32 %v3386, %v3958
      %v3960 = vpop.f32.mrb[0].mxu0
      %v3961 = vpop.f32.mrb[0].mxu0
      %v3962 = vadd.f32 %v3386, %v3961
      %v3963 = vpop.f32.mrb[0].mxu0
      %3964 = vmatprep.mubr.bf16.mxu0 %v3220
      %3965 = vmatmul.mubr.bf16.gmra.mrb[0].mxu0 %v3219
      %v3966 = vpop.f32.mrb[0].mxu0
      %v3967 = vadd.f32 %v3386, %v3966
      %v3968 = vpop.f32.mrb[0].mxu0
      %v3969 = vpop.f32.mrb[0].mxu0
      %v3970 = vadd.f32 %v3386, %v3969
      %v3971 = vpop.f32.mrb[0].mxu0
      %3972 = vmatprep.mubr.bf16.mxu0 %v3229
      %3973 = vmatmul.mubr.bf16.gmra.mrb[0].mxu0 %v3228
      %v3974 = vpop.f32.mrb[0].mxu0
      %v3975 = vadd.f32 %v3386, %v3974
      %v3976 = vpop.f32.mrb[0].mxu0
      %v3977 = vpop.f32.mrb[0].mxu0
      %v3978 = vadd.f32 %v3386, %v3977
      %v3979 = vpop.f32.mrb[0].mxu0
      %3980 = vdwg.mxu0
      %3981 = vmatprep.subr.bf16.mxu0 0
      %3982 = vmatpush1.bf16.msra.mxu0 %v3692
      %3983 = vmatprep.subr.bf16.mxu0 0
      %3984 = vmatpush1.bf16.msra.mxu0 %v3693
      %3985 = vmatprep.subr.bf16.mxu0 0
      %3986 = vmatpush1.bf16.msra.mxu0 %v3694
      %3987 = vmatprep.subr.bf16.mxu0 0
      %3988 = vmatpush1.bf16.msra.mxu0 %v3695
      %3989 = vmatprep.subr.bf16.mxu0 0
      %3990 = vmatpush1.bf16.msra.mxu0 %v3696
      %3991 = vmatprep.subr.bf16.mxu0 0
      %3992 = vmatpush1.bf16.msra.mxu0 %v3697
      %3993 = vmatprep.subr.bf16.mxu0 0
      %3994 = vmatpush1.bf16.msra.mxu0 %v3698
      %3995 = vmatprep.subr.bf16.mxu0 0
      %3996 = vmatpush1.bf16.msra.mxu0 %v3699
      %3997 = vmatprep.subr.bf16.mxu0 0
      %3998 = vmatpush1.bf16.msra.mxu0 %v3700
      %3999 = vmatprep.subr.bf16.mxu0 0
      %4000 = vmatpush1.bf16.msra.mxu0 %v3701
      %4001 = vmatprep.subr.bf16.mxu0 0
      %4002 = vmatpush1.bf16.msra.mxu0 %v3702
      %4003 = vmatprep.subr.bf16.mxu0 0
      %4004 = vmatpush1.bf16.msra.mxu0 %v3703
      %4005 = vmatprep.subr.bf16.mxu0 0
      %4006 = vmatpush1.bf16.msra.mxu0 %v3704
      %4007 = vmatprep.subr.bf16.mxu0 0
      %4008 = vmatpush1.bf16.msra.mxu0 %v3705
      %4009 = vmatprep.subr.bf16.mxu0 0
      %4010 = vmatpush1.bf16.msra.mxu0 %v3706
      %4011 = vmatprep.subr.bf16.mxu0 0
      %4012 = vmatpush1.bf16.msra.mxu0 %v3707
      %4013 = vmatprep.mubr.bf16.mxu0 %v3096
      %4014 = vmatmul.mubr.bf16.gmra.mrb[0].mxu0 %v3095
      %v4015 = vpop.f32.mrb[0].mxu0
      %v4016 = vadd.f32 %v3855, %v4015
      %v4017 = vpop.f32.mrb[0].mxu0
      %v4018 = vpop.f32.mrb[0].mxu0
      %v4019 = vadd.f32 %v3858, %v4018
      %v4020 = vpop.f32.mrb[0].mxu0
      %4021 = vmatprep.mubr.bf16.mxu0 %v3105
      %4022 = vmatmul.mubr.bf16.gmra.mrb[0].mxu0 %v3104
      %v4023 = vpop.f32.mrb[0].mxu0
      %v4024 = vadd.f32 %v3863, %v4023
      %v4025 = vpop.f32.mrb[0].mxu0
      %v4026 = vpop.f32.mrb[0].mxu0
      %v4027 = vadd.f32 %v3866, %v4026
      %v4028 = vpop.f32.mrb[0].mxu0
      %4029 = vmatprep.mubr.bf16.mxu0 %v3114
      %4030 = vmatmul.mubr.bf16.gmra.mrb[0].mxu0 %v3113
      %v4031 = vpop.f32.mrb[0].mxu0
      %v4032 = vadd.f32 %v3871, %v4031
      %v4033 = vpop.f32.mrb[0].mxu0
      %v4034 = vpop.f32.mrb[0].mxu0
      %v4035 = vadd.f32 %v3874, %v4034
      %v4036 = vpop.f32.mrb[0].mxu0
      %4037 = vmatprep.mubr.bf16.mxu0 %v3123
      %4038 = vmatmul.mubr.bf16.gmra.mrb[0].mxu0 %v3122
      %v4039 = vpop.f32.mrb[0].mxu0
      %v4040 = vadd.f32 %v3879, %v4039
      %v4041 = vpop.f32.mrb[0].mxu0
      %v4042 = vpop.f32.mrb[0].mxu0
      %v4043 = vadd.f32 %v3882, %v4042
      %v4044 = vpop.f32.mrb[0].mxu0
      %4045 = vmatprep.mubr.bf16.mxu0 %v3132
      %4046 = vmatmul.mubr.bf16.gmra.mrb[0].mxu0 %v3131
      %v4047 = vpop.f32.mrb[0].mxu0
      %v4048 = vadd.f32 %v3887, %v4047
      %v4049 = vpop.f32.mrb[0].mxu0
      %v4050 = vpop.f32.mrb[0].mxu0
      %v4051 = vadd.f32 %v3890, %v4050
      %v4052 = vpop.f32.mrb[0].mxu0
      %4053 = vmatprep.mubr.bf16.mxu0 %v3141
      %4054 = vmatmul.mubr.bf16.gmra.mrb[0].mxu0 %v3140
      %v4055 = vpop.f32.mrb[0].mxu0
      %v4056 = vadd.f32 %v3895, %v4055
      %v4057 = vpop.f32.mrb[0].mxu0
      %v4058 = vpop.f32.mrb[0].mxu0
      %v4059 = vadd.f32 %v3898, %v4058
      %v4060 = vpop.f32.mrb[0].mxu0
      %4061 = vmatprep.mubr.bf16.mxu0 %v3150
      %4062 = vmatmul.mubr.bf16.gmra.mrb[0].mxu0 %v3149
      %v4063 = vpop.f32.mrb[0].mxu0
      %v4064 = vadd.f32 %v3903, %v4063
      %v4065 = vpop.f32.mrb[0].mxu0
      %v4066 = vpop.f32.mrb[0].mxu0
      %v4067 = vadd.f32 %v3906, %v4066
      %v4068 = vpop.f32.mrb[0].mxu0
      %4069 = vmatprep.mubr.bf16.mxu0 %v3159
      %4070 = vmatmul.mubr.bf16.gmra.mrb[0].mxu0 %v3158
      %v4071 = vpop.f32.mrb[0].mxu0
      %v4072 = vadd.f32 %v3911, %v4071
      %v4073 = vpop.f32.mrb[0].mxu0
      %v4074 = vpop.f32.mrb[0].mxu0
      %v4075 = vadd.f32 %v3914, %v4074
      %v4076 = vpop.f32.mrb[0].mxu0
      %4077 = vmatprep.mubr.bf16.mxu0 %v3168
      %4078 = vmatmul.mubr.bf16.gmra.mrb[0].mxu0 %v3167
      %v4079 = vpop.f32.mrb[0].mxu0
      %v4080 = vadd.f32 %v3919, %v4079
      %v4081 = vpop.f32.mrb[0].mxu0
      %v4082 = vpop.f32.mrb[0].mxu0
      %v4083 = vadd.f32 %v3922, %v4082
      %v4084 = vpop.f32.mrb[0].mxu0
      %4085 = vmatprep.mubr.bf16.mxu0 %v3177
      %4086 = vmatmul.mubr.bf16.gmra.mrb[0].mxu0 %v3176
      %v4087 = vpop.f32.mrb[0].mxu0
      %v4088 = vadd.f32 %v3927, %v4087
      %v4089 = vpop.f32.mrb[0].mxu0
      %v4090 = vpop.f32.mrb[0].mxu0
      %v4091 = vadd.f32 %v3930, %v4090
      %v4092 = vpop.f32.mrb[0].mxu0
      %4093 = vmatprep.mubr.bf16.mxu0 %v3186
      %4094 = vmatmul.mubr.bf16.gmra.mrb[0].mxu0 %v3185
      %v4095 = vpop.f32.mrb[0].mxu0
      %v4096 = vadd.f32 %v3935, %v4095
      %v4097 = vpop.f32.mrb[0].mxu0
      %v4098 = vpop.f32.mrb[0].mxu0
      %v4099 = vadd.f32 %v3938, %v4098
      %v4100 = vpop.f32.mrb[0].mxu0
      %4101 = vmatprep.mubr.bf16.mxu0 %v3195
      %4102 = vmatmul.mubr.bf16.gmra.mrb[0].mxu0 %v3194
      %v4103 = vpop.f32.mrb[0].mxu0
      %v4104 = vadd.f32 %v3943, %v4103
      %v4105 = vpop.f32.mrb[0].mxu0
      %v4106 = vpop.f32.mrb[0].mxu0
      %v4107 = vadd.f32 %v3946, %v4106
      %v4108 = vpop.f32.mrb[0].mxu0
      %4109 = vmatprep.mubr.bf16.mxu0 %v3204
      %4110 = vmatmul.mubr.bf16.gmra.mrb[0].mxu0 %v3203
      %v4111 = vpop.f32.mrb[0].mxu0
      %v4112 = vadd.f32 %v3951, %v4111
      %v4113 = vpop.f32.mrb[0].mxu0
      %v4114 = vpop.f32.mrb[0].mxu0
      %v4115 = vadd.f32 %v3954, %v4114
      %v4116 = vpop.f32.mrb[0].mxu0
      %4117 = vmatprep.mubr.bf16.mxu0 %v3213
      %4118 = vmatmul.mubr.bf16.gmra.mrb[0].mxu0 %v3212
      %v4119 = vpop.f32.mrb[0].mxu0
      %v4120 = vadd.f32 %v3959, %v4119
      %v4121 = vpop.f32.mrb[0].mxu0
      %v4122 = vpop.f32.mrb[0].mxu0
      %v4123 = vadd.f32 %v3962, %v4122
      %v4124 = vpop.f32.mrb[0].mxu0
      %4125 = vmatprep.mubr.bf16.mxu0 %v3222
      %4126 = vmatmul.mubr.bf16.gmra.mrb[0].mxu0 %v3221
      %v4127 = vpop.f32.mrb[0].mxu0
      %v4128 = vadd.f32 %v3967, %v4127
      %v4129 = vpop.f32.mrb[0].mxu0
      %v4130 = vpop.f32.mrb[0].mxu0
      %v4131 = vadd.f32 %v3970, %v4130
      %v4132 = vpop.f32.mrb[0].mxu0
      %4133 = vmatprep.mubr.bf16.mxu0 %v3231
      %4134 = vmatmul.mubr.bf16.gmra.mrb[0].mxu0 %v3230
      %v4135 = vpop.f32.mrb[0].mxu0
      %v4136 = vadd.f32 %v3975, %v4135
      %v4137 = vpop.f32.mrb[0].mxu0
      %v4138 = vpop.f32.mrb[0].mxu0
      %v4139 = vadd.f32 %v3978, %v4138
      %v4140 = vpop.f32.mrb[0].mxu0
      %4141 = vdwg.mxu0
      %4142 = vmatprep.subr.bf16.mxu0 0
      %4143 = vmatpush1.bf16.msra.mxu0 %v3708
      %4144 = vmatprep.subr.bf16.mxu0 0
      %4145 = vmatpush1.bf16.msra.mxu0 %v3709
      %4146 = vmatprep.subr.bf16.mxu0 0
      %4147 = vmatpush1.bf16.msra.mxu0 %v3710
      %4148 = vmatprep.subr.bf16.mxu0 0
      %4149 = vmatpush1.bf16.msra.mxu0 %v3711
      %4150 = vmatprep.subr.bf16.mxu0 0
      %4151 = vmatpush1.bf16.msra.mxu0 %v3712
      %4152 = vmatprep.subr.bf16.mxu0 0
      %4153 = vmatpush1.bf16.msra.mxu0 %v3713
      %4154 = vmatprep.subr.bf16.mxu0 0
      %4155 = vmatpush1.bf16.msra.mxu0 %v3714
      %4156 = vmatprep.subr.bf16.mxu0 0
      %4157 = vmatpush1.bf16.msra.mxu0 %v3715
      %4158 = vmatprep.subr.bf16.mxu0 0
      %4159 = vmatpush1.bf16.msra.mxu0 %v3716
      %4160 = vmatprep.subr.bf16.mxu0 0
      %4161 = vmatpush1.bf16.msra.mxu0 %v3717
      %4162 = vmatprep.subr.bf16.mxu0 0
      %4163 = vmatpush1.bf16.msra.mxu0 %v3718
      %4164 = vmatprep.subr.bf16.mxu0 0
      %4165 = vmatpush1.bf16.msra.mxu0 %v3719
      %4166 = vmatprep.subr.bf16.mxu0 0
      %4167 = vmatpush1.bf16.msra.mxu0 %v3720
      %4168 = vmatprep.subr.bf16.mxu0 0
      %4169 = vmatpush1.bf16.msra.mxu0 %v3721
      %4170 = vmatprep.subr.bf16.mxu0 0
      %4171 = vmatpush1.bf16.msra.mxu0 %v3722
      %4172 = vmatprep.subr.bf16.mxu0 0
      %4173 = vmatpush1.bf16.msra.mxu0 %v3723
      %4174 = vmatprep.mubr.bf16.mxu0 %v3098
      %4175 = vmatmul.mubr.bf16.gmra.mrb[0].mxu0 %v3097
      %v4176 = vpop.f32.mrb[0].mxu0
      %v4177 = vadd.f32 %v4016, %v4176
      %v4178 = vpop.f32.mrb[0].mxu0
      %v4179 = vpop.f32.mrb[0].mxu0
      %v4180 = vadd.f32 %v4019, %v4179
      %v4181 = vpop.f32.mrb[0].mxu0
      %4182 = vmatprep.mubr.bf16.mxu0 %v3107
      %4183 = vmatmul.mubr.bf16.gmra.mrb[0].mxu0 %v3106
      %v4184 = vpop.f32.mrb[0].mxu0
      %v4185 = vadd.f32 %v4024, %v4184
      %v4186 = vpop.f32.mrb[0].mxu0
      %v4187 = vpop.f32.mrb[0].mxu0
      %v4188 = vadd.f32 %v4027, %v4187
      %v4189 = vpop.f32.mrb[0].mxu0
      %4190 = vmatprep.mubr.bf16.mxu0 %v3116
      %4191 = vmatmul.mubr.bf16.gmra.mrb[0].mxu0 %v3115
      %v4192 = vpop.f32.mrb[0].mxu0
      %v4193 = vadd.f32 %v4032, %v4192
      %v4194 = vpop.f32.mrb[0].mxu0
      %v4195 = vpop.f32.mrb[0].mxu0
      %v4196 = vadd.f32 %v4035, %v4195
      %v4197 = vpop.f32.mrb[0].mxu0
      %4198 = vmatprep.mubr.bf16.mxu0 %v3125
      %4199 = vmatmul.mubr.bf16.gmra.mrb[0].mxu0 %v3124
      %v4200 = vpop.f32.mrb[0].mxu0
      %v4201 = vadd.f32 %v4040, %v4200
      %v4202 = vpop.f32.mrb[0].mxu0
      %v4203 = vpop.f32.mrb[0].mxu0
      %v4204 = vadd.f32 %v4043, %v4203
      %v4205 = vpop.f32.mrb[0].mxu0
      %4206 = vmatprep.mubr.bf16.mxu0 %v3134
      %4207 = vmatmul.mubr.bf16.gmra.mrb[0].mxu0 %v3133
      %v4208 = vpop.f32.mrb[0].mxu0
      %v4209 = vadd.f32 %v4048, %v4208
      %v4210 = vpop.f32.mrb[0].mxu0
      %v4211 = vpop.f32.mrb[0].mxu0
      %v4212 = vadd.f32 %v4051, %v4211
      %v4213 = vpop.f32.mrb[0].mxu0
      %4214 = vmatprep.mubr.bf16.mxu0 %v3143
      %4215 = vmatmul.mubr.bf16.gmra.mrb[0].mxu0 %v3142
      %v4216 = vpop.f32.mrb[0].mxu0
      %v4217 = vadd.f32 %v4056, %v4216
      %v4218 = vpop.f32.mrb[0].mxu0
      %v4219 = vpop.f32.mrb[0].mxu0
      %v4220 = vadd.f32 %v4059, %v4219
      %v4221 = vpop.f32.mrb[0].mxu0
      %4222 = vmatprep.mubr.bf16.mxu0 %v3152
      %4223 = vmatmul.mubr.bf16.gmra.mrb[0].mxu0 %v3151
      %v4224 = vpop.f32.mrb[0].mxu0
      %v4225 = vadd.f32 %v4064, %v4224
      %v4226 = vpop.f32.mrb[0].mxu0
      %v4227 = vpop.f32.mrb[0].mxu0
      %v4228 = vadd.f32 %v4067, %v4227
      %v4229 = vpop.f32.mrb[0].mxu0
      %4230 = vmatprep.mubr.bf16.mxu0 %v3161
      %4231 = vmatmul.mubr.bf16.gmra.mrb[0].mxu0 %v3160
      %v4232 = vpop.f32.mrb[0].mxu0
      %v4233 = vadd.f32 %v4072, %v4232
      %v4234 = vpop.f32.mrb[0].mxu0
      %v4235 = vpop.f32.mrb[0].mxu0
      %v4236 = vadd.f32 %v4075, %v4235
      %v4237 = vpop.f32.mrb[0].mxu0
      %4238 = vmatprep.mubr.bf16.mxu0 %v3170
      %4239 = vmatmul.mubr.bf16.gmra.mrb[0].mxu0 %v3169
      %v4240 = vpop.f32.mrb[0].mxu0
      %v4241 = vadd.f32 %v4080, %v4240
      %v4242 = vpop.f32.mrb[0].mxu0
      %v4243 = vpop.f32.mrb[0].mxu0
      %v4244 = vadd.f32 %v4083, %v4243
      %v4245 = vpop.f32.mrb[0].mxu0
      %4246 = vmatprep.mubr.bf16.mxu0 %v3179
      %4247 = vmatmul.mubr.bf16.gmra.mrb[0].mxu0 %v3178
      %v4248 = vpop.f32.mrb[0].mxu0
      %v4249 = vadd.f32 %v4088, %v4248
      %v4250 = vpop.f32.mrb[0].mxu0
      %v4251 = vpop.f32.mrb[0].mxu0
      %v4252 = vadd.f32 %v4091, %v4251
      %v4253 = vpop.f32.mrb[0].mxu0
      %4254 = vmatprep.mubr.bf16.mxu0 %v3188
      %4255 = vmatmul.mubr.bf16.gmra.mrb[0].mxu0 %v3187
      %v4256 = vpop.f32.mrb[0].mxu0
      %v4257 = vadd.f32 %v4096, %v4256
      %v4258 = vpop.f32.mrb[0].mxu0
      %v4259 = vpop.f32.mrb[0].mxu0
      %v4260 = vadd.f32 %v4099, %v4259
      %v4261 = vpop.f32.mrb[0].mxu0
      %4262 = vmatprep.mubr.bf16.mxu0 %v3197
      %4263 = vmatmul.mubr.bf16.gmra.mrb[0].mxu0 %v3196
      %v4264 = vpop.f32.mrb[0].mxu0
      %v4265 = vadd.f32 %v4104, %v4264
      %v4266 = vpop.f32.mrb[0].mxu0
      %v4267 = vpop.f32.mrb[0].mxu0
      %v4268 = vadd.f32 %v4107, %v4267
      %v4269 = vpop.f32.mrb[0].mxu0
      %4270 = vmatprep.mubr.bf16.mxu0 %v3206
      %4271 = vmatmul.mubr.bf16.gmra.mrb[0].mxu0 %v3205
      %v4272 = vpop.f32.mrb[0].mxu0
      %v4273 = vadd.f32 %v4112, %v4272
      %v4274 = vpop.f32.mrb[0].mxu0
      %v4275 = vpop.f32.mrb[0].mxu0
      %v4276 = vadd.f32 %v4115, %v4275
      %v4277 = vpop.f32.mrb[0].mxu0
      %4278 = vmatprep.mubr.bf16.mxu0 %v3215
      %4279 = vmatmul.mubr.bf16.gmra.mrb[0].mxu0 %v3214
      %v4280 = vpop.f32.mrb[0].mxu0
      %v4281 = vadd.f32 %v4120, %v4280
      %v4282 = vpop.f32.mrb[0].mxu0
      %v4283 = vpop.f32.mrb[0].mxu0
      %v4284 = vadd.f32 %v4123, %v4283
      %v4285 = vpop.f32.mrb[0].mxu0
      %4286 = vmatprep.mubr.bf16.mxu0 %v3224
      %4287 = vmatmul.mubr.bf16.gmra.mrb[0].mxu0 %v3223
      %v4288 = vpop.f32.mrb[0].mxu0
      %v4289 = vadd.f32 %v4128, %v4288
      %v4290 = vpop.f32.mrb[0].mxu0
      %v4291 = vpop.f32.mrb[0].mxu0
      %v4292 = vadd.f32 %v4131, %v4291
      %v4293 = vpop.f32.mrb[0].mxu0
      %4294 = vmatprep.mubr.bf16.mxu0 %v3233
      %4295 = vmatmul.mubr.bf16.gmra.mrb[0].mxu0 %v3232
      %v4296 = vpop.f32.mrb[0].mxu0
      %v4297 = vadd.f32 %v4136, %v4296
      %v4298 = vpop.f32.mrb[0].mxu0
      %v4299 = vpop.f32.mrb[0].mxu0
      %v4300 = vadd.f32 %v4139, %v4299
      %v4301 = vpop.f32.mrb[0].mxu0
      %4302 = vdwg.mxu0
      %4303 = vmatprep.subr.bf16.mxu0 0
      %4304 = vmatpush1.bf16.msra.mxu0 %v3724
      %4305 = vmatprep.subr.bf16.mxu0 0
      %4306 = vmatpush1.bf16.msra.mxu0 %v3725
      %4307 = vmatprep.subr.bf16.mxu0 0
      %4308 = vmatpush1.bf16.msra.mxu0 %v3726
      %4309 = vmatprep.subr.bf16.mxu0 0
      %4310 = vmatpush1.bf16.msra.mxu0 %v3727
      %4311 = vmatprep.subr.bf16.mxu0 0
      %4312 = vmatpush1.bf16.msra.mxu0 %v3728
      %4313 = vmatprep.subr.bf16.mxu0 0
      %4314 = vmatpush1.bf16.msra.mxu0 %v3729
      %4315 = vmatprep.subr.bf16.mxu0 0
      %4316 = vmatpush1.bf16.msra.mxu0 %v3730
      %4317 = vmatprep.subr.bf16.mxu0 0
      %4318 = vmatpush1.bf16.msra.mxu0 %v3731
      %4319 = vmatprep.subr.bf16.mxu0 0
      %4320 = vmatpush1.bf16.msra.mxu0 %v3732
      %4321 = vmatprep.subr.bf16.mxu0 0
      %4322 = vmatpush1.bf16.msra.mxu0 %v3733
      %4323 = vmatprep.subr.bf16.mxu0 0
      %4324 = vmatpush1.bf16.msra.mxu0 %v3734
      %4325 = vmatprep.subr.bf16.mxu0 0
      %4326 = vmatpush1.bf16.msra.mxu0 %v3735
      %4327 = vmatprep.subr.bf16.mxu0 0
      %4328 = vmatpush1.bf16.msra.mxu0 %v3736
      %4329 = vmatprep.subr.bf16.mxu0 0
      %4330 = vmatpush1.bf16.msra.mxu0 %v3737
      %4331 = vmatprep.subr.bf16.mxu0 0
      %4332 = vmatpush1.bf16.msra.mxu0 %v3738
      %4333 = vmatprep.subr.bf16.mxu0 0
      %4334 = vmatpush1.bf16.msra.mxu0 %v3739
      %4335 = vmatprep.mubr.bf16.mxu0 %v3100
      %4336 = vmatmul.mubr.bf16.gmra.mrb[0].mxu0 %v3099
      %v4337 = vpop.f32.mrb[0].mxu0
      %v4338 = vadd.f32 %v4177, %v4337
      %v4339 = vpop.f32.mrb[0].mxu0
      %v4340 = vpop.f32.mrb[0].mxu0
      %v4341 = vadd.f32 %v4180, %v4340
      %v4342 = vpop.f32.mrb[0].mxu0
      %4343 = vmatprep.mubr.bf16.mxu0 %v3109
      %4344 = vmatmul.mubr.bf16.gmra.mrb[0].mxu0 %v3108
      %v4345 = vpop.f32.mrb[0].mxu0
      %v4346 = vadd.f32 %v4185, %v4345
      %v4347 = vpop.f32.mrb[0].mxu0
      %v4348 = vpop.f32.mrb[0].mxu0
      %v4349 = vadd.f32 %v4188, %v4348
      %v4350 = vpop.f32.mrb[0].mxu0
      %4351 = vmatprep.mubr.bf16.mxu0 %v3118
      %4352 = vmatmul.mubr.bf16.gmra.mrb[0].mxu0 %v3117
      %v4353 = vpop.f32.mrb[0].mxu0
      %v4354 = vadd.f32 %v4193, %v4353
      %v4355 = vpop.f32.mrb[0].mxu0
      %v4356 = vpop.f32.mrb[0].mxu0
      %v4357 = vadd.f32 %v4196, %v4356
      %v4358 = vpop.f32.mrb[0].mxu0
      %4359 = vmatprep.mubr.bf16.mxu0 %v3127
      %4360 = vmatmul.mubr.bf16.gmra.mrb[0].mxu0 %v3126
      %v4361 = vpop.f32.mrb[0].mxu0
      %v4362 = vadd.f32 %v4201, %v4361
      %v4363 = vpop.f32.mrb[0].mxu0
      %v4364 = vpop.f32.mrb[0].mxu0
      %v4365 = vadd.f32 %v4204, %v4364
      %v4366 = vpop.f32.mrb[0].mxu0
      %4367 = vmatprep.mubr.bf16.mxu0 %v3136
      %4368 = vmatmul.mubr.bf16.gmra.mrb[0].mxu0 %v3135
      %v4369 = vpop.f32.mrb[0].mxu0
      %v4370 = vadd.f32 %v4209, %v4369
      %v4371 = vpop.f32.mrb[0].mxu0
      %v4372 = vpop.f32.mrb[0].mxu0
      %v4373 = vadd.f32 %v4212, %v4372
      %v4374 = vpop.f32.mrb[0].mxu0
      %4375 = vmatprep.mubr.bf16.mxu0 %v3145
      %4376 = vmatmul.mubr.bf16.gmra.mrb[0].mxu0 %v3144
      %v4377 = vpop.f32.mrb[0].mxu0
      %v4378 = vadd.f32 %v4217, %v4377
      %v4379 = vpop.f32.mrb[0].mxu0
      %v4380 = vpop.f32.mrb[0].mxu0
      %v4381 = vadd.f32 %v4220, %v4380
      %v4382 = vpop.f32.mrb[0].mxu0
      %4383 = vmatprep.mubr.bf16.mxu0 %v3154
      %4384 = vmatmul.mubr.bf16.gmra.mrb[0].mxu0 %v3153
      %v4385 = vpop.f32.mrb[0].mxu0
      %v4386 = vadd.f32 %v4225, %v4385
      %v4387 = vpop.f32.mrb[0].mxu0
      %v4388 = vpop.f32.mrb[0].mxu0
      %v4389 = vadd.f32 %v4228, %v4388
      %v4390 = vpop.f32.mrb[0].mxu0
      %4391 = vmatprep.mubr.bf16.mxu0 %v3163
      %4392 = vmatmul.mubr.bf16.gmra.mrb[0].mxu0 %v3162
      %v4393 = vpop.f32.mrb[0].mxu0
      %v4394 = vadd.f32 %v4233, %v4393
      %v4395 = vpop.f32.mrb[0].mxu0
      %v4396 = vpop.f32.mrb[0].mxu0
      %v4397 = vadd.f32 %v4236, %v4396
      %v4398 = vpop.f32.mrb[0].mxu0
      %4399 = vmatprep.mubr.bf16.mxu0 %v3172
      %4400 = vmatmul.mubr.bf16.gmra.mrb[0].mxu0 %v3171
      %v4401 = vpop.f32.mrb[0].mxu0
      %v4402 = vadd.f32 %v4241, %v4401
      %v4403 = vpop.f32.mrb[0].mxu0
      %v4404 = vpop.f32.mrb[0].mxu0
      %v4405 = vadd.f32 %v4244, %v4404
      %v4406 = vpop.f32.mrb[0].mxu0
      %4407 = vmatprep.mubr.bf16.mxu0 %v3181
      %4408 = vmatmul.mubr.bf16.gmra.mrb[0].mxu0 %v3180
      %v4409 = vpop.f32.mrb[0].mxu0
      %v4410 = vadd.f32 %v4249, %v4409
      %v4411 = vpop.f32.mrb[0].mxu0
      %v4412 = vpop.f32.mrb[0].mxu0
      %v4413 = vadd.f32 %v4252, %v4412
      %v4414 = vpop.f32.mrb[0].mxu0
      %4415 = vmatprep.mubr.bf16.mxu0 %v3190
      %4416 = vmatmul.mubr.bf16.gmra.mrb[0].mxu0 %v3189
      %v4417 = vpop.f32.mrb[0].mxu0
      %v4418 = vadd.f32 %v4257, %v4417
      %v4419 = vpop.f32.mrb[0].mxu0
      %v4420 = vpop.f32.mrb[0].mxu0
      %v4421 = vadd.f32 %v4260, %v4420
      %v4422 = vpop.f32.mrb[0].mxu0
      %4423 = vmatprep.mubr.bf16.mxu0 %v3199
      %4424 = vmatmul.mubr.bf16.gmra.mrb[0].mxu0 %v3198
      %v4425 = vpop.f32.mrb[0].mxu0
      %v4426 = vadd.f32 %v4265, %v4425
      %v4427 = vpop.f32.mrb[0].mxu0
      %v4428 = vpop.f32.mrb[0].mxu0
      %v4429 = vadd.f32 %v4268, %v4428
      %v4430 = vpop.f32.mrb[0].mxu0
      %4431 = vmatprep.mubr.bf16.mxu0 %v3208
      %4432 = vmatmul.mubr.bf16.gmra.mrb[0].mxu0 %v3207
      %v4433 = vpop.f32.mrb[0].mxu0
      %v4434 = vadd.f32 %v4273, %v4433
      %v4435 = vpop.f32.mrb[0].mxu0
      %v4436 = vpop.f32.mrb[0].mxu0
      %v4437 = vadd.f32 %v4276, %v4436
      %v4438 = vpop.f32.mrb[0].mxu0
      %4439 = vmatprep.mubr.bf16.mxu0 %v3217
      %4440 = vmatmul.mubr.bf16.gmra.mrb[0].mxu0 %v3216
      %v4441 = vpop.f32.mrb[0].mxu0
      %v4442 = vadd.f32 %v4281, %v4441
      %v4443 = vpop.f32.mrb[0].mxu0
      %v4444 = vpop.f32.mrb[0].mxu0
      %v4445 = vadd.f32 %v4284, %v4444
      %v4446 = vpop.f32.mrb[0].mxu0
      %4447 = vmatprep.mubr.bf16.mxu0 %v3226
      %4448 = vmatmul.mubr.bf16.gmra.mrb[0].mxu0 %v3225
      %v4449 = vpop.f32.mrb[0].mxu0
      %v4450 = vadd.f32 %v4289, %v4449
      %v4451 = vpop.f32.mrb[0].mxu0
      %v4452 = vpop.f32.mrb[0].mxu0
      %v4453 = vadd.f32 %v4292, %v4452
      %v4454 = vpop.f32.mrb[0].mxu0
      %4455 = vmatprep.mubr.bf16.mxu0 %v3235
      %4456 = vmatmul.mubr.bf16.gmra.mrb[0].mxu0 %v3234
      %v4457 = vpop.f32.mrb[0].mxu0
      %v4458 = vadd.f32 %v4297, %v4457
      %v4459 = vpop.f32.mrb[0].mxu0
      %v4460 = vpop.f32.mrb[0].mxu0
      %v4461 = vadd.f32 %v4300, %v4460
      %v4462 = vpop.f32.mrb[0].mxu0
      %4463 = vdwg.mxu0
      %4464 = vmatprep.subr.bf16.mxu0 0
      %4465 = vmatpush1.bf16.msra.mxu0 %v3740
      %4466 = vmatprep.subr.bf16.mxu0 0
      %4467 = vmatpush1.bf16.msra.mxu0 %v3741
      %4468 = vmatprep.subr.bf16.mxu0 0
      %4469 = vmatpush1.bf16.msra.mxu0 %v3742
      %4470 = vmatprep.subr.bf16.mxu0 0
      %4471 = vmatpush1.bf16.msra.mxu0 %v3743
      %4472 = vmatprep.subr.bf16.mxu0 0
      %4473 = vmatpush1.bf16.msra.mxu0 %v3744
      %4474 = vmatprep.subr.bf16.mxu0 0
      %4475 = vmatpush1.bf16.msra.mxu0 %v3745
      %4476 = vmatprep.subr.bf16.mxu0 0
      %4477 = vmatpush1.bf16.msra.mxu0 %v3746
      %4478 = vmatprep.subr.bf16.mxu0 0
      %4479 = vmatpush1.bf16.msra.mxu0 %v3747
      %4480 = vmatprep.subr.bf16.mxu0 0
      %4481 = vmatpush1.bf16.msra.mxu0 0
      %4482 = vmatprep.subr.bf16.mxu0 0
      %4483 = vmatpush1.bf16.msra.mxu0 0
      %4484 = vmatprep.subr.bf16.mxu0 0
      %4485 = vmatpush1.bf16.msra.mxu0 0
      %4486 = vmatprep.subr.bf16.mxu0 0
      %4487 = vmatpush1.bf16.msra.mxu0 0
      %4488 = vmatprep.subr.bf16.mxu0 0
      %4489 = vmatpush1.bf16.msra.mxu0 0
      %4490 = vmatprep.subr.bf16.mxu0 0
      %4491 = vmatpush1.bf16.msra.mxu0 0
      %4492 = vmatprep.subr.bf16.mxu0 0
      %4493 = vmatpush1.bf16.msra.mxu0 0
      %4494 = vmatprep.subr.bf16.mxu0 0
      %4495 = vmatpush1.bf16.msra.mxu0 0
      %4496 = vmatprep.mubr.bf16.mxu0 0
      %4497 = vmatmul.mubr.bf16.gmra.mrb[0].mxu0 %v3101
      %v4498 = vpop.f32.mrb[0].mxu0
      %v4499 = vadd.f32 %v4338, %v4498
      %v4500 = vpop.f32.mrb[0].mxu0
      %v4501 = vpop.f32.mrb[0].mxu0
      %v4502 = vadd.f32 %v4341, %v4501
      %v4503 = vpop.f32.mrb[0].mxu0
      %4504 = vmatprep.mubr.bf16.mxu0 0
      %4505 = vmatmul.mubr.bf16.gmra.mrb[0].mxu0 %v3110
      %v4506 = vpop.f32.mrb[0].mxu0
      %v4507 = vadd.f32 %v4346, %v4506
      %v4508 = vpop.f32.mrb[0].mxu0
      %v4509 = vpop.f32.mrb[0].mxu0
      %v4510 = vadd.f32 %v4349, %v4509
      %v4511 = vpop.f32.mrb[0].mxu0
      %4512 = vmatprep.mubr.bf16.mxu0 0
      %4513 = vmatmul.mubr.bf16.gmra.mrb[0].mxu0 %v3119
      %v4514 = vpop.f32.mrb[0].mxu0
      %v4515 = vadd.f32 %v4354, %v4514
      %v4516 = vpop.f32.mrb[0].mxu0
      %v4517 = vpop.f32.mrb[0].mxu0
      %v4518 = vadd.f32 %v4357, %v4517
      %v4519 = vpop.f32.mrb[0].mxu0
      %4520 = vmatprep.mubr.bf16.mxu0 0
      %4521 = vmatmul.mubr.bf16.gmra.mrb[0].mxu0 %v3128
      %v4522 = vpop.f32.mrb[0].mxu0
      %v4523 = vadd.f32 %v4362, %v4522
      %v4524 = vpop.f32.mrb[0].mxu0
      %v4525 = vpop.f32.mrb[0].mxu0
      %v4526 = vadd.f32 %v4365, %v4525
      %v4527 = vpop.f32.mrb[0].mxu0
      %4528 = vmatprep.mubr.bf16.mxu0 0
      %4529 = vmatmul.mubr.bf16.gmra.mrb[0].mxu0 %v3137
      %v4530 = vpop.f32.mrb[0].mxu0
      %v4531 = vadd.f32 %v4370, %v4530
      %v4532 = vpop.f32.mrb[0].mxu0
      %v4533 = vpop.f32.mrb[0].mxu0
      %v4534 = vadd.f32 %v4373, %v4533
      %v4535 = vpop.f32.mrb[0].mxu0
      %4536 = vmatprep.mubr.bf16.mxu0 0
      %4537 = vmatmul.mubr.bf16.gmra.mrb[0].mxu0 %v3146
      %v4538 = vpop.f32.mrb[0].mxu0
      %v4539 = vadd.f32 %v4378, %v4538
      %v4540 = vpop.f32.mrb[0].mxu0
      %v4541 = vpop.f32.mrb[0].mxu0
      %v4542 = vadd.f32 %v4381, %v4541
      %v4543 = vpop.f32.mrb[0].mxu0
      %4544 = vmatprep.mubr.bf16.mxu0 0
      %4545 = vmatmul.mubr.bf16.gmra.mrb[0].mxu0 %v3155
      %v4546 = vpop.f32.mrb[0].mxu0
      %v4547 = vadd.f32 %v4386, %v4546
      %v4548 = vpop.f32.mrb[0].mxu0
      %v4549 = vpop.f32.mrb[0].mxu0
      %v4550 = vadd.f32 %v4389, %v4549
      %v4551 = vpop.f32.mrb[0].mxu0
      %4552 = vmatprep.mubr.bf16.mxu0 0
      %4553 = vmatmul.mubr.bf16.gmra.mrb[0].mxu0 %v3164
      %v4554 = vpop.f32.mrb[0].mxu0
      %v4555 = vadd.f32 %v4394, %v4554
      %v4556 = vpop.f32.mrb[0].mxu0
      %v4557 = vpop.f32.mrb[0].mxu0
      %v4558 = vadd.f32 %v4397, %v4557
      %v4559 = vpop.f32.mrb[0].mxu0
      %4560 = vmatprep.mubr.bf16.mxu0 0
      %4561 = vmatmul.mubr.bf16.gmra.mrb[0].mxu0 %v3173
      %v4562 = vpop.f32.mrb[0].mxu0
      %v4563 = vadd.f32 %v4402, %v4562
      %v4564 = vpop.f32.mrb[0].mxu0
      %v4565 = vpop.f32.mrb[0].mxu0
      %v4566 = vadd.f32 %v4405, %v4565
      %v4567 = vpop.f32.mrb[0].mxu0
      %4568 = vmatprep.mubr.bf16.mxu0 0
      %4569 = vmatmul.mubr.bf16.gmra.mrb[0].mxu0 %v3182
      %v4570 = vpop.f32.mrb[0].mxu0
      %v4571 = vadd.f32 %v4410, %v4570
      %v4572 = vpop.f32.mrb[0].mxu0
      %v4573 = vpop.f32.mrb[0].mxu0
      %v4574 = vadd.f32 %v4413, %v4573
      %v4575 = vpop.f32.mrb[0].mxu0
      %4576 = vmatprep.mubr.bf16.mxu0 0
      %4577 = vmatmul.mubr.bf16.gmra.mrb[0].mxu0 %v3191
      %v4578 = vpop.f32.mrb[0].mxu0
      %v4579 = vadd.f32 %v4418, %v4578
      %v4580 = vpop.f32.mrb[0].mxu0
      %v4581 = vpop.f32.mrb[0].mxu0
      %v4582 = vadd.f32 %v4421, %v4581
      %v4583 = vpop.f32.mrb[0].mxu0
      %4584 = vmatprep.mubr.bf16.mxu0 0
      %4585 = vmatmul.mubr.bf16.gmra.mrb[0].mxu0 %v3200
      %v4586 = vpop.f32.mrb[0].mxu0
      %v4587 = vadd.f32 %v4426, %v4586
      %v4588 = vpop.f32.mrb[0].mxu0
      %v4589 = vpop.f32.mrb[0].mxu0
      %v4590 = vadd.f32 %v4429, %v4589
      %v4591 = vpop.f32.mrb[0].mxu0
      %4592 = vmatprep.mubr.bf16.mxu0 0
      %4593 = vmatmul.mubr.bf16.gmra.mrb[0].mxu0 %v3209
      %v4594 = vpop.f32.mrb[0].mxu0
      %v4595 = vadd.f32 %v4434, %v4594
      %v4596 = vpop.f32.mrb[0].mxu0
      %v4597 = vpop.f32.mrb[0].mxu0
      %v4598 = vadd.f32 %v4437, %v4597
      %v4599 = vpop.f32.mrb[0].mxu0
      %4600 = vmatprep.mubr.bf16.mxu0 0
      %4601 = vmatmul.mubr.bf16.gmra.mrb[0].mxu0 %v3218
      %v4602 = vpop.f32.mrb[0].mxu0
      %v4603 = vadd.f32 %v4442, %v4602
      %v4604 = vpop.f32.mrb[0].mxu0
      %v4605 = vpop.f32.mrb[0].mxu0
      %v4606 = vadd.f32 %v4445, %v4605
      %v4607 = vpop.f32.mrb[0].mxu0
      %4608 = vmatprep.mubr.bf16.mxu0 0
      %4609 = vmatmul.mubr.bf16.gmra.mrb[0].mxu0 %v3227
      %v4610 = vpop.f32.mrb[0].mxu0
      %v4611 = vadd.f32 %v4450, %v4610
      %v4612 = vpop.f32.mrb[0].mxu0
      %v4613 = vpop.f32.mrb[0].mxu0
      %v4614 = vadd.f32 %v4453, %v4613
      %v4615 = vpop.f32.mrb[0].mxu0
      %4616 = vmatprep.mubr.bf16.mxu0 0
      %4617 = vmatmul.mubr.bf16.gmra.mrb[0].mxu0 %v3236
      %v4618 = vpop.f32.mrb[0].mxu0
      %v4619 = vadd.f32 %v4458, %v4618
      %v4620 = vpop.f32.mrb[0].mxu0
      %v4621 = vpop.f32.mrb[0].mxu0
      %v4622 = vadd.f32 %v4461, %v4621
      %v4623 = vpop.f32.mrb[0].mxu0
      %4624 = vdwg.mxu0
      %v4625 = vmax.f32 %v4499, 0.0
      %v4626 = vmax.f32 %v4502, 0.0
      %v4627 = vmax.f32 %v4507, 0.0
      %v4628 = vmax.f32 %v4510, 0.0
      %v4629 = vmax.f32 %v4515, 0.0
      %v4630 = vmax.f32 %v4518, 0.0
      %v4631 = vmax.f32 %v4523, 0.0
      %v4632 = vmax.f32 %v4526, 0.0
      %v4633 = vmax.f32 %v4531, 0.0
      %v4634 = vmax.f32 %v4534, 0.0
      %v4635 = vmax.f32 %v4539, 0.0
      %v4636 = vmax.f32 %v4542, 0.0
      %v4637 = vmax.f32 %v4547, 0.0
      %v4638 = vmax.f32 %v4550, 0.0
      %v4639 = vmax.f32 %v4555, 0.0
      %v4640 = vmax.f32 %v4558, 0.0
      %v4641 = vmax.f32 %v4563, 0.0
      %v4642 = vmax.f32 %v4566, 0.0
      %v4643 = vmax.f32 %v4571, 0.0
      %v4644 = vmax.f32 %v4574, 0.0
      %v4645 = vmax.f32 %v4579, 0.0
      %v4646 = vmax.f32 %v4582, 0.0
      %v4647 = vmax.f32 %v4587, 0.0
      %v4648 = vmax.f32 %v4590, 0.0
      %v4649 = vmax.f32 %v4595, 0.0
      %v4650 = vmax.f32 %v4598, 0.0
      %v4651 = vmax.f32 %v4603, 0.0
      %v4652 = vmax.f32 %v4606, 0.0
      %v4653 = vmax.f32 %v4611, 0.0
      %v4654 = vmax.f32 %v4614, 0.0
      %v4655 = vmax.f32 %v4619, 0.0
      %v4656 = vmax.f32 %v4622, 0.0
      %v4657 = vpack.c.bf16 %v4626, %v4625
      %v4658 = vpack.c.bf16 %v4628, %v4627
      %v4659 = vpack.c.bf16 %v4630, %v4629
      %v4660 = vpack.c.bf16 %v4632, %v4631
      %v4661 = vpack.c.bf16 %v4634, %v4633
      %v4662 = vpack.c.bf16 %v4636, %v4635
      %v4663 = vpack.c.bf16 %v4638, %v4637
      %v4664 = vpack.c.bf16 %v4640, %v4639
      %v4665 = vpack.c.bf16 %v4642, %v4641
      %v4666 = vpack.c.bf16 %v4644, %v4643
      %v4667 = vpack.c.bf16 %v4646, %v4645
      %v4668 = vpack.c.bf16 %v4648, %v4647
      %v4669 = vpack.c.bf16 %v4650, %v4649
      %v4670 = vpack.c.bf16 %v4652, %v4651
      %v4671 = vpack.c.bf16 %v4654, %v4653
      %v4672 = vpack.c.bf16 %v4656, %v4655
      %v4689 = vunpack.c.l.b16 %v4657
      %v4690 = vunpack.c.h.b16 %v4657
      %v4691 = vunpack.c.l.b16 %v4658
      %v4692 = vunpack.c.h.b16 %v4658
      %v4693 = vunpack.c.l.b16 %v4659
      %v4694 = vunpack.c.h.b16 %v4659
      %v4695 = vunpack.c.l.b16 %v4660
      %v4696 = vunpack.c.h.b16 %v4660
      %v4697 = vunpack.c.l.b16 %v4661
      %v4698 = vunpack.c.h.b16 %v4661
      %v4699 = vunpack.c.l.b16 %v4662
      %v4700 = vunpack.c.h.b16 %v4662
      %v4701 = vunpack.c.l.b16 %v4663
      %v4702 = vunpack.c.h.b16 %v4663
      %v4703 = vunpack.c.l.b16 %v4664
      %v4704 = vunpack.c.h.b16 %v4664
      %v4705 = vunpack.c.l.b16 %v4665
      %v4706 = vunpack.c.h.b16 %v4665
      %v4707 = vunpack.c.l.b16 %v4666
      %v4708 = vunpack.c.h.b16 %v4666
      %v4709 = vunpack.c.l.b16 %v4667
      %v4710 = vunpack.c.h.b16 %v4667
      %v4711 = vunpack.c.l.b16 %v4668
      %v4712 = vunpack.c.h.b16 %v4668
      %v4713 = vunpack.c.l.b16 %v4669
      %v4714 = vunpack.c.h.b16 %v4669
      %v4715 = vunpack.c.l.b16 %v4670
      %v4716 = vunpack.c.h.b16 %v4670
      %v4717 = vunpack.c.l.b16 %v4671
      %v4718 = vunpack.c.h.b16 %v4671
      %v4719 = vunpack.c.l.b16 %v4672
      %v4720 = vunpack.c.h.b16 %v4672
      %v4721 = vpack.c.b16 %v4689, %v4689
      %v4722 = vpack.c.b16 %v4690, %v4690
      %v4723 = vpack.c.b16 %v4691, %v4691
      %v4724 = vpack.c.b16 %v4692, %v4692
      %v4725 = vpack.c.b16 %v4693, %v4693
      %v4726 = vpack.c.b16 %v4694, %v4694
      %v4727 = vpack.c.b16 %v4695, %v4695
      %v4728 = vpack.c.b16 %v4696, %v4696
      %v4729 = vpack.c.b16 %v4697, %v4697
      %v4730 = vpack.c.b16 %v4698, %v4698
      %v4731 = vpack.c.b16 %v4699, %v4699
      %v4732 = vpack.c.b16 %v4700, %v4700
      %v4733 = vpack.c.b16 %v4701, %v4701
      %v4734 = vpack.c.b16 %v4702, %v4702
      %v4735 = vpack.c.b16 %v4703, %v4703
      %v4736 = vpack.c.b16 %v4704, %v4704
      %v4737 = vpack.c.b16 %v4705, %v4705
      %v4738 = vpack.c.b16 %v4706, %v4706
      %v4739 = vpack.c.b16 %v4707, %v4707
      %v4740 = vpack.c.b16 %v4708, %v4708
      %v4741 = vpack.c.b16 %v4709, %v4709
      %v4742 = vpack.c.b16 %v4710, %v4710
      %v4743 = vpack.c.b16 %v4711, %v4711
      %v4744 = vpack.c.b16 %v4712, %v4712
      %v4745 = vpack.c.b16 %v4713, %v4713
      %v4746 = vpack.c.b16 %v4714, %v4714
      %v4747 = vpack.c.b16 %v4715, %v4715
      %v4748 = vpack.c.b16 %v4716, %v4716
      %v4749 = vpack.c.b16 %v4717, %v4717
      %v4750 = vpack.c.b16 %v4718, %v4718
      %v4751 = vpack.c.b16 %v4719, %v4719
      %v4752 = vpack.c.b16 %v4720, %v4720
      %4785 = vst [vmem:[%s240] sm:$0xf] %v4721
      %4786 = vst [vmem:[%s240 + $0x4] sm:$0xf] %v4722
      %4787 = vst [vmem:[%s240 + $0x8] sm:$0xf] %v4723
      %4788 = vst [vmem:[%s240 + $0xc] sm:$0xf] %v4724
      %4789 = vst [vmem:[%s240 + $0x10] sm:$0xf] %v4725
      %4790 = vst [vmem:[%s240 + $0x14] sm:$0xf] %v4726
      %4791 = vst [vmem:[%s240 + $0x18] sm:$0xf] %v4727
      %4792 = vst [vmem:[%s240 + $0x1c] sm:$0xf] %v4728
      %4793 = vst [vmem:[%s240 + $0x20] sm:$0xf] %v4729
      %4794 = vst [vmem:[%s240 + $0x24] sm:$0xf] %v4730
      %4795 = vst [vmem:[%s240 + $0x28] sm:$0xf] %v4731
      %4796 = vst [vmem:[%s240 + $0x2c] sm:$0xf] %v4732
      %4797 = vst [vmem:[%s240 + $0x30] sm:$0xf] %v4733
      %4798 = vst [vmem:[%s240 + $0x34] sm:$0xf] %v4734
      %4799 = vst [vmem:[%s240 + $0x38] sm:$0xf] %v4735
      %4800 = vst [vmem:[%s240 + $0x3c] sm:$0xf] %v4736
      %4801 = vst [vmem:[%s240 + $0x40] sm:$0xf] %v4737
      %4802 = vst [vmem:[%s240 + $0x44] sm:$0xf] %v4738
      %4803 = vst [vmem:[%s240 + $0x48] sm:$0xf] %v4739
      %4804 = vst [vmem:[%s240 + $0x4c] sm:$0xf] %v4740
      %4805 = vst [vmem:[%s240 + $0x50] sm:$0xf] %v4741
      %4806 = vst [vmem:[%s240 + $0x54] sm:$0xf] %v4742
      %4807 = vst [vmem:[%s240 + $0x58] sm:$0xf] %v4743
      %4808 = vst [vmem:[%s240 + $0x5c] sm:$0xf] %v4744
      %4809 = vst [vmem:[%s240 + $0x60] sm:$0xf] %v4745
      %4810 = vst [vmem:[%s240 + $0x64] sm:$0xf] %v4746
      %4811 = vst [vmem:[%s240 + $0x68] sm:$0xf] %v4747
      %4812 = vst [vmem:[%s240 + $0x6c] sm:$0xf] %v4748
      %4813 = vst [vmem:[%s240 + $0x70] sm:$0xf] %v4749
      %4814 = vst [vmem:[%s240 + $0x74] sm:$0xf] %v4750
      %4815 = vst [vmem:[%s240 + $0x78] sm:$0xf] %v4751
      %4816 = vst [vmem:[%s240 + $0x7c] sm:$0xf] %v4752
      %s4817 = smul.u32 16, %s21
      %p4818 = scmp.lt.s32.totalorder %s20, 1
      %s4819 = scalar_select %p4818, %s20, 1
      %p4820 = scmp.lt.s32.totalorder %s4817, 15
      %s4821 = scalar_select %p4820, %s4817, 15
      %p4822 = scmp.lt.s32.totalorder %s19, 0
      %s4823 = scalar_select %p4822, %s19, 0
      %s4824 = smul.addr %s4821, 2
      %s4825 = sadd.s32 %s4823, %s4824
      %s4826 = smul.addr %s4819, 32
      %s4827 = sadd.s32 %s4825, %s4826
      %s4828 = smul.addr %s4827, 4
      %s4829 = scalar_lea.vmem %s3, %s4828
      // Predicated region
      $region33: #{basic_block_forward.2} parent=31 // pred_check
        %p4830 = pneg %p133
      $region34: #{basic_block_forward.2} parent=31 // pred_check_branch
        %4832 = sbr.rel (%p4830) target = $region36
      $region35: #{basic_block_forward.2} parent=31 // pred_region
        %s4833 = smul.u32 16, %s21
      $region36: #{basic_block_forward.2} parent=31 // pred_fallthru
        _
    $region32: #{basic_block_forward.2} parent=5 // pred_fallthru
      _
    %p4834 = scmp.le.s32.totalorder 2, %s9
    // Predicated region
    $region37: #{basic_block_forward.2} parent=5 // pred_check
      %p4835 = pneg %p4834
    $region38: #{basic_block_forward.2} parent=5 // pred_check_branch
      %4837 = sbr.rel (%p4835) target = $region40
    $region39: #{basic_block_forward.2} parent=5 // pred_region
      %s4838 = ssub.s32 %s9, 2
      // Predicated region
      $region41: #{basic_block_forward.2} parent=39 // pred_check
        %p4839 = pneg %p139
      $region42: #{basic_block_forward.2} parent=39 // pred_check_branch
        %4841 = sbr.rel (%p4839) target = $region44
      $region43: #{basic_block_forward.2} parent=39 // pred_region
        %s4842 = smul.u32 16, %s24
        %p4843 = scmp.lt.s32.totalorder %s23, 1
        %s4844 = scalar_select %p4843, %s23, 1
        %p4845 = scmp.lt.s32.totalorder %s4842, 15
        %s4846 = scalar_select %p4845, %s4842, 15
        %p4847 = scmp.lt.s32.totalorder %s22, 0
        %s4848 = scalar_select %p4847, %s22, 0
        %s4849 = smul.addr %s4846, 2
        %s4850 = sadd.s32 %s4848, %s4849
        %s4851 = smul.addr %s4844, 32
        %s4852 = sadd.s32 %s4850, %s4851
        %s4853 = smul.addr %s4852, 4
        %s4854 = scalar_lea.vmem %s3, %s4853
      $region44: #{basic_block_forward.2} parent=39 // pred_fallthru
        _
    $region40: #{basic_block_forward.2} parent=5 // pred_fallthru
      _
  $region6: #{basic_block_forward.2} parent=0 // loop_footer
    %s13 = sadd.s32 1, %s9
  $region7: #{basic_block_forward.2} parent=0 // loop_footer_branch
    %8 = sbr.rel target = $region3
  $region8: #{basic_block_forward.2} parent=0 // loop_exit
    _

// kernel: basic_block_forward.3
$region0: #{basic_block_forward.3}
  #allocation0 [shape = 'u32[]', space=smem, size = 0x4, offset = 0x4, fixed_abs, tag = 'smem constant byte address 0x4 - core index']
  #allocation1 [shape = 'u32[144,128]{1,0:T(1,128)}', space=vmem, size = 0x12000, scoped, tag = 'internal scratch']
  #allocation2 [shape = 'bf16[256,1152]{1,0:T(16,128)(2,1)}', space=vmem, size = 0x90000, scoped, tag = 'scratch operand']
  %s0 = inlined_call_operand.vmem [shape: bf16[2,18,18,128], index: 0, kind: input, shape index: {}]
  %s1 = inlined_call_operand.vmem [shape: bf16[1152,128], index: 1, kind: input, shape index: {}]
  %s2 = inlined_call_operand.vmem [shape: f32[1,128], index: 2, kind: input, shape index: {}]
  %s3 = inlined_call_operand.vmem [shape: bf16[2,18,18,128], index: 3, kind: input, shape index: {}]
  %s4 = inlined_call_operand.vmem [shape: bf16[128,128], index: 4, kind: input, shape index: {}]
  %s5 = inlined_call_operand.vmem [shape: f32[1,128], index: 5, kind: input, shape index: {}]
  %s6 = inlined_call_operand.vmem [shape: f32[2,16,16,128], index: 6, kind: output, shape index: {}]
  %s7 = sld [smem:[#allocation0]]
  $region57: #{basic_block_forward.3} parent=0
    _
  %s9 = ssub.s32 1, %s7
  %s10 = scalar_select 0, %s9, %s7
  loop: start=0, step=1, limit=4
  $region2: #{basic_block_forward.3} parent=0 // loop_pre_header
    _
  $region3: #{basic_block_forward.3} parent=0 // loop_header
    %s12 = sphi 0, %s16
    %p13 = scmp.ge.s32.totalorder %s12, 4
    %s19 = sphi 0, %s38
    %s20 = sphi 0, %s34
    %s21 = sphi 0, %s30
    %s22 = sphi 0, %s19
    %s23 = sphi 0, %s20
    %s24 = sphi 0, %s21
    %s25 = sphi 0, %s22
    %s26 = sphi 0, %s23
    %s27 = sphi 0, %s24
    %s41 = sphi 0, %s43
    %s44 = sphi 0, %s41
    %s45 = sphi 0, %s44
    %s61 = sphi 0, %s45
    %s67 = sphi 0, %s69
    %s70 = sphi 0, %s67
    %s71 = sphi 0, %s70
    %s87 = sphi 0, %s71
    %s93 = sphi 0, %s95
    %s96 = sphi 0, %s93
    %s97 = sphi 0, %s96
    %s113 = sphi 0, %s97
    %s119 = sphi 0, %s121
    %s122 = sphi 0, %s119
    %s123 = sphi 0, %s122
    %s139 = sphi 0, %s123
    %s145 = sphi 0, %s147
    %s148 = sphi 0, %s145
    %s149 = sphi 0, %s148
    %s165 = sphi 0, %s149
    %s171 = sphi 0, %s173
    %s174 = sphi 0, %s171
    %s175 = sphi 0, %s174
    %s191 = sphi 0, %s175
    %s201 = sphi 0, %s203
    %s204 = sphi 0, %s201
    %s205 = sphi 0, %s204
    %s221 = sphi 0, %s205
  $region4: #{basic_block_forward.3} parent=0 // loop_header_branch
    %15 = sbr.rel (%p13) target = $region8
  $region5: #{basic_block_forward.3} parent=0 // loop_body
    %s17 = ssub.s32 %s12, 1
    %s18 = ssub.s32 %s12, 2
    %s28 = sadd.s32 1, %s21
    %p29 = scmp.ge.s32.totalorder %s28, 1
    %s30 = scalar_select %p29, 0, %s28
    %s31 = sadd.s32 1, %s20
    %s32 = scalar_select %p29, %s31, %s20
    %p33 = scmp.ge.s32.totalorder %s32, 2
    %s34 = scalar_select %p33, 0, %s32
    %s35 = sadd.s32 1, %s19
    %s36 = scalar_select %p33, %s35, %s19
    %p37 = scmp.ge.s32.totalorder %s36, 1
    %s38 = scalar_select %p37, 0, %s36
    %s39 = ssub.s32 %s20, %s34
    %p40 = scmp.eq.s32.totalorder %s39, 0
    %s42 = sadd.s32 %s41, 1
    %s43 = scalar_select %p40, %s41, %s42
    %p46 = pneg %p40
    %p47 = scmp.eq.s32.totalorder %s12, 1
    %p48 = por %p46, %p47
    %p49 = scmp.ne.s32.totalorder %s41, %s44
    %p50 = scmp.eq.s32.totalorder %s12, 0
    %p51 = por %p49, %p50
    %p52 = scmp.ne.s32.totalorder %s41, %s44
    %p53 = scmp.eq.s32.totalorder %s17, 1
    %p54 = por %p52, %p53
    %p55 = scmp.ne.s32.totalorder %s44, %s45
    %p56 = scmp.eq.s32.totalorder %s17, 0
    %p57 = por %p55, %p56
    %p58 = scmp.ne.s32.totalorder %s44, %s45
    %p59 = scmp.eq.s32.totalorder %s18, 1
    %p60 = por %p58, %p59
    %p62 = scmp.ne.s32.totalorder %s45, %s61
    %p63 = scmp.eq.s32.totalorder %s18, 0
    %p64 = por %p62, %p63
    %s65 = ssub.s32 %s19, %s38
    %p66 = scmp.eq.s32.totalorder %s65, 0
    %s68 = sadd.s32 %s67, 1
    %s69 = scalar_select %p66, %s67, %s68
    %p72 = pneg %p66
    %p73 = scmp.eq.s32.totalorder %s12, 1
    %p74 = por %p72, %p73
    %p75 = scmp.ne.s32.totalorder %s67, %s70
    %p76 = scmp.eq.s32.totalorder %s12, 0
    %p77 = por %p75, %p76
    %p78 = scmp.ne.s32.totalorder %s67, %s70
    %p79 = scmp.eq.s32.totalorder %s17, 1
    %p80 = por %p78, %p79
    %p81 = scmp.ne.s32.totalorder %s70, %s71
    %p82 = scmp.eq.s32.totalorder %s17, 0
    %p83 = por %p81, %p82
    %p84 = scmp.ne.s32.totalorder %s70, %s71
    %p85 = scmp.eq.s32.totalorder %s18, 1
    %p86 = por %p84, %p85
    %p88 = scmp.ne.s32.totalorder %s71, %s87
    %p89 = scmp.eq.s32.totalorder %s18, 0
    %p90 = por %p88, %p89
    %s91 = ssub.s32 %s19, %s38
    %p92 = scmp.eq.s32.totalorder %s91, 0
    %s94 = sadd.s32 %s93, 1
    %s95 = scalar_select %p92, %s93, %s94
    %p98 = pneg %p92
    %p99 = scmp.eq.s32.totalorder %s12, 1
    %p100 = por %p98, %p99
    %p101 = scmp.ne.s32.totalorder %s93, %s96
    %p102 = scmp.eq.s32.totalorder %s12, 0
    %p103 = por %p101, %p102
    %p104 = scmp.ne.s32.totalorder %s93, %s96
    %p105 = scmp.eq.s32.totalorder %s17, 1
    %p106 = por %p104, %p105
    %p107 = scmp.ne.s32.totalorder %s96, %s97
    %p108 = scmp.eq.s32.totalorder %s17, 0
    %p109 = por %p107, %p108
    %p110 = scmp.ne.s32.totalorder %s96, %s97
    %p111 = scmp.eq.s32.totalorder %s18, 1
    %p112 = por %p110, %p111
    %p114 = scmp.ne.s32.totalorder %s97, %s113
    %p115 = scmp.eq.s32.totalorder %s18, 0
    %p116 = por %p114, %p115
    %s117 = ssub.s32 %s20, %s34
    %p118 = scmp.eq.s32.totalorder %s117, 0
    %s120 = sadd.s32 %s119, 1
    %s121 = scalar_select %p118, %s119, %s120
    %p124 = pneg %p118
    %p125 = scmp.eq.s32.totalorder %s12, 1
    %p126 = por %p124, %p125
    %p127 = scmp.ne.s32.totalorder %s119, %s122
    %p128 = scmp.eq.s32.totalorder %s12, 0
    %p129 = por %p127, %p128
    %p130 = scmp.ne.s32.totalorder %s119, %s122
    %p131 = scmp.eq.s32.totalorder %s17, 1
    %p132 = por %p130, %p131
    %p133 = scmp.ne.s32.totalorder %s122, %s123
    %p134 = scmp.eq.s32.totalorder %s17, 0
    %p135 = por %p133, %p134
    %p136 = scmp.ne.s32.totalorder %s122, %s123
    %p137 = scmp.eq.s32.totalorder %s18, 1
    %p138 = por %p136, %p137
    %p140 = scmp.ne.s32.totalorder %s123, %s139
    %p141 = scmp.eq.s32.totalorder %s18, 0
    %p142 = por %p140, %p141
    %s143 = ssub.s32 %s19, %s38
    %p144 = scmp.eq.s32.totalorder %s143, 0
    %s146 = sadd.s32 %s145, 1
    %s147 = scalar_select %p144, %s145, %s146
    %p150 = pneg %p144
    %p151 = scmp.eq.s32.totalorder %s12, 1
    %p152 = por %p150, %p151
    %p153 = scmp.ne.s32.totalorder %s145, %s148
    %p154 = scmp.eq.s32.totalorder %s12, 0
    %p155 = por %p153, %p154
    %p156 = scmp.ne.s32.totalorder %s145, %s148
    %p157 = scmp.eq.s32.totalorder %s17, 1
    %p158 = por %p156, %p157
    %p159 = scmp.ne.s32.totalorder %s148, %s149
    %p160 = scmp.eq.s32.totalorder %s17, 0
    %p161 = por %p159, %p160
    %p162 = scmp.ne.s32.totalorder %s148, %s149
    %p163 = scmp.eq.s32.totalorder %s18, 1
    %p164 = por %p162, %p163
    %p166 = scmp.ne.s32.totalorder %s149, %s165
    %p167 = scmp.eq.s32.totalorder %s18, 0
    %p168 = por %p166, %p167
    %s169 = ssub.s32 %s19, %s38
    %p170 = scmp.eq.s32.totalorder %s169, 0
    %s172 = sadd.s32 %s171, 1
    %s173 = scalar_select %p170, %s171, %s172
    %p176 = pneg %p170
    %p177 = scmp.eq.s32.totalorder %s12, 1
    %p178 = por %p176, %p177
    %p179 = scmp.ne.s32.totalorder %s171, %s174
    %p180 = scmp.eq.s32.totalorder %s12, 0
    %p181 = por %p179, %p180
    %p182 = scmp.ne.s32.totalorder %s171, %s174
    %p183 = scmp.eq.s32.totalorder %s17, 1
    %p184 = por %p182, %p183
    %p185 = scmp.ne.s32.totalorder %s174, %s175
    %p186 = scmp.eq.s32.totalorder %s17, 0
    %p187 = por %p185, %p186
    %p188 = scmp.ne.s32.totalorder %s174, %s175
    %p189 = scmp.eq.s32.totalorder %s18, 1
    %p190 = por %p188, %p189
    %p192 = scmp.ne.s32.totalorder %s175, %s191
    %p193 = scmp.eq.s32.totalorder %s18, 0
    %p194 = por %p192, %p193
    %s195 = ssub.s32 %s20, %s34
    %s196 = ssub.s32 %s21, %s30
    %s197 = sor.u32 %s195, %s196
    %s198 = ssub.s32 %s19, %s38
    %s199 = sor.u32 %s197, %s198
    %p200 = scmp.eq.s32.totalorder %s199, 0
    %s202 = sadd.s32 %s201, 1
    %s203 = scalar_select %p200, %s201, %s202
    %p206 = pneg %p200
    %p207 = scmp.eq.s32.totalorder %s12, 1
    %p208 = por %p206, %p207
    %p209 = scmp.ne.s32.totalorder %s201, %s204
    %p210 = scmp.eq.s32.totalorder %s12, 0
    %p211 = por %p209, %p210
    %p212 = scmp.ne.s32.totalorder %s201, %s204
    %p213 = scmp.eq.s32.totalorder %s17, 1
    %p214 = por %p212, %p213
    %p215 = scmp.ne.s32.totalorder %s204, %s205
    %p216 = scmp.eq.s32.totalorder %s17, 0
    %p217 = por %p215, %p216
    %p218 = scmp.ne.s32.totalorder %s204, %s205
    %p219 = scmp.eq.s32.totalorder %s18, 1
    %p220 = por %p218, %p219
    %p222 = scmp.ne.s32.totalorder %s205, %s221
    %p223 = scmp.eq.s32.totalorder %s18, 0
    %p224 = por %p222, %p223
    %p225 = scmp.le.s32.totalorder 1, %s12
    %p226 = scmp.lt.s32.totalorder %s12, 3
    %p227 = pnand %p225, %p226
    %p228 = pneg %p227
    // Predicated region
    $region9: #{basic_block_forward.3} parent=5 // pred_check
      _
    $region10: #{basic_block_forward.3} parent=5 // pred_check_branch
      %230 = sbr.rel (%p227) target = $region12
    $region11: #{basic_block_forward.3} parent=5 // pred_region
      %s231 = ssub.s32 %s12, 1
      // Predicated region
      $region13: #{basic_block_forward.3} parent=11 // pred_check
        %p232 = pneg %p83
      $region14: #{basic_block_forward.3} parent=11 // pred_check_branch
        %234 = sbr.rel (%p232) target = $region16
      $region15: #{basic_block_forward.3} parent=11 // pred_region
        %p235 = scmp.lt.s32.totalorder %s22, 0
        %s236 = scalar_select %p235, %s22, 0
        %s237 = smul.addr %s236, 4
        %s238 = scalar_lea.vmem %s1, %s237
      $region16: #{basic_block_forward.3} parent=11 // pred_fallthru
        _
      // Predicated region
      $region17: #{basic_block_forward.3} parent=11 // pred_check
        %p239 = pneg %p109
      $region18: #{basic_block_forward.3} parent=11 // pred_check_branch
        %241 = sbr.rel (%p239) target = $region20
      $region19: #{basic_block_forward.3} parent=11 // pred_region
        %p242 = scmp.lt.s32.totalorder %s22, 0
        %s243 = scalar_select %p242, %s22, 0
        %s244 = scalar_lea.vmem %s2, %s243
      $region20: #{basic_block_forward.3} parent=11 // pred_fallthru
        _
      // Predicated region
      $region21: #{basic_block_forward.3} parent=11 // pred_check
        %p245 = pneg %p161
      $region22: #{basic_block_forward.3} parent=11 // pred_check_branch
        %247 = sbr.rel (%p245) target = $region24
      $region23: #{basic_block_forward.3} parent=11 // pred_region
        %p248 = scmp.lt.s32.totalorder %s22, 0
        %s249 = scalar_select %p248, %s22, 0
        %s250 = smul.addr %s249, 4
        %s251 = scalar_lea.vmem %s4, %s250
      $region24: #{basic_block_forward.3} parent=11 // pred_fallthru
        _
      // Predicated region
      $region25: #{basic_block_forward.3} parent=11 // pred_check
        %p252 = pneg %p187
      $region26: #{basic_block_forward.3} parent=11 // pred_check_branch
        %254 = sbr.rel (%p252) target = $region28
      $region27: #{basic_block_forward.3} parent=11 // pred_region
        %p255 = scmp.lt.s32.totalorder %s22, 0
        %s256 = scalar_select %p255, %s22, 0
        %s257 = scalar_lea.vmem %s5, %s256
      $region28: #{basic_block_forward.3} parent=11 // pred_fallthru
        _
    $region12: #{basic_block_forward.3} parent=5 // pred_fallthru
      _
    %p258 = scmp.lt.s32.totalorder %s12, 2
    // Predicated region
    $region29: #{basic_block_forward.3} parent=5 // pred_check
      %p259 = pneg %p258
    $region30: #{basic_block_forward.3} parent=5 // pred_check_branch
      %261 = sbr.rel (%p259) target = $region32
    $region31: #{basic_block_forward.3} parent=5 // pred_region
      // Predicated region
      $region33: #{basic_block_forward.3} parent=31 // pred_check
        %p262 = pneg %p51
      $region34: #{basic_block_forward.3} parent=31 // pred_check_branch
        %264 = sbr.rel (%p262) target = $region36
      $region35: #{basic_block_forward.3} parent=31 // pred_region
        %p265 = scmp.lt.s32.totalorder %s20, 1
        %s266 = scalar_select %p265, %s20, 1
        %s267 = smul.addr %s266, 54
        %s268 = smul.addr %s267, 4
        %s269 = scalar_lea.vmem %s0, %s268
      $region36: #{basic_block_forward.3} parent=31 // pred_fallthru
        _
      // Predicated region
      $region37: #{basic_block_forward.3} parent=31 // pred_check
        %p270 = pneg %p129
      $region38: #{basic_block_forward.3} parent=31 // pred_check_branch
        %272 = sbr.rel (%p270) target = $region40
      $region39: #{basic_block_forward.3} parent=31 // pred_region
        %p273 = scmp.lt.s32.totalorder %s20, 1
        %s274 = scalar_select %p273, %s20, 1
        %s275 = smul.addr %s274, 54
        %s276 = smul.addr %s275, 4
        %s277 = scalar_lea.vmem %s3, %s276
      $region40: #{basic_block_forward.3} parent=31 // pred_fallthru
        _
    $region32: #{basic_block_forward.3} parent=5 // pred_fallthru
      _
    %p278 = scmp.le.s32.totalorder 1, %s12
    %p279 = scmp.lt.s32.totalorder %s12, 3
    %p280 = pnand %p278, %p279
    %p281 = pneg %p280
    // Predicated region
    $region41: #{basic_block_forward.3} parent=5 // pred_check
      _
    $region42: #{basic_block_forward.3} parent=5 // pred_check_branch
      %283 = sbr.rel (%p280) target = $region44
    $region43: #{basic_block_forward.3} parent=5 // pred_region
      %s284 = ssub.s32 %s12, 1
      %p285 = scmp.lt.s32.totalorder %s23, 1
      %s286 = scalar_select %p285, %s23, 1
      %s287 = smul.addr %s286, 54
      %s288 = smul.addr %s287, 4
      %s289 = scalar_lea.vmem %s0, %s288
      %p290 = pneg %p57
      %p291 = pneg %p54
      %p292 = scmp.lt.s32.totalorder %s22, 0
      %s293 = scalar_select %p292, %s22, 0
      %s294 = smul.addr %s293, 4
      %s295 = scalar_lea.vmem %s1, %s294
      %p296 = pneg %p83
      %p297 = pneg %p80
      %p298 = scmp.lt.s32.totalorder %s22, 0
      %s299 = scalar_select %p298, %s22, 0
      %s300 = scalar_lea.vmem %s2, %s299
      %p301 = pneg %p109
      %p302 = pneg %p106
      %p303 = scmp.lt.s32.totalorder %s23, 1
      %s304 = scalar_select %p303, %s23, 1
      %s305 = smul.addr %s304, 54
      %s306 = smul.addr %s305, 4
      %s307 = scalar_lea.vmem %s3, %s306
      %p308 = pneg %p135
      %p309 = pneg %p132
      %p310 = scmp.lt.s32.totalorder %s22, 0
      %s311 = scalar_select %p310, %s22, 0
      %s312 = smul.addr %s311, 4
      %s313 = scalar_lea.vmem %s4, %s312
      %p314 = pneg %p161
      %p315 = pneg %p158
      %p316 = scmp.lt.s32.totalorder %s22, 0
      %s317 = scalar_select %p316, %s22, 0
      %s318 = scalar_lea.vmem %s5, %s317
      %p319 = pneg %p187
      %p320 = pneg %p184
      %p321 = pneg %p217
      %p322 = pneg %p214
      %s323 = smul.u32 16, %s24
      %p324 = scmp.lt.s32.totalorder %s23, 1
      %s325 = scalar_select %p324, %s23, 1
      %p326 = scmp.lt.s32.totalorder %s323, 15
      %s327 = scalar_select %p326, %s323, 15
      %p328 = scmp.lt.s32.totalorder %s22, 0
      %s329 = scalar_select %p328, %s22, 0
      %s330 = smul.addr %s327, 2
      %s331 = sadd.s32 %s329, %s330
      %s332 = smul.addr %s325, 32
      %s333 = sadd.s32 %s331, %s332
      %s334 = smul.addr %s333, 8
      %s335 = scalar_lea.vmem %s6, %s334
      %p336 = scmp.lt.s32.totalorder %s23, 1
      %s337 = scalar_select %p336, %s23, 1
      %s338 = smul.addr %s337, 54
      %s339 = smul.addr %s338, 4
      %s340 = scalar_lea.vmem %s0, %s339
      %p341 = scmp.lt.s32.totalorder %s22, 0
      %s342 = scalar_select %p341, %s22, 0
      %s343 = smul.addr %s342, 4
      %s344 = scalar_lea.vmem %s1, %s343
      %p345 = scmp.lt.s32.totalorder %s22, 0
      %s346 = scalar_select %p345, %s22, 0
      %s347 = scalar_lea.vmem %s2, %s346
      %p348 = scmp.lt.s32.totalorder %s23, 1
      %s349 = scalar_select %p348, %s23, 1
      %s350 = smul.addr %s349, 54
      %s351 = smul.addr %s350, 4
      %s352 = scalar_lea.vmem %s3, %s351
      %p353 = scmp.lt.s32.totalorder %s22, 0
      %s354 = scalar_select %p353, %s22, 0
      %s355 = smul.addr %s354, 4
      %s356 = scalar_lea.vmem %s4, %s355
      %p357 = scmp.lt.s32.totalorder %s22, 0
      %s358 = scalar_select %p357, %s22, 0
      %s359 = scalar_lea.vmem %s5, %s358
      %s360 = smul.u32 16, %s24
      %p361 = scmp.lt.s32.totalorder %s23, 1
      %s362 = scalar_select %p361, %s23, 1
      %p363 = scmp.lt.s32.totalorder %s360, 15
      %s364 = scalar_select %p363, %s360, 15
      %p365 = scmp.lt.s32.totalorder %s22, 0
      %s366 = scalar_select %p365, %s22, 0
      %s367 = smul.addr %s364, 2
      %s368 = sadd.s32 %s366, %s367
      %s369 = smul.addr %s362, 32
      %s370 = sadd.s32 %s368, %s369
      %s371 = smul.addr %s370, 8
      %s372 = scalar_lea.vmem %s6, %s371
      %s373 = smul.u32 16, %s24
      %s375 = smul.u32 %s24, 16
      %s376 = smul.u32 %s375, 3
      %s377 = smul.addr %s376, 4
      %s378 = scalar_lea.vmem %s340, %s377
      %v379 = vld [vmem:[%s378] sm:$0xf]
      %v380 = vld [vmem:[%s378 + $0x4] sm:$0xf]
      %v381 = vld [vmem:[%s378 + $0xc] sm:$0xf]
      %v382 = vld [vmem:[%s378 + $0x10] sm:$0xf]
      %v383 = vld [vmem:[%s378 + $0x18] sm:$0xf]
      %v384 = vld [vmem:[%s378 + $0x1c] sm:$0xf]
      %v385 = vld [vmem:[%s378 + $0x24] sm:$0xf]
      %v386 = vld [vmem:[%s378 + $0x28] sm:$0xf]
      %v387 = vld [vmem:[%s378 + $0x30] sm:$0xf]
      %v388 = vld [vmem:[%s378 + $0x34] sm:$0xf]
      %v389 = vld [vmem:[%s378 + $0x3c] sm:$0xf]
      %v390 = vld [vmem:[%s378 + $0x40] sm:$0xf]
      %v391 = vld [vmem:[%s378 + $0x48] sm:$0xf]
      %v392 = vld [vmem:[%s378 + $0x4c] sm:$0xf]
      %v393 = vld [vmem:[%s378 + $0x54] sm:$0xf]
      %v394 = vld [vmem:[%s378 + $0x58] sm:$0xf]
      %v395 = vld [vmem:[%s378 + $0x60] sm:$0xf]
      %v396 = vld [vmem:[%s378 + $0x64] sm:$0xf]
      %v397 = vld [vmem:[%s378 + $0x6c] sm:$0xf]
      %v398 = vld [vmem:[%s378 + $0x70] sm:$0xf]
      %v399 = vld [vmem:[%s378 + $0x78] sm:$0xf]
      %v400 = vld [vmem:[%s378 + $0x7c] sm:$0xf]
      %v401 = vld [vmem:[%s378 + $0x84] sm:$0xf]
      %v402 = vld [vmem:[%s378 + $0x88] sm:$0xf]
      %v403 = vld [vmem:[%s378 + $0x90] sm:$0xf]
      %v404 = vld [vmem:[%s378 + $0x94] sm:$0xf]
      %v405 = vld [vmem:[%s378 + $0x9c] sm:$0xf]
      %v406 = vld [vmem:[%s378 + $0xa0] sm:$0xf]
      %v407 = vld [vmem:[%s378 + $0xa8] sm:$0xf]
      %v408 = vld [vmem:[%s378 + $0xac] sm:$0xf]
      %v409 = vld [vmem:[%s378 + $0xb4] sm:$0xf]
      %v410 = vld [vmem:[%s378 + $0xb8] sm:$0xf]
      %v443 = vunpack.c.l.b16 %v379
      %v444 = vunpack.c.l.b16 %v380
      %v445 = vunpack.c.l.b16 %v381
      %v446 = vunpack.c.l.b16 %v382
      %v447 = vunpack.c.l.b16 %v383
      %v448 = vunpack.c.l.b16 %v384
      %v449 = vunpack.c.l.b16 %v385
      %v450 = vunpack.c.l.b16 %v386
      %v451 = vunpack.c.l.b16 %v387
      %v452 = vunpack.c.l.b16 %v388
      %v453 = vunpack.c.l.b16 %v389
      %v454 = vunpack.c.l.b16 %v390
      %v455 = vunpack.c.l.b16 %v391
      %v456 = vunpack.c.l.b16 %v392
      %v457 = vunpack.c.l.b16 %v393
      %v458 = vunpack.c.l.b16 %v394
      %v459 = vunpack.c.l.b16 %v395
      %v460 = vunpack.c.l.b16 %v396
      %v461 = vunpack.c.l.b16 %v397
      %v462 = vunpack.c.l.b16 %v398
      %v463 = vunpack.c.l.b16 %v399
      %v464 = vunpack.c.l.b16 %v400
      %v465 = vunpack.c.l.b16 %v401
      %v466 = vunpack.c.l.b16 %v402
      %v467 = vunpack.c.l.b16 %v403
      %v468 = vunpack.c.l.b16 %v404
      %v469 = vunpack.c.l.b16 %v405
      %v470 = vunpack.c.l.b16 %v406
      %v471 = vunpack.c.l.b16 %v407
      %v472 = vunpack.c.l.b16 %v408
      %v473 = vunpack.c.l.b16 %v409
      %v474 = vunpack.c.l.b16 %v410
      %v475 = vpack.c.b16 %v444, %v443
      %v476 = vpack.c.b16 %v446, %v445
      %v477 = vpack.c.b16 %v448, %v447
      %v478 = vpack.c.b16 %v450, %v449
      %v479 = vpack.c.b16 %v452, %v451
      %v480 = vpack.c.b16 %v454, %v453
      %v481 = vpack.c.b16 %v456, %v455
      %v482 = vpack.c.b16 %v458, %v457
      %v483 = vpack.c.b16 %v460, %v459
      %v484 = vpack.c.b16 %v462, %v461
      %v485 = vpack.c.b16 %v464, %v463
      %v486 = vpack.c.b16 %v466, %v465
      %v487 = vpack.c.b16 %v468, %v467
      %v488 = vpack.c.b16 %v470, %v469
      %v489 = vpack.c.b16 %v472, %v471
      %v490 = vpack.c.b16 %v474, %v473
      %507 = vst [vmem:[#allocation2] sm:$0xff] %v475
      %508 = vst [vmem:[#allocation2 + $0x48] sm:$0xff] %v476
      %509 = vst [vmem:[#allocation2 + $0x90] sm:$0xff] %v477
      %510 = vst [vmem:[#allocation2 + $0xd8] sm:$0xff] %v478
      %511 = vst [vmem:[#allocation2 + $0x120] sm:$0xff] %v479
      %512 = vst [vmem:[#allocation2 + $0x168] sm:$0xff] %v480
      %513 = vst [vmem:[#allocation2 + $0x1b0] sm:$0xff] %v481
      %514 = vst [vmem:[#allocation2 + $0x1f8] sm:$0xff] %v482
      %515 = vst [vmem:[#allocation2 + $0x240] sm:$0xff] %v483
      %516 = vst [vmem:[#allocation2 + $0x288] sm:$0xff] %v484
      %517 = vst [vmem:[#allocation2 + $0x2d0] sm:$0xff] %v485
      %518 = vst [vmem:[#allocation2 + $0x318] sm:$0xff] %v486
      %519 = vst [vmem:[#allocation2 + $0x360] sm:$0xff] %v487
      %520 = vst [vmem:[#allocation2 + $0x3a8] sm:$0xff] %v488
      %521 = vst [vmem:[#allocation2 + $0x3f0] sm:$0xff] %v489
      %522 = vst [vmem:[#allocation2 + $0x438] sm:$0xff] %v490
      %v523 = vld [vmem:[%s378] sm:$0xf]
      %v524 = vld [vmem:[%s378 + $0x4] sm:$0xf]
      %v525 = vld [vmem:[%s378 + $0x8] sm:$0x1]
      %v526 = vld [vmem:[%s378 + $0xc] sm:$0xf]
      %v527 = vld [vmem:[%s378 + $0x10] sm:$0xf]
      %v528 = vld [vmem:[%s378 + $0x14] sm:$0x1]
      %v529 = vld [vmem:[%s378 + $0x18] sm:$0xf]
      %v530 = vld [vmem:[%s378 + $0x1c] sm:$0xf]
      %v531 = vld [vmem:[%s378 + $0x20] sm:$0x1]
      %v532 = vld [vmem:[%s378 + $0x24] sm:$0xf]
      %v533 = vld [vmem:[%s378 + $0x28] sm:$0xf]
      %v534 = vld [vmem:[%s378 + $0x2c] sm:$0x1]
      %v535 = vld [vmem:[%s378 + $0x30] sm:$0xf]
      %v536 = vld [vmem:[%s378 + $0x34] sm:$0xf]
      %v537 = vld [vmem:[%s378 + $0x38] sm:$0x1]
      %v538 = vld [vmem:[%s378 + $0x3c] sm:$0xf]
      %v539 = vld [vmem:[%s378 + $0x40] sm:$0xf]
      %v540 = vld [vmem:[%s378 + $0x44] sm:$0x1]
      %v541 = vld [vmem:[%s378 + $0x48] sm:$0xf]
      %v542 = vld [vmem:[%s378 + $0x4c] sm:$0xf]
      %v543 = vld [vmem:[%s378 + $0x50] sm:$0x1]
      %v544 = vld [vmem:[%s378 + $0x54] sm:$0xf]
      %v545 = vld [vmem:[%s378 + $0x58] sm:$0xf]
      %v546 = vld [vmem:[%s378 + $0x5c] sm:$0x1]
      %v547 = vld [vmem:[%s378 + $0x60] sm:$0xf]
      %v548 = vld [vmem:[%s378 + $0x64] sm:$0xf]
      %v549 = vld [vmem:[%s378 + $0x68] sm:$0x1]
      %v550 = vld [vmem:[%s378 + $0x6c] sm:$0xf]
      %v551 = vld [vmem:[%s378 + $0x70] sm:$0xf]
      %v552 = vld [vmem:[%s378 + $0x74] sm:$0x1]
      %v553 = vld [vmem:[%s378 + $0x78] sm:$0xf]
      %v554 = vld [vmem:[%s378 + $0x7c] sm:$0xf]
      %v555 = vld [vmem:[%s378 + $0x80] sm:$0x1]
      %v556 = vld [vmem:[%s378 + $0x84] sm:$0xf]
      %v557 = vld [vmem:[%s378 + $0x88] sm:$0xf]
      %v558 = vld [vmem:[%s378 + $0x8c] sm:$0x1]
      %v559 = vld [vmem:[%s378 + $0x90] sm:$0xf]
      %v560 = vld [vmem:[%s378 + $0x94] sm:$0xf]
      %v561 = vld [vmem:[%s378 + $0x98] sm:$0x1]
      %v562 = vld [vmem:[%s378 + $0x9c] sm:$0xf]
      %v563 = vld [vmem:[%s378 + $0xa0] sm:$0xf]
      %v564 = vld [vmem:[%s378 + $0xa4] sm:$0x1]
      %v565 = vld [vmem:[%s378 + $0xa8] sm:$0xf]
      %v566 = vld [vmem:[%s378 + $0xac] sm:$0xf]
      %v567 = vld [vmem:[%s378 + $0xb0] sm:$0x1]
      %v568 = vld [vmem:[%s378 + $0xb4] sm:$0xf]
      %v569 = vld [vmem:[%s378 + $0xb8] sm:$0xf]
      %v570 = vld [vmem:[%s378 + $0xbc] sm:$0x1]
      %vm571 = vsmask.f32 3328
      %vm572 = vsmask.f32 7440
      %vm573 = vmor %vm571, %vm572
      %v575 = vshrl.u32 %v523, 16
      %v577 = vrot.slane %v575, 4
      %v578 = vshll.u32 %v523, 16
      %v580 = vrot.slane %v578, 5
      %v581 = vor.u32 %v577, %v580
      %v582 = vrot.slane %v581, 4
      %v584 = vshll.u32 %v524, 16
      %v586 = vrot.slane %v584, 5
      %v587 = vsel %vm573, %v582, %v586
      %v588 = vshrl.u32 %v524, 16
      %v590 = vrot.slane %v588, 4
      %v591 = vor.u32 %v590, %v586
      %v592 = vrot.slane %v591, 4
      %v594 = vshll.u32 %v525, 16
      %v596 = vrot.slane %v594, 5
      %v597 = vsel %vm573, %v592, %v596
      %v599 = vshrl.u32 %v526, 16
      %v601 = vrot.slane %v599, 4
      %v602 = vshll.u32 %v526, 16
      %v604 = vrot.slane %v602, 5
      %v605 = vor.u32 %v601, %v604
      %v606 = vrot.slane %v605, 4
      %v608 = vshll.u32 %v527, 16
      %v610 = vrot.slane %v608, 5
      %v611 = vsel %vm573, %v606, %v610
      %v612 = vshrl.u32 %v527, 16
      %v614 = vrot.slane %v612, 4
      %v615 = vor.u32 %v614, %v610
      %v616 = vrot.slane %v615, 4
      %v618 = vshll.u32 %v528, 16
      %v620 = vrot.slane %v618, 5
      %v621 = vsel %vm573, %v616, %v620
      %v623 = vshrl.u32 %v529, 16
      %v625 = vrot.slane %v623, 4
      %v626 = vshll.u32 %v529, 16
      %v628 = vrot.slane %v626, 5
      %v629 = vor.u32 %v625, %v628
      %v630 = vrot.slane %v629, 4
      %v632 = vshll.u32 %v530, 16
      %v634 = vrot.slane %v632, 5
      %v635 = vsel %vm573, %v630, %v634
      %v636 = vshrl.u32 %v530, 16
      %v638 = vrot.slane %v636, 4
      %v639 = vor.u32 %v638, %v634
      %v640 = vrot.slane %v639, 4
      %v642 = vshll.u32 %v531, 16
      %v644 = vrot.slane %v642, 5
      %v645 = vsel %vm573, %v640, %v644
      %v647 = vshrl.u32 %v532, 16
      %v649 = vrot.slane %v647, 4
      %v650 = vshll.u32 %v532, 16
      %v652 = vrot.slane %v650, 5
      %v653 = vor.u32 %v649, %v652
      %v654 = vrot.slane %v653, 4
      %v656 = vshll.u32 %v533, 16
      %v658 = vrot.slane %v656, 5
      %v659 = vsel %vm573, %v654, %v658
      %v660 = vshrl.u32 %v533, 16
      %v662 = vrot.slane %v660, 4
      %v663 = vor.u32 %v662, %v658
      %v664 = vrot.slane %v663, 4
      %v666 = vshll.u32 %v534, 16
      %v668 = vrot.slane %v666, 5
      %v669 = vsel %vm573, %v664, %v668
      %v671 = vshrl.u32 %v535, 16
      %v673 = vrot.slane %v671, 4
      %v674 = vshll.u32 %v535, 16
      %v676 = vrot.slane %v674, 5
      %v677 = vor.u32 %v673, %v676
      %v678 = vrot.slane %v677, 4
      %v680 = vshll.u32 %v536, 16
      %v682 = vrot.slane %v680, 5
      %v683 = vsel %vm573, %v678, %v682
      %v684 = vshrl.u32 %v536, 16
      %v686 = vrot.slane %v684, 4
      %v687 = vor.u32 %v686, %v682
      %v688 = vrot.slane %v687, 4
      %v690 = vshll.u32 %v537, 16
      %v692 = vrot.slane %v690, 5
      %v693 = vsel %vm573, %v688, %v692
      %v695 = vshrl.u32 %v538, 16
      %v697 = vrot.slane %v695, 4
      %v698 = vshll.u32 %v538, 16
      %v700 = vrot.slane %v698, 5
      %v701 = vor.u32 %v697, %v700
      %v702 = vrot.slane %v701, 4
      %v704 = vshll.u32 %v539, 16
      %v706 = vrot.slane %v704, 5
      %v707 = vsel %vm573, %v702, %v706
      %v708 = vshrl.u32 %v539, 16
      %v710 = vrot.slane %v708, 4
      %v711 = vor.u32 %v710, %v706
      %v712 = vrot.slane %v711, 4
      %v714 = vshll.u32 %v540, 16
      %v716 = vrot.slane %v714, 5
      %v717 = vsel %vm573, %v712, %v716
      %v719 = vshrl.u32 %v541, 16
      %v721 = vrot.slane %v719, 4
      %v722 = vshll.u32 %v541, 16
      %v724 = vrot.slane %v722, 5
      %v725 = vor.u32 %v721, %v724
      %v726 = vrot.slane %v725, 4
      %v728 = vshll.u32 %v542, 16
      %v730 = vrot.slane %v728, 5
      %v731 = vsel %vm573, %v726, %v730
      %v732 = vshrl.u32 %v542, 16
      %v734 = vrot.slane %v732, 4
      %v735 = vor.u32 %v734, %v730
      %v736 = vrot.slane %v735, 4
      %v738 = vshll.u32 %v543, 16
      %v740 = vrot.slane %v738, 5
      %v741 = vsel %vm573, %v736, %v740
      %v743 = vshrl.u32 %v544, 16
      %v745 = vrot.slane %v743, 4
      %v746 = vshll.u32 %v544, 16
      %v748 = vrot.slane %v746, 5
      %v749 = vor.u32 %v745, %v748
      %v750 = vrot.slane %v749, 4
      %v752 = vshll.u32 %v545, 16
      %v754 = vrot.slane %v752, 5
      %v755 = vsel %vm573, %v750, %v754
      %v756 = vshrl.u32 %v545, 16
      %v758 = vrot.slane %v756, 4
      %v759 = vor.u32 %v758, %v754
      %v760 = vrot.slane %v759, 4
      %v762 = vshll.u32 %v546, 16
      %v764 = vrot.slane %v762, 5
      %v765 = vsel %vm573, %v760, %v764
      %v767 = vshrl.u32 %v547, 16
      %v769 = vrot.slane %v767, 4
      %v770 = vshll.u32 %v547, 16
      %v772 = vrot.slane %v770, 5
      %v773 = vor.u32 %v769, %v772
      %v774 = vrot.slane %v773, 4
      %v776 = vshll.u32 %v548, 16
      %v778 = vrot.slane %v776, 5
      %v779 = vsel %vm573, %v774, %v778
      %v780 = vshrl.u32 %v548, 16
      %v782 = vrot.slane %v780, 4
      %v783 = vor.u32 %v782, %v778
      %v784 = vrot.slane %v783, 4
      %v786 = vshll.u32 %v549, 16
      %v788 = vrot.slane %v786, 5
      %v789 = vsel %vm573, %v784, %v788
      %v791 = vshrl.u32 %v550, 16
      %v793 = vrot.slane %v791, 4
      %v794 = vshll.u32 %v550, 16
      %v796 = vrot.slane %v794, 5
      %v797 = vor.u32 %v793, %v796
      %v798 = vrot.slane %v797, 4
      %v800 = vshll.u32 %v551, 16
      %v802 = vrot.slane %v800, 5
      %v803 = vsel %vm573, %v798, %v802
      %v804 = vshrl.u32 %v551, 16
      %v806 = vrot.slane %v804, 4
      %v807 = vor.u32 %v806, %v802
      %v808 = vrot.slane %v807, 4
      %v810 = vshll.u32 %v552, 16
      %v812 = vrot.slane %v810, 5
      %v813 = vsel %vm573, %v808, %v812
      %v815 = vshrl.u32 %v553, 16
      %v817 = vrot.slane %v815, 4
      %v818 = vshll.u32 %v553, 16
      %v820 = vrot.slane %v818, 5
      %v821 = vor.u32 %v817, %v820
      %v822 = vrot.slane %v821, 4
      %v824 = vshll.u32 %v554, 16
      %v826 = vrot.slane %v824, 5
      %v827 = vsel %vm573, %v822, %v826
      %v828 = vshrl.u32 %v554, 16
      %v830 = vrot.slane %v828, 4
      %v831 = vor.u32 %v830, %v826
      %v832 = vrot.slane %v831, 4
      %v834 = vshll.u32 %v555, 16
      %v836 = vrot.slane %v834, 5
      %v837 = vsel %vm573, %v832, %v836
      %v839 = vshrl.u32 %v556, 16
      %v841 = vrot.slane %v839, 4
      %v842 = vshll.u32 %v556, 16
      %v844 = vrot.slane %v842, 5
      %v845 = vor.u32 %v841, %v844
      %v846 = vrot.slane %v845, 4
      %v848 = vshll.u32 %v557, 16
      %v850 = vrot.slane %v848, 5
      %v851 = vsel %vm573, %v846, %v850
      %v852 = vshrl.u32 %v557, 16
      %v854 = vrot.slane %v852, 4
      %v855 = vor.u32 %v854, %v850
      %v856 = vrot.slane %v855, 4
      %v858 = vshll.u32 %v558, 16
      %v860 = vrot.slane %v858, 5
      %v861 = vsel %vm573, %v856, %v860
      %v863 = vshrl.u32 %v559, 16
      %v865 = vrot.slane %v863, 4
      %v866 = vshll.u32 %v559, 16
      %v868 = vrot.slane %v866, 5
      %v869 = vor.u32 %v865, %v868
      %v870 = vrot.slane %v869, 4
      %v872 = vshll.u32 %v560, 16
      %v874 = vrot.slane %v872, 5
      %v875 = vsel %vm573, %v870, %v874
      %v876 = vshrl.u32 %v560, 16
      %v878 = vrot.slane %v876, 4
      %v879 = vor.u32 %v878, %v874
      %v880 = vrot.slane %v879, 4
      %v882 = vshll.u32 %v561, 16
      %v884 = vrot.slane %v882, 5
      %v885 = vsel %vm573, %v880, %v884
      %v887 = vshrl.u32 %v562, 16
      %v889 = vrot.slane %v887, 4
      %v890 = vshll.u32 %v562, 16
      %v892 = vrot.slane %v890, 5
      %v893 = vor.u32 %v889, %v892
      %v894 = vrot.slane %v893, 4
      %v896 = vshll.u32 %v563, 16
      %v898 = vrot.slane %v896, 5
      %v899 = vsel %vm573, %v894, %v898
      %v900 = vshrl.u32 %v563, 16
      %v902 = vrot.slane %v900, 4
      %v903 = vor.u32 %v902, %v898
      %v904 = vrot.slane %v903, 4
      %v906 = vshll.u32 %v564, 16
      %v908 = vrot.slane %v906, 5
      %v909 = vsel %vm573, %v904, %v908
      %v911 = vshrl.u32 %v565, 16
      %v913 = vrot.slane %v911, 4
      %v914 = vshll.u32 %v565, 16
      %v916 = vrot.slane %v914, 5
      %v917 = vor.u32 %v913, %v916
      %v918 = vrot.slane %v917, 4
      %v920 = vshll.u32 %v566, 16
      %v922 = vrot.slane %v920, 5
      %v923 = vsel %vm573, %v918, %v922
      %v924 = vshrl.u32 %v566, 16
      %v926 = vrot.slane %v924, 4
      %v927 = vor.u32 %v926, %v922
      %v928 = vrot.slane %v927, 4
      %v930 = vshll.u32 %v567, 16
      %v932 = vrot.slane %v930, 5
      %v933 = vsel %vm573, %v928, %v932
      %v935 = vshrl.u32 %v568, 16
      %v937 = vrot.slane %v935, 4
      %v938 = vshll.u32 %v568, 16
      %v940 = vrot.slane %v938, 5
      %v941 = vor.u32 %v937, %v940
      %v942 = vrot.slane %v941, 4
      %v944 = vshll.u32 %v569, 16
      %v946 = vrot.slane %v944, 5
      %v947 = vsel %vm573, %v942, %v946
      %v948 = vshrl.u32 %v569, 16
      %v950 = vrot.slane %v948, 4
      %v951 = vor.u32 %v950, %v946
      %v952 = vrot.slane %v951, 4
      %v954 = vshll.u32 %v570, 16
      %v956 = vrot.slane %v954, 5
      %v957 = vsel %vm573, %v952, %v956
      %v958 = vunpack.c.l.b16 %v587
      %v959 = vunpack.c.l.b16 %v597
      %v960 = vunpack.c.l.b16 %v611
      %v961 = vunpack.c.l.b16 %v621
      %v962 = vunpack.c.l.b16 %v635
      %v963 = vunpack.c.l.b16 %v645
      %v964 = vunpack.c.l.b16 %v659
      %v965 = vunpack.c.l.b16 %v669
      %v966 = vunpack.c.l.b16 %v683
      %v967 = vunpack.c.l.b16 %v693
      %v968 = vunpack.c.l.b16 %v707
      %v969 = vunpack.c.l.b16 %v717
      %v970 = vunpack.c.l.b16 %v731
      %v971 = vunpack.c.l.b16 %v741
      %v972 = vunpack.c.l.b16 %v755
      %v973 = vunpack.c.l.b16 %v765
      %v974 = vunpack.c.l.b16 %v779
      %v975 = vunpack.c.l.b16 %v789
      %v976 = vunpack.c.l.b16 %v803
      %v977 = vunpack.c.l.b16 %v813
      %v978 = vunpack.c.l.b16 %v827
      %v979 = vunpack.c.l.b16 %v837
      %v980 = vunpack.c.l.b16 %v851
      %v981 = vunpack.c.l.b16 %v861
      %v982 = vunpack.c.l.b16 %v875
      %v983 = vunpack.c.l.b16 %v885
      %v984 = vunpack.c.l.b16 %v899
      %v985 = vunpack.c.l.b16 %v909
      %v986 = vunpack.c.l.b16 %v923
      %v987 = vunpack.c.l.b16 %v933
      %v988 = vunpack.c.l.b16 %v947
      %v989 = vunpack.c.l.b16 %v957
      %v990 = vpack.c.b16 %v959, %v958
      %v991 = vpack.c.b16 %v961, %v960
      %v992 = vpack.c.b16 %v963, %v962
      %v993 = vpack.c.b16 %v965, %v964
      %v994 = vpack.c.b16 %v967, %v966
      %v995 = vpack.c.b16 %v969, %v968
      %v996 = vpack.c.b16 %v971, %v970
      %v997 = vpack.c.b16 %v973, %v972
      %v998 = vpack.c.b16 %v975, %v974
      %v999 = vpack.c.b16 %v977, %v976
      %v1000 = vpack.c.b16 %v979, %v978
      %v1001 = vpack.c.b16 %v981, %v980
      %v1002 = vpack.c.b16 %v983, %v982
      %v1003 = vpack.c.b16 %v985, %v984
      %v1004 = vpack.c.b16 %v987, %v986
      %v1005 = vpack.c.b16 %v989, %v988
      %1022 = vst [vmem:[#allocation2 + $0x8] sm:$0xff] %v990
      %1023 = vst [vmem:[#allocation2 + $0x50] sm:$0xff] %v991
      %1024 = vst [vmem:[#allocation2 + $0x98] sm:$0xff] %v992
      %1025 = vst [vmem:[#allocation2 + $0xe0] sm:$0xff] %v993
      %1026 = vst [vmem:[#allocation2 + $0x128] sm:$0xff] %v994
      %1027 = vst [vmem:[#allocation2 + $0x170] sm:$0xff] %v995
      %1028 = vst [vmem:[#allocation2 + $0x1b8] sm:$0xff] %v996
      %1029 = vst [vmem:[#allocation2 + $0x200] sm:$0xff] %v997
      %1030 = vst [vmem:[#allocation2 + $0x248] sm:$0xff] %v998
      %1031 = vst [vmem:[#allocation2 + $0x290] sm:$0xff] %v999
      %1032 = vst [vmem:[#allocation2 + $0x2d8] sm:$0xff] %v1000
      %1033 = vst [vmem:[#allocation2 + $0x320] sm:$0xff] %v1001
      %1034 = vst [vmem:[#allocation2 + $0x368] sm:$0xff] %v1002
      %1035 = vst [vmem:[#allocation2 + $0x3b0] sm:$0xff] %v1003
      %1036 = vst [vmem:[#allocation2 + $0x3f8] sm:$0xff] %v1004
      %1037 = vst [vmem:[#allocation2 + $0x440] sm:$0xff] %v1005
      %v1038 = vld [vmem:[%s378] sm:$0xe]
      %v1039 = vld [vmem:[%s378 + $0x4] sm:$0xf]
      %v1040 = vld [vmem:[%s378 + $0x8] sm:$0x1]
      %v1041 = vld [vmem:[%s378 + $0xc] sm:$0xe]
      %v1042 = vld [vmem:[%s378 + $0x10] sm:$0xf]
      %v1043 = vld [vmem:[%s378 + $0x14] sm:$0x1]
      %v1044 = vld [vmem:[%s378 + $0x18] sm:$0xe]
      %v1045 = vld [vmem:[%s378 + $0x1c] sm:$0xf]
      %v1046 = vld [vmem:[%s378 + $0x20] sm:$0x1]
      %v1047 = vld [vmem:[%s378 + $0x24] sm:$0xe]
      %v1048 = vld [vmem:[%s378 + $0x28] sm:$0xf]
      %v1049 = vld [vmem:[%s378 + $0x2c] sm:$0x1]
      %v1050 = vld [vmem:[%s378 + $0x30] sm:$0xe]
      %v1051 = vld [vmem:[%s378 + $0x34] sm:$0xf]
      %v1052 = vld [vmem:[%s378 + $0x38] sm:$0x1]
      %v1053 = vld [vmem:[%s378 + $0x3c] sm:$0xe]
      %v1054 = vld [vmem:[%s378 + $0x40] sm:$0xf]
      %v1055 = vld [vmem:[%s378 + $0x44] sm:$0x1]
      %v1056 = vld [vmem:[%s378 + $0x48] sm:$0xe]
      %v1057 = vld [vmem:[%s378 + $0x4c] sm:$0xf]
      %v1058 = vld [vmem:[%s378 + $0x50] sm:$0x1]
      %v1059 = vld [vmem:[%s378 + $0x54] sm:$0xe]
      %v1060 = vld [vmem:[%s378 + $0x58] sm:$0xf]
      %v1061 = vld [vmem:[%s378 + $0x5c] sm:$0x1]
      %v1062 = vld [vmem:[%s378 + $0x60] sm:$0xe]
      %v1063 = vld [vmem:[%s378 + $0x64] sm:$0xf]
      %v1064 = vld [vmem:[%s378 + $0x68] sm:$0x1]
      %v1065 = vld [vmem:[%s378 + $0x6c] sm:$0xe]
      %v1066 = vld [vmem:[%s378 + $0x70] sm:$0xf]
      %v1067 = vld [vmem:[%s378 + $0x74] sm:$0x1]
      %v1068 = vld [vmem:[%s378 + $0x78] sm:$0xe]
      %v1069 = vld [vmem:[%s378 + $0x7c] sm:$0xf]
      %v1070 = vld [vmem:[%s378 + $0x80] sm:$0x1]
      %v1071 = vld [vmem:[%s378 + $0x84] sm:$0xe]
      %v1072 = vld [vmem:[%s378 + $0x88] sm:$0xf]
      %v1073 = vld [vmem:[%s378 + $0x8c] sm:$0x1]
      %v1074 = vld [vmem:[%s378 + $0x90] sm:$0xe]
      %v1075 = vld [vmem:[%s378 + $0x94] sm:$0xf]
      %v1076 = vld [vmem:[%s378 + $0x98] sm:$0x1]
      %v1077 = vld [vmem:[%s378 + $0x9c] sm:$0xe]
      %v1078 = vld [vmem:[%s378 + $0xa0] sm:$0xf]
      %v1079 = vld [vmem:[%s378 + $0xa4] sm:$0x1]
      %v1080 = vld [vmem:[%s378 + $0xa8] sm:$0xe]
      %v1081 = vld [vmem:[%s378 + $0xac] sm:$0xf]
      %v1082 = vld [vmem:[%s378 + $0xb0] sm:$0x1]
      %v1083 = vld [vmem:[%s378 + $0xb4] sm:$0xe]
      %v1084 = vld [vmem:[%s378 + $0xb8] sm:$0xf]
      %v1085 = vld [vmem:[%s378 + $0xbc] sm:$0x1]
      %vm1134 = vcmask 1042432
      %vm1135 = vcmask 1046532
      %vm1136 = vmor %vm1134, %vm1135
      %v1137 = vrot.slane %v1038, 5
      %v1138 = vrot.slane %v1137, 4
      %v1139 = vrot.slane %v1039, 5
      %v1140 = vsel %vm1136, %v1138, %v1139
      %v1141 = vrot.slane %v1139, 4
      %v1142 = vrot.slane %v1040, 5
      %v1143 = vsel %vm1136, %v1141, %v1142
      %v1144 = vrot.slane %v1041, 5
      %v1145 = vrot.slane %v1144, 4
      %v1146 = vrot.slane %v1042, 5
      %v1147 = vsel %vm1136, %v1145, %v1146
      %v1148 = vrot.slane %v1146, 4
      %v1149 = vrot.slane %v1043, 5
      %v1150 = vsel %vm1136, %v1148, %v1149
      %v1151 = vrot.slane %v1044, 5
      %v1152 = vrot.slane %v1151, 4
      %v1153 = vrot.slane %v1045, 5
      %v1154 = vsel %vm1136, %v1152, %v1153
      %v1155 = vrot.slane %v1153, 4
      %v1156 = vrot.slane %v1046, 5
      %v1157 = vsel %vm1136, %v1155, %v1156
      %v1158 = vrot.slane %v1047, 5
      %v1159 = vrot.slane %v1158, 4
      %v1160 = vrot.slane %v1048, 5
      %v1161 = vsel %vm1136, %v1159, %v1160
      %v1162 = vrot.slane %v1160, 4
      %v1163 = vrot.slane %v1049, 5
      %v1164 = vsel %vm1136, %v1162, %v1163
      %v1165 = vrot.slane %v1050, 5
      %v1166 = vrot.slane %v1165, 4
      %v1167 = vrot.slane %v1051, 5
      %v1168 = vsel %vm1136, %v1166, %v1167
      %v1169 = vrot.slane %v1167, 4
      %v1170 = vrot.slane %v1052, 5
      %v1171 = vsel %vm1136, %v1169, %v1170
      %v1172 = vrot.slane %v1053, 5
      %v1173 = vrot.slane %v1172, 4
      %v1174 = vrot.slane %v1054, 5
      %v1175 = vsel %vm1136, %v1173, %v1174
      %v1176 = vrot.slane %v1174, 4
      %v1177 = vrot.slane %v1055, 5
      %v1178 = vsel %vm1136, %v1176, %v1177
      %v1179 = vrot.slane %v1056, 5
      %v1180 = vrot.slane %v1179, 4
      %v1181 = vrot.slane %v1057, 5
      %v1182 = vsel %vm1136, %v1180, %v1181
      %v1183 = vrot.slane %v1181, 4
      %v1184 = vrot.slane %v1058, 5
      %v1185 = vsel %vm1136, %v1183, %v1184
      %v1186 = vrot.slane %v1059, 5
      %v1187 = vrot.slane %v1186, 4
      %v1188 = vrot.slane %v1060, 5
      %v1189 = vsel %vm1136, %v1187, %v1188
      %v1190 = vrot.slane %v1188, 4
      %v1191 = vrot.slane %v1061, 5
      %v1192 = vsel %vm1136, %v1190, %v1191
      %v1193 = vrot.slane %v1062, 5
      %v1194 = vrot.slane %v1193, 4
      %v1195 = vrot.slane %v1063, 5
      %v1196 = vsel %vm1136, %v1194, %v1195
      %v1197 = vrot.slane %v1195, 4
      %v1198 = vrot.slane %v1064, 5
      %v1199 = vsel %vm1136, %v1197, %v1198
      %v1200 = vrot.slane %v1065, 5
      %v1201 = vrot.slane %v1200, 4
      %v1202 = vrot.slane %v1066, 5
      %v1203 = vsel %vm1136, %v1201, %v1202
      %v1204 = vrot.slane %v1202, 4
      %v1205 = vrot.slane %v1067, 5
      %v1206 = vsel %vm1136, %v1204, %v1205
      %v1207 = vrot.slane %v1068, 5
      %v1208 = vrot.slane %v1207, 4
      %v1209 = vrot.slane %v1069, 5
      %v1210 = vsel %vm1136, %v1208, %v1209
      %v1211 = vrot.slane %v1209, 4
      %v1212 = vrot.slane %v1070, 5
      %v1213 = vsel %vm1136, %v1211, %v1212
      %v1214 = vrot.slane %v1071, 5
      %v1215 = vrot.slane %v1214, 4
      %v1216 = vrot.slane %v1072, 5
      %v1217 = vsel %vm1136, %v1215, %v1216
      %v1218 = vrot.slane %v1216, 4
      %v1219 = vrot.slane %v1073, 5
      %v1220 = vsel %vm1136, %v1218, %v1219
      %v1221 = vrot.slane %v1074, 5
      %v1222 = vrot.slane %v1221, 4
      %v1223 = vrot.slane %v1075, 5
      %v1224 = vsel %vm1136, %v1222, %v1223
      %v1225 = vrot.slane %v1223, 4
      %v1226 = vrot.slane %v1076, 5
      %v1227 = vsel %vm1136, %v1225, %v1226
      %v1228 = vrot.slane %v1077, 5
      %v1229 = vrot.slane %v1228, 4
      %v1230 = vrot.slane %v1078, 5
      %v1231 = vsel %vm1136, %v1229, %v1230
      %v1232 = vrot.slane %v1230, 4
      %v1233 = vrot.slane %v1079, 5
      %v1234 = vsel %vm1136, %v1232, %v1233
      %v1235 = vrot.slane %v1080, 5
      %v1236 = vrot.slane %v1235, 4
      %v1237 = vrot.slane %v1081, 5
      %v1238 = vsel %vm1136, %v1236, %v1237
      %v1239 = vrot.slane %v1237, 4
      %v1240 = vrot.slane %v1082, 5
      %v1241 = vsel %vm1136, %v1239, %v1240
      %v1242 = vrot.slane %v1083, 5
      %v1243 = vrot.slane %v1242, 4
      %v1244 = vrot.slane %v1084, 5
      %v1245 = vsel %vm1136, %v1243, %v1244
      %v1246 = vrot.slane %v1244, 4
      %v1247 = vrot.slane %v1085, 5
      %v1248 = vsel %vm1136, %v1246, %v1247
      %v1249 = vunpack.c.l.b16 %v1140
      %v1250 = vunpack.c.l.b16 %v1143
      %v1251 = vunpack.c.l.b16 %v1147
      %v1252 = vunpack.c.l.b16 %v1150
      %v1253 = vunpack.c.l.b16 %v1154
      %v1254 = vunpack.c.l.b16 %v1157
      %v1255 = vunpack.c.l.b16 %v1161
      %v1256 = vunpack.c.l.b16 %v1164
      %v1257 = vunpack.c.l.b16 %v1168
      %v1258 = vunpack.c.l.b16 %v1171
      %v1259 = vunpack.c.l.b16 %v1175
      %v1260 = vunpack.c.l.b16 %v1178
      %v1261 = vunpack.c.l.b16 %v1182
      %v1262 = vunpack.c.l.b16 %v1185
      %v1263 = vunpack.c.l.b16 %v1189
      %v1264 = vunpack.c.l.b16 %v1192
      %v1265 = vunpack.c.l.b16 %v1196
      %v1266 = vunpack.c.l.b16 %v1199
      %v1267 = vunpack.c.l.b16 %v1203
      %v1268 = vunpack.c.l.b16 %v1206
      %v1269 = vunpack.c.l.b16 %v1210
      %v1270 = vunpack.c.l.b16 %v1213
      %v1271 = vunpack.c.l.b16 %v1217
      %v1272 = vunpack.c.l.b16 %v1220
      %v1273 = vunpack.c.l.b16 %v1224
      %v1274 = vunpack.c.l.b16 %v1227
      %v1275 = vunpack.c.l.b16 %v1231
      %v1276 = vunpack.c.l.b16 %v1234
      %v1277 = vunpack.c.l.b16 %v1238
      %v1278 = vunpack.c.l.b16 %v1241
      %v1279 = vunpack.c.l.b16 %v1245
      %v1280 = vunpack.c.l.b16 %v1248
      %v1281 = vpack.c.b16 %v1250, %v1249
      %v1282 = vpack.c.b16 %v1252, %v1251
      %v1283 = vpack.c.b16 %v1254, %v1253
      %v1284 = vpack.c.b16 %v1256, %v1255
      %v1285 = vpack.c.b16 %v1258, %v1257
      %v1286 = vpack.c.b16 %v1260, %v1259
      %v1287 = vpack.c.b16 %v1262, %v1261
      %v1288 = vpack.c.b16 %v1264, %v1263
      %v1289 = vpack.c.b16 %v1266, %v1265
      %v1290 = vpack.c.b16 %v1268, %v1267
      %v1291 = vpack.c.b16 %v1270, %v1269
      %v1292 = vpack.c.b16 %v1272, %v1271
      %v1293 = vpack.c.b16 %v1274, %v1273
      %v1294 = vpack.c.b16 %v1276, %v1275
      %v1295 = vpack.c.b16 %v1278, %v1277
      %v1296 = vpack.c.b16 %v1280, %v1279
      %1313 = vst [vmem:[#allocation2 + $0x10] sm:$0xff] %v1281
      %1314 = vst [vmem:[#allocation2 + $0x58] sm:$0xff] %v1282
      %1315 = vst [vmem:[#allocation2 + $0xa0] sm:$0xff] %v1283
      %1316 = vst [vmem:[#allocation2 + $0xe8] sm:$0xff] %v1284
      %1317 = vst [vmem:[#allocation2 + $0x130] sm:$0xff] %v1285
      %1318 = vst [vmem:[#allocation2 + $0x178] sm:$0xff] %v1286
      %1319 = vst [vmem:[#allocation2 + $0x1c0] sm:$0xff] %v1287
      %1320 = vst [vmem:[#allocation2 + $0x208] sm:$0xff] %v1288
      %1321 = vst [vmem:[#allocation2 + $0x250] sm:$0xff] %v1289
      %1322 = vst [vmem:[#allocation2 + $0x298] sm:$0xff] %v1290
      %1323 = vst [vmem:[#allocation2 + $0x2e0] sm:$0xff] %v1291
      %1324 = vst [vmem:[#allocation2 + $0x328] sm:$0xff] %v1292
      %1325 = vst [vmem:[#allocation2 + $0x370] sm:$0xff] %v1293
      %1326 = vst [vmem:[#allocation2 + $0x3b8] sm:$0xff] %v1294
      %1327 = vst [vmem:[#allocation2 + $0x400] sm:$0xff] %v1295
      %1328 = vst [vmem:[#allocation2 + $0x448] sm:$0xff] %v1296
      %s1329 = sadd.s32 %s375, 1
      %s1330 = smul.u32 %s1329, 3
      %s1331 = smul.addr %s1330, 4
      %s1332 = scalar_lea.vmem %s340, %s1331
      %v1333 = vld [vmem:[%s1332] sm:$0xf]
      %v1334 = vld [vmem:[%s1332 + $0x4] sm:$0xf]
      %v1335 = vld [vmem:[%s1332 + $0xc] sm:$0xf]
      %v1336 = vld [vmem:[%s1332 + $0x10] sm:$0xf]
      %v1337 = vld [vmem:[%s1332 + $0x18] sm:$0xf]
      %v1338 = vld [vmem:[%s1332 + $0x1c] sm:$0xf]
      %v1339 = vld [vmem:[%s1332 + $0x24] sm:$0xf]
      %v1340 = vld [vmem:[%s1332 + $0x28] sm:$0xf]
      %v1341 = vld [vmem:[%s1332 + $0x30] sm:$0xf]
      %v1342 = vld [vmem:[%s1332 + $0x34] sm:$0xf]
      %v1343 = vld [vmem:[%s1332 + $0x3c] sm:$0xf]
      %v1344 = vld [vmem:[%s1332 + $0x40] sm:$0xf]
      %v1345 = vld [vmem:[%s1332 + $0x48] sm:$0xf]
      %v1346 = vld [vmem:[%s1332 + $0x4c] sm:$0xf]
      %v1347 = vld [vmem:[%s1332 + $0x54] sm:$0xf]
      %v1348 = vld [vmem:[%s1332 + $0x58] sm:$0xf]
      %v1349 = vld [vmem:[%s1332 + $0x60] sm:$0xf]
      %v1350 = vld [vmem:[%s1332 + $0x64] sm:$0xf]
      %v1351 = vld [vmem:[%s1332 + $0x6c] sm:$0xf]
      %v1352 = vld [vmem:[%s1332 + $0x70] sm:$0xf]
      %v1353 = vld [vmem:[%s1332 + $0x78] sm:$0xf]
      %v1354 = vld [vmem:[%s1332 + $0x7c] sm:$0xf]
      %v1355 = vld [vmem:[%s1332 + $0x84] sm:$0xf]
      %v1356 = vld [vmem:[%s1332 + $0x88] sm:$0xf]
      %v1357 = vld [vmem:[%s1332 + $0x90] sm:$0xf]
      %v1358 = vld [vmem:[%s1332 + $0x94] sm:$0xf]
      %v1359 = vld [vmem:[%s1332 + $0x9c] sm:$0xf]
      %v1360 = vld [vmem:[%s1332 + $0xa0] sm:$0xf]
      %v1361 = vld [vmem:[%s1332 + $0xa8] sm:$0xf]
      %v1362 = vld [vmem:[%s1332 + $0xac] sm:$0xf]
      %v1363 = vld [vmem:[%s1332 + $0xb4] sm:$0xf]
      %v1364 = vld [vmem:[%s1332 + $0xb8] sm:$0xf]
      %v1397 = vunpack.c.l.b16 %v1333
      %v1398 = vunpack.c.l.b16 %v1334
      %v1399 = vunpack.c.l.b16 %v1335
      %v1400 = vunpack.c.l.b16 %v1336
      %v1401 = vunpack.c.l.b16 %v1337
      %v1402 = vunpack.c.l.b16 %v1338
      %v1403 = vunpack.c.l.b16 %v1339
      %v1404 = vunpack.c.l.b16 %v1340
      %v1405 = vunpack.c.l.b16 %v1341
      %v1406 = vunpack.c.l.b16 %v1342
      %v1407 = vunpack.c.l.b16 %v1343
      %v1408 = vunpack.c.l.b16 %v1344
      %v1409 = vunpack.c.l.b16 %v1345
      %v1410 = vunpack.c.l.b16 %v1346
      %v1411 = vunpack.c.l.b16 %v1347
      %v1412 = vunpack.c.l.b16 %v1348
      %v1413 = vunpack.c.l.b16 %v1349
      %v1414 = vunpack.c.l.b16 %v1350
      %v1415 = vunpack.c.l.b16 %v1351
      %v1416 = vunpack.c.l.b16 %v1352
      %v1417 = vunpack.c.l.b16 %v1353
      %v1418 = vunpack.c.l.b16 %v1354
      %v1419 = vunpack.c.l.b16 %v1355
      %v1420 = vunpack.c.l.b16 %v1356
      %v1421 = vunpack.c.l.b16 %v1357
      %v1422 = vunpack.c.l.b16 %v1358
      %v1423 = vunpack.c.l.b16 %v1359
      %v1424 = vunpack.c.l.b16 %v1360
      %v1425 = vunpack.c.l.b16 %v1361
      %v1426 = vunpack.c.l.b16 %v1362
      %v1427 = vunpack.c.l.b16 %v1363
      %v1428 = vunpack.c.l.b16 %v1364
      %v1429 = vpack.c.b16 %v1398, %v1397
      %v1430 = vpack.c.b16 %v1400, %v1399
      %v1431 = vpack.c.b16 %v1402, %v1401
      %v1432 = vpack.c.b16 %v1404, %v1403
      %v1433 = vpack.c.b16 %v1406, %v1405
      %v1434 = vpack.c.b16 %v1408, %v1407
      %v1435 = vpack.c.b16 %v1410, %v1409
      %v1436 = vpack.c.b16 %v1412, %v1411
      %v1437 = vpack.c.b16 %v1414, %v1413
      %v1438 = vpack.c.b16 %v1416, %v1415
      %v1439 = vpack.c.b16 %v1418, %v1417
      %v1440 = vpack.c.b16 %v1420, %v1419
      %v1441 = vpack.c.b16 %v1422, %v1421
      %v1442 = vpack.c.b16 %v1424, %v1423
      %v1443 = vpack.c.b16 %v1426, %v1425
      %v1444 = vpack.c.b16 %v1428, %v1427
      %1461 = vst [vmem:[#allocation2 + $0x18] sm:$0xff] %v1429
      %1462 = vst [vmem:[#allocation2 + $0x60] sm:$0xff] %v1430
      %1463 = vst [vmem:[#allocation2 + $0xa8] sm:$0xff] %v1431
      %1464 = vst [vmem:[#allocation2 + $0xf0] sm:$0xff] %v1432
      %1465 = vst [vmem:[#allocation2 + $0x138] sm:$0xff] %v1433
      %1466 = vst [vmem:[#allocation2 + $0x180] sm:$0xff] %v1434
      %1467 = vst [vmem:[#allocation2 + $0x1c8] sm:$0xff] %v1435
      %1468 = vst [vmem:[#allocation2 + $0x210] sm:$0xff] %v1436
      %1469 = vst [vmem:[#allocation2 + $0x258] sm:$0xff] %v1437
      %1470 = vst [vmem:[#allocation2 + $0x2a0] sm:$0xff] %v1438
      %1471 = vst [vmem:[#allocation2 + $0x2e8] sm:$0xff] %v1439
      %1472 = vst [vmem:[#allocation2 + $0x330] sm:$0xff] %v1440
      %1473 = vst [vmem:[#allocation2 + $0x378] sm:$0xff] %v1441
      %1474 = vst [vmem:[#allocation2 + $0x3c0] sm:$0xff] %v1442
      %1475 = vst [vmem:[#allocation2 + $0x408] sm:$0xff] %v1443
      %1476 = vst [vmem:[#allocation2 + $0x450] sm:$0xff] %v1444
      %v1477 = vld [vmem:[%s1332] sm:$0xf]
      %v1478 = vld [vmem:[%s1332 + $0x4] sm:$0xf]
      %v1479 = vld [vmem:[%s1332 + $0x8] sm:$0x1]
      %v1480 = vld [vmem:[%s1332 + $0xc] sm:$0xf]
      %v1481 = vld [vmem:[%s1332 + $0x10] sm:$0xf]
      %v1482 = vld [vmem:[%s1332 + $0x14] sm:$0x1]
      %v1483 = vld [vmem:[%s1332 + $0x18] sm:$0xf]
      %v1484 = vld [vmem:[%s1332 + $0x1c] sm:$0xf]
      %v1485 = vld [vmem:[%s1332 + $0x20] sm:$0x1]
      %v1486 = vld [vmem:[%s1332 + $0x24] sm:$0xf]
      %v1487 = vld [vmem:[%s1332 + $0x28] sm:$0xf]
      %v1488 = vld [vmem:[%s1332 + $0x2c] sm:$0x1]
      %v1489 = vld [vmem:[%s1332 + $0x30] sm:$0xf]
      %v1490 = vld [vmem:[%s1332 + $0x34] sm:$0xf]
      %v1491 = vld [vmem:[%s1332 + $0x38] sm:$0x1]
      %v1492 = vld [vmem:[%s1332 + $0x3c] sm:$0xf]
      %v1493 = vld [vmem:[%s1332 + $0x40] sm:$0xf]
      %v1494 = vld [vmem:[%s1332 + $0x44] sm:$0x1]
      %v1495 = vld [vmem:[%s1332 + $0x48] sm:$0xf]
      %v1496 = vld [vmem:[%s1332 + $0x4c] sm:$0xf]
      %v1497 = vld [vmem:[%s1332 + $0x50] sm:$0x1]
      %v1498 = vld [vmem:[%s1332 + $0x54] sm:$0xf]
      %v1499 = vld [vmem:[%s1332 + $0x58] sm:$0xf]
      %v1500 = vld [vmem:[%s1332 + $0x5c] sm:$0x1]
      %v1501 = vld [vmem:[%s1332 + $0x60] sm:$0xf]
      %v1502 = vld [vmem:[%s1332 + $0x64] sm:$0xf]
      %v1503 = vld [vmem:[%s1332 + $0x68] sm:$0x1]
      %v1504 = vld [vmem:[%s1332 + $0x6c] sm:$0xf]
      %v1505 = vld [vmem:[%s1332 + $0x70] sm:$0xf]
      %v1506 = vld [vmem:[%s1332 + $0x74] sm:$0x1]
      %v1507 = vld [vmem:[%s1332 + $0x78] sm:$0xf]
      %v1508 = vld [vmem:[%s1332 + $0x7c] sm:$0xf]
      %v1509 = vld [vmem:[%s1332 + $0x80] sm:$0x1]
      %v1510 = vld [vmem:[%s1332 + $0x84] sm:$0xf]
      %v1511 = vld [vmem:[%s1332 + $0x88] sm:$0xf]
      %v1512 = vld [vmem:[%s1332 + $0x8c] sm:$0x1]
      %v1513 = vld [vmem:[%s1332 + $0x90] sm:$0xf]
      %v1514 = vld [vmem:[%s1332 + $0x94] sm:$0xf]
      %v1515 = vld [vmem:[%s1332 + $0x98] sm:$0x1]
      %v1516 = vld [vmem:[%s1332 + $0x9c] sm:$0xf]
      %v1517 = vld [vmem:[%s1332 + $0xa0] sm:$0xf]
      %v1518 = vld [vmem:[%s1332 + $0xa4] sm:$0x1]
      %v1519 = vld [vmem:[%s1332 + $0xa8] sm:$0xf]
      %v1520 = vld [vmem:[%s1332 + $0xac] sm:$0xf]
      %v1521 = vld [vmem:[%s1332 + $0xb0] sm:$0x1]
      %v1522 = vld [vmem:[%s1332 + $0xb4] sm:$0xf]
      %v1523 = vld [vmem:[%s1332 + $0xb8] sm:$0xf]
      %v1524 = vld [vmem:[%s1332 + $0xbc] sm:$0x1]
      %v1526 = vshrl.u32 %v1477, 16
      %v1528 = vrot.slane %v1526, 4
      %v1529 = vshll.u32 %v1477, 16
      %v1531 = vrot.slane %v1529, 5
      %v1532 = vor.u32 %v1528, %v1531
      %v1533 = vrot.slane %v1532, 4
      %v1535 = vshll.u32 %v1478, 16
      %v1537 = vrot.slane %v1535, 5
      %v1538 = vsel %vm573, %v1533, %v1537
      %v1539 = vshrl.u32 %v1478, 16
      %v1541 = vrot.slane %v1539, 4
      %v1542 = vor.u32 %v1541, %v1537
      %v1543 = vrot.slane %v1542, 4
      %v1545 = vshll.u32 %v1479, 16
      %v1547 = vrot.slane %v1545, 5
      %v1548 = vsel %vm573, %v1543, %v1547
      %v1550 = vshrl.u32 %v1480, 16
      %v1552 = vrot.slane %v1550, 4
      %v1553 = vshll.u32 %v1480, 16
      %v1555 = vrot.slane %v1553, 5
      %v1556 = vor.u32 %v1552, %v1555
      %v1557 = vrot.slane %v1556, 4
      %v1559 = vshll.u32 %v1481, 16
      %v1561 = vrot.slane %v1559, 5
      %v1562 = vsel %vm573, %v1557, %v1561
      %v1563 = vshrl.u32 %v1481, 16
      %v1565 = vrot.slane %v1563, 4
      %v1566 = vor.u32 %v1565, %v1561
      %v1567 = vrot.slane %v1566, 4
      %v1569 = vshll.u32 %v1482, 16
      %v1571 = vrot.slane %v1569, 5
      %v1572 = vsel %vm573, %v1567, %v1571
      %v1574 = vshrl.u32 %v1483, 16
      %v1576 = vrot.slane %v1574, 4
      %v1577 = vshll.u32 %v1483, 16
      %v1579 = vrot.slane %v1577, 5
      %v1580 = vor.u32 %v1576, %v1579
      %v1581 = vrot.slane %v1580, 4
      %v1583 = vshll.u32 %v1484, 16
      %v1585 = vrot.slane %v1583, 5
      %v1586 = vsel %vm573, %v1581, %v1585
      %v1587 = vshrl.u32 %v1484, 16
      %v1589 = vrot.slane %v1587, 4
      %v1590 = vor.u32 %v1589, %v1585
      %v1591 = vrot.slane %v1590, 4
      %v1593 = vshll.u32 %v1485, 16
      %v1595 = vrot.slane %v1593, 5
      %v1596 = vsel %vm573, %v1591, %v1595
      %v1598 = vshrl.u32 %v1486, 16
      %v1600 = vrot.slane %v1598, 4
      %v1601 = vshll.u32 %v1486, 16
      %v1603 = vrot.slane %v1601, 5
      %v1604 = vor.u32 %v1600, %v1603
      %v1605 = vrot.slane %v1604, 4
      %v1607 = vshll.u32 %v1487, 16
      %v1609 = vrot.slane %v1607, 5
      %v1610 = vsel %vm573, %v1605, %v1609
      %v1611 = vshrl.u32 %v1487, 16
      %v1613 = vrot.slane %v1611, 4
      %v1614 = vor.u32 %v1613, %v1609
      %v1615 = vrot.slane %v1614, 4
      %v1617 = vshll.u32 %v1488, 16
      %v1619 = vrot.slane %v1617, 5
      %v1620 = vsel %vm573, %v1615, %v1619
      %v1622 = vshrl.u32 %v1489, 16
      %v1624 = vrot.slane %v1622, 4
      %v1625 = vshll.u32 %v1489, 16
      %v1627 = vrot.slane %v1625, 5
      %v1628 = vor.u32 %v1624, %v1627
      %v1629 = vrot.slane %v1628, 4
      %v1631 = vshll.u32 %v1490, 16
      %v1633 = vrot.slane %v1631, 5
      %v1634 = vsel %vm573, %v1629, %v1633
      %v1635 = vshrl.u32 %v1490, 16
      %v1637 = vrot.slane %v1635, 4
      %v1638 = vor.u32 %v1637, %v1633
      %v1639 = vrot.slane %v1638, 4
      %v1641 = vshll.u32 %v1491, 16
      %v1643 = vrot.slane %v1641, 5
      %v1644 = vsel %vm573, %v1639, %v1643
      %v1646 = vshrl.u32 %v1492, 16
      %v1648 = vrot.slane %v1646, 4
      %v1649 = vshll.u32 %v1492, 16
      %v1651 = vrot.slane %v1649, 5
      %v1652 = vor.u32 %v1648, %v1651
      %v1653 = vrot.slane %v1652, 4
      %v1655 = vshll.u32 %v1493, 16
      %v1657 = vrot.slane %v1655, 5
      %v1658 = vsel %vm573, %v1653, %v1657
      %v1659 = vshrl.u32 %v1493, 16
      %v1661 = vrot.slane %v1659, 4
      %v1662 = vor.u32 %v1661, %v1657
      %v1663 = vrot.slane %v1662, 4
      %v1665 = vshll.u32 %v1494, 16
      %v1667 = vrot.slane %v1665, 5
      %v1668 = vsel %vm573, %v1663, %v1667
      %v1670 = vshrl.u32 %v1495, 16
      %v1672 = vrot.slane %v1670, 4
      %v1673 = vshll.u32 %v1495, 16
      %v1675 = vrot.slane %v1673, 5
      %v1676 = vor.u32 %v1672, %v1675
      %v1677 = vrot.slane %v1676, 4
      %v1679 = vshll.u32 %v1496, 16
      %v1681 = vrot.slane %v1679, 5
      %v1682 = vsel %vm573, %v1677, %v1681
      %v1683 = vshrl.u32 %v1496, 16
      %v1685 = vrot.slane %v1683, 4
      %v1686 = vor.u32 %v1685, %v1681
      %v1687 = vrot.slane %v1686, 4
      %v1689 = vshll.u32 %v1497, 16
      %v1691 = vrot.slane %v1689, 5
      %v1692 = vsel %vm573, %v1687, %v1691
      %v1694 = vshrl.u32 %v1498, 16
      %v1696 = vrot.slane %v1694, 4
      %v1697 = vshll.u32 %v1498, 16
      %v1699 = vrot.slane %v1697, 5
      %v1700 = vor.u32 %v1696, %v1699
      %v1701 = vrot.slane %v1700, 4
      %v1703 = vshll.u32 %v1499, 16
      %v1705 = vrot.slane %v1703, 5
      %v1706 = vsel %vm573, %v1701, %v1705
      %v1707 = vshrl.u32 %v1499, 16
      %v1709 = vrot.slane %v1707, 4
      %v1710 = vor.u32 %v1709, %v1705
      %v1711 = vrot.slane %v1710, 4
      %v1713 = vshll.u32 %v1500, 16
      %v1715 = vrot.slane %v1713, 5
      %v1716 = vsel %vm573, %v1711, %v1715
      %v1718 = vshrl.u32 %v1501, 16
      %v1720 = vrot.slane %v1718, 4
      %v1721 = vshll.u32 %v1501, 16
      %v1723 = vrot.slane %v1721, 5
      %v1724 = vor.u32 %v1720, %v1723
      %v1725 = vrot.slane %v1724, 4
      %v1727 = vshll.u32 %v1502, 16
      %v1729 = vrot.slane %v1727, 5
      %v1730 = vsel %vm573, %v1725, %v1729
      %v1731 = vshrl.u32 %v1502, 16
      %v1733 = vrot.slane %v1731, 4
      %v1734 = vor.u32 %v1733, %v1729
      %v1735 = vrot.slane %v1734, 4
      %v1737 = vshll.u32 %v1503, 16
      %v1739 = vrot.slane %v1737, 5
      %v1740 = vsel %vm573, %v1735, %v1739
      %v1742 = vshrl.u32 %v1504, 16
      %v1744 = vrot.slane %v1742, 4
      %v1745 = vshll.u32 %v1504, 16
      %v1747 = vrot.slane %v1745, 5
      %v1748 = vor.u32 %v1744, %v1747
      %v1749 = vrot.slane %v1748, 4
      %v1751 = vshll.u32 %v1505, 16
      %v1753 = vrot.slane %v1751, 5
      %v1754 = vsel %vm573, %v1749, %v1753
      %v1755 = vshrl.u32 %v1505, 16
      %v1757 = vrot.slane %v1755, 4
      %v1758 = vor.u32 %v1757, %v1753
      %v1759 = vrot.slane %v1758, 4
      %v1761 = vshll.u32 %v1506, 16
      %v1763 = vrot.slane %v1761, 5
      %v1764 = vsel %vm573, %v1759, %v1763
      %v1766 = vshrl.u32 %v1507, 16
      %v1768 = vrot.slane %v1766, 4
      %v1769 = vshll.u32 %v1507, 16
      %v1771 = vrot.slane %v1769, 5
      %v1772 = vor.u32 %v1768, %v1771
      %v1773 = vrot.slane %v1772, 4
      %v1775 = vshll.u32 %v1508, 16
      %v1777 = vrot.slane %v1775, 5
      %v1778 = vsel %vm573, %v1773, %v1777
      %v1779 = vshrl.u32 %v1508, 16
      %v1781 = vrot.slane %v1779, 4
      %v1782 = vor.u32 %v1781, %v1777
      %v1783 = vrot.slane %v1782, 4
      %v1785 = vshll.u32 %v1509, 16
      %v1787 = vrot.slane %v1785, 5
      %v1788 = vsel %vm573, %v1783, %v1787
      %v1790 = vshrl.u32 %v1510, 16
      %v1792 = vrot.slane %v1790, 4
      %v1793 = vshll.u32 %v1510, 16
      %v1795 = vrot.slane %v1793, 5
      %v1796 = vor.u32 %v1792, %v1795
      %v1797 = vrot.slane %v1796, 4
      %v1799 = vshll.u32 %v1511, 16
      %v1801 = vrot.slane %v1799, 5
      %v1802 = vsel %vm573, %v1797, %v1801
      %v1803 = vshrl.u32 %v1511, 16
      %v1805 = vrot.slane %v1803, 4
      %v1806 = vor.u32 %v1805, %v1801
      %v1807 = vrot.slane %v1806, 4
      %v1809 = vshll.u32 %v1512, 16
      %v1811 = vrot.slane %v1809, 5
      %v1812 = vsel %vm573, %v1807, %v1811
      %v1814 = vshrl.u32 %v1513, 16
      %v1816 = vrot.slane %v1814, 4
      %v1817 = vshll.u32 %v1513, 16
      %v1819 = vrot.slane %v1817, 5
      %v1820 = vor.u32 %v1816, %v1819
      %v1821 = vrot.slane %v1820, 4
      %v1823 = vshll.u32 %v1514, 16
      %v1825 = vrot.slane %v1823, 5
      %v1826 = vsel %vm573, %v1821, %v1825
      %v1827 = vshrl.u32 %v1514, 16
      %v1829 = vrot.slane %v1827, 4
      %v1830 = vor.u32 %v1829, %v1825
      %v1831 = vrot.slane %v1830, 4
      %v1833 = vshll.u32 %v1515, 16
      %v1835 = vrot.slane %v1833, 5
      %v1836 = vsel %vm573, %v1831, %v1835
      %v1838 = vshrl.u32 %v1516, 16
      %v1840 = vrot.slane %v1838, 4
      %v1841 = vshll.u32 %v1516, 16
      %v1843 = vrot.slane %v1841, 5
      %v1844 = vor.u32 %v1840, %v1843
      %v1845 = vrot.slane %v1844, 4
      %v1847 = vshll.u32 %v1517, 16
      %v1849 = vrot.slane %v1847, 5
      %v1850 = vsel %vm573, %v1845, %v1849
      %v1851 = vshrl.u32 %v1517, 16
      %v1853 = vrot.slane %v1851, 4
      %v1854 = vor.u32 %v1853, %v1849
      %v1855 = vrot.slane %v1854, 4
      %v1857 = vshll.u32 %v1518, 16
      %v1859 = vrot.slane %v1857, 5
      %v1860 = vsel %vm573, %v1855, %v1859
      %v1862 = vshrl.u32 %v1519, 16
      %v1864 = vrot.slane %v1862, 4
      %v1865 = vshll.u32 %v1519, 16
      %v1867 = vrot.slane %v1865, 5
      %v1868 = vor.u32 %v1864, %v1867
      %v1869 = vrot.slane %v1868, 4
      %v1871 = vshll.u32 %v1520, 16
      %v1873 = vrot.slane %v1871, 5
      %v1874 = vsel %vm573, %v1869, %v1873
      %v1875 = vshrl.u32 %v1520, 16
      %v1877 = vrot.slane %v1875, 4
      %v1878 = vor.u32 %v1877, %v1873
      %v1879 = vrot.slane %v1878, 4
      %v1881 = vshll.u32 %v1521, 16
      %v1883 = vrot.slane %v1881, 5
      %v1884 = vsel %vm573, %v1879, %v1883
      %v1886 = vshrl.u32 %v1522, 16
      %v1888 = vrot.slane %v1886, 4
      %v1889 = vshll.u32 %v1522, 16
      %v1891 = vrot.slane %v1889, 5
      %v1892 = vor.u32 %v1888, %v1891
      %v1893 = vrot.slane %v1892, 4
      %v1895 = vshll.u32 %v1523, 16
      %v1897 = vrot.slane %v1895, 5
      %v1898 = vsel %vm573, %v1893, %v1897
      %v1899 = vshrl.u32 %v1523, 16
      %v1901 = vrot.slane %v1899, 4
      %v1902 = vor.u32 %v1901, %v1897
      %v1903 = vrot.slane %v1902, 4
      %v1905 = vshll.u32 %v1524, 16
      %v1907 = vrot.slane %v1905, 5
      %v1908 = vsel %vm573, %v1903, %v1907
      %v1909 = vunpack.c.l.b16 %v1538
      %v1910 = vunpack.c.l.b16 %v1548
      %v1911 = vunpack.c.l.b16 %v1562
      %v1912 = vunpack.c.l.b16 %v1572
      %v1913 = vunpack.c.l.b16 %v1586
      %v1914 = vunpack.c.l.b16 %v1596
      %v1915 = vunpack.c.l.b16 %v1610
      %v1916 = vunpack.c.l.b16 %v1620
      %v1917 = vunpack.c.l.b16 %v1634
      %v1918 = vunpack.c.l.b16 %v1644
      %v1919 = vunpack.c.l.b16 %v1658
      %v1920 = vunpack.c.l.b16 %v1668
      %v1921 = vunpack.c.l.b16 %v1682
      %v1922 = vunpack.c.l.b16 %v1692
      %v1923 = vunpack.c.l.b16 %v1706
      %v1924 = vunpack.c.l.b16 %v1716
      %v1925 = vunpack.c.l.b16 %v1730
      %v1926 = vunpack.c.l.b16 %v1740
      %v1927 = vunpack.c.l.b16 %v1754
      %v1928 = vunpack.c.l.b16 %v1764
      %v1929 = vunpack.c.l.b16 %v1778
      %v1930 = vunpack.c.l.b16 %v1788
      %v1931 = vunpack.c.l.b16 %v1802
      %v1932 = vunpack.c.l.b16 %v1812
      %v1933 = vunpack.c.l.b16 %v1826
      %v1934 = vunpack.c.l.b16 %v1836
      %v1935 = vunpack.c.l.b16 %v1850
      %v1936 = vunpack.c.l.b16 %v1860
      %v1937 = vunpack.c.l.b16 %v1874
      %v1938 = vunpack.c.l.b16 %v1884
      %v1939 = vunpack.c.l.b16 %v1898
      %v1940 = vunpack.c.l.b16 %v1908
      %v1941 = vpack.c.b16 %v1910, %v1909
      %v1942 = vpack.c.b16 %v1912, %v1911
      %v1943 = vpack.c.b16 %v1914, %v1913
      %v1944 = vpack.c.b16 %v1916, %v1915
      %v1945 = vpack.c.b16 %v1918, %v1917
      %v1946 = vpack.c.b16 %v1920, %v1919
      %v1947 = vpack.c.b16 %v1922, %v1921
      %v1948 = vpack.c.b16 %v1924, %v1923
      %v1949 = vpack.c.b16 %v1926, %v1925
      %v1950 = vpack.c.b16 %v1928, %v1927
      %v1951 = vpack.c.b16 %v1930, %v1929
      %v1952 = vpack.c.b16 %v1932, %v1931
      %v1953 = vpack.c.b16 %v1934, %v1933
      %v1954 = vpack.c.b16 %v1936, %v1935
      %v1955 = vpack.c.b16 %v1938, %v1937
      %v1956 = vpack.c.b16 %v1940, %v1939
      %1973 = vst [vmem:[#allocation2 + $0x20] sm:$0xff] %v1941
      %1974 = vst [vmem:[#allocation2 + $0x68] sm:$0xff] %v1942
      %1975 = vst [vmem:[#allocation2 + $0xb0] sm:$0xff] %v1943
      %1976 = vst [vmem:[#allocation2 + $0xf8] sm:$0xff] %v1944
      %1977 = vst [vmem:[#allocation2 + $0x140] sm:$0xff] %v1945
      %1978 = vst [vmem:[#allocation2 + $0x188] sm:$0xff] %v1946
      %1979 = vst [vmem:[#allocation2 + $0x1d0] sm:$0xff] %v1947
      %1980 = vst [vmem:[#allocation2 + $0x218] sm:$0xff] %v1948
      %1981 = vst [vmem:[#allocation2 + $0x260] sm:$0xff] %v1949
      %1982 = vst [vmem:[#allocation2 + $0x2a8] sm:$0xff] %v1950
      %1983 = vst [vmem:[#allocation2 + $0x2f0] sm:$0xff] %v1951
      %1984 = vst [vmem:[#allocation2 + $0x338] sm:$0xff] %v1952
      %1985 = vst [vmem:[#allocation2 + $0x380] sm:$0xff] %v1953
      %1986 = vst [vmem:[#allocation2 + $0x3c8] sm:$0xff] %v1954
      %1987 = vst [vmem:[#allocation2 + $0x410] sm:$0xff] %v1955
      %1988 = vst [vmem:[#allocation2 + $0x458] sm:$0xff] %v1956
      %v1989 = vld [vmem:[%s1332] sm:$0xe]
      %v1990 = vld [vmem:[%s1332 + $0x4] sm:$0xf]
      %v1991 = vld [vmem:[%s1332 + $0x8] sm:$0x1]
      %v1992 = vld [vmem:[%s1332 + $0xc] sm:$0xe]
      %v1993 = vld [vmem:[%s1332 + $0x10] sm:$0xf]
      %v1994 = vld [vmem:[%s1332 + $0x14] sm:$0x1]
      %v1995 = vld [vmem:[%s1332 + $0x18] sm:$0xe]
      %v1996 = vld [vmem:[%s1332 + $0x1c] sm:$0xf]
      %v1997 = vld [vmem:[%s1332 + $0x20] sm:$0x1]
      %v1998 = vld [vmem:[%s1332 + $0x24] sm:$0xe]
      %v1999 = vld [vmem:[%s1332 + $0x28] sm:$0xf]
      %v2000 = vld [vmem:[%s1332 + $0x2c] sm:$0x1]
      %v2001 = vld [vmem:[%s1332 + $0x30] sm:$0xe]
      %v2002 = vld [vmem:[%s1332 + $0x34] sm:$0xf]
      %v2003 = vld [vmem:[%s1332 + $0x38] sm:$0x1]
      %v2004 = vld [vmem:[%s1332 + $0x3c] sm:$0xe]
      %v2005 = vld [vmem:[%s1332 + $0x40] sm:$0xf]
      %v2006 = vld [vmem:[%s1332 + $0x44] sm:$0x1]
      %v2007 = vld [vmem:[%s1332 + $0x48] sm:$0xe]
      %v2008 = vld [vmem:[%s1332 + $0x4c] sm:$0xf]
      %v2009 = vld [vmem:[%s1332 + $0x50] sm:$0x1]
      %v2010 = vld [vmem:[%s1332 + $0x54] sm:$0xe]
      %v2011 = vld [vmem:[%s1332 + $0x58] sm:$0xf]
      %v2012 = vld [vmem:[%s1332 + $0x5c] sm:$0x1]
      %v2013 = vld [vmem:[%s1332 + $0x60] sm:$0xe]
      %v2014 = vld [vmem:[%s1332 + $0x64] sm:$0xf]
      %v2015 = vld [vmem:[%s1332 + $0x68] sm:$0x1]
      %v2016 = vld [vmem:[%s1332 + $0x6c] sm:$0xe]
      %v2017 = vld [vmem:[%s1332 + $0x70] sm:$0xf]
      %v2018 = vld [vmem:[%s1332 + $0x74] sm:$0x1]
      %v2019 = vld [vmem:[%s1332 + $0x78] sm:$0xe]
      %v2020 = vld [vmem:[%s1332 + $0x7c] sm:$0xf]
      %v2021 = vld [vmem:[%s1332 + $0x80] sm:$0x1]
      %v2022 = vld [vmem:[%s1332 + $0x84] sm:$0xe]
      %v2023 = vld [vmem:[%s1332 + $0x88] sm:$0xf]
      %v2024 = vld [vmem:[%s1332 + $0x8c] sm:$0x1]
      %v2025 = vld [vmem:[%s1332 + $0x90] sm:$0xe]
      %v2026 = vld [vmem:[%s1332 + $0x94] sm:$0xf]
      %v2027 = vld [vmem:[%s1332 + $0x98] sm:$0x1]
      %v2028 = vld [vmem:[%s1332 + $0x9c] sm:$0xe]
      %v2029 = vld [vmem:[%s1332 + $0xa0] sm:$0xf]
      %v2030 = vld [vmem:[%s1332 + $0xa4] sm:$0x1]
      %v2031 = vld [vmem:[%s1332 + $0xa8] sm:$0xe]
      %v2032 = vld [vmem:[%s1332 + $0xac] sm:$0xf]
      %v2033 = vld [vmem:[%s1332 + $0xb0] sm:$0x1]
      %v2034 = vld [vmem:[%s1332 + $0xb4] sm:$0xe]
      %v2035 = vld [vmem:[%s1332 + $0xb8] sm:$0xf]
      %v2036 = vld [vmem:[%s1332 + $0xbc] sm:$0x1]
      %v2085 = vrot.slane %v1989, 5
      %v2086 = vrot.slane %v2085, 4
      %v2087 = vrot.slane %v1990, 5
      %v2088 = vsel %vm1136, %v2086, %v2087
      %v2089 = vrot.slane %v2087, 4
      %v2090 = vrot.slane %v1991, 5
      %v2091 = vsel %vm1136, %v2089, %v2090
      %v2092 = vrot.slane %v1992, 5
      %v2093 = vrot.slane %v2092, 4
      %v2094 = vrot.slane %v1993, 5
      %v2095 = vsel %vm1136, %v2093, %v2094
      %v2096 = vrot.slane %v2094, 4
      %v2097 = vrot.slane %v1994, 5
      %v2098 = vsel %vm1136, %v2096, %v2097
      %v2099 = vrot.slane %v1995, 5
      %v2100 = vrot.slane %v2099, 4
      %v2101 = vrot.slane %v1996, 5
      %v2102 = vsel %vm1136, %v2100, %v2101
      %v2103 = vrot.slane %v2101, 4
      %v2104 = vrot.slane %v1997, 5
      %v2105 = vsel %vm1136, %v2103, %v2104
      %v2106 = vrot.slane %v1998, 5
      %v2107 = vrot.slane %v2106, 4
      %v2108 = vrot.slane %v1999, 5
      %v2109 = vsel %vm1136, %v2107, %v2108
      %v2110 = vrot.slane %v2108, 4
      %v2111 = vrot.slane %v2000, 5
      %v2112 = vsel %vm1136, %v2110, %v2111
      %v2113 = vrot.slane %v2001, 5
      %v2114 = vrot.slane %v2113, 4
      %v2115 = vrot.slane %v2002, 5
      %v2116 = vsel %vm1136, %v2114, %v2115
      %v2117 = vrot.slane %v2115, 4
      %v2118 = vrot.slane %v2003, 5
      %v2119 = vsel %vm1136, %v2117, %v2118
      %v2120 = vrot.slane %v2004, 5
      %v2121 = vrot.slane %v2120, 4
      %v2122 = vrot.slane %v2005, 5
      %v2123 = vsel %vm1136, %v2121, %v2122
      %v2124 = vrot.slane %v2122, 4
      %v2125 = vrot.slane %v2006, 5
      %v2126 = vsel %vm1136, %v2124, %v2125
      %v2127 = vrot.slane %v2007, 5
      %v2128 = vrot.slane %v2127, 4
      %v2129 = vrot.slane %v2008, 5
      %v2130 = vsel %vm1136, %v2128, %v2129
      %v2131 = vrot.slane %v2129, 4
      %v2132 = vrot.slane %v2009, 5
      %v2133 = vsel %vm1136, %v2131, %v2132
      %v2134 = vrot.slane %v2010, 5
      %v2135 = vrot.slane %v2134, 4
      %v2136 = vrot.slane %v2011, 5
      %v2137 = vsel %vm1136, %v2135, %v2136
      %v2138 = vrot.slane %v2136, 4
      %v2139 = vrot.slane %v2012, 5
      %v2140 = vsel %vm1136, %v2138, %v2139
      %v2141 = vrot.slane %v2013, 5
      %v2142 = vrot.slane %v2141, 4
      %v2143 = vrot.slane %v2014, 5
      %v2144 = vsel %vm1136, %v2142, %v2143
      %v2145 = vrot.slane %v2143, 4
      %v2146 = vrot.slane %v2015, 5
      %v2147 = vsel %vm1136, %v2145, %v2146
      %v2148 = vrot.slane %v2016, 5
      %v2149 = vrot.slane %v2148, 4
      %v2150 = vrot.slane %v2017, 5
      %v2151 = vsel %vm1136, %v2149, %v2150
      %v2152 = vrot.slane %v2150, 4
      %v2153 = vrot.slane %v2018, 5
      %v2154 = vsel %vm1136, %v2152, %v2153
      %v2155 = vrot.slane %v2019, 5
      %v2156 = vrot.slane %v2155, 4
      %v2157 = vrot.slane %v2020, 5
      %v2158 = vsel %vm1136, %v2156, %v2157
      %v2159 = vrot.slane %v2157, 4
      %v2160 = vrot.slane %v2021, 5
      %v2161 = vsel %vm1136, %v2159, %v2160
      %v2162 = vrot.slane %v2022, 5
      %v2163 = vrot.slane %v2162, 4
      %v2164 = vrot.slane %v2023, 5
      %v2165 = vsel %vm1136, %v2163, %v2164
      %v2166 = vrot.slane %v2164, 4
      %v2167 = vrot.slane %v2024, 5
      %v2168 = vsel %vm1136, %v2166, %v2167
      %v2169 = vrot.slane %v2025, 5
      %v2170 = vrot.slane %v2169, 4
      %v2171 = vrot.slane %v2026, 5
      %v2172 = vsel %vm1136, %v2170, %v2171
      %v2173 = vrot.slane %v2171, 4
      %v2174 = vrot.slane %v2027, 5
      %v2175 = vsel %vm1136, %v2173, %v2174
      %v2176 = vrot.slane %v2028, 5
      %v2177 = vrot.slane %v2176, 4
      %v2178 = vrot.slane %v2029, 5
      %v2179 = vsel %vm1136, %v2177, %v2178
      %v2180 = vrot.slane %v2178, 4
      %v2181 = vrot.slane %v2030, 5
      %v2182 = vsel %vm1136, %v2180, %v2181
      %v2183 = vrot.slane %v2031, 5
      %v2184 = vrot.slane %v2183, 4
      %v2185 = vrot.slane %v2032, 5
      %v2186 = vsel %vm1136, %v2184, %v2185
      %v2187 = vrot.slane %v2185, 4
      %v2188 = vrot.slane %v2033, 5
      %v2189 = vsel %vm1136, %v2187, %v2188
      %v2190 = vrot.slane %v2034, 5
      %v2191 = vrot.slane %v2190, 4
      %v2192 = vrot.slane %v2035, 5
      %v2193 = vsel %vm1136, %v2191, %v2192
      %v2194 = vrot.slane %v2192, 4
      %v2195 = vrot.slane %v2036, 5
      %v2196 = vsel %vm1136, %v2194, %v2195
      %v2197 = vunpack.c.l.b16 %v2088
      %v2198 = vunpack.c.l.b16 %v2091
      %v2199 = vunpack.c.l.b16 %v2095
      %v2200 = vunpack.c.l.b16 %v2098
      %v2201 = vunpack.c.l.b16 %v2102
      %v2202 = vunpack.c.l.b16 %v2105
      %v2203 = vunpack.c.l.b16 %v2109
      %v2204 = vunpack.c.l.b16 %v2112
      %v2205 = vunpack.c.l.b16 %v2116
      %v2206 = vunpack.c.l.b16 %v2119
      %v2207 = vunpack.c.l.b16 %v2123
      %v2208 = vunpack.c.l.b16 %v2126
      %v2209 = vunpack.c.l.b16 %v2130
      %v2210 = vunpack.c.l.b16 %v2133
      %v2211 = vunpack.c.l.b16 %v2137
      %v2212 = vunpack.c.l.b16 %v2140
      %v2213 = vunpack.c.l.b16 %v2144
      %v2214 = vunpack.c.l.b16 %v2147
      %v2215 = vunpack.c.l.b16 %v2151
      %v2216 = vunpack.c.l.b16 %v2154
      %v2217 = vunpack.c.l.b16 %v2158
      %v2218 = vunpack.c.l.b16 %v2161
      %v2219 = vunpack.c.l.b16 %v2165
      %v2220 = vunpack.c.l.b16 %v2168
      %v2221 = vunpack.c.l.b16 %v2172
      %v2222 = vunpack.c.l.b16 %v2175
      %v2223 = vunpack.c.l.b16 %v2179
      %v2224 = vunpack.c.l.b16 %v2182
      %v2225 = vunpack.c.l.b16 %v2186
      %v2226 = vunpack.c.l.b16 %v2189
      %v2227 = vunpack.c.l.b16 %v2193
      %v2228 = vunpack.c.l.b16 %v2196
      %v2229 = vpack.c.b16 %v2198, %v2197
      %v2230 = vpack.c.b16 %v2200, %v2199
      %v2231 = vpack.c.b16 %v2202, %v2201
      %v2232 = vpack.c.b16 %v2204, %v2203
      %v2233 = vpack.c.b16 %v2206, %v2205
      %v2234 = vpack.c.b16 %v2208, %v2207
      %v2235 = vpack.c.b16 %v2210, %v2209
      %v2236 = vpack.c.b16 %v2212, %v2211
      %v2237 = vpack.c.b16 %v2214, %v2213
      %v2238 = vpack.c.b16 %v2216, %v2215
      %v2239 = vpack.c.b16 %v2218, %v2217
      %v2240 = vpack.c.b16 %v2220, %v2219
      %v2241 = vpack.c.b16 %v2222, %v2221
      %v2242 = vpack.c.b16 %v2224, %v2223
      %v2243 = vpack.c.b16 %v2226, %v2225
      %v2244 = vpack.c.b16 %v2228, %v2227
      %2261 = vst [vmem:[#allocation2 + $0x28] sm:$0xff] %v2229
      %2262 = vst [vmem:[#allocation2 + $0x70] sm:$0xff] %v2230
      %2263 = vst [vmem:[#allocation2 + $0xb8] sm:$0xff] %v2231
      %2264 = vst [vmem:[#allocation2 + $0x100] sm:$0xff] %v2232
      %2265 = vst [vmem:[#allocation2 + $0x148] sm:$0xff] %v2233
      %2266 = vst [vmem:[#allocation2 + $0x190] sm:$0xff] %v2234
      %2267 = vst [vmem:[#allocation2 + $0x1d8] sm:$0xff] %v2235
      %2268 = vst [vmem:[#allocation2 + $0x220] sm:$0xff] %v2236
      %2269 = vst [vmem:[#allocation2 + $0x268] sm:$0xff] %v2237
      %2270 = vst [vmem:[#allocation2 + $0x2b0] sm:$0xff] %v2238
      %2271 = vst [vmem:[#allocation2 + $0x2f8] sm:$0xff] %v2239
      %2272 = vst [vmem:[#allocation2 + $0x340] sm:$0xff] %v2240
      %2273 = vst [vmem:[#allocation2 + $0x388] sm:$0xff] %v2241
      %2274 = vst [vmem:[#allocation2 + $0x3d0] sm:$0xff] %v2242
      %2275 = vst [vmem:[#allocation2 + $0x418] sm:$0xff] %v2243
      %2276 = vst [vmem:[#allocation2 + $0x460] sm:$0xff] %v2244
      %s2277 = sadd.s32 %s375, 2
      %s2278 = smul.u32 %s2277, 3
      %s2279 = smul.addr %s2278, 4
      %s2280 = scalar_lea.vmem %s340, %s2279
      %v2281 = vld [vmem:[%s2280] sm:$0xf]
      %v2282 = vld [vmem:[%s2280 + $0x4] sm:$0xf]
      %v2283 = vld [vmem:[%s2280 + $0xc] sm:$0xf]
      %v2284 = vld [vmem:[%s2280 + $0x10] sm:$0xf]
      %v2285 = vld [vmem:[%s2280 + $0x18] sm:$0xf]
      %v2286 = vld [vmem:[%s2280 + $0x1c] sm:$0xf]
      %v2287 = vld [vmem:[%s2280 + $0x24] sm:$0xf]
      %v2288 = vld [vmem:[%s2280 + $0x28] sm:$0xf]
      %v2289 = vld [vmem:[%s2280 + $0x30] sm:$0xf]
      %v2290 = vld [vmem:[%s2280 + $0x34] sm:$0xf]
      %v2291 = vld [vmem:[%s2280 + $0x3c] sm:$0xf]
      %v2292 = vld [vmem:[%s2280 + $0x40] sm:$0xf]
      %v2293 = vld [vmem:[%s2280 + $0x48] sm:$0xf]
      %v2294 = vld [vmem:[%s2280 + $0x4c] sm:$0xf]
      %v2295 = vld [vmem:[%s2280 + $0x54] sm:$0xf]
      %v2296 = vld [vmem:[%s2280 + $0x58] sm:$0xf]
      %v2297 = vld [vmem:[%s2280 + $0x60] sm:$0xf]
      %v2298 = vld [vmem:[%s2280 + $0x64] sm:$0xf]
      %v2299 = vld [vmem:[%s2280 + $0x6c] sm:$0xf]
      %v2300 = vld [vmem:[%s2280 + $0x70] sm:$0xf]
      %v2301 = vld [vmem:[%s2280 + $0x78] sm:$0xf]
      %v2302 = vld [vmem:[%s2280 + $0x7c] sm:$0xf]
      %v2303 = vld [vmem:[%s2280 + $0x84] sm:$0xf]
      %v2304 = vld [vmem:[%s2280 + $0x88] sm:$0xf]
      %v2305 = vld [vmem:[%s2280 + $0x90] sm:$0xf]
      %v2306 = vld [vmem:[%s2280 + $0x94] sm:$0xf]
      %v2307 = vld [vmem:[%s2280 + $0x9c] sm:$0xf]
      %v2308 = vld [vmem:[%s2280 + $0xa0] sm:$0xf]
      %v2309 = vld [vmem:[%s2280 + $0xa8] sm:$0xf]
      %v2310 = vld [vmem:[%s2280 + $0xac] sm:$0xf]
      %v2311 = vld [vmem:[%s2280 + $0xb4] sm:$0xf]
      %v2312 = vld [vmem:[%s2280 + $0xb8] sm:$0xf]
      %v2345 = vunpack.c.l.b16 %v2281
      %v2346 = vunpack.c.l.b16 %v2282
      %v2347 = vunpack.c.l.b16 %v2283
      %v2348 = vunpack.c.l.b16 %v2284
      %v2349 = vunpack.c.l.b16 %v2285
      %v2350 = vunpack.c.l.b16 %v2286
      %v2351 = vunpack.c.l.b16 %v2287
      %v2352 = vunpack.c.l.b16 %v2288
      %v2353 = vunpack.c.l.b16 %v2289
      %v2354 = vunpack.c.l.b16 %v2290
      %v2355 = vunpack.c.l.b16 %v2291
      %v2356 = vunpack.c.l.b16 %v2292
      %v2357 = vunpack.c.l.b16 %v2293
      %v2358 = vunpack.c.l.b16 %v2294
      %v2359 = vunpack.c.l.b16 %v2295
      %v2360 = vunpack.c.l.b16 %v2296
      %v2361 = vunpack.c.l.b16 %v2297
      %v2362 = vunpack.c.l.b16 %v2298
      %v2363 = vunpack.c.l.b16 %v2299
      %v2364 = vunpack.c.l.b16 %v2300
      %v2365 = vunpack.c.l.b16 %v2301
      %v2366 = vunpack.c.l.b16 %v2302
      %v2367 = vunpack.c.l.b16 %v2303
      %v2368 = vunpack.c.l.b16 %v2304
      %v2369 = vunpack.c.l.b16 %v2305
      %v2370 = vunpack.c.l.b16 %v2306
      %v2371 = vunpack.c.l.b16 %v2307
      %v2372 = vunpack.c.l.b16 %v2308
      %v2373 = vunpack.c.l.b16 %v2309
      %v2374 = vunpack.c.l.b16 %v2310
      %v2375 = vunpack.c.l.b16 %v2311
      %v2376 = vunpack.c.l.b16 %v2312
      %v2377 = vpack.c.b16 %v2346, %v2345
      %v2378 = vpack.c.b16 %v2348, %v2347
      %v2379 = vpack.c.b16 %v2350, %v2349
      %v2380 = vpack.c.b16 %v2352, %v2351
      %v2381 = vpack.c.b16 %v2354, %v2353
      %v2382 = vpack.c.b16 %v2356, %v2355
      %v2383 = vpack.c.b16 %v2358, %v2357
      %v2384 = vpack.c.b16 %v2360, %v2359
      %v2385 = vpack.c.b16 %v2362, %v2361
      %v2386 = vpack.c.b16 %v2364, %v2363
      %v2387 = vpack.c.b16 %v2366, %v2365
      %v2388 = vpack.c.b16 %v2368, %v2367
      %v2389 = vpack.c.b16 %v2370, %v2369
      %v2390 = vpack.c.b16 %v2372, %v2371
      %v2391 = vpack.c.b16 %v2374, %v2373
      %v2392 = vpack.c.b16 %v2376, %v2375
      %2409 = vst [vmem:[#allocation2 + $0x30] sm:$0xff] %v2377
      %2410 = vst [vmem:[#allocation2 + $0x78] sm:$0xff] %v2378
      %2411 = vst [vmem:[#allocation2 + $0xc0] sm:$0xff] %v2379
      %2412 = vst [vmem:[#allocation2 + $0x108] sm:$0xff] %v2380
      %2413 = vst [vmem:[#allocation2 + $0x150] sm:$0xff] %v2381
      %2414 = vst [vmem:[#allocation2 + $0x198] sm:$0xff] %v2382
      %2415 = vst [vmem:[#allocation2 + $0x1e0] sm:$0xff] %v2383
      %2416 = vst [vmem:[#allocation2 + $0x228] sm:$0xff] %v2384
      %2417 = vst [vmem:[#allocation2 + $0x270] sm:$0xff] %v2385
      %2418 = vst [vmem:[#allocation2 + $0x2b8] sm:$0xff] %v2386
      %2419 = vst [vmem:[#allocation2 + $0x300] sm:$0xff] %v2387
      %2420 = vst [vmem:[#allocation2 + $0x348] sm:$0xff] %v2388
      %2421 = vst [vmem:[#allocation2 + $0x390] sm:$0xff] %v2389
      %2422 = vst [vmem:[#allocation2 + $0x3d8] sm:$0xff] %v2390
      %2423 = vst [vmem:[#allocation2 + $0x420] sm:$0xff] %v2391
      %2424 = vst [vmem:[#allocation2 + $0x468] sm:$0xff] %v2392
      %v2425 = vld [vmem:[%s2280] sm:$0xf]
      %v2426 = vld [vmem:[%s2280 + $0x4] sm:$0xf]
      %v2427 = vld [vmem:[%s2280 + $0x8] sm:$0x1]
      %v2428 = vld [vmem:[%s2280 + $0xc] sm:$0xf]
      %v2429 = vld [vmem:[%s2280 + $0x10] sm:$0xf]
      %v2430 = vld [vmem:[%s2280 + $0x14] sm:$0x1]
      %v2431 = vld [vmem:[%s2280 + $0x18] sm:$0xf]
      %v2432 = vld [vmem:[%s2280 + $0x1c] sm:$0xf]
      %v2433 = vld [vmem:[%s2280 + $0x20] sm:$0x1]
      %v2434 = vld [vmem:[%s2280 + $0x24] sm:$0xf]
      %v2435 = vld [vmem:[%s2280 + $0x28] sm:$0xf]
      %v2436 = vld [vmem:[%s2280 + $0x2c] sm:$0x1]
      %v2437 = vld [vmem:[%s2280 + $0x30] sm:$0xf]
      %v2438 = vld [vmem:[%s2280 + $0x34] sm:$0xf]
      %v2439 = vld [vmem:[%s2280 + $0x38] sm:$0x1]
      %v2440 = vld [vmem:[%s2280 + $0x3c] sm:$0xf]
      %v2441 = vld [vmem:[%s2280 + $0x40] sm:$0xf]
      %v2442 = vld [vmem:[%s2280 + $0x44] sm:$0x1]
      %v2443 = vld [vmem:[%s2280 + $0x48] sm:$0xf]
      %v2444 = vld [vmem:[%s2280 + $0x4c] sm:$0xf]
      %v2445 = vld [vmem:[%s2280 + $0x50] sm:$0x1]
      %v2446 = vld [vmem:[%s2280 + $0x54] sm:$0xf]
      %v2447 = vld [vmem:[%s2280 + $0x58] sm:$0xf]
      %v2448 = vld [vmem:[%s2280 + $0x5c] sm:$0x1]
      %v2449 = vld [vmem:[%s2280 + $0x60] sm:$0xf]
      %v2450 = vld [vmem:[%s2280 + $0x64] sm:$0xf]
      %v2451 = vld [vmem:[%s2280 + $0x68] sm:$0x1]
      %v2452 = vld [vmem:[%s2280 + $0x6c] sm:$0xf]
      %v2453 = vld [vmem:[%s2280 + $0x70] sm:$0xf]
      %v2454 = vld [vmem:[%s2280 + $0x74] sm:$0x1]
      %v2455 = vld [vmem:[%s2280 + $0x78] sm:$0xf]
      %v2456 = vld [vmem:[%s2280 + $0x7c] sm:$0xf]
      %v2457 = vld [vmem:[%s2280 + $0x80] sm:$0x1]
      %v2458 = vld [vmem:[%s2280 + $0x84] sm:$0xf]
      %v2459 = vld [vmem:[%s2280 + $0x88] sm:$0xf]
      %v2460 = vld [vmem:[%s2280 + $0x8c] sm:$0x1]
      %v2461 = vld [vmem:[%s2280 + $0x90] sm:$0xf]
      %v2462 = vld [vmem:[%s2280 + $0x94] sm:$0xf]
      %v2463 = vld [vmem:[%s2280 + $0x98] sm:$0x1]
      %v2464 = vld [vmem:[%s2280 + $0x9c] sm:$0xf]
      %v2465 = vld [vmem:[%s2280 + $0xa0] sm:$0xf]
      %v2466 = vld [vmem:[%s2280 + $0xa4] sm:$0x1]
      %v2467 = vld [vmem:[%s2280 + $0xa8] sm:$0xf]
      %v2468 = vld [vmem:[%s2280 + $0xac] sm:$0xf]
      %v2469 = vld [vmem:[%s2280 + $0xb0] sm:$0x1]
      %v2470 = vld [vmem:[%s2280 + $0xb4] sm:$0xf]
      %v2471 = vld [vmem:[%s2280 + $0xb8] sm:$0xf]
      %v2472 = vld [vmem:[%s2280 + $0xbc] sm:$0x1]
      %v2474 = vshrl.u32 %v2425, 16
      %v2476 = vrot.slane %v2474, 4
      %v2477 = vshll.u32 %v2425, 16
      %v2479 = vrot.slane %v2477, 5
      %v2480 = vor.u32 %v2476, %v2479
      %v2481 = vrot.slane %v2480, 4
      %v2483 = vshll.u32 %v2426, 16
      %v2485 = vrot.slane %v2483, 5
      %v2486 = vsel %vm573, %v2481, %v2485
      %v2487 = vshrl.u32 %v2426, 16
      %v2489 = vrot.slane %v2487, 4
      %v2490 = vor.u32 %v2489, %v2485
      %v2491 = vrot.slane %v2490, 4
      %v2493 = vshll.u32 %v2427, 16
      %v2495 = vrot.slane %v2493, 5
      %v2496 = vsel %vm573, %v2491, %v2495
      %v2498 = vshrl.u32 %v2428, 16
      %v2500 = vrot.slane %v2498, 4
      %v2501 = vshll.u32 %v2428, 16
      %v2503 = vrot.slane %v2501, 5
      %v2504 = vor.u32 %v2500, %v2503
      %v2505 = vrot.slane %v2504, 4
      %v2507 = vshll.u32 %v2429, 16
      %v2509 = vrot.slane %v2507, 5
      %v2510 = vsel %vm573, %v2505, %v2509
      %v2511 = vshrl.u32 %v2429, 16
      %v2513 = vrot.slane %v2511, 4
      %v2514 = vor.u32 %v2513, %v2509
      %v2515 = vrot.slane %v2514, 4
      %v2517 = vshll.u32 %v2430, 16
      %v2519 = vrot.slane %v2517, 5
      %v2520 = vsel %vm573, %v2515, %v2519
      %v2522 = vshrl.u32 %v2431, 16
      %v2524 = vrot.slane %v2522, 4
      %v2525 = vshll.u32 %v2431, 16
      %v2527 = vrot.slane %v2525, 5
      %v2528 = vor.u32 %v2524, %v2527
      %v2529 = vrot.slane %v2528, 4
      %v2531 = vshll.u32 %v2432, 16
      %v2533 = vrot.slane %v2531, 5
      %v2534 = vsel %vm573, %v2529, %v2533
      %v2535 = vshrl.u32 %v2432, 16
      %v2537 = vrot.slane %v2535, 4
      %v2538 = vor.u32 %v2537, %v2533
      %v2539 = vrot.slane %v2538, 4
      %v2541 = vshll.u32 %v2433, 16
      %v2543 = vrot.slane %v2541, 5
      %v2544 = vsel %vm573, %v2539, %v2543
      %v2546 = vshrl.u32 %v2434, 16
      %v2548 = vrot.slane %v2546, 4
      %v2549 = vshll.u32 %v2434, 16
      %v2551 = vrot.slane %v2549, 5
      %v2552 = vor.u32 %v2548, %v2551
      %v2553 = vrot.slane %v2552, 4
      %v2555 = vshll.u32 %v2435, 16
      %v2557 = vrot.slane %v2555, 5
      %v2558 = vsel %vm573, %v2553, %v2557
      %v2559 = vshrl.u32 %v2435, 16
      %v2561 = vrot.slane %v2559, 4
      %v2562 = vor.u32 %v2561, %v2557
      %v2563 = vrot.slane %v2562, 4
      %v2565 = vshll.u32 %v2436, 16
      %v2567 = vrot.slane %v2565, 5
      %v2568 = vsel %vm573, %v2563, %v2567
      %v2570 = vshrl.u32 %v2437, 16
      %v2572 = vrot.slane %v2570, 4
      %v2573 = vshll.u32 %v2437, 16
      %v2575 = vrot.slane %v2573, 5
      %v2576 = vor.u32 %v2572, %v2575
      %v2577 = vrot.slane %v2576, 4
      %v2579 = vshll.u32 %v2438, 16
      %v2581 = vrot.slane %v2579, 5
      %v2582 = vsel %vm573, %v2577, %v2581
      %v2583 = vshrl.u32 %v2438, 16
      %v2585 = vrot.slane %v2583, 4
      %v2586 = vor.u32 %v2585, %v2581
      %v2587 = vrot.slane %v2586, 4
      %v2589 = vshll.u32 %v2439, 16
      %v2591 = vrot.slane %v2589, 5
      %v2592 = vsel %vm573, %v2587, %v2591
      %v2594 = vshrl.u32 %v2440, 16
      %v2596 = vrot.slane %v2594, 4
      %v2597 = vshll.u32 %v2440, 16
      %v2599 = vrot.slane %v2597, 5
      %v2600 = vor.u32 %v2596, %v2599
      %v2601 = vrot.slane %v2600, 4
      %v2603 = vshll.u32 %v2441, 16
      %v2605 = vrot.slane %v2603, 5
      %v2606 = vsel %vm573, %v2601, %v2605
      %v2607 = vshrl.u32 %v2441, 16
      %v2609 = vrot.slane %v2607, 4
      %v2610 = vor.u32 %v2609, %v2605
      %v2611 = vrot.slane %v2610, 4
      %v2613 = vshll.u32 %v2442, 16
      %v2615 = vrot.slane %v2613, 5
      %v2616 = vsel %vm573, %v2611, %v2615
      %v2618 = vshrl.u32 %v2443, 16
      %v2620 = vrot.slane %v2618, 4
      %v2621 = vshll.u32 %v2443, 16
      %v2623 = vrot.slane %v2621, 5
      %v2624 = vor.u32 %v2620, %v2623
      %v2625 = vrot.slane %v2624, 4
      %v2627 = vshll.u32 %v2444, 16
      %v2629 = vrot.slane %v2627, 5
      %v2630 = vsel %vm573, %v2625, %v2629
      %v2631 = vshrl.u32 %v2444, 16
      %v2633 = vrot.slane %v2631, 4
      %v2634 = vor.u32 %v2633, %v2629
      %v2635 = vrot.slane %v2634, 4
      %v2637 = vshll.u32 %v2445, 16
      %v2639 = vrot.slane %v2637, 5
      %v2640 = vsel %vm573, %v2635, %v2639
      %v2642 = vshrl.u32 %v2446, 16
      %v2644 = vrot.slane %v2642, 4
      %v2645 = vshll.u32 %v2446, 16
      %v2647 = vrot.slane %v2645, 5
      %v2648 = vor.u32 %v2644, %v2647
      %v2649 = vrot.slane %v2648, 4
      %v2651 = vshll.u32 %v2447, 16
      %v2653 = vrot.slane %v2651, 5
      %v2654 = vsel %vm573, %v2649, %v2653
      %v2655 = vshrl.u32 %v2447, 16
      %v2657 = vrot.slane %v2655, 4
      %v2658 = vor.u32 %v2657, %v2653
      %v2659 = vrot.slane %v2658, 4
      %v2661 = vshll.u32 %v2448, 16
      %v2663 = vrot.slane %v2661, 5
      %v2664 = vsel %vm573, %v2659, %v2663
      %v2666 = vshrl.u32 %v2449, 16
      %v2668 = vrot.slane %v2666, 4
      %v2669 = vshll.u32 %v2449, 16
      %v2671 = vrot.slane %v2669, 5
      %v2672 = vor.u32 %v2668, %v2671
      %v2673 = vrot.slane %v2672, 4
      %v2675 = vshll.u32 %v2450, 16
      %v2677 = vrot.slane %v2675, 5
      %v2678 = vsel %vm573, %v2673, %v2677
      %v2679 = vshrl.u32 %v2450, 16
      %v2681 = vrot.slane %v2679, 4
      %v2682 = vor.u32 %v2681, %v2677
      %v2683 = vrot.slane %v2682, 4
      %v2685 = vshll.u32 %v2451, 16
      %v2687 = vrot.slane %v2685, 5
      %v2688 = vsel %vm573, %v2683, %v2687
      %v2690 = vshrl.u32 %v2452, 16
      %v2692 = vrot.slane %v2690, 4
      %v2693 = vshll.u32 %v2452, 16
      %v2695 = vrot.slane %v2693, 5
      %v2696 = vor.u32 %v2692, %v2695
      %v2697 = vrot.slane %v2696, 4
      %v2699 = vshll.u32 %v2453, 16
      %v2701 = vrot.slane %v2699, 5
      %v2702 = vsel %vm573, %v2697, %v2701
      %v2703 = vshrl.u32 %v2453, 16
      %v2705 = vrot.slane %v2703, 4
      %v2706 = vor.u32 %v2705, %v2701
      %v2707 = vrot.slane %v2706, 4
      %v2709 = vshll.u32 %v2454, 16
      %v2711 = vrot.slane %v2709, 5
      %v2712 = vsel %vm573, %v2707, %v2711
      %v2714 = vshrl.u32 %v2455, 16
      %v2716 = vrot.slane %v2714, 4
      %v2717 = vshll.u32 %v2455, 16
      %v2719 = vrot.slane %v2717, 5
      %v2720 = vor.u32 %v2716, %v2719
      %v2721 = vrot.slane %v2720, 4
      %v2723 = vshll.u32 %v2456, 16
      %v2725 = vrot.slane %v2723, 5
      %v2726 = vsel %vm573, %v2721, %v2725
      %v2727 = vshrl.u32 %v2456, 16
      %v2729 = vrot.slane %v2727, 4
      %v2730 = vor.u32 %v2729, %v2725
      %v2731 = vrot.slane %v2730, 4
      %v2733 = vshll.u32 %v2457, 16
      %v2735 = vrot.slane %v2733, 5
      %v2736 = vsel %vm573, %v2731, %v2735
      %v2738 = vshrl.u32 %v2458, 16
      %v2740 = vrot.slane %v2738, 4
      %v2741 = vshll.u32 %v2458, 16
      %v2743 = vrot.slane %v2741, 5
      %v2744 = vor.u32 %v2740, %v2743
      %v2745 = vrot.slane %v2744, 4
      %v2747 = vshll.u32 %v2459, 16
      %v2749 = vrot.slane %v2747, 5
      %v2750 = vsel %vm573, %v2745, %v2749
      %v2751 = vshrl.u32 %v2459, 16
      %v2753 = vrot.slane %v2751, 4
      %v2754 = vor.u32 %v2753, %v2749
      %v2755 = vrot.slane %v2754, 4
      %v2757 = vshll.u32 %v2460, 16
      %v2759 = vrot.slane %v2757, 5
      %v2760 = vsel %vm573, %v2755, %v2759
      %v2762 = vshrl.u32 %v2461, 16
      %v2764 = vrot.slane %v2762, 4
      %v2765 = vshll.u32 %v2461, 16
      %v2767 = vrot.slane %v2765, 5
      %v2768 = vor.u32 %v2764, %v2767
      %v2769 = vrot.slane %v2768, 4
      %v2771 = vshll.u32 %v2462, 16
      %v2773 = vrot.slane %v2771, 5
      %v2774 = vsel %vm573, %v2769, %v2773
      %v2775 = vshrl.u32 %v2462, 16
      %v2777 = vrot.slane %v2775, 4
      %v2778 = vor.u32 %v2777, %v2773
      %v2779 = vrot.slane %v2778, 4
      %v2781 = vshll.u32 %v2463, 16
      %v2783 = vrot.slane %v2781, 5
      %v2784 = vsel %vm573, %v2779, %v2783
      %v2786 = vshrl.u32 %v2464, 16
      %v2788 = vrot.slane %v2786, 4
      %v2789 = vshll.u32 %v2464, 16
      %v2791 = vrot.slane %v2789, 5
      %v2792 = vor.u32 %v2788, %v2791
      %v2793 = vrot.slane %v2792, 4
      %v2795 = vshll.u32 %v2465, 16
      %v2797 = vrot.slane %v2795, 5
      %v2798 = vsel %vm573, %v2793, %v2797
      %v2799 = vshrl.u32 %v2465, 16
      %v2801 = vrot.slane %v2799, 4
      %v2802 = vor.u32 %v2801, %v2797
      %v2803 = vrot.slane %v2802, 4
      %v2805 = vshll.u32 %v2466, 16
      %v2807 = vrot.slane %v2805, 5
      %v2808 = vsel %vm573, %v2803, %v2807
      %v2810 = vshrl.u32 %v2467, 16
      %v2812 = vrot.slane %v2810, 4
      %v2813 = vshll.u32 %v2467, 16
      %v2815 = vrot.slane %v2813, 5
      %v2816 = vor.u32 %v2812, %v2815
      %v2817 = vrot.slane %v2816, 4
      %v2819 = vshll.u32 %v2468, 16
      %v2821 = vrot.slane %v2819, 5
      %v2822 = vsel %vm573, %v2817, %v2821
      %v2823 = vshrl.u32 %v2468, 16
      %v2825 = vrot.slane %v2823, 4
      %v2826 = vor.u32 %v2825, %v2821
      %v2827 = vrot.slane %v2826, 4
      %v2829 = vshll.u32 %v2469, 16
      %v2831 = vrot.slane %v2829, 5
      %v2832 = vsel %vm573, %v2827, %v2831
      %v2834 = vshrl.u32 %v2470, 16
      %v2836 = vrot.slane %v2834, 4
      %v2837 = vshll.u32 %v2470, 16
      %v2839 = vrot.slane %v2837, 5
      %v2840 = vor.u32 %v2836, %v2839
      %v2841 = vrot.slane %v2840, 4
      %v2843 = vshll.u32 %v2471, 16
      %v2845 = vrot.slane %v2843, 5
      %v2846 = vsel %vm573, %v2841, %v2845
      %v2847 = vshrl.u32 %v2471, 16
      %v2849 = vrot.slane %v2847, 4
      %v2850 = vor.u32 %v2849, %v2845
      %v2851 = vrot.slane %v2850, 4
      %v2853 = vshll.u32 %v2472, 16
      %v2855 = vrot.slane %v2853, 5
      %v2856 = vsel %vm573, %v2851, %v2855
      %v2857 = vunpack.c.l.b16 %v2486
      %v2858 = vunpack.c.l.b16 %v2496
      %v2859 = vunpack.c.l.b16 %v2510
      %v2860 = vunpack.c.l.b16 %v2520
      %v2861 = vunpack.c.l.b16 %v2534
      %v2862 = vunpack.c.l.b16 %v2544
      %v2863 = vunpack.c.l.b16 %v2558
      %v2864 = vunpack.c.l.b16 %v2568
      %v2865 = vunpack.c.l.b16 %v2582
      %v2866 = vunpack.c.l.b16 %v2592
      %v2867 = vunpack.c.l.b16 %v2606
      %v2868 = vunpack.c.l.b16 %v2616
      %v2869 = vunpack.c.l.b16 %v2630
      %v2870 = vunpack.c.l.b16 %v2640
      %v2871 = vunpack.c.l.b16 %v2654
      %v2872 = vunpack.c.l.b16 %v2664
      %v2873 = vunpack.c.l.b16 %v2678
      %v2874 = vunpack.c.l.b16 %v2688
      %v2875 = vunpack.c.l.b16 %v2702
      %v2876 = vunpack.c.l.b16 %v2712
      %v2877 = vunpack.c.l.b16 %v2726
      %v2878 = vunpack.c.l.b16 %v2736
      %v2879 = vunpack.c.l.b16 %v2750
      %v2880 = vunpack.c.l.b16 %v2760
      %v2881 = vunpack.c.l.b16 %v2774
      %v2882 = vunpack.c.l.b16 %v2784
      %v2883 = vunpack.c.l.b16 %v2798
      %v2884 = vunpack.c.l.b16 %v2808
      %v2885 = vunpack.c.l.b16 %v2822
      %v2886 = vunpack.c.l.b16 %v2832
      %v2887 = vunpack.c.l.b16 %v2846
      %v2888 = vunpack.c.l.b16 %v2856
      %v2889 = vpack.c.b16 %v2858, %v2857
      %v2890 = vpack.c.b16 %v2860, %v2859
      %v2891 = vpack.c.b16 %v2862, %v2861
      %v2892 = vpack.c.b16 %v2864, %v2863
      %v2893 = vpack.c.b16 %v2866, %v2865
      %v2894 = vpack.c.b16 %v2868, %v2867
      %v2895 = vpack.c.b16 %v2870, %v2869
      %v2896 = vpack.c.b16 %v2872, %v2871
      %v2897 = vpack.c.b16 %v2874, %v2873
      %v2898 = vpack.c.b16 %v2876, %v2875
      %v2899 = vpack.c.b16 %v2878, %v2877
      %v2900 = vpack.c.b16 %v2880, %v2879
      %v2901 = vpack.c.b16 %v2882, %v2881
      %v2902 = vpack.c.b16 %v2884, %v2883
      %v2903 = vpack.c.b16 %v2886, %v2885
      %v2904 = vpack.c.b16 %v2888, %v2887
      %2921 = vst [vmem:[#allocation2 + $0x38] sm:$0xff] %v2889
      %2922 = vst [vmem:[#allocation2 + $0x80] sm:$0xff] %v2890
      %2923 = vst [vmem:[#allocation2 + $0xc8] sm:$0xff] %v2891
      %2924 = vst [vmem:[#allocation2 + $0x110] sm:$0xff] %v2892
      %2925 = vst [vmem:[#allocation2 + $0x158] sm:$0xff] %v2893
      %2926 = vst [vmem:[#allocation2 + $0x1a0] sm:$0xff] %v2894
      %2927 = vst [vmem:[#allocation2 + $0x1e8] sm:$0xff] %v2895
      %2928 = vst [vmem:[#allocation2 + $0x230] sm:$0xff] %v2896
      %2929 = vst [vmem:[#allocation2 + $0x278] sm:$0xff] %v2897
      %2930 = vst [vmem:[#allocation2 + $0x2c0] sm:$0xff] %v2898
      %2931 = vst [vmem:[#allocation2 + $0x308] sm:$0xff] %v2899
      %2932 = vst [vmem:[#allocation2 + $0x350] sm:$0xff] %v2900
      %2933 = vst [vmem:[#allocation2 + $0x398] sm:$0xff] %v2901
      %2934 = vst [vmem:[#allocation2 + $0x3e0] sm:$0xff] %v2902
      %2935 = vst [vmem:[#allocation2 + $0x428] sm:$0xff] %v2903
      %2936 = vst [vmem:[#allocation2 + $0x470] sm:$0xff] %v2904
      %v2937 = vld [vmem:[%s2280] sm:$0xe]
      %v2938 = vld [vmem:[%s2280 + $0x4] sm:$0xf]
      %v2939 = vld [vmem:[%s2280 + $0x8] sm:$0x1]
      %v2940 = vld [vmem:[%s2280 + $0xc] sm:$0xe]
      %v2941 = vld [vmem:[%s2280 + $0x10] sm:$0xf]
      %v2942 = vld [vmem:[%s2280 + $0x14] sm:$0x1]
      %v2943 = vld [vmem:[%s2280 + $0x18] sm:$0xe]
      %v2944 = vld [vmem:[%s2280 + $0x1c] sm:$0xf]
      %v2945 = vld [vmem:[%s2280 + $0x20] sm:$0x1]
      %v2946 = vld [vmem:[%s2280 + $0x24] sm:$0xe]
      %v2947 = vld [vmem:[%s2280 + $0x28] sm:$0xf]
      %v2948 = vld [vmem:[%s2280 + $0x2c] sm:$0x1]
      %v2949 = vld [vmem:[%s2280 + $0x30] sm:$0xe]
      %v2950 = vld [vmem:[%s2280 + $0x34] sm:$0xf]
      %v2951 = vld [vmem:[%s2280 + $0x38] sm:$0x1]
      %v2952 = vld [vmem:[%s2280 + $0x3c] sm:$0xe]
      %v2953 = vld [vmem:[%s2280 + $0x40] sm:$0xf]
      %v2954 = vld [vmem:[%s2280 + $0x44] sm:$0x1]
      %v2955 = vld [vmem:[%s2280 + $0x48] sm:$0xe]
      %v2956 = vld [vmem:[%s2280 + $0x4c] sm:$0xf]
      %v2957 = vld [vmem:[%s2280 + $0x50] sm:$0x1]
      %v2958 = vld [vmem:[%s2280 + $0x54] sm:$0xe]
      %v2959 = vld [vmem:[%s2280 + $0x58] sm:$0xf]
      %v2960 = vld [vmem:[%s2280 + $0x5c] sm:$0x1]
      %v2961 = vld [vmem:[%s2280 + $0x60] sm:$0xe]
      %v2962 = vld [vmem:[%s2280 + $0x64] sm:$0xf]
      %v2963 = vld [vmem:[%s2280 + $0x68] sm:$0x1]
      %v2964 = vld [vmem:[%s2280 + $0x6c] sm:$0xe]
      %v2965 = vld [vmem:[%s2280 + $0x70] sm:$0xf]
      %v2966 = vld [vmem:[%s2280 + $0x74] sm:$0x1]
      %v2967 = vld [vmem:[%s2280 + $0x78] sm:$0xe]
      %v2968 = vld [vmem:[%s2280 + $0x7c] sm:$0xf]
      %v2969 = vld [vmem:[%s2280 + $0x80] sm:$0x1]
      %v2970 = vld [vmem:[%s2280 + $0x84] sm:$0xe]
      %v2971 = vld [vmem:[%s2280 + $0x88] sm:$0xf]
      %v2972 = vld [vmem:[%s2280 + $0x8c] sm:$0x1]
      %v2973 = vld [vmem:[%s2280 + $0x90] sm:$0xe]
      %v2974 = vld [vmem:[%s2280 + $0x94] sm:$0xf]
      %v2975 = vld [vmem:[%s2280 + $0x98] sm:$0x1]
      %v2976 = vld [vmem:[%s2280 + $0x9c] sm:$0xe]
      %v2977 = vld [vmem:[%s2280 + $0xa0] sm:$0xf]
      %v2978 = vld [vmem:[%s2280 + $0xa4] sm:$0x1]
      %v2979 = vld [vmem:[%s2280 + $0xa8] sm:$0xe]
      %v2980 = vld [vmem:[%s2280 + $0xac] sm:$0xf]
      %v2981 = vld [vmem:[%s2280 + $0xb0] sm:$0x1]
      %v2982 = vld [vmem:[%s2280 + $0xb4] sm:$0xe]
      %v2983 = vld [vmem:[%s2280 + $0xb8] sm:$0xf]
      %v2984 = vld [vmem:[%s2280 + $0xbc] sm:$0x1]
      %v3033 = vrot.slane %v2937, 5
      %v3034 = vrot.slane %v3033, 4
      %v3035 = vrot.slane %v2938, 5
      %v3036 = vsel %vm1136, %v3034, %v3035
      %v3037 = vrot.slane %v3035, 4
      %v3038 = vrot.slane %v2939, 5
      %v3039 = vsel %vm1136, %v3037, %v3038
      %v3040 = vrot.slane %v2940, 5
      %v3041 = vrot.slane %v3040, 4
      %v3042 = vrot.slane %v2941, 5
      %v3043 = vsel %vm1136, %v3041, %v3042
      %v3044 = vrot.slane %v3042, 4
      %v3045 = vrot.slane %v2942, 5
      %v3046 = vsel %vm1136, %v3044, %v3045
      %v3047 = vrot.slane %v2943, 5
      %v3048 = vrot.slane %v3047, 4
      %v3049 = vrot.slane %v2944, 5
      %v3050 = vsel %vm1136, %v3048, %v3049
      %v3051 = vrot.slane %v3049, 4
      %v3052 = vrot.slane %v2945, 5
      %v3053 = vsel %vm1136, %v3051, %v3052
      %v3054 = vrot.slane %v2946, 5
      %v3055 = vrot.slane %v3054, 4
      %v3056 = vrot.slane %v2947, 5
      %v3057 = vsel %vm1136, %v3055, %v3056
      %v3058 = vrot.slane %v3056, 4
      %v3059 = vrot.slane %v2948, 5
      %v3060 = vsel %vm1136, %v3058, %v3059
      %v3061 = vrot.slane %v2949, 5
      %v3062 = vrot.slane %v3061, 4
      %v3063 = vrot.slane %v2950, 5
      %v3064 = vsel %vm1136, %v3062, %v3063
      %v3065 = vrot.slane %v3063, 4
      %v3066 = vrot.slane %v2951, 5
      %v3067 = vsel %vm1136, %v3065, %v3066
      %v3068 = vrot.slane %v2952, 5
      %v3069 = vrot.slane %v3068, 4
      %v3070 = vrot.slane %v2953, 5
      %v3071 = vsel %vm1136, %v3069, %v3070
      %v3072 = vrot.slane %v3070, 4
      %v3073 = vrot.slane %v2954, 5
      %v3074 = vsel %vm1136, %v3072, %v3073
      %v3075 = vrot.slane %v2955, 5
      %v3076 = vrot.slane %v3075, 4
      %v3077 = vrot.slane %v2956, 5
      %v3078 = vsel %vm1136, %v3076, %v3077
      %v3079 = vrot.slane %v3077, 4
      %v3080 = vrot.slane %v2957, 5
      %v3081 = vsel %vm1136, %v3079, %v3080
      %v3082 = vrot.slane %v2958, 5
      %v3083 = vrot.slane %v3082, 4
      %v3084 = vrot.slane %v2959, 5
      %v3085 = vsel %vm1136, %v3083, %v3084
      %v3086 = vrot.slane %v3084, 4
      %v3087 = vrot.slane %v2960, 5
      %v3088 = vsel %vm1136, %v3086, %v3087
      %v3089 = vrot.slane %v2961, 5
      %v3090 = vrot.slane %v3089, 4
      %v3091 = vrot.slane %v2962, 5
      %v3092 = vsel %vm1136, %v3090, %v3091
      %v3093 = vrot.slane %v3091, 4
      %v3094 = vrot.slane %v2963, 5
      %v3095 = vsel %vm1136, %v3093, %v3094
      %v3096 = vrot.slane %v2964, 5
      %v3097 = vrot.slane %v3096, 4
      %v3098 = vrot.slane %v2965, 5
      %v3099 = vsel %vm1136, %v3097, %v3098
      %v3100 = vrot.slane %v3098, 4
      %v3101 = vrot.slane %v2966, 5
      %v3102 = vsel %vm1136, %v3100, %v3101
      %v3103 = vrot.slane %v2967, 5
      %v3104 = vrot.slane %v3103, 4
      %v3105 = vrot.slane %v2968, 5
      %v3106 = vsel %vm1136, %v3104, %v3105
      %v3107 = vrot.slane %v3105, 4
      %v3108 = vrot.slane %v2969, 5
      %v3109 = vsel %vm1136, %v3107, %v3108
      %v3110 = vrot.slane %v2970, 5
      %v3111 = vrot.slane %v3110, 4
      %v3112 = vrot.slane %v2971, 5
      %v3113 = vsel %vm1136, %v3111, %v3112
      %v3114 = vrot.slane %v3112, 4
      %v3115 = vrot.slane %v2972, 5
      %v3116 = vsel %vm1136, %v3114, %v3115
      %v3117 = vrot.slane %v2973, 5
      %v3118 = vrot.slane %v3117, 4
      %v3119 = vrot.slane %v2974, 5
      %v3120 = vsel %vm1136, %v3118, %v3119
      %v3121 = vrot.slane %v3119, 4
      %v3122 = vrot.slane %v2975, 5
      %v3123 = vsel %vm1136, %v3121, %v3122
      %v3124 = vrot.slane %v2976, 5
      %v3125 = vrot.slane %v3124, 4
      %v3126 = vrot.slane %v2977, 5
      %v3127 = vsel %vm1136, %v3125, %v3126
      %v3128 = vrot.slane %v3126, 4
      %v3129 = vrot.slane %v2978, 5
      %v3130 = vsel %vm1136, %v3128, %v3129
      %v3131 = vrot.slane %v2979, 5
      %v3132 = vrot.slane %v3131, 4
      %v3133 = vrot.slane %v2980, 5
      %v3134 = vsel %vm1136, %v3132, %v3133
      %v3135 = vrot.slane %v3133, 4
      %v3136 = vrot.slane %v2981, 5
      %v3137 = vsel %vm1136, %v3135, %v3136
      %v3138 = vrot.slane %v2982, 5
      %v3139 = vrot.slane %v3138, 4
      %v3140 = vrot.slane %v2983, 5
      %v3141 = vsel %vm1136, %v3139, %v3140
      %v3142 = vrot.slane %v3140, 4
      %v3143 = vrot.slane %v2984, 5
      %v3144 = vsel %vm1136, %v3142, %v3143
      %v3145 = vunpack.c.l.b16 %v3036
      %v3146 = vunpack.c.l.b16 %v3039
      %v3147 = vunpack.c.l.b16 %v3043
      %v3148 = vunpack.c.l.b16 %v3046
      %v3149 = vunpack.c.l.b16 %v3050
      %v3150 = vunpack.c.l.b16 %v3053
      %v3151 = vunpack.c.l.b16 %v3057
      %v3152 = vunpack.c.l.b16 %v3060
      %v3153 = vunpack.c.l.b16 %v3064
      %v3154 = vunpack.c.l.b16 %v3067
      %v3155 = vunpack.c.l.b16 %v3071
      %v3156 = vunpack.c.l.b16 %v3074
      %v3157 = vunpack.c.l.b16 %v3078
      %v3158 = vunpack.c.l.b16 %v3081
      %v3159 = vunpack.c.l.b16 %v3085
      %v3160 = vunpack.c.l.b16 %v3088
      %v3161 = vunpack.c.l.b16 %v3092
      %v3162 = vunpack.c.l.b16 %v3095
      %v3163 = vunpack.c.l.b16 %v3099
      %v3164 = vunpack.c.l.b16 %v3102
      %v3165 = vunpack.c.l.b16 %v3106
      %v3166 = vunpack.c.l.b16 %v3109
      %v3167 = vunpack.c.l.b16 %v3113
      %v3168 = vunpack.c.l.b16 %v3116
      %v3169 = vunpack.c.l.b16 %v3120
      %v3170 = vunpack.c.l.b16 %v3123
      %v3171 = vunpack.c.l.b16 %v3127
      %v3172 = vunpack.c.l.b16 %v3130
      %v3173 = vunpack.c.l.b16 %v3134
      %v3174 = vunpack.c.l.b16 %v3137
      %v3175 = vunpack.c.l.b16 %v3141
      %v3176 = vunpack.c.l.b16 %v3144
      %v3177 = vpack.c.b16 %v3146, %v3145
      %v3178 = vpack.c.b16 %v3148, %v3147
      %v3179 = vpack.c.b16 %v3150, %v3149
      %v3180 = vpack.c.b16 %v3152, %v3151
      %v3181 = vpack.c.b16 %v3154, %v3153
      %v3182 = vpack.c.b16 %v3156, %v3155
      %v3183 = vpack.c.b16 %v3158, %v3157
      %v3184 = vpack.c.b16 %v3160, %v3159
      %v3185 = vpack.c.b16 %v3162, %v3161
      %v3186 = vpack.c.b16 %v3164, %v3163
      %v3187 = vpack.c.b16 %v3166, %v3165
      %v3188 = vpack.c.b16 %v3168, %v3167
      %v3189 = vpack.c.b16 %v3170, %v3169
      %v3190 = vpack.c.b16 %v3172, %v3171
      %v3191 = vpack.c.b16 %v3174, %v3173
      %v3192 = vpack.c.b16 %v3176, %v3175
      %3209 = vst [vmem:[#allocation2 + $0x40] sm:$0xff] %v3177
      %3210 = vst [vmem:[#allocation2 + $0x88] sm:$0xff] %v3178
      %3211 = vst [vmem:[#allocation2 + $0xd0] sm:$0xff] %v3179
      %3212 = vst [vmem:[#allocation2 + $0x118] sm:$0xff] %v3180
      %3213 = vst [vmem:[#allocation2 + $0x160] sm:$0xff] %v3181
      %3214 = vst [vmem:[#allocation2 + $0x1a8] sm:$0xff] %v3182
      %3215 = vst [vmem:[#allocation2 + $0x1f0] sm:$0xff] %v3183
      %3216 = vst [vmem:[#allocation2 + $0x238] sm:$0xff] %v3184
      %3217 = vst [vmem:[#allocation2 + $0x280] sm:$0xff] %v3185
      %3218 = vst [vmem:[#allocation2 + $0x2c8] sm:$0xff] %v3186
      %3219 = vst [vmem:[#allocation2 + $0x310] sm:$0xff] %v3187
      %3220 = vst [vmem:[#allocation2 + $0x358] sm:$0xff] %v3188
      %3221 = vst [vmem:[#allocation2 + $0x3a0] sm:$0xff] %v3189
      %3222 = vst [vmem:[#allocation2 + $0x3e8] sm:$0xff] %v3190
      %3223 = vst [vmem:[#allocation2 + $0x430] sm:$0xff] %v3191
      %3224 = vst [vmem:[#allocation2 + $0x478] sm:$0xff] %v3192
      %v3225 = vld [vmem:[#allocation2] sm:$0xff]
      %v3226 = vld [vmem:[#allocation2 + $0x8] sm:$0xff]
      %v3227 = vld [vmem:[#allocation2 + $0x10] sm:$0xff]
      %v3228 = vld [vmem:[#allocation2 + $0x18] sm:$0xff]
      %v3229 = vld [vmem:[#allocation2 + $0x20] sm:$0xff]
      %v3230 = vld [vmem:[#allocation2 + $0x28] sm:$0xff]
      %v3231 = vld [vmem:[#allocation2 + $0x30] sm:$0xff]
      %v3232 = vld [vmem:[#allocation2 + $0x38] sm:$0xff]
      %v3233 = vld [vmem:[#allocation2 + $0x40] sm:$0xff]
      %v3234 = vld [vmem:[#allocation2 + $0x48] sm:$0xff]
      %v3235 = vld [vmem:[#allocation2 + $0x50] sm:$0xff]
      %v3236 = vld [vmem:[#allocation2 + $0x58] sm:$0xff]
      %v3237 = vld [vmem:[#allocation2 + $0x60] sm:$0xff]
      %v3238 = vld [vmem:[#allocation2 + $0x68] sm:$0xff]
      %v3239 = vld [vmem:[#allocation2 + $0x70] sm:$0xff]
      %v3240 = vld [vmem:[#allocation2 + $0x78] sm:$0xff]
      %v3241 = vld [vmem:[#allocation2 + $0x80] sm:$0xff]
      %v3242 = vld [vmem:[#allocation2 + $0x88] sm:$0xff]
      %v3243 = vld [vmem:[#allocation2 + $0x90] sm:$0xff]
      %v3244 = vld [vmem:[#allocation2 + $0x98] sm:$0xff]
      %v3245 = vld [vmem:[#allocation2 + $0xa0] sm:$0xff]
      %v3246 = vld [vmem:[#allocation2 + $0xa8] sm:$0xff]
      %v3247 = vld [vmem:[#allocation2 + $0xb0] sm:$0xff]
      %v3248 = vld [vmem:[#allocation2 + $0xb8] sm:$0xff]
      %v3249 = vld [vmem:[#allocation2 + $0xc0] sm:$0xff]
      %v3250 = vld [vmem:[#allocation2 + $0xc8] sm:$0xff]
      %v3251 = vld [vmem:[#allocation2 + $0xd0] sm:$0xff]
      %v3252 = vld [vmem:[#allocation2 + $0xd8] sm:$0xff]
      %v3253 = vld [vmem:[#allocation2 + $0xe0] sm:$0xff]
      %v3254 = vld [vmem:[#allocation2 + $0xe8] sm:$0xff]
      %v3255 = vld [vmem:[#allocation2 + $0xf0] sm:$0xff]
      %v3256 = vld [vmem:[#allocation2 + $0xf8] sm:$0xff]
      %v3257 = vld [vmem:[#allocation2 + $0x100] sm:$0xff]
      %v3258 = vld [vmem:[#allocation2 + $0x108] sm:$0xff]
      %v3259 = vld [vmem:[#allocation2 + $0x110] sm:$0xff]
      %v3260 = vld [vmem:[#allocation2 + $0x118] sm:$0xff]
      %v3261 = vld [vmem:[#allocation2 + $0x120] sm:$0xff]
      %v3262 = vld [vmem:[#allocation2 + $0x128] sm:$0xff]
      %v3263 = vld [vmem:[#allocation2 + $0x130] sm:$0xff]
      %v3264 = vld [vmem:[#allocation2 + $0x138] sm:$0xff]
      %v3265 = vld [vmem:[#allocation2 + $0x140] sm:$0xff]
      %v3266 = vld [vmem:[#allocation2 + $0x148] sm:$0xff]
      %v3267 = vld [vmem:[#allocation2 + $0x150] sm:$0xff]
      %v3268 = vld [vmem:[#allocation2 + $0x158] sm:$0xff]
      %v3269 = vld [vmem:[#allocation2 + $0x160] sm:$0xff]
      %v3270 = vld [vmem:[#allocation2 + $0x168] sm:$0xff]
      %v3271 = vld [vmem:[#allocation2 + $0x170] sm:$0xff]
      %v3272 = vld [vmem:[#allocation2 + $0x178] sm:$0xff]
      %v3273 = vld [vmem:[#allocation2 + $0x180] sm:$0xff]
      %v3274 = vld [vmem:[#allocation2 + $0x188] sm:$0xff]
      %v3275 = vld [vmem:[#allocation2 + $0x190] sm:$0xff]
      %v3276 = vld [vmem:[#allocation2 + $0x198] sm:$0xff]
      %v3277 = vld [vmem:[#allocation2 + $0x1a0] sm:$0xff]
      %v3278 = vld [vmem:[#allocation2 + $0x1a8] sm:$0xff]
      %v3279 = vld [vmem:[#allocation2 + $0x1b0] sm:$0xff]
      %v3280 = vld [vmem:[#allocation2 + $0x1b8] sm:$0xff]
      %v3281 = vld [vmem:[#allocation2 + $0x1c0] sm:$0xff]
      %v3282 = vld [vmem:[#allocation2 + $0x1c8] sm:$0xff]
      %v3283 = vld [vmem:[#allocation2 + $0x1d0] sm:$0xff]
      %v3284 = vld [vmem:[#allocation2 + $0x1d8] sm:$0xff]
      %v3285 = vld [vmem:[#allocation2 + $0x1e0] sm:$0xff]
      %v3286 = vld [vmem:[#allocation2 + $0x1e8] sm:$0xff]
      %v3287 = vld [vmem:[#allocation2 + $0x1f0] sm:$0xff]
      %v3288 = vld [vmem:[#allocation2 + $0x1f8] sm:$0xff]
      %v3289 = vld [vmem:[#allocation2 + $0x200] sm:$0xff]
      %v3290 = vld [vmem:[#allocation2 + $0x208] sm:$0xff]
      %v3291 = vld [vmem:[#allocation2 + $0x210] sm:$0xff]
      %v3292 = vld [vmem:[#allocation2 + $0x218] sm:$0xff]
      %v3293 = vld [vmem:[#allocation2 + $0x220] sm:$0xff]
      %v3294 = vld [vmem:[#allocation2 + $0x228] sm:$0xff]
      %v3295 = vld [vmem:[#allocation2 + $0x230] sm:$0xff]
      %v3296 = vld [vmem:[#allocation2 + $0x238] sm:$0xff]
      %v3297 = vld [vmem:[#allocation2 + $0x240] sm:$0xff]
      %v3298 = vld [vmem:[#allocation2 + $0x248] sm:$0xff]
      %v3299 = vld [vmem:[#allocation2 + $0x250] sm:$0xff]
      %v3300 = vld [vmem:[#allocation2 + $0x258] sm:$0xff]
      %v3301 = vld [vmem:[#allocation2 + $0x260] sm:$0xff]
      %v3302 = vld [vmem:[#allocation2 + $0x268] sm:$0xff]
      %v3303 = vld [vmem:[#allocation2 + $0x270] sm:$0xff]
      %v3304 = vld [vmem:[#allocation2 + $0x278] sm:$0xff]
      %v3305 = vld [vmem:[#allocation2 + $0x280] sm:$0xff]
      %v3306 = vld [vmem:[#allocation2 + $0x288] sm:$0xff]
      %v3307 = vld [vmem:[#allocation2 + $0x290] sm:$0xff]
      %v3308 = vld [vmem:[#allocation2 + $0x298] sm:$0xff]
      %v3309 = vld [vmem:[#allocation2 + $0x2a0] sm:$0xff]
      %v3310 = vld [vmem:[#allocation2 + $0x2a8] sm:$0xff]
      %v3311 = vld [vmem:[#allocation2 + $0x2b0] sm:$0xff]
      %v3312 = vld [vmem:[#allocation2 + $0x2b8] sm:$0xff]
      %v3313 = vld [vmem:[#allocation2 + $0x2c0] sm:$0xff]
      %v3314 = vld [vmem:[#allocation2 + $0x2c8] sm:$0xff]
      %v3315 = vld [vmem:[#allocation2 + $0x2d0] sm:$0xff]
      %v3316 = vld [vmem:[#allocation2 + $0x2d8] sm:$0xff]
      %v3317 = vld [vmem:[#allocation2 + $0x2e0] sm:$0xff]
      %v3318 = vld [vmem:[#allocation2 + $0x2e8] sm:$0xff]
      %v3319 = vld [vmem:[#allocation2 + $0x2f0] sm:$0xff]
      %v3320 = vld [vmem:[#allocation2 + $0x2f8] sm:$0xff]
      %v3321 = vld [vmem:[#allocation2 + $0x300] sm:$0xff]
      %v3322 = vld [vmem:[#allocation2 + $0x308] sm:$0xff]
      %v3323 = vld [vmem:[#allocation2 + $0x310] sm:$0xff]
      %v3324 = vld [vmem:[#allocation2 + $0x318] sm:$0xff]
      %v3325 = vld [vmem:[#allocation2 + $0x320] sm:$0xff]
      %v3326 = vld [vmem:[#allocation2 + $0x328] sm:$0xff]
      %v3327 = vld [vmem:[#allocation2 + $0x330] sm:$0xff]
      %v3328 = vld [vmem:[#allocation2 + $0x338] sm:$0xff]
      %v3329 = vld [vmem:[#allocation2 + $0x340] sm:$0xff]
      %v3330 = vld [vmem:[#allocation2 + $0x348] sm:$0xff]
      %v3331 = vld [vmem:[#allocation2 + $0x350] sm:$0xff]
      %v3332 = vld [vmem:[#allocation2 + $0x358] sm:$0xff]
      %v3333 = vld [vmem:[#allocation2 + $0x360] sm:$0xff]
      %v3334 = vld [vmem:[#allocation2 + $0x368] sm:$0xff]
      %v3335 = vld [vmem:[#allocation2 + $0x370] sm:$0xff]
      %v3336 = vld [vmem:[#allocation2 + $0x378] sm:$0xff]
      %v3337 = vld [vmem:[#allocation2 + $0x380] sm:$0xff]
      %v3338 = vld [vmem:[#allocation2 + $0x388] sm:$0xff]
      %v3339 = vld [vmem:[#allocation2 + $0x390] sm:$0xff]
      %v3340 = vld [vmem:[#allocation2 + $0x398] sm:$0xff]
      %v3341 = vld [vmem:[#allocation2 + $0x3a0] sm:$0xff]
      %v3342 = vld [vmem:[#allocation2 + $0x3a8] sm:$0xff]
      %v3343 = vld [vmem:[#allocation2 + $0x3b0] sm:$0xff]
      %v3344 = vld [vmem:[#allocation2 + $0x3b8] sm:$0xff]
      %v3345 = vld [vmem:[#allocation2 + $0x3c0] sm:$0xff]
      %v3346 = vld [vmem:[#allocation2 + $0x3c8] sm:$0xff]
      %v3347 = vld [vmem:[#allocation2 + $0x3d0] sm:$0xff]
      %v3348 = vld [vmem:[#allocation2 + $0x3d8] sm:$0xff]
      %v3349 = vld [vmem:[#allocation2 + $0x3e0] sm:$0xff]
      %v3350 = vld [vmem:[#allocation2 + $0x3e8] sm:$0xff]
      %v3351 = vld [vmem:[#allocation2 + $0x3f0] sm:$0xff]
      %v3352 = vld [vmem:[#allocation2 + $0x3f8] sm:$0xff]
      %v3353 = vld [vmem:[#allocation2 + $0x400] sm:$0xff]
      %v3354 = vld [vmem:[#allocation2 + $0x408] sm:$0xff]
      %v3355 = vld [vmem:[#allocation2 + $0x410] sm:$0xff]
      %v3356 = vld [vmem:[#allocation2 + $0x418] sm:$0xff]
      %v3357 = vld [vmem:[#allocation2 + $0x420] sm:$0xff]
      %v3358 = vld [vmem:[#allocation2 + $0x428] sm:$0xff]
      %v3359 = vld [vmem:[#allocation2 + $0x430] sm:$0xff]
      %v3360 = vld [vmem:[#allocation2 + $0x438] sm:$0xff]
      %v3361 = vld [vmem:[#allocation2 + $0x440] sm:$0xff]
      %v3362 = vld [vmem:[#allocation2 + $0x448] sm:$0xff]
      %v3363 = vld [vmem:[#allocation2 + $0x450] sm:$0xff]
      %v3364 = vld [vmem:[#allocation2 + $0x458] sm:$0xff]
      %v3365 = vld [vmem:[#allocation2 + $0x460] sm:$0xff]
      %v3366 = vld [vmem:[#allocation2 + $0x468] sm:$0xff]
      %v3367 = vld [vmem:[#allocation2 + $0x470] sm:$0xff]
      %v3368 = vld [vmem:[#allocation2 + $0x478] sm:$0xff]
      %v3369 = vld [vmem:[%s344] sm:$0xf]
      %v3370 = vld [vmem:[%s344 + $0x4] sm:$0xf]
      %v3371 = vld [vmem:[%s344 + $0x8] sm:$0xf]
      %v3372 = vld [vmem:[%s344 + $0xc] sm:$0xf]
      %v3373 = vld [vmem:[%s344 + $0x10] sm:$0xf]
      %v3374 = vld [vmem:[%s344 + $0x14] sm:$0xf]
      %v3375 = vld [vmem:[%s344 + $0x18] sm:$0xf]
      %v3376 = vld [vmem:[%s344 + $0x1c] sm:$0xf]
      %v3377 = vld [vmem:[%s344 + $0x20] sm:$0xf]
      %v3378 = vld [vmem:[%s344 + $0x24] sm:$0xf]
      %v3379 = vld [vmem:[%s344 + $0x28] sm:$0xf]
      %v3380 = vld [vmem:[%s344 + $0x2c] sm:$0xf]
      %v3381 = vld [vmem:[%s344 + $0x30] sm:$0xf]
      %v3382 = vld [vmem:[%s344 + $0x34] sm:$0xf]
      %v3383 = vld [vmem:[%s344 + $0x38] sm:$0xf]
      %v3384 = vld [vmem:[%s344 + $0x3c] sm:$0xf]
      %v3385 = vld [vmem:[%s344 + $0x40] sm:$0xf]
      %v3386 = vld [vmem:[%s344 + $0x44] sm:$0xf]
      %v3387 = vld [vmem:[%s344 + $0x48] sm:$0xf]
      %v3388 = vld [vmem:[%s344 + $0x4c] sm:$0xf]
      %v3389 = vld [vmem:[%s344 + $0x50] sm:$0xf]
      %v3390 = vld [vmem:[%s344 + $0x54] sm:$0xf]
      %v3391 = vld [vmem:[%s344 + $0x58] sm:$0xf]
      %v3392 = vld [vmem:[%s344 + $0x5c] sm:$0xf]
      %v3393 = vld [vmem:[%s344 + $0x60] sm:$0xf]
      %v3394 = vld [vmem:[%s344 + $0x64] sm:$0xf]
      %v3395 = vld [vmem:[%s344 + $0x68] sm:$0xf]
      %v3396 = vld [vmem:[%s344 + $0x6c] sm:$0xf]
      %v3397 = vld [vmem:[%s344 + $0x70] sm:$0xf]
      %v3398 = vld [vmem:[%s344 + $0x74] sm:$0xf]
      %v3399 = vld [vmem:[%s344 + $0x78] sm:$0xf]
      %v3400 = vld [vmem:[%s344 + $0x7c] sm:$0xf]
      %v3401 = vld [vmem:[%s344 + $0x80] sm:$0xf]
      %v3402 = vld [vmem:[%s344 + $0x84] sm:$0xf]
      %v3403 = vld [vmem:[%s344 + $0x88] sm:$0xf]
      %v3404 = vld [vmem:[%s344 + $0x8c] sm:$0xf]
      %v3405 = vld [vmem:[%s344 + $0x90] sm:$0xf]
      %v3406 = vld [vmem:[%s344 + $0x94] sm:$0xf]
      %v3407 = vld [vmem:[%s344 + $0x98] sm:$0xf]
      %v3408 = vld [vmem:[%s344 + $0x9c] sm:$0xf]
      %v3409 = vld [vmem:[%s344 + $0xa0] sm:$0xf]
      %v3410 = vld [vmem:[%s344 + $0xa4] sm:$0xf]
      %v3411 = vld [vmem:[%s344 + $0xa8] sm:$0xf]
      %v3412 = vld [vmem:[%s344 + $0xac] sm:$0xf]
      %v3413 = vld [vmem:[%s344 + $0xb0] sm:$0xf]
      %v3414 = vld [vmem:[%s344 + $0xb4] sm:$0xf]
      %v3415 = vld [vmem:[%s344 + $0xb8] sm:$0xf]
      %v3416 = vld [vmem:[%s344 + $0xbc] sm:$0xf]
      %v3417 = vld [vmem:[%s344 + $0xc0] sm:$0xf]
      %v3418 = vld [vmem:[%s344 + $0xc4] sm:$0xf]
      %v3419 = vld [vmem:[%s344 + $0xc8] sm:$0xf]
      %v3420 = vld [vmem:[%s344 + $0xcc] sm:$0xf]
      %v3421 = vld [vmem:[%s344 + $0xd0] sm:$0xf]
      %v3422 = vld [vmem:[%s344 + $0xd4] sm:$0xf]
      %v3423 = vld [vmem:[%s344 + $0xd8] sm:$0xf]
      %v3424 = vld [vmem:[%s344 + $0xdc] sm:$0xf]
      %v3425 = vld [vmem:[%s344 + $0xe0] sm:$0xf]
      %v3426 = vld [vmem:[%s344 + $0xe4] sm:$0xf]
      %v3427 = vld [vmem:[%s344 + $0xe8] sm:$0xf]
      %v3428 = vld [vmem:[%s344 + $0xec] sm:$0xf]
      %v3429 = vld [vmem:[%s344 + $0xf0] sm:$0xf]
      %v3430 = vld [vmem:[%s344 + $0xf4] sm:$0xf]
      %v3431 = vld [vmem:[%s344 + $0xf8] sm:$0xf]
      %v3432 = vld [vmem:[%s344 + $0xfc] sm:$0xf]
      %v3433 = vld [vmem:[%s344 + $0x100] sm:$0xf]
      %v3434 = vld [vmem:[%s344 + $0x104] sm:$0xf]
      %v3435 = vld [vmem:[%s344 + $0x108] sm:$0xf]
      %v3436 = vld [vmem:[%s344 + $0x10c] sm:$0xf]
      %v3437 = vld [vmem:[%s344 + $0x110] sm:$0xf]
      %v3438 = vld [vmem:[%s344 + $0x114] sm:$0xf]
      %v3439 = vld [vmem:[%s344 + $0x118] sm:$0xf]
      %v3440 = vld [vmem:[%s344 + $0x11c] sm:$0xf]
      %v3441 = vld [vmem:[%s344 + $0x120] sm:$0xf]
      %v3442 = vld [vmem:[%s344 + $0x124] sm:$0xf]
      %v3443 = vld [vmem:[%s344 + $0x128] sm:$0xf]
      %v3444 = vld [vmem:[%s344 + $0x12c] sm:$0xf]
      %v3445 = vld [vmem:[%s344 + $0x130] sm:$0xf]
      %v3446 = vld [vmem:[%s344 + $0x134] sm:$0xf]
      %v3447 = vld [vmem:[%s344 + $0x138] sm:$0xf]
      %v3448 = vld [vmem:[%s344 + $0x13c] sm:$0xf]
      %v3449 = vld [vmem:[%s344 + $0x140] sm:$0xf]
      %v3450 = vld [vmem:[%s344 + $0x144] sm:$0xf]
      %v3451 = vld [vmem:[%s344 + $0x148] sm:$0xf]
      %v3452 = vld [vmem:[%s344 + $0x14c] sm:$0xf]
      %v3453 = vld [vmem:[%s344 + $0x150] sm:$0xf]
      %v3454 = vld [vmem:[%s344 + $0x154] sm:$0xf]
      %v3455 = vld [vmem:[%s344 + $0x158] sm:$0xf]
      %v3456 = vld [vmem:[%s344 + $0x15c] sm:$0xf]
      %v3457 = vld [vmem:[%s344 + $0x160] sm:$0xf]
      %v3458 = vld [vmem:[%s344 + $0x164] sm:$0xf]
      %v3459 = vld [vmem:[%s344 + $0x168] sm:$0xf]
      %v3460 = vld [vmem:[%s344 + $0x16c] sm:$0xf]
      %v3461 = vld [vmem:[%s344 + $0x170] sm:$0xf]
      %v3462 = vld [vmem:[%s344 + $0x174] sm:$0xf]
      %v3463 = vld [vmem:[%s344 + $0x178] sm:$0xf]
      %v3464 = vld [vmem:[%s344 + $0x17c] sm:$0xf]
      %v3465 = vld [vmem:[%s344 + $0x180] sm:$0xf]
      %v3466 = vld [vmem:[%s344 + $0x184] sm:$0xf]
      %v3467 = vld [vmem:[%s344 + $0x188] sm:$0xf]
      %v3468 = vld [vmem:[%s344 + $0x18c] sm:$0xf]
      %v3469 = vld [vmem:[%s344 + $0x190] sm:$0xf]
      %v3470 = vld [vmem:[%s344 + $0x194] sm:$0xf]
      %v3471 = vld [vmem:[%s344 + $0x198] sm:$0xf]
      %v3472 = vld [vmem:[%s344 + $0x19c] sm:$0xf]
      %v3473 = vld [vmem:[%s344 + $0x1a0] sm:$0xf]
      %v3474 = vld [vmem:[%s344 + $0x1a4] sm:$0xf]
      %v3475 = vld [vmem:[%s344 + $0x1a8] sm:$0xf]
      %v3476 = vld [vmem:[%s344 + $0x1ac] sm:$0xf]
      %v3477 = vld [vmem:[%s344 + $0x1b0] sm:$0xf]
      %v3478 = vld [vmem:[%s344 + $0x1b4] sm:$0xf]
      %v3479 = vld [vmem:[%s344 + $0x1b8] sm:$0xf]
      %v3480 = vld [vmem:[%s344 + $0x1bc] sm:$0xf]
      %v3481 = vld [vmem:[%s344 + $0x1c0] sm:$0xf]
      %v3482 = vld [vmem:[%s344 + $0x1c4] sm:$0xf]
      %v3483 = vld [vmem:[%s344 + $0x1c8] sm:$0xf]
      %v3484 = vld [vmem:[%s344 + $0x1cc] sm:$0xf]
      %v3485 = vld [vmem:[%s344 + $0x1d0] sm:$0xf]
      %v3486 = vld [vmem:[%s344 + $0x1d4] sm:$0xf]
      %v3487 = vld [vmem:[%s344 + $0x1d8] sm:$0xf]
      %v3488 = vld [vmem:[%s344 + $0x1dc] sm:$0xf]
      %v3489 = vld [vmem:[%s344 + $0x1e0] sm:$0xf]
      %v3490 = vld [vmem:[%s344 + $0x1e4] sm:$0xf]
      %v3491 = vld [vmem:[%s344 + $0x1e8] sm:$0xf]
      %v3492 = vld [vmem:[%s344 + $0x1ec] sm:$0xf]
      %v3493 = vld [vmem:[%s344 + $0x1f0] sm:$0xf]
      %v3494 = vld [vmem:[%s344 + $0x1f4] sm:$0xf]
      %v3495 = vld [vmem:[%s344 + $0x1f8] sm:$0xf]
      %v3496 = vld [vmem:[%s344 + $0x1fc] sm:$0xf]
      %v3497 = vld [vmem:[%s344 + $0x200] sm:$0xf]
      %v3498 = vld [vmem:[%s344 + $0x204] sm:$0xf]
      %v3499 = vld [vmem:[%s344 + $0x208] sm:$0xf]
      %v3500 = vld [vmem:[%s344 + $0x20c] sm:$0xf]
      %v3501 = vld [vmem:[%s344 + $0x210] sm:$0xf]
      %v3502 = vld [vmem:[%s344 + $0x214] sm:$0xf]
      %v3503 = vld [vmem:[%s344 + $0x218] sm:$0xf]
      %v3504 = vld [vmem:[%s344 + $0x21c] sm:$0xf]
      %v3505 = vld [vmem:[%s344 + $0x220] sm:$0xf]
      %v3506 = vld [vmem:[%s344 + $0x224] sm:$0xf]
      %v3507 = vld [vmem:[%s344 + $0x228] sm:$0xf]
      %v3508 = vld [vmem:[%s344 + $0x22c] sm:$0xf]
      %v3509 = vld [vmem:[%s344 + $0x230] sm:$0xf]
      %v3510 = vld [vmem:[%s344 + $0x234] sm:$0xf]
      %v3511 = vld [vmem:[%s344 + $0x238] sm:$0xf]
      %v3512 = vld [vmem:[%s344 + $0x23c] sm:$0xf]
      %v3513 = vld [vmem:[%s347] sm:$0x1]
      %v3515 = vlaneseq
      %v3516 = vshrl.u32 %v3515, 7
      %v3517 = vsub.s32 0, %v3516
      %v3518 = vrot.slane %v3513, %v3517
      %v3664 = vunpack.c.l.b16 %v3369
      %v3665 = vunpack.c.l.b16 %v3370
      %v3666 = vunpack.c.l.b16 %v3371
      %v3667 = vunpack.c.l.b16 %v3372
      %v3668 = vunpack.c.l.b16 %v3373
      %v3669 = vunpack.c.l.b16 %v3374
      %v3670 = vunpack.c.l.b16 %v3375
      %v3671 = vunpack.c.l.b16 %v3376
      %v3672 = vunpack.c.l.b16 %v3377
      %v3673 = vunpack.c.l.b16 %v3378
      %v3674 = vunpack.c.l.b16 %v3379
      %v3675 = vunpack.c.l.b16 %v3380
      %v3676 = vunpack.c.l.b16 %v3381
      %v3677 = vunpack.c.l.b16 %v3382
      %v3678 = vunpack.c.l.b16 %v3383
      %v3679 = vunpack.c.l.b16 %v3384
      %v3680 = vunpack.c.l.b16 %v3385
      %v3681 = vunpack.c.l.b16 %v3386
      %v3682 = vunpack.c.l.b16 %v3387
      %v3683 = vunpack.c.l.b16 %v3388
      %v3684 = vunpack.c.l.b16 %v3389
      %v3685 = vunpack.c.l.b16 %v3390
      %v3686 = vunpack.c.l.b16 %v3391
      %v3687 = vunpack.c.l.b16 %v3392
      %v3688 = vunpack.c.l.b16 %v3393
      %v3689 = vunpack.c.l.b16 %v3394
      %v3690 = vunpack.c.l.b16 %v3395
      %v3691 = vunpack.c.l.b16 %v3396
      %v3692 = vunpack.c.l.b16 %v3397
      %v3693 = vunpack.c.l.b16 %v3398
      %v3694 = vunpack.c.l.b16 %v3399
      %v3695 = vunpack.c.l.b16 %v3400
      %v3696 = vunpack.c.l.b16 %v3401
      %v3697 = vunpack.c.l.b16 %v3402
      %v3698 = vunpack.c.l.b16 %v3403
      %v3699 = vunpack.c.l.b16 %v3404
      %v3700 = vunpack.c.l.b16 %v3405
      %v3701 = vunpack.c.l.b16 %v3406
      %v3702 = vunpack.c.l.b16 %v3407
      %v3703 = vunpack.c.l.b16 %v3408
      %v3704 = vunpack.c.l.b16 %v3409
      %v3705 = vunpack.c.l.b16 %v3410
      %v3706 = vunpack.c.l.b16 %v3411
      %v3707 = vunpack.c.l.b16 %v3412
      %v3708 = vunpack.c.l.b16 %v3413
      %v3709 = vunpack.c.l.b16 %v3414
      %v3710 = vunpack.c.l.b16 %v3415
      %v3711 = vunpack.c.l.b16 %v3416
      %v3712 = vunpack.c.l.b16 %v3417
      %v3713 = vunpack.c.l.b16 %v3418
      %v3714 = vunpack.c.l.b16 %v3419
      %v3715 = vunpack.c.l.b16 %v3420
      %v3716 = vunpack.c.l.b16 %v3421
      %v3717 = vunpack.c.l.b16 %v3422
      %v3718 = vunpack.c.l.b16 %v3423
      %v3719 = vunpack.c.l.b16 %v3424
      %v3720 = vunpack.c.l.b16 %v3425
      %v3721 = vunpack.c.l.b16 %v3426
      %v3722 = vunpack.c.l.b16 %v3427
      %v3723 = vunpack.c.l.b16 %v3428
      %v3724 = vunpack.c.l.b16 %v3429
      %v3725 = vunpack.c.l.b16 %v3430
      %v3726 = vunpack.c.l.b16 %v3431
      %v3727 = vunpack.c.l.b16 %v3432
      %v3728 = vunpack.c.l.b16 %v3433
      %v3729 = vunpack.c.l.b16 %v3434
      %v3730 = vunpack.c.l.b16 %v3435
      %v3731 = vunpack.c.l.b16 %v3436
      %v3732 = vunpack.c.l.b16 %v3437
      %v3733 = vunpack.c.l.b16 %v3438
      %v3734 = vunpack.c.l.b16 %v3439
      %v3735 = vunpack.c.l.b16 %v3440
      %v3736 = vunpack.c.l.b16 %v3441
      %v3737 = vunpack.c.l.b16 %v3442
      %v3738 = vunpack.c.l.b16 %v3443
      %v3739 = vunpack.c.l.b16 %v3444
      %v3740 = vunpack.c.l.b16 %v3445
      %v3741 = vunpack.c.l.b16 %v3446
      %v3742 = vunpack.c.l.b16 %v3447
      %v3743 = vunpack.c.l.b16 %v3448
      %v3744 = vunpack.c.l.b16 %v3449
      %v3745 = vunpack.c.l.b16 %v3450
      %v3746 = vunpack.c.l.b16 %v3451
      %v3747 = vunpack.c.l.b16 %v3452
      %v3748 = vunpack.c.l.b16 %v3453
      %v3749 = vunpack.c.l.b16 %v3454
      %v3750 = vunpack.c.l.b16 %v3455
      %v3751 = vunpack.c.l.b16 %v3456
      %v3752 = vunpack.c.l.b16 %v3457
      %v3753 = vunpack.c.l.b16 %v3458
      %v3754 = vunpack.c.l.b16 %v3459
      %v3755 = vunpack.c.l.b16 %v3460
      %v3756 = vunpack.c.l.b16 %v3461
      %v3757 = vunpack.c.l.b16 %v3462
      %v3758 = vunpack.c.l.b16 %v3463
      %v3759 = vunpack.c.l.b16 %v3464
      %v3760 = vunpack.c.l.b16 %v3465
      %v3761 = vunpack.c.l.b16 %v3466
      %v3762 = vunpack.c.l.b16 %v3467
      %v3763 = vunpack.c.l.b16 %v3468
      %v3764 = vunpack.c.l.b16 %v3469
      %v3765 = vunpack.c.l.b16 %v3470
      %v3766 = vunpack.c.l.b16 %v3471
      %v3767 = vunpack.c.l.b16 %v3472
      %v3768 = vunpack.c.l.b16 %v3473
      %v3769 = vunpack.c.l.b16 %v3474
      %v3770 = vunpack.c.l.b16 %v3475
      %v3771 = vunpack.c.l.b16 %v3476
      %v3772 = vunpack.c.l.b16 %v3477
      %v3773 = vunpack.c.l.b16 %v3478
      %v3774 = vunpack.c.l.b16 %v3479
      %v3775 = vunpack.c.l.b16 %v3480
      %v3776 = vunpack.c.l.b16 %v3481
      %v3777 = vunpack.c.l.b16 %v3482
      %v3778 = vunpack.c.l.b16 %v3483
      %v3779 = vunpack.c.l.b16 %v3484
      %v3780 = vunpack.c.l.b16 %v3485
      %v3781 = vunpack.c.l.b16 %v3486
      %v3782 = vunpack.c.l.b16 %v3487
      %v3783 = vunpack.c.l.b16 %v3488
      %v3784 = vunpack.c.l.b16 %v3489
      %v3785 = vunpack.c.l.b16 %v3490
      %v3786 = vunpack.c.l.b16 %v3491
      %v3787 = vunpack.c.l.b16 %v3492
      %v3788 = vunpack.c.l.b16 %v3493
      %v3789 = vunpack.c.l.b16 %v3494
      %v3790 = vunpack.c.l.b16 %v3495
      %v3791 = vunpack.c.l.b16 %v3496
      %v3792 = vunpack.c.l.b16 %v3497
      %v3793 = vunpack.c.l.b16 %v3498
      %v3794 = vunpack.c.l.b16 %v3499
      %v3795 = vunpack.c.l.b16 %v3500
      %v3796 = vunpack.c.l.b16 %v3501
      %v3797 = vunpack.c.l.b16 %v3502
      %v3798 = vunpack.c.l.b16 %v3503
      %v3799 = vunpack.c.l.b16 %v3504
      %v3800 = vunpack.c.l.b16 %v3505
      %v3801 = vunpack.c.l.b16 %v3506
      %v3802 = vunpack.c.l.b16 %v3507
      %v3803 = vunpack.c.l.b16 %v3508
      %v3804 = vunpack.c.l.b16 %v3509
      %v3805 = vunpack.c.l.b16 %v3510
      %v3806 = vunpack.c.l.b16 %v3511
      %v3807 = vunpack.c.l.b16 %v3512
      %v3808 = vpack.c.b16 %v3665, %v3664
      %v3809 = vpack.c.b16 %v3667, %v3666
      %v3810 = vpack.c.b16 %v3669, %v3668
      %v3811 = vpack.c.b16 %v3671, %v3670
      %v3812 = vpack.c.b16 %v3673, %v3672
      %v3813 = vpack.c.b16 %v3675, %v3674
      %v3814 = vpack.c.b16 %v3677, %v3676
      %v3815 = vpack.c.b16 %v3679, %v3678
      %v3816 = vpack.c.b16 %v3681, %v3680
      %v3817 = vpack.c.b16 %v3683, %v3682
      %v3818 = vpack.c.b16 %v3685, %v3684
      %v3819 = vpack.c.b16 %v3687, %v3686
      %v3820 = vpack.c.b16 %v3689, %v3688
      %v3821 = vpack.c.b16 %v3691, %v3690
      %v3822 = vpack.c.b16 %v3693, %v3692
      %v3823 = vpack.c.b16 %v3695, %v3694
      %v3824 = vpack.c.b16 %v3697, %v3696
      %v3825 = vpack.c.b16 %v3699, %v3698
      %v3826 = vpack.c.b16 %v3701, %v3700
      %v3827 = vpack.c.b16 %v3703, %v3702
      %v3828 = vpack.c.b16 %v3705, %v3704
      %v3829 = vpack.c.b16 %v3707, %v3706
      %v3830 = vpack.c.b16 %v3709, %v3708
      %v3831 = vpack.c.b16 %v3711, %v3710
      %v3832 = vpack.c.b16 %v3713, %v3712
      %v3833 = vpack.c.b16 %v3715, %v3714
      %v3834 = vpack.c.b16 %v3717, %v3716
      %v3835 = vpack.c.b16 %v3719, %v3718
      %v3836 = vpack.c.b16 %v3721, %v3720
      %v3837 = vpack.c.b16 %v3723, %v3722
      %v3838 = vpack.c.b16 %v3725, %v3724
      %v3839 = vpack.c.b16 %v3727, %v3726
      %v3840 = vpack.c.b16 %v3729, %v3728
      %v3841 = vpack.c.b16 %v3731, %v3730
      %v3842 = vpack.c.b16 %v3733, %v3732
      %v3843 = vpack.c.b16 %v3735, %v3734
      %v3844 = vpack.c.b16 %v3737, %v3736
      %v3845 = vpack.c.b16 %v3739, %v3738
      %v3846 = vpack.c.b16 %v3741, %v3740
      %v3847 = vpack.c.b16 %v3743, %v3742
      %v3848 = vpack.c.b16 %v3745, %v3744
      %v3849 = vpack.c.b16 %v3747, %v3746
      %v3850 = vpack.c.b16 %v3749, %v3748
      %v3851 = vpack.c.b16 %v3751, %v3750
      %v3852 = vpack.c.b16 %v3753, %v3752
      %v3853 = vpack.c.b16 %v3755, %v3754
      %v3854 = vpack.c.b16 %v3757, %v3756
      %v3855 = vpack.c.b16 %v3759, %v3758
      %v3856 = vpack.c.b16 %v3761, %v3760
      %v3857 = vpack.c.b16 %v3763, %v3762
      %v3858 = vpack.c.b16 %v3765, %v3764
      %v3859 = vpack.c.b16 %v3767, %v3766
      %v3860 = vpack.c.b16 %v3769, %v3768
      %v3861 = vpack.c.b16 %v3771, %v3770
      %v3862 = vpack.c.b16 %v3773, %v3772
      %v3863 = vpack.c.b16 %v3775, %v3774
      %v3864 = vpack.c.b16 %v3777, %v3776
      %v3865 = vpack.c.b16 %v3779, %v3778
      %v3866 = vpack.c.b16 %v3781, %v3780
      %v3867 = vpack.c.b16 %v3783, %v3782
      %v3868 = vpack.c.b16 %v3785, %v3784
      %v3869 = vpack.c.b16 %v3787, %v3786
      %v3870 = vpack.c.b16 %v3789, %v3788
      %v3871 = vpack.c.b16 %v3791, %v3790
      %v3872 = vpack.c.b16 %v3793, %v3792
      %v3873 = vpack.c.b16 %v3795, %v3794
      %v3874 = vpack.c.b16 %v3797, %v3796
      %v3875 = vpack.c.b16 %v3799, %v3798
      %v3876 = vpack.c.b16 %v3801, %v3800
      %v3877 = vpack.c.b16 %v3803, %v3802
      %v3878 = vpack.c.b16 %v3805, %v3804
      %v3879 = vpack.c.b16 %v3807, %v3806
      %3952 = vmatprep.subr.bf16.mxu0 0
      %3953 = vmatpush1.bf16.msra.mxu0 %v3808
      %3954 = vmatprep.subr.bf16.mxu0 0
      %3955 = vmatpush1.bf16.msra.mxu0 %v3809
      %3956 = vmatprep.subr.bf16.mxu0 0
      %3957 = vmatpush1.bf16.msra.mxu0 %v3810
      %3958 = vmatprep.subr.bf16.mxu0 0
      %3959 = vmatpush1.bf16.msra.mxu0 %v3811
      %3960 = vmatprep.subr.bf16.mxu0 0
      %3961 = vmatpush1.bf16.msra.mxu0 %v3812
      %3962 = vmatprep.subr.bf16.mxu0 0
      %3963 = vmatpush1.bf16.msra.mxu0 %v3813
      %3964 = vmatprep.subr.bf16.mxu0 0
      %3965 = vmatpush1.bf16.msra.mxu0 %v3814
      %3966 = vmatprep.subr.bf16.mxu0 0
      %3967 = vmatpush1.bf16.msra.mxu0 %v3815
      %3968 = vmatprep.subr.bf16.mxu0 0
      %3969 = vmatpush1.bf16.msra.mxu0 %v3816
      %3970 = vmatprep.subr.bf16.mxu0 0
      %3971 = vmatpush1.bf16.msra.mxu0 %v3817
      %3972 = vmatprep.subr.bf16.mxu0 0
      %3973 = vmatpush1.bf16.msra.mxu0 %v3818
      %3974 = vmatprep.subr.bf16.mxu0 0
      %3975 = vmatpush1.bf16.msra.mxu0 %v3819
      %3976 = vmatprep.subr.bf16.mxu0 0
      %3977 = vmatpush1.bf16.msra.mxu0 %v3820
      %3978 = vmatprep.subr.bf16.mxu0 0
      %3979 = vmatpush1.bf16.msra.mxu0 %v3821
      %3980 = vmatprep.subr.bf16.mxu0 0
      %3981 = vmatpush1.bf16.msra.mxu0 %v3822
      %3982 = vmatprep.subr.bf16.mxu0 0
      %3983 = vmatpush1.bf16.msra.mxu0 %v3823
      %3984 = vmatprep.mubr.bf16.mxu0 %v3226
      %3985 = vmatmul.mubr.bf16.gmra.mrb[0].mxu0 %v3225
      %v3986 = vpop.f32.mrb[0].mxu0
      %v3987 = vadd.f32 %v3518, %v3986
      %v3988 = vpop.f32.mrb[0].mxu0
      %v3989 = vpop.f32.mrb[0].mxu0
      %v3990 = vadd.f32 %v3518, %v3989
      %v3991 = vpop.f32.mrb[0].mxu0
      %3992 = vmatprep.mubr.bf16.mxu0 %v3235
      %3993 = vmatmul.mubr.bf16.gmra.mrb[0].mxu0 %v3234
      %v3994 = vpop.f32.mrb[0].mxu0
      %v3995 = vadd.f32 %v3518, %v3994
      %v3996 = vpop.f32.mrb[0].mxu0
      %v3997 = vpop.f32.mrb[0].mxu0
      %v3998 = vadd.f32 %v3518, %v3997
      %v3999 = vpop.f32.mrb[0].mxu0
      %4000 = vmatprep.mubr.bf16.mxu0 %v3244
      %4001 = vmatmul.mubr.bf16.gmra.mrb[0].mxu0 %v3243
      %v4002 = vpop.f32.mrb[0].mxu0
      %v4003 = vadd.f32 %v3518, %v4002
      %v4004 = vpop.f32.mrb[0].mxu0
      %v4005 = vpop.f32.mrb[0].mxu0
      %v4006 = vadd.f32 %v3518, %v4005
      %v4007 = vpop.f32.mrb[0].mxu0
      %4008 = vmatprep.mubr.bf16.mxu0 %v3253
      %4009 = vmatmul.mubr.bf16.gmra.mrb[0].mxu0 %v3252
      %v4010 = vpop.f32.mrb[0].mxu0
      %v4011 = vadd.f32 %v3518, %v4010
      %v4012 = vpop.f32.mrb[0].mxu0
      %v4013 = vpop.f32.mrb[0].mxu0
      %v4014 = vadd.f32 %v3518, %v4013
      %v4015 = vpop.f32.mrb[0].mxu0
      %4016 = vmatprep.mubr.bf16.mxu0 %v3262
      %4017 = vmatmul.mubr.bf16.gmra.mrb[0].mxu0 %v3261
      %v4018 = vpop.f32.mrb[0].mxu0
      %v4019 = vadd.f32 %v3518, %v4018
      %v4020 = vpop.f32.mrb[0].mxu0
      %v4021 = vpop.f32.mrb[0].mxu0
      %v4022 = vadd.f32 %v3518, %v4021
      %v4023 = vpop.f32.mrb[0].mxu0
      %4024 = vmatprep.mubr.bf16.mxu0 %v3271
      %4025 = vmatmul.mubr.bf16.gmra.mrb[0].mxu0 %v3270
      %v4026 = vpop.f32.mrb[0].mxu0
      %v4027 = vadd.f32 %v3518, %v4026
      %v4028 = vpop.f32.mrb[0].mxu0
      %v4029 = vpop.f32.mrb[0].mxu0
      %v4030 = vadd.f32 %v3518, %v4029
      %v4031 = vpop.f32.mrb[0].mxu0
      %4032 = vmatprep.mubr.bf16.mxu0 %v3280
      %4033 = vmatmul.mubr.bf16.gmra.mrb[0].mxu0 %v3279
      %v4034 = vpop.f32.mrb[0].mxu0
      %v4035 = vadd.f32 %v3518, %v4034
      %v4036 = vpop.f32.mrb[0].mxu0
      %v4037 = vpop.f32.mrb[0].mxu0
      %v4038 = vadd.f32 %v3518, %v4037
      %v4039 = vpop.f32.mrb[0].mxu0
      %4040 = vmatprep.mubr.bf16.mxu0 %v3289
      %4041 = vmatmul.mubr.bf16.gmra.mrb[0].mxu0 %v3288
      %v4042 = vpop.f32.mrb[0].mxu0
      %v4043 = vadd.f32 %v3518, %v4042
      %v4044 = vpop.f32.mrb[0].mxu0
      %v4045 = vpop.f32.mrb[0].mxu0
      %v4046 = vadd.f32 %v3518, %v4045
      %v4047 = vpop.f32.mrb[0].mxu0
      %4048 = vmatprep.mubr.bf16.mxu0 %v3298
      %4049 = vmatmul.mubr.bf16.gmra.mrb[0].mxu0 %v3297
      %v4050 = vpop.f32.mrb[0].mxu0
      %v4051 = vadd.f32 %v3518, %v4050
      %v4052 = vpop.f32.mrb[0].mxu0
      %v4053 = vpop.f32.mrb[0].mxu0
      %v4054 = vadd.f32 %v3518, %v4053
      %v4055 = vpop.f32.mrb[0].mxu0
      %4056 = vmatprep.mubr.bf16.mxu0 %v3307
      %4057 = vmatmul.mubr.bf16.gmra.mrb[0].mxu0 %v3306
      %v4058 = vpop.f32.mrb[0].mxu0
      %v4059 = vadd.f32 %v3518, %v4058
      %v4060 = vpop.f32.mrb[0].mxu0
      %v4061 = vpop.f32.mrb[0].mxu0
      %v4062 = vadd.f32 %v3518, %v4061
      %v4063 = vpop.f32.mrb[0].mxu0
      %4064 = vmatprep.mubr.bf16.mxu0 %v3316
      %4065 = vmatmul.mubr.bf16.gmra.mrb[0].mxu0 %v3315
      %v4066 = vpop.f32.mrb[0].mxu0
      %v4067 = vadd.f32 %v3518, %v4066
      %v4068 = vpop.f32.mrb[0].mxu0
      %v4069 = vpop.f32.mrb[0].mxu0
      %v4070 = vadd.f32 %v3518, %v4069
      %v4071 = vpop.f32.mrb[0].mxu0
      %4072 = vmatprep.mubr.bf16.mxu0 %v3325
      %4073 = vmatmul.mubr.bf16.gmra.mrb[0].mxu0 %v3324
      %v4074 = vpop.f32.mrb[0].mxu0
      %v4075 = vadd.f32 %v3518, %v4074
      %v4076 = vpop.f32.mrb[0].mxu0
      %v4077 = vpop.f32.mrb[0].mxu0
      %v4078 = vadd.f32 %v3518, %v4077
      %v4079 = vpop.f32.mrb[0].mxu0
      %4080 = vmatprep.mubr.bf16.mxu0 %v3334
      %4081 = vmatmul.mubr.bf16.gmra.mrb[0].mxu0 %v3333
      %v4082 = vpop.f32.mrb[0].mxu0
      %v4083 = vadd.f32 %v3518, %v4082
      %v4084 = vpop.f32.mrb[0].mxu0
      %v4085 = vpop.f32.mrb[0].mxu0
      %v4086 = vadd.f32 %v3518, %v4085
      %v4087 = vpop.f32.mrb[0].mxu0
      %4088 = vmatprep.mubr.bf16.mxu0 %v3343
      %4089 = vmatmul.mubr.bf16.gmra.mrb[0].mxu0 %v3342
      %v4090 = vpop.f32.mrb[0].mxu0
      %v4091 = vadd.f32 %v3518, %v4090
      %v4092 = vpop.f32.mrb[0].mxu0
      %v4093 = vpop.f32.mrb[0].mxu0
      %v4094 = vadd.f32 %v3518, %v4093
      %v4095 = vpop.f32.mrb[0].mxu0
      %4096 = vmatprep.mubr.bf16.mxu0 %v3352
      %4097 = vmatmul.mubr.bf16.gmra.mrb[0].mxu0 %v3351
      %v4098 = vpop.f32.mrb[0].mxu0
      %v4099 = vadd.f32 %v3518, %v4098
      %v4100 = vpop.f32.mrb[0].mxu0
      %v4101 = vpop.f32.mrb[0].mxu0
      %v4102 = vadd.f32 %v3518, %v4101
      %v4103 = vpop.f32.mrb[0].mxu0
      %4104 = vmatprep.mubr.bf16.mxu0 %v3361
      %4105 = vmatmul.mubr.bf16.gmra.mrb[0].mxu0 %v3360
      %v4106 = vpop.f32.mrb[0].mxu0
      %v4107 = vadd.f32 %v3518, %v4106
      %v4108 = vpop.f32.mrb[0].mxu0
      %v4109 = vpop.f32.mrb[0].mxu0
      %v4110 = vadd.f32 %v3518, %v4109
      %v4111 = vpop.f32.mrb[0].mxu0
      %4112 = vdwg.mxu0
      %4113 = vmatprep.subr.bf16.mxu0 0
      %4114 = vmatpush1.bf16.msra.mxu0 %v3824
      %4115 = vmatprep.subr.bf16.mxu0 0
      %4116 = vmatpush1.bf16.msra.mxu0 %v3825
      %4117 = vmatprep.subr.bf16.mxu0 0
      %4118 = vmatpush1.bf16.msra.mxu0 %v3826
      %4119 = vmatprep.subr.bf16.mxu0 0
      %4120 = vmatpush1.bf16.msra.mxu0 %v3827
      %4121 = vmatprep.subr.bf16.mxu0 0
      %4122 = vmatpush1.bf16.msra.mxu0 %v3828
      %4123 = vmatprep.subr.bf16.mxu0 0
      %4124 = vmatpush1.bf16.msra.mxu0 %v3829
      %4125 = vmatprep.subr.bf16.mxu0 0
      %4126 = vmatpush1.bf16.msra.mxu0 %v3830
      %4127 = vmatprep.subr.bf16.mxu0 0
      %4128 = vmatpush1.bf16.msra.mxu0 %v3831
      %4129 = vmatprep.subr.bf16.mxu0 0
      %4130 = vmatpush1.bf16.msra.mxu0 %v3832
      %4131 = vmatprep.subr.bf16.mxu0 0
      %4132 = vmatpush1.bf16.msra.mxu0 %v3833
      %4133 = vmatprep.subr.bf16.mxu0 0
      %4134 = vmatpush1.bf16.msra.mxu0 %v3834
      %4135 = vmatprep.subr.bf16.mxu0 0
      %4136 = vmatpush1.bf16.msra.mxu0 %v3835
      %4137 = vmatprep.subr.bf16.mxu0 0
      %4138 = vmatpush1.bf16.msra.mxu0 %v3836
      %4139 = vmatprep.subr.bf16.mxu0 0
      %4140 = vmatpush1.bf16.msra.mxu0 %v3837
      %4141 = vmatprep.subr.bf16.mxu0 0
      %4142 = vmatpush1.bf16.msra.mxu0 %v3838
      %4143 = vmatprep.subr.bf16.mxu0 0
      %4144 = vmatpush1.bf16.msra.mxu0 %v3839
      %4145 = vmatprep.mubr.bf16.mxu0 %v3228
      %4146 = vmatmul.mubr.bf16.gmra.mrb[0].mxu0 %v3227
      %v4147 = vpop.f32.mrb[0].mxu0
      %v4148 = vadd.f32 %v3987, %v4147
      %v4149 = vpop.f32.mrb[0].mxu0
      %v4150 = vpop.f32.mrb[0].mxu0
      %v4151 = vadd.f32 %v3990, %v4150
      %v4152 = vpop.f32.mrb[0].mxu0
      %4153 = vmatprep.mubr.bf16.mxu0 %v3237
      %4154 = vmatmul.mubr.bf16.gmra.mrb[0].mxu0 %v3236
      %v4155 = vpop.f32.mrb[0].mxu0
      %v4156 = vadd.f32 %v3995, %v4155
      %v4157 = vpop.f32.mrb[0].mxu0
      %v4158 = vpop.f32.mrb[0].mxu0
      %v4159 = vadd.f32 %v3998, %v4158
      %v4160 = vpop.f32.mrb[0].mxu0
      %4161 = vmatprep.mubr.bf16.mxu0 %v3246
      %4162 = vmatmul.mubr.bf16.gmra.mrb[0].mxu0 %v3245
      %v4163 = vpop.f32.mrb[0].mxu0
      %v4164 = vadd.f32 %v4003, %v4163
      %v4165 = vpop.f32.mrb[0].mxu0
      %v4166 = vpop.f32.mrb[0].mxu0
      %v4167 = vadd.f32 %v4006, %v4166
      %v4168 = vpop.f32.mrb[0].mxu0
      %4169 = vmatprep.mubr.bf16.mxu0 %v3255
      %4170 = vmatmul.mubr.bf16.gmra.mrb[0].mxu0 %v3254
      %v4171 = vpop.f32.mrb[0].mxu0
      %v4172 = vadd.f32 %v4011, %v4171
      %v4173 = vpop.f32.mrb[0].mxu0
      %v4174 = vpop.f32.mrb[0].mxu0
      %v4175 = vadd.f32 %v4014, %v4174
      %v4176 = vpop.f32.mrb[0].mxu0
      %4177 = vmatprep.mubr.bf16.mxu0 %v3264
      %4178 = vmatmul.mubr.bf16.gmra.mrb[0].mxu0 %v3263
      %v4179 = vpop.f32.mrb[0].mxu0
      %v4180 = vadd.f32 %v4019, %v4179
      %v4181 = vpop.f32.mrb[0].mxu0
      %v4182 = vpop.f32.mrb[0].mxu0
      %v4183 = vadd.f32 %v4022, %v4182
      %v4184 = vpop.f32.mrb[0].mxu0
      %4185 = vmatprep.mubr.bf16.mxu0 %v3273
      %4186 = vmatmul.mubr.bf16.gmra.mrb[0].mxu0 %v3272
      %v4187 = vpop.f32.mrb[0].mxu0
      %v4188 = vadd.f32 %v4027, %v4187
      %v4189 = vpop.f32.mrb[0].mxu0
      %v4190 = vpop.f32.mrb[0].mxu0
      %v4191 = vadd.f32 %v4030, %v4190
      %v4192 = vpop.f32.mrb[0].mxu0
      %4193 = vmatprep.mubr.bf16.mxu0 %v3282
      %4194 = vmatmul.mubr.bf16.gmra.mrb[0].mxu0 %v3281
      %v4195 = vpop.f32.mrb[0].mxu0
      %v4196 = vadd.f32 %v4035, %v4195
      %v4197 = vpop.f32.mrb[0].mxu0
      %v4198 = vpop.f32.mrb[0].mxu0
      %v4199 = vadd.f32 %v4038, %v4198
      %v4200 = vpop.f32.mrb[0].mxu0
      %4201 = vmatprep.mubr.bf16.mxu0 %v3291
      %4202 = vmatmul.mubr.bf16.gmra.mrb[0].mxu0 %v3290
      %v4203 = vpop.f32.mrb[0].mxu0
      %v4204 = vadd.f32 %v4043, %v4203
      %v4205 = vpop.f32.mrb[0].mxu0
      %v4206 = vpop.f32.mrb[0].mxu0
      %v4207 = vadd.f32 %v4046, %v4206
      %v4208 = vpop.f32.mrb[0].mxu0
      %4209 = vmatprep.mubr.bf16.mxu0 %v3300
      %4210 = vmatmul.mubr.bf16.gmra.mrb[0].mxu0 %v3299
      %v4211 = vpop.f32.mrb[0].mxu0
      %v4212 = vadd.f32 %v4051, %v4211
      %v4213 = vpop.f32.mrb[0].mxu0
      %v4214 = vpop.f32.mrb[0].mxu0
      %v4215 = vadd.f32 %v4054, %v4214
      %v4216 = vpop.f32.mrb[0].mxu0
      %4217 = vmatprep.mubr.bf16.mxu0 %v3309
      %4218 = vmatmul.mubr.bf16.gmra.mrb[0].mxu0 %v3308
      %v4219 = vpop.f32.mrb[0].mxu0
      %v4220 = vadd.f32 %v4059, %v4219
      %v4221 = vpop.f32.mrb[0].mxu0
      %v4222 = vpop.f32.mrb[0].mxu0
      %v4223 = vadd.f32 %v4062, %v4222
      %v4224 = vpop.f32.mrb[0].mxu0
      %4225 = vmatprep.mubr.bf16.mxu0 %v3318
      %4226 = vmatmul.mubr.bf16.gmra.mrb[0].mxu0 %v3317
      %v4227 = vpop.f32.mrb[0].mxu0
      %v4228 = vadd.f32 %v4067, %v4227
      %v4229 = vpop.f32.mrb[0].mxu0
      %v4230 = vpop.f32.mrb[0].mxu0
      %v4231 = vadd.f32 %v4070, %v4230
      %v4232 = vpop.f32.mrb[0].mxu0
      %4233 = vmatprep.mubr.bf16.mxu0 %v3327
      %4234 = vmatmul.mubr.bf16.gmra.mrb[0].mxu0 %v3326
      %v4235 = vpop.f32.mrb[0].mxu0
      %v4236 = vadd.f32 %v4075, %v4235
      %v4237 = vpop.f32.mrb[0].mxu0
      %v4238 = vpop.f32.mrb[0].mxu0
      %v4239 = vadd.f32 %v4078, %v4238
      %v4240 = vpop.f32.mrb[0].mxu0
      %4241 = vmatprep.mubr.bf16.mxu0 %v3336
      %4242 = vmatmul.mubr.bf16.gmra.mrb[0].mxu0 %v3335
      %v4243 = vpop.f32.mrb[0].mxu0
      %v4244 = vadd.f32 %v4083, %v4243
      %v4245 = vpop.f32.mrb[0].mxu0
      %v4246 = vpop.f32.mrb[0].mxu0
      %v4247 = vadd.f32 %v4086, %v4246
      %v4248 = vpop.f32.mrb[0].mxu0
      %4249 = vmatprep.mubr.bf16.mxu0 %v3345
      %4250 = vmatmul.mubr.bf16.gmra.mrb[0].mxu0 %v3344
      %v4251 = vpop.f32.mrb[0].mxu0
      %v4252 = vadd.f32 %v4091, %v4251
      %v4253 = vpop.f32.mrb[0].mxu0
      %v4254 = vpop.f32.mrb[0].mxu0
      %v4255 = vadd.f32 %v4094, %v4254
      %v4256 = vpop.f32.mrb[0].mxu0
      %4257 = vmatprep.mubr.bf16.mxu0 %v3354
      %4258 = vmatmul.mubr.bf16.gmra.mrb[0].mxu0 %v3353
      %v4259 = vpop.f32.mrb[0].mxu0
      %v4260 = vadd.f32 %v4099, %v4259
      %v4261 = vpop.f32.mrb[0].mxu0
      %v4262 = vpop.f32.mrb[0].mxu0
      %v4263 = vadd.f32 %v4102, %v4262
      %v4264 = vpop.f32.mrb[0].mxu0
      %4265 = vmatprep.mubr.bf16.mxu0 %v3363
      %4266 = vmatmul.mubr.bf16.gmra.mrb[0].mxu0 %v3362
      %v4267 = vpop.f32.mrb[0].mxu0
      %v4268 = vadd.f32 %v4107, %v4267
      %v4269 = vpop.f32.mrb[0].mxu0
      %v4270 = vpop.f32.mrb[0].mxu0
      %v4271 = vadd.f32 %v4110, %v4270
      %v4272 = vpop.f32.mrb[0].mxu0
      %4273 = vdwg.mxu0
      %4274 = vmatprep.subr.bf16.mxu0 0
      %4275 = vmatpush1.bf16.msra.mxu0 %v3840
      %4276 = vmatprep.subr.bf16.mxu0 0
      %4277 = vmatpush1.bf16.msra.mxu0 %v3841
      %4278 = vmatprep.subr.bf16.mxu0 0
      %4279 = vmatpush1.bf16.msra.mxu0 %v3842
      %4280 = vmatprep.subr.bf16.mxu0 0
      %4281 = vmatpush1.bf16.msra.mxu0 %v3843
      %4282 = vmatprep.subr.bf16.mxu0 0
      %4283 = vmatpush1.bf16.msra.mxu0 %v3844
      %4284 = vmatprep.subr.bf16.mxu0 0
      %4285 = vmatpush1.bf16.msra.mxu0 %v3845
      %4286 = vmatprep.subr.bf16.mxu0 0
      %4287 = vmatpush1.bf16.msra.mxu0 %v3846
      %4288 = vmatprep.subr.bf16.mxu0 0
      %4289 = vmatpush1.bf16.msra.mxu0 %v3847
      %4290 = vmatprep.subr.bf16.mxu0 0
      %4291 = vmatpush1.bf16.msra.mxu0 %v3848
      %4292 = vmatprep.subr.bf16.mxu0 0
      %4293 = vmatpush1.bf16.msra.mxu0 %v3849
      %4294 = vmatprep.subr.bf16.mxu0 0
      %4295 = vmatpush1.bf16.msra.mxu0 %v3850
      %4296 = vmatprep.subr.bf16.mxu0 0
      %4297 = vmatpush1.bf16.msra.mxu0 %v3851
      %4298 = vmatprep.subr.bf16.mxu0 0
      %4299 = vmatpush1.bf16.msra.mxu0 %v3852
      %4300 = vmatprep.subr.bf16.mxu0 0
      %4301 = vmatpush1.bf16.msra.mxu0 %v3853
      %4302 = vmatprep.subr.bf16.mxu0 0
      %4303 = vmatpush1.bf16.msra.mxu0 %v3854
      %4304 = vmatprep.subr.bf16.mxu0 0
      %4305 = vmatpush1.bf16.msra.mxu0 %v3855
      %4306 = vmatprep.mubr.bf16.mxu0 %v3230
      %4307 = vmatmul.mubr.bf16.gmra.mrb[0].mxu0 %v3229
      %v4308 = vpop.f32.mrb[0].mxu0
      %v4309 = vadd.f32 %v4148, %v4308
      %v4310 = vpop.f32.mrb[0].mxu0
      %v4311 = vpop.f32.mrb[0].mxu0
      %v4312 = vadd.f32 %v4151, %v4311
      %v4313 = vpop.f32.mrb[0].mxu0
      %4314 = vmatprep.mubr.bf16.mxu0 %v3239
      %4315 = vmatmul.mubr.bf16.gmra.mrb[0].mxu0 %v3238
      %v4316 = vpop.f32.mrb[0].mxu0
      %v4317 = vadd.f32 %v4156, %v4316
      %v4318 = vpop.f32.mrb[0].mxu0
      %v4319 = vpop.f32.mrb[0].mxu0
      %v4320 = vadd.f32 %v4159, %v4319
      %v4321 = vpop.f32.mrb[0].mxu0
      %4322 = vmatprep.mubr.bf16.mxu0 %v3248
      %4323 = vmatmul.mubr.bf16.gmra.mrb[0].mxu0 %v3247
      %v4324 = vpop.f32.mrb[0].mxu0
      %v4325 = vadd.f32 %v4164, %v4324
      %v4326 = vpop.f32.mrb[0].mxu0
      %v4327 = vpop.f32.mrb[0].mxu0
      %v4328 = vadd.f32 %v4167, %v4327
      %v4329 = vpop.f32.mrb[0].mxu0
      %4330 = vmatprep.mubr.bf16.mxu0 %v3257
      %4331 = vmatmul.mubr.bf16.gmra.mrb[0].mxu0 %v3256
      %v4332 = vpop.f32.mrb[0].mxu0
      %v4333 = vadd.f32 %v4172, %v4332
      %v4334 = vpop.f32.mrb[0].mxu0
      %v4335 = vpop.f32.mrb[0].mxu0
      %v4336 = vadd.f32 %v4175, %v4335
      %v4337 = vpop.f32.mrb[0].mxu0
      %4338 = vmatprep.mubr.bf16.mxu0 %v3266
      %4339 = vmatmul.mubr.bf16.gmra.mrb[0].mxu0 %v3265
      %v4340 = vpop.f32.mrb[0].mxu0
      %v4341 = vadd.f32 %v4180, %v4340
      %v4342 = vpop.f32.mrb[0].mxu0
      %v4343 = vpop.f32.mrb[0].mxu0
      %v4344 = vadd.f32 %v4183, %v4343
      %v4345 = vpop.f32.mrb[0].mxu0
      %4346 = vmatprep.mubr.bf16.mxu0 %v3275
      %4347 = vmatmul.mubr.bf16.gmra.mrb[0].mxu0 %v3274
      %v4348 = vpop.f32.mrb[0].mxu0
      %v4349 = vadd.f32 %v4188, %v4348
      %v4350 = vpop.f32.mrb[0].mxu0
      %v4351 = vpop.f32.mrb[0].mxu0
      %v4352 = vadd.f32 %v4191, %v4351
      %v4353 = vpop.f32.mrb[0].mxu0
      %4354 = vmatprep.mubr.bf16.mxu0 %v3284
      %4355 = vmatmul.mubr.bf16.gmra.mrb[0].mxu0 %v3283
      %v4356 = vpop.f32.mrb[0].mxu0
      %v4357 = vadd.f32 %v4196, %v4356
      %v4358 = vpop.f32.mrb[0].mxu0
      %v4359 = vpop.f32.mrb[0].mxu0
      %v4360 = vadd.f32 %v4199, %v4359
      %v4361 = vpop.f32.mrb[0].mxu0
      %4362 = vmatprep.mubr.bf16.mxu0 %v3293
      %4363 = vmatmul.mubr.bf16.gmra.mrb[0].mxu0 %v3292
      %v4364 = vpop.f32.mrb[0].mxu0
      %v4365 = vadd.f32 %v4204, %v4364
      %v4366 = vpop.f32.mrb[0].mxu0
      %v4367 = vpop.f32.mrb[0].mxu0
      %v4368 = vadd.f32 %v4207, %v4367
      %v4369 = vpop.f32.mrb[0].mxu0
      %4370 = vmatprep.mubr.bf16.mxu0 %v3302
      %4371 = vmatmul.mubr.bf16.gmra.mrb[0].mxu0 %v3301
      %v4372 = vpop.f32.mrb[0].mxu0
      %v4373 = vadd.f32 %v4212, %v4372
      %v4374 = vpop.f32.mrb[0].mxu0
      %v4375 = vpop.f32.mrb[0].mxu0
      %v4376 = vadd.f32 %v4215, %v4375
      %v4377 = vpop.f32.mrb[0].mxu0
      %4378 = vmatprep.mubr.bf16.mxu0 %v3311
      %4379 = vmatmul.mubr.bf16.gmra.mrb[0].mxu0 %v3310
      %v4380 = vpop.f32.mrb[0].mxu0
      %v4381 = vadd.f32 %v4220, %v4380
      %v4382 = vpop.f32.mrb[0].mxu0
      %v4383 = vpop.f32.mrb[0].mxu0
      %v4384 = vadd.f32 %v4223, %v4383
      %v4385 = vpop.f32.mrb[0].mxu0
      %4386 = vmatprep.mubr.bf16.mxu0 %v3320
      %4387 = vmatmul.mubr.bf16.gmra.mrb[0].mxu0 %v3319
      %v4388 = vpop.f32.mrb[0].mxu0
      %v4389 = vadd.f32 %v4228, %v4388
      %v4390 = vpop.f32.mrb[0].mxu0
      %v4391 = vpop.f32.mrb[0].mxu0
      %v4392 = vadd.f32 %v4231, %v4391
      %v4393 = vpop.f32.mrb[0].mxu0
      %4394 = vmatprep.mubr.bf16.mxu0 %v3329
      %4395 = vmatmul.mubr.bf16.gmra.mrb[0].mxu0 %v3328
      %v4396 = vpop.f32.mrb[0].mxu0
      %v4397 = vadd.f32 %v4236, %v4396
      %v4398 = vpop.f32.mrb[0].mxu0
      %v4399 = vpop.f32.mrb[0].mxu0
      %v4400 = vadd.f32 %v4239, %v4399
      %v4401 = vpop.f32.mrb[0].mxu0
      %4402 = vmatprep.mubr.bf16.mxu0 %v3338
      %4403 = vmatmul.mubr.bf16.gmra.mrb[0].mxu0 %v3337
      %v4404 = vpop.f32.mrb[0].mxu0
      %v4405 = vadd.f32 %v4244, %v4404
      %v4406 = vpop.f32.mrb[0].mxu0
      %v4407 = vpop.f32.mrb[0].mxu0
      %v4408 = vadd.f32 %v4247, %v4407
      %v4409 = vpop.f32.mrb[0].mxu0
      %4410 = vmatprep.mubr.bf16.mxu0 %v3347
      %4411 = vmatmul.mubr.bf16.gmra.mrb[0].mxu0 %v3346
      %v4412 = vpop.f32.mrb[0].mxu0
      %v4413 = vadd.f32 %v4252, %v4412
      %v4414 = vpop.f32.mrb[0].mxu0
      %v4415 = vpop.f32.mrb[0].mxu0
      %v4416 = vadd.f32 %v4255, %v4415
      %v4417 = vpop.f32.mrb[0].mxu0
      %4418 = vmatprep.mubr.bf16.mxu0 %v3356
      %4419 = vmatmul.mubr.bf16.gmra.mrb[0].mxu0 %v3355
      %v4420 = vpop.f32.mrb[0].mxu0
      %v4421 = vadd.f32 %v4260, %v4420
      %v4422 = vpop.f32.mrb[0].mxu0
      %v4423 = vpop.f32.mrb[0].mxu0
      %v4424 = vadd.f32 %v4263, %v4423
      %v4425 = vpop.f32.mrb[0].mxu0
      %4426 = vmatprep.mubr.bf16.mxu0 %v3365
      %4427 = vmatmul.mubr.bf16.gmra.mrb[0].mxu0 %v3364
      %v4428 = vpop.f32.mrb[0].mxu0
      %v4429 = vadd.f32 %v4268, %v4428
      %v4430 = vpop.f32.mrb[0].mxu0
      %v4431 = vpop.f32.mrb[0].mxu0
      %v4432 = vadd.f32 %v4271, %v4431
      %v4433 = vpop.f32.mrb[0].mxu0
      %4434 = vdwg.mxu0
      %4435 = vmatprep.subr.bf16.mxu0 0
      %4436 = vmatpush1.bf16.msra.mxu0 %v3856
      %4437 = vmatprep.subr.bf16.mxu0 0
      %4438 = vmatpush1.bf16.msra.mxu0 %v3857
      %4439 = vmatprep.subr.bf16.mxu0 0
      %4440 = vmatpush1.bf16.msra.mxu0 %v3858
      %4441 = vmatprep.subr.bf16.mxu0 0
      %4442 = vmatpush1.bf16.msra.mxu0 %v3859
      %4443 = vmatprep.subr.bf16.mxu0 0
      %4444 = vmatpush1.bf16.msra.mxu0 %v3860
      %4445 = vmatprep.subr.bf16.mxu0 0
      %4446 = vmatpush1.bf16.msra.mxu0 %v3861
      %4447 = vmatprep.subr.bf16.mxu0 0
      %4448 = vmatpush1.bf16.msra.mxu0 %v3862
      %4449 = vmatprep.subr.bf16.mxu0 0
      %4450 = vmatpush1.bf16.msra.mxu0 %v3863
      %4451 = vmatprep.subr.bf16.mxu0 0
      %4452 = vmatpush1.bf16.msra.mxu0 %v3864
      %4453 = vmatprep.subr.bf16.mxu0 0
      %4454 = vmatpush1.bf16.msra.mxu0 %v3865
      %4455 = vmatprep.subr.bf16.mxu0 0
      %4456 = vmatpush1.bf16.msra.mxu0 %v3866
      %4457 = vmatprep.subr.bf16.mxu0 0
      %4458 = vmatpush1.bf16.msra.mxu0 %v3867
      %4459 = vmatprep.subr.bf16.mxu0 0
      %4460 = vmatpush1.bf16.msra.mxu0 %v3868
      %4461 = vmatprep.subr.bf16.mxu0 0
      %4462 = vmatpush1.bf16.msra.mxu0 %v3869
      %4463 = vmatprep.subr.bf16.mxu0 0
      %4464 = vmatpush1.bf16.msra.mxu0 %v3870
      %4465 = vmatprep.subr.bf16.mxu0 0
      %4466 = vmatpush1.bf16.msra.mxu0 %v3871
      %4467 = vmatprep.mubr.bf16.mxu0 %v3232
      %4468 = vmatmul.mubr.bf16.gmra.mrb[0].mxu0 %v3231
      %v4469 = vpop.f32.mrb[0].mxu0
      %v4470 = vadd.f32 %v4309, %v4469
      %v4471 = vpop.f32.mrb[0].mxu0
      %v4472 = vpop.f32.mrb[0].mxu0
      %v4473 = vadd.f32 %v4312, %v4472
      %v4474 = vpop.f32.mrb[0].mxu0
      %4475 = vmatprep.mubr.bf16.mxu0 %v3241
      %4476 = vmatmul.mubr.bf16.gmra.mrb[0].mxu0 %v3240
      %v4477 = vpop.f32.mrb[0].mxu0
      %v4478 = vadd.f32 %v4317, %v4477
      %v4479 = vpop.f32.mrb[0].mxu0
      %v4480 = vpop.f32.mrb[0].mxu0
      %v4481 = vadd.f32 %v4320, %v4480
      %v4482 = vpop.f32.mrb[0].mxu0
      %4483 = vmatprep.mubr.bf16.mxu0 %v3250
      %4484 = vmatmul.mubr.bf16.gmra.mrb[0].mxu0 %v3249
      %v4485 = vpop.f32.mrb[0].mxu0
      %v4486 = vadd.f32 %v4325, %v4485
      %v4487 = vpop.f32.mrb[0].mxu0
      %v4488 = vpop.f32.mrb[0].mxu0
      %v4489 = vadd.f32 %v4328, %v4488
      %v4490 = vpop.f32.mrb[0].mxu0
      %4491 = vmatprep.mubr.bf16.mxu0 %v3259
      %4492 = vmatmul.mubr.bf16.gmra.mrb[0].mxu0 %v3258
      %v4493 = vpop.f32.mrb[0].mxu0
      %v4494 = vadd.f32 %v4333, %v4493
      %v4495 = vpop.f32.mrb[0].mxu0
      %v4496 = vpop.f32.mrb[0].mxu0
      %v4497 = vadd.f32 %v4336, %v4496
      %v4498 = vpop.f32.mrb[0].mxu0
      %4499 = vmatprep.mubr.bf16.mxu0 %v3268
      %4500 = vmatmul.mubr.bf16.gmra.mrb[0].mxu0 %v3267
      %v4501 = vpop.f32.mrb[0].mxu0
      %v4502 = vadd.f32 %v4341, %v4501
      %v4503 = vpop.f32.mrb[0].mxu0
      %v4504 = vpop.f32.mrb[0].mxu0
      %v4505 = vadd.f32 %v4344, %v4504
      %v4506 = vpop.f32.mrb[0].mxu0
      %4507 = vmatprep.mubr.bf16.mxu0 %v3277
      %4508 = vmatmul.mubr.bf16.gmra.mrb[0].mxu0 %v3276
      %v4509 = vpop.f32.mrb[0].mxu0
      %v4510 = vadd.f32 %v4349, %v4509
      %v4511 = vpop.f32.mrb[0].mxu0
      %v4512 = vpop.f32.mrb[0].mxu0
      %v4513 = vadd.f32 %v4352, %v4512
      %v4514 = vpop.f32.mrb[0].mxu0
      %4515 = vmatprep.mubr.bf16.mxu0 %v3286
      %4516 = vmatmul.mubr.bf16.gmra.mrb[0].mxu0 %v3285
      %v4517 = vpop.f32.mrb[0].mxu0
      %v4518 = vadd.f32 %v4357, %v4517
      %v4519 = vpop.f32.mrb[0].mxu0
      %v4520 = vpop.f32.mrb[0].mxu0
      %v4521 = vadd.f32 %v4360, %v4520
      %v4522 = vpop.f32.mrb[0].mxu0
      %4523 = vmatprep.mubr.bf16.mxu0 %v3295
      %4524 = vmatmul.mubr.bf16.gmra.mrb[0].mxu0 %v3294
      %v4525 = vpop.f32.mrb[0].mxu0
      %v4526 = vadd.f32 %v4365, %v4525
      %v4527 = vpop.f32.mrb[0].mxu0
      %v4528 = vpop.f32.mrb[0].mxu0
      %v4529 = vadd.f32 %v4368, %v4528
      %v4530 = vpop.f32.mrb[0].mxu0
      %4531 = vmatprep.mubr.bf16.mxu0 %v3304
      %4532 = vmatmul.mubr.bf16.gmra.mrb[0].mxu0 %v3303
      %v4533 = vpop.f32.mrb[0].mxu0
      %v4534 = vadd.f32 %v4373, %v4533
      %v4535 = vpop.f32.mrb[0].mxu0
      %v4536 = vpop.f32.mrb[0].mxu0
      %v4537 = vadd.f32 %v4376, %v4536
      %v4538 = vpop.f32.mrb[0].mxu0
      %4539 = vmatprep.mubr.bf16.mxu0 %v3313
      %4540 = vmatmul.mubr.bf16.gmra.mrb[0].mxu0 %v3312
      %v4541 = vpop.f32.mrb[0].mxu0
      %v4542 = vadd.f32 %v4381, %v4541
      %v4543 = vpop.f32.mrb[0].mxu0
      %v4544 = vpop.f32.mrb[0].mxu0
      %v4545 = vadd.f32 %v4384, %v4544
      %v4546 = vpop.f32.mrb[0].mxu0
      %4547 = vmatprep.mubr.bf16.mxu0 %v3322
      %4548 = vmatmul.mubr.bf16.gmra.mrb[0].mxu0 %v3321
      %v4549 = vpop.f32.mrb[0].mxu0
      %v4550 = vadd.f32 %v4389, %v4549
      %v4551 = vpop.f32.mrb[0].mxu0
      %v4552 = vpop.f32.mrb[0].mxu0
      %v4553 = vadd.f32 %v4392, %v4552
      %v4554 = vpop.f32.mrb[0].mxu0
      %4555 = vmatprep.mubr.bf16.mxu0 %v3331
      %4556 = vmatmul.mubr.bf16.gmra.mrb[0].mxu0 %v3330
      %v4557 = vpop.f32.mrb[0].mxu0
      %v4558 = vadd.f32 %v4397, %v4557
      %v4559 = vpop.f32.mrb[0].mxu0
      %v4560 = vpop.f32.mrb[0].mxu0
      %v4561 = vadd.f32 %v4400, %v4560
      %v4562 = vpop.f32.mrb[0].mxu0
      %4563 = vmatprep.mubr.bf16.mxu0 %v3340
      %4564 = vmatmul.mubr.bf16.gmra.mrb[0].mxu0 %v3339
      %v4565 = vpop.f32.mrb[0].mxu0
      %v4566 = vadd.f32 %v4405, %v4565
      %v4567 = vpop.f32.mrb[0].mxu0
      %v4568 = vpop.f32.mrb[0].mxu0
      %v4569 = vadd.f32 %v4408, %v4568
      %v4570 = vpop.f32.mrb[0].mxu0
      %4571 = vmatprep.mubr.bf16.mxu0 %v3349
      %4572 = vmatmul.mubr.bf16.gmra.mrb[0].mxu0 %v3348
      %v4573 = vpop.f32.mrb[0].mxu0
      %v4574 = vadd.f32 %v4413, %v4573
      %v4575 = vpop.f32.mrb[0].mxu0
      %v4576 = vpop.f32.mrb[0].mxu0
      %v4577 = vadd.f32 %v4416, %v4576
      %v4578 = vpop.f32.mrb[0].mxu0
      %4579 = vmatprep.mubr.bf16.mxu0 %v3358
      %4580 = vmatmul.mubr.bf16.gmra.mrb[0].mxu0 %v3357
      %v4581 = vpop.f32.mrb[0].mxu0
      %v4582 = vadd.f32 %v4421, %v4581
      %v4583 = vpop.f32.mrb[0].mxu0
      %v4584 = vpop.f32.mrb[0].mxu0
      %v4585 = vadd.f32 %v4424, %v4584
      %v4586 = vpop.f32.mrb[0].mxu0
      %4587 = vmatprep.mubr.bf16.mxu0 %v3367
      %4588 = vmatmul.mubr.bf16.gmra.mrb[0].mxu0 %v3366
      %v4589 = vpop.f32.mrb[0].mxu0
      %v4590 = vadd.f32 %v4429, %v4589
      %v4591 = vpop.f32.mrb[0].mxu0
      %v4592 = vpop.f32.mrb[0].mxu0
      %v4593 = vadd.f32 %v4432, %v4592
      %v4594 = vpop.f32.mrb[0].mxu0
      %4595 = vdwg.mxu0
      %4596 = vmatprep.subr.bf16.mxu0 0
      %4597 = vmatpush1.bf16.msra.mxu0 %v3872
      %4598 = vmatprep.subr.bf16.mxu0 0
      %4599 = vmatpush1.bf16.msra.mxu0 %v3873
      %4600 = vmatprep.subr.bf16.mxu0 0
      %4601 = vmatpush1.bf16.msra.mxu0 %v3874
      %4602 = vmatprep.subr.bf16.mxu0 0
      %4603 = vmatpush1.bf16.msra.mxu0 %v3875
      %4604 = vmatprep.subr.bf16.mxu0 0
      %4605 = vmatpush1.bf16.msra.mxu0 %v3876
      %4606 = vmatprep.subr.bf16.mxu0 0
      %4607 = vmatpush1.bf16.msra.mxu0 %v3877
      %4608 = vmatprep.subr.bf16.mxu0 0
      %4609 = vmatpush1.bf16.msra.mxu0 %v3878
      %4610 = vmatprep.subr.bf16.mxu0 0
      %4611 = vmatpush1.bf16.msra.mxu0 %v3879
      %4612 = vmatprep.subr.bf16.mxu0 0
      %4613 = vmatpush1.bf16.msra.mxu0 0
      %4614 = vmatprep.subr.bf16.mxu0 0
      %4615 = vmatpush1.bf16.msra.mxu0 0
      %4616 = vmatprep.subr.bf16.mxu0 0
      %4617 = vmatpush1.bf16.msra.mxu0 0
      %4618 = vmatprep.subr.bf16.mxu0 0
      %4619 = vmatpush1.bf16.msra.mxu0 0
      %4620 = vmatprep.subr.bf16.mxu0 0
      %4621 = vmatpush1.bf16.msra.mxu0 0
      %4622 = vmatprep.subr.bf16.mxu0 0
      %4623 = vmatpush1.bf16.msra.mxu0 0
      %4624 = vmatprep.subr.bf16.mxu0 0
      %4625 = vmatpush1.bf16.msra.mxu0 0
      %4626 = vmatprep.subr.bf16.mxu0 0
      %4627 = vmatpush1.bf16.msra.mxu0 0
      %4628 = vmatprep.mubr.bf16.mxu0 0
      %4629 = vmatmul.mubr.bf16.gmra.mrb[0].mxu0 %v3233
      %v4630 = vpop.f32.mrb[0].mxu0
      %v4631 = vadd.f32 %v4470, %v4630
      %v4632 = vpop.f32.mrb[0].mxu0
      %v4633 = vpop.f32.mrb[0].mxu0
      %v4634 = vadd.f32 %v4473, %v4633
      %v4635 = vpop.f32.mrb[0].mxu0
      %4636 = vmatprep.mubr.bf16.mxu0 0
      %4637 = vmatmul.mubr.bf16.gmra.mrb[0].mxu0 %v3242
      %v4638 = vpop.f32.mrb[0].mxu0
      %v4639 = vadd.f32 %v4478, %v4638
      %v4640 = vpop.f32.mrb[0].mxu0
      %v4641 = vpop.f32.mrb[0].mxu0
      %v4642 = vadd.f32 %v4481, %v4641
      %v4643 = vpop.f32.mrb[0].mxu0
      %4644 = vmatprep.mubr.bf16.mxu0 0
      %4645 = vmatmul.mubr.bf16.gmra.mrb[0].mxu0 %v3251
      %v4646 = vpop.f32.mrb[0].mxu0
      %v4647 = vadd.f32 %v4486, %v4646
      %v4648 = vpop.f32.mrb[0].mxu0
      %v4649 = vpop.f32.mrb[0].mxu0
      %v4650 = vadd.f32 %v4489, %v4649
      %v4651 = vpop.f32.mrb[0].mxu0
      %4652 = vmatprep.mubr.bf16.mxu0 0
      %4653 = vmatmul.mubr.bf16.gmra.mrb[0].mxu0 %v3260
      %v4654 = vpop.f32.mrb[0].mxu0
      %v4655 = vadd.f32 %v4494, %v4654
      %v4656 = vpop.f32.mrb[0].mxu0
      %v4657 = vpop.f32.mrb[0].mxu0
      %v4658 = vadd.f32 %v4497, %v4657
      %v4659 = vpop.f32.mrb[0].mxu0
      %4660 = vmatprep.mubr.bf16.mxu0 0
      %4661 = vmatmul.mubr.bf16.gmra.mrb[0].mxu0 %v3269
      %v4662 = vpop.f32.mrb[0].mxu0
      %v4663 = vadd.f32 %v4502, %v4662
      %v4664 = vpop.f32.mrb[0].mxu0
      %v4665 = vpop.f32.mrb[0].mxu0
      %v4666 = vadd.f32 %v4505, %v4665
      %v4667 = vpop.f32.mrb[0].mxu0
      %4668 = vmatprep.mubr.bf16.mxu0 0
      %4669 = vmatmul.mubr.bf16.gmra.mrb[0].mxu0 %v3278
      %v4670 = vpop.f32.mrb[0].mxu0
      %v4671 = vadd.f32 %v4510, %v4670
      %v4672 = vpop.f32.mrb[0].mxu0
      %v4673 = vpop.f32.mrb[0].mxu0
      %v4674 = vadd.f32 %v4513, %v4673
      %v4675 = vpop.f32.mrb[0].mxu0
      %4676 = vmatprep.mubr.bf16.mxu0 0
      %4677 = vmatmul.mubr.bf16.gmra.mrb[0].mxu0 %v3287
      %v4678 = vpop.f32.mrb[0].mxu0
      %v4679 = vadd.f32 %v4518, %v4678
      %v4680 = vpop.f32.mrb[0].mxu0
      %v4681 = vpop.f32.mrb[0].mxu0
      %v4682 = vadd.f32 %v4521, %v4681
      %v4683 = vpop.f32.mrb[0].mxu0
      %4684 = vmatprep.mubr.bf16.mxu0 0
      %4685 = vmatmul.mubr.bf16.gmra.mrb[0].mxu0 %v3296
      %v4686 = vpop.f32.mrb[0].mxu0
      %v4687 = vadd.f32 %v4526, %v4686
      %v4688 = vpop.f32.mrb[0].mxu0
      %v4689 = vpop.f32.mrb[0].mxu0
      %v4690 = vadd.f32 %v4529, %v4689
      %v4691 = vpop.f32.mrb[0].mxu0
      %4692 = vmatprep.mubr.bf16.mxu0 0
      %4693 = vmatmul.mubr.bf16.gmra.mrb[0].mxu0 %v3305
      %v4694 = vpop.f32.mrb[0].mxu0
      %v4695 = vadd.f32 %v4534, %v4694
      %v4696 = vpop.f32.mrb[0].mxu0
      %v4697 = vpop.f32.mrb[0].mxu0
      %v4698 = vadd.f32 %v4537, %v4697
      %v4699 = vpop.f32.mrb[0].mxu0
      %4700 = vmatprep.mubr.bf16.mxu0 0
      %4701 = vmatmul.mubr.bf16.gmra.mrb[0].mxu0 %v3314
      %v4702 = vpop.f32.mrb[0].mxu0
      %v4703 = vadd.f32 %v4542, %v4702
      %v4704 = vpop.f32.mrb[0].mxu0
      %v4705 = vpop.f32.mrb[0].mxu0
      %v4706 = vadd.f32 %v4545, %v4705
      %v4707 = vpop.f32.mrb[0].mxu0
      %4708 = vmatprep.mubr.bf16.mxu0 0
      %4709 = vmatmul.mubr.bf16.gmra.mrb[0].mxu0 %v3323
      %v4710 = vpop.f32.mrb[0].mxu0
      %v4711 = vadd.f32 %v4550, %v4710
      %v4712 = vpop.f32.mrb[0].mxu0
      %v4713 = vpop.f32.mrb[0].mxu0
      %v4714 = vadd.f32 %v4553, %v4713
      %v4715 = vpop.f32.mrb[0].mxu0
      %4716 = vmatprep.mubr.bf16.mxu0 0
      %4717 = vmatmul.mubr.bf16.gmra.mrb[0].mxu0 %v3332
      %v4718 = vpop.f32.mrb[0].mxu0
      %v4719 = vadd.f32 %v4558, %v4718
      %v4720 = vpop.f32.mrb[0].mxu0
      %v4721 = vpop.f32.mrb[0].mxu0
      %v4722 = vadd.f32 %v4561, %v4721
      %v4723 = vpop.f32.mrb[0].mxu0
      %4724 = vmatprep.mubr.bf16.mxu0 0
      %4725 = vmatmul.mubr.bf16.gmra.mrb[0].mxu0 %v3341
      %v4726 = vpop.f32.mrb[0].mxu0
      %v4727 = vadd.f32 %v4566, %v4726
      %v4728 = vpop.f32.mrb[0].mxu0
      %v4729 = vpop.f32.mrb[0].mxu0
      %v4730 = vadd.f32 %v4569, %v4729
      %v4731 = vpop.f32.mrb[0].mxu0
      %4732 = vmatprep.mubr.bf16.mxu0 0
      %4733 = vmatmul.mubr.bf16.gmra.mrb[0].mxu0 %v3350
      %v4734 = vpop.f32.mrb[0].mxu0
      %v4735 = vadd.f32 %v4574, %v4734
      %v4736 = vpop.f32.mrb[0].mxu0
      %v4737 = vpop.f32.mrb[0].mxu0
      %v4738 = vadd.f32 %v4577, %v4737
      %v4739 = vpop.f32.mrb[0].mxu0
      %4740 = vmatprep.mubr.bf16.mxu0 0
      %4741 = vmatmul.mubr.bf16.gmra.mrb[0].mxu0 %v3359
      %v4742 = vpop.f32.mrb[0].mxu0
      %v4743 = vadd.f32 %v4582, %v4742
      %v4744 = vpop.f32.mrb[0].mxu0
      %v4745 = vpop.f32.mrb[0].mxu0
      %v4746 = vadd.f32 %v4585, %v4745
      %v4747 = vpop.f32.mrb[0].mxu0
      %4748 = vmatprep.mubr.bf16.mxu0 0
      %4749 = vmatmul.mubr.bf16.gmra.mrb[0].mxu0 %v3368
      %v4750 = vpop.f32.mrb[0].mxu0
      %v4751 = vadd.f32 %v4590, %v4750
      %v4752 = vpop.f32.mrb[0].mxu0
      %v4753 = vpop.f32.mrb[0].mxu0
      %v4754 = vadd.f32 %v4593, %v4753
      %v4755 = vpop.f32.mrb[0].mxu0
      %4756 = vdwg.mxu0
      %s4757 = smul.addr %s1330, 4
      %s4758 = scalar_lea.vmem %s352, %s4757
      %v4759 = vld [vmem:[%s4758] sm:$0xf]
      %v4760 = vld [vmem:[%s4758 + $0x4] sm:$0xf]
      %v4761 = vld [vmem:[%s4758 + $0x8] sm:$0x1]
      %v4762 = vld [vmem:[%s4758 + $0xc] sm:$0xf]
      %v4763 = vld [vmem:[%s4758 + $0x10] sm:$0xf]
      %v4764 = vld [vmem:[%s4758 + $0x14] sm:$0x1]
      %v4765 = vld [vmem:[%s4758 + $0x18] sm:$0xf]
      %v4766 = vld [vmem:[%s4758 + $0x1c] sm:$0xf]
      %v4767 = vld [vmem:[%s4758 + $0x20] sm:$0x1]
      %v4768 = vld [vmem:[%s4758 + $0x24] sm:$0xf]
      %v4769 = vld [vmem:[%s4758 + $0x28] sm:$0xf]
      %v4770 = vld [vmem:[%s4758 + $0x2c] sm:$0x1]
      %v4771 = vld [vmem:[%s4758 + $0x30] sm:$0xf]
      %v4772 = vld [vmem:[%s4758 + $0x34] sm:$0xf]
      %v4773 = vld [vmem:[%s4758 + $0x38] sm:$0x1]
      %v4774 = vld [vmem:[%s4758 + $0x3c] sm:$0xf]
      %v4775 = vld [vmem:[%s4758 + $0x40] sm:$0xf]
      %v4776 = vld [vmem:[%s4758 + $0x44] sm:$0x1]
      %v4777 = vld [vmem:[%s4758 + $0x48] sm:$0xf]
      %v4778 = vld [vmem:[%s4758 + $0x4c] sm:$0xf]
      %v4779 = vld [vmem:[%s4758 + $0x50] sm:$0x1]
      %v4780 = vld [vmem:[%s4758 + $0x54] sm:$0xf]
      %v4781 = vld [vmem:[%s4758 + $0x58] sm:$0xf]
      %v4782 = vld [vmem:[%s4758 + $0x5c] sm:$0x1]
      %v4783 = vld [vmem:[%s4758 + $0x60] sm:$0xf]
      %v4784 = vld [vmem:[%s4758 + $0x64] sm:$0xf]
      %v4785 = vld [vmem:[%s4758 + $0x68] sm:$0x1]
      %v4786 = vld [vmem:[%s4758 + $0x6c] sm:$0xf]
      %v4787 = vld [vmem:[%s4758 + $0x70] sm:$0xf]
      %v4788 = vld [vmem:[%s4758 + $0x74] sm:$0x1]
      %v4789 = vld [vmem:[%s4758 + $0x78] sm:$0xf]
      %v4790 = vld [vmem:[%s4758 + $0x7c] sm:$0xf]
      %v4791 = vld [vmem:[%s4758 + $0x80] sm:$0x1]
      %v4792 = vld [vmem:[%s4758 + $0x84] sm:$0xf]
      %v4793 = vld [vmem:[%s4758 + $0x88] sm:$0xf]
      %v4794 = vld [vmem:[%s4758 + $0x8c] sm:$0x1]
      %v4795 = vld [vmem:[%s4758 + $0x90] sm:$0xf]
      %v4796 = vld [vmem:[%s4758 + $0x94] sm:$0xf]
      %v4797 = vld [vmem:[%s4758 + $0x98] sm:$0x1]
      %v4798 = vld [vmem:[%s4758 + $0x9c] sm:$0xf]
      %v4799 = vld [vmem:[%s4758 + $0xa0] sm:$0xf]
      %v4800 = vld [vmem:[%s4758 + $0xa4] sm:$0x1]
      %v4801 = vld [vmem:[%s4758 + $0xa8] sm:$0xf]
      %v4802 = vld [vmem:[%s4758 + $0xac] sm:$0xf]
      %v4803 = vld [vmem:[%s4758 + $0xb0] sm:$0x1]
      %v4804 = vld [vmem:[%s4758 + $0xb4] sm:$0xf]
      %v4805 = vld [vmem:[%s4758 + $0xb8] sm:$0xf]
      %v4806 = vld [vmem:[%s4758 + $0xbc] sm:$0x1]
      %v4808 = vshrl.u32 %v4759, 16
      %v4810 = vrot.slane %v4808, 4
      %v4811 = vshll.u32 %v4759, 16
      %v4813 = vrot.slane %v4811, 5
      %v4814 = vor.u32 %v4810, %v4813
      %v4815 = vrot.slane %v4814, 4
      %v4817 = vshll.u32 %v4760, 16
      %v4819 = vrot.slane %v4817, 5
      %v4820 = vsel %vm573, %v4815, %v4819
      %v4821 = vshrl.u32 %v4760, 16
      %v4823 = vrot.slane %v4821, 4
      %v4824 = vor.u32 %v4823, %v4819
      %v4825 = vrot.slane %v4824, 4
      %v4827 = vshll.u32 %v4761, 16
      %v4829 = vrot.slane %v4827, 5
      %v4830 = vsel %vm573, %v4825, %v4829
      %v4832 = vshrl.u32 %v4762, 16
      %v4834 = vrot.slane %v4832, 4
      %v4835 = vshll.u32 %v4762, 16
      %v4837 = vrot.slane %v4835, 5
      %v4838 = vor.u32 %v4834, %v4837
      %v4839 = vrot.slane %v4838, 4
      %v4841 = vshll.u32 %v4763, 16
      %v4843 = vrot.slane %v4841, 5
      %v4844 = vsel %vm573, %v4839, %v4843
      %v4845 = vshrl.u32 %v4763, 16
      %v4847 = vrot.slane %v4845, 4
      %v4848 = vor.u32 %v4847, %v4843
      %v4849 = vrot.slane %v4848, 4
      %v4851 = vshll.u32 %v4764, 16
      %v4853 = vrot.slane %v4851, 5
      %v4854 = vsel %vm573, %v4849, %v4853
      %v4856 = vshrl.u32 %v4765, 16
      %v4858 = vrot.slane %v4856, 4
      %v4859 = vshll.u32 %v4765, 16
      %v4861 = vrot.slane %v4859, 5
      %v4862 = vor.u32 %v4858, %v4861
      %v4863 = vrot.slane %v4862, 4
      %v4865 = vshll.u32 %v4766, 16
      %v4867 = vrot.slane %v4865, 5
      %v4868 = vsel %vm573, %v4863, %v4867
      %v4869 = vshrl.u32 %v4766, 16
      %v4871 = vrot.slane %v4869, 4
      %v4872 = vor.u32 %v4871, %v4867
      %v4873 = vrot.slane %v4872, 4
      %v4875 = vshll.u32 %v4767, 16
      %v4877 = vrot.slane %v4875, 5
      %v4878 = vsel %vm573, %v4873, %v4877
      %v4880 = vshrl.u32 %v4768, 16
      %v4882 = vrot.slane %v4880, 4
      %v4883 = vshll.u32 %v4768, 16
      %v4885 = vrot.slane %v4883, 5
      %v4886 = vor.u32 %v4882, %v4885
      %v4887 = vrot.slane %v4886, 4
      %v4889 = vshll.u32 %v4769, 16
      %v4891 = vrot.slane %v4889, 5
      %v4892 = vsel %vm573, %v4887, %v4891
      %v4893 = vshrl.u32 %v4769, 16
      %v4895 = vrot.slane %v4893, 4
      %v4896 = vor.u32 %v4895, %v4891
      %v4897 = vrot.slane %v4896, 4
      %v4899 = vshll.u32 %v4770, 16
      %v4901 = vrot.slane %v4899, 5
      %v4902 = vsel %vm573, %v4897, %v4901
      %v4904 = vshrl.u32 %v4771, 16
      %v4906 = vrot.slane %v4904, 4
      %v4907 = vshll.u32 %v4771, 16
      %v4909 = vrot.slane %v4907, 5
      %v4910 = vor.u32 %v4906, %v4909
      %v4911 = vrot.slane %v4910, 4
      %v4913 = vshll.u32 %v4772, 16
      %v4915 = vrot.slane %v4913, 5
      %v4916 = vsel %vm573, %v4911, %v4915
      %v4917 = vshrl.u32 %v4772, 16
      %v4919 = vrot.slane %v4917, 4
      %v4920 = vor.u32 %v4919, %v4915
      %v4921 = vrot.slane %v4920, 4
      %v4923 = vshll.u32 %v4773, 16
      %v4925 = vrot.slane %v4923, 5
      %v4926 = vsel %vm573, %v4921, %v4925
      %v4928 = vshrl.u32 %v4774, 16
      %v4930 = vrot.slane %v4928, 4
      %v4931 = vshll.u32 %v4774, 16
      %v4933 = vrot.slane %v4931, 5
      %v4934 = vor.u32 %v4930, %v4933
      %v4935 = vrot.slane %v4934, 4
      %v4937 = vshll.u32 %v4775, 16
      %v4939 = vrot.slane %v4937, 5
      %v4940 = vsel %vm573, %v4935, %v4939
      %v4941 = vshrl.u32 %v4775, 16
      %v4943 = vrot.slane %v4941, 4
      %v4944 = vor.u32 %v4943, %v4939
      %v4945 = vrot.slane %v4944, 4
      %v4947 = vshll.u32 %v4776, 16
      %v4949 = vrot.slane %v4947, 5
      %v4950 = vsel %vm573, %v4945, %v4949
      %v4952 = vshrl.u32 %v4777, 16
      %v4954 = vrot.slane %v4952, 4
      %v4955 = vshll.u32 %v4777, 16
      %v4957 = vrot.slane %v4955, 5
      %v4958 = vor.u32 %v4954, %v4957
      %v4959 = vrot.slane %v4958, 4
      %v4961 = vshll.u32 %v4778, 16
      %v4963 = vrot.slane %v4961, 5
      %v4964 = vsel %vm573, %v4959, %v4963
      %v4965 = vshrl.u32 %v4778, 16
      %v4967 = vrot.slane %v4965, 4
      %v4968 = vor.u32 %v4967, %v4963
      %v4969 = vrot.slane %v4968, 4
      %v4971 = vshll.u32 %v4779, 16
      %v4973 = vrot.slane %v4971, 5
      %v4974 = vsel %vm573, %v4969, %v4973
      %v4976 = vshrl.u32 %v4780, 16
      %v4978 = vrot.slane %v4976, 4
      %v4979 = vshll.u32 %v4780, 16
      %v4981 = vrot.slane %v4979, 5
      %v4982 = vor.u32 %v4978, %v4981
      %v4983 = vrot.slane %v4982, 4
      %v4985 = vshll.u32 %v4781, 16
      %v4987 = vrot.slane %v4985, 5
      %v4988 = vsel %vm573, %v4983, %v4987
      %v4989 = vshrl.u32 %v4781, 16
      %v4991 = vrot.slane %v4989, 4
      %v4992 = vor.u32 %v4991, %v4987
      %v4993 = vrot.slane %v4992, 4
      %v4995 = vshll.u32 %v4782, 16
      %v4997 = vrot.slane %v4995, 5
      %v4998 = vsel %vm573, %v4993, %v4997
      %v5000 = vshrl.u32 %v4783, 16
      %v5002 = vrot.slane %v5000, 4
      %v5003 = vshll.u32 %v4783, 16
      %v5005 = vrot.slane %v5003, 5
      %v5006 = vor.u32 %v5002, %v5005
      %v5007 = vrot.slane %v5006, 4
      %v5009 = vshll.u32 %v4784, 16
      %v5011 = vrot.slane %v5009, 5
      %v5012 = vsel %vm573, %v5007, %v5011
      %v5013 = vshrl.u32 %v4784, 16
      %v5015 = vrot.slane %v5013, 4
      %v5016 = vor.u32 %v5015, %v5011
      %v5017 = vrot.slane %v5016, 4
      %v5019 = vshll.u32 %v4785, 16
      %v5021 = vrot.slane %v5019, 5
      %v5022 = vsel %vm573, %v5017, %v5021
      %v5024 = vshrl.u32 %v4786, 16
      %v5026 = vrot.slane %v5024, 4
      %v5027 = vshll.u32 %v4786, 16
      %v5029 = vrot.slane %v5027, 5
      %v5030 = vor.u32 %v5026, %v5029
      %v5031 = vrot.slane %v5030, 4
      %v5033 = vshll.u32 %v4787, 16
      %v5035 = vrot.slane %v5033, 5
      %v5036 = vsel %vm573, %v5031, %v5035
      %v5037 = vshrl.u32 %v4787, 16
      %v5039 = vrot.slane %v5037, 4
      %v5040 = vor.u32 %v5039, %v5035
      %v5041 = vrot.slane %v5040, 4
      %v5043 = vshll.u32 %v4788, 16
      %v5045 = vrot.slane %v5043, 5
      %v5046 = vsel %vm573, %v5041, %v5045
      %v5048 = vshrl.u32 %v4789, 16
      %v5050 = vrot.slane %v5048, 4
      %v5051 = vshll.u32 %v4789, 16
      %v5053 = vrot.slane %v5051, 5
      %v5054 = vor.u32 %v5050, %v5053
      %v5055 = vrot.slane %v5054, 4
      %v5057 = vshll.u32 %v4790, 16
      %v5059 = vrot.slane %v5057, 5
      %v5060 = vsel %vm573, %v5055, %v5059
      %v5061 = vshrl.u32 %v4790, 16
      %v5063 = vrot.slane %v5061, 4
      %v5064 = vor.u32 %v5063, %v5059
      %v5065 = vrot.slane %v5064, 4
      %v5067 = vshll.u32 %v4791, 16
      %v5069 = vrot.slane %v5067, 5
      %v5070 = vsel %vm573, %v5065, %v5069
      %v5072 = vshrl.u32 %v4792, 16
      %v5074 = vrot.slane %v5072, 4
      %v5075 = vshll.u32 %v4792, 16
      %v5077 = vrot.slane %v5075, 5
      %v5078 = vor.u32 %v5074, %v5077
      %v5079 = vrot.slane %v5078, 4
      %v5081 = vshll.u32 %v4793, 16
      %v5083 = vrot.slane %v5081, 5
      %v5084 = vsel %vm573, %v5079, %v5083
      %v5085 = vshrl.u32 %v4793, 16
      %v5087 = vrot.slane %v5085, 4
      %v5088 = vor.u32 %v5087, %v5083
      %v5089 = vrot.slane %v5088, 4
      %v5091 = vshll.u32 %v4794, 16
      %v5093 = vrot.slane %v5091, 5
      %v5094 = vsel %vm573, %v5089, %v5093
      %v5096 = vshrl.u32 %v4795, 16
      %v5098 = vrot.slane %v5096, 4
      %v5099 = vshll.u32 %v4795, 16
      %v5101 = vrot.slane %v5099, 5
      %v5102 = vor.u32 %v5098, %v5101
      %v5103 = vrot.slane %v5102, 4
      %v5105 = vshll.u32 %v4796, 16
      %v5107 = vrot.slane %v5105, 5
      %v5108 = vsel %vm573, %v5103, %v5107
      %v5109 = vshrl.u32 %v4796, 16
      %v5111 = vrot.slane %v5109, 4
      %v5112 = vor.u32 %v5111, %v5107
      %v5113 = vrot.slane %v5112, 4
      %v5115 = vshll.u32 %v4797, 16
      %v5117 = vrot.slane %v5115, 5
      %v5118 = vsel %vm573, %v5113, %v5117
      %v5120 = vshrl.u32 %v4798, 16
      %v5122 = vrot.slane %v5120, 4
      %v5123 = vshll.u32 %v4798, 16
      %v5125 = vrot.slane %v5123, 5
      %v5126 = vor.u32 %v5122, %v5125
      %v5127 = vrot.slane %v5126, 4
      %v5129 = vshll.u32 %v4799, 16
      %v5131 = vrot.slane %v5129, 5
      %v5132 = vsel %vm573, %v5127, %v5131
      %v5133 = vshrl.u32 %v4799, 16
      %v5135 = vrot.slane %v5133, 4
      %v5136 = vor.u32 %v5135, %v5131
      %v5137 = vrot.slane %v5136, 4
      %v5139 = vshll.u32 %v4800, 16
      %v5141 = vrot.slane %v5139, 5
      %v5142 = vsel %vm573, %v5137, %v5141
      %v5144 = vshrl.u32 %v4801, 16
      %v5146 = vrot.slane %v5144, 4
      %v5147 = vshll.u32 %v4801, 16
      %v5149 = vrot.slane %v5147, 5
      %v5150 = vor.u32 %v5146, %v5149
      %v5151 = vrot.slane %v5150, 4
      %v5153 = vshll.u32 %v4802, 16
      %v5155 = vrot.slane %v5153, 5
      %v5156 = vsel %vm573, %v5151, %v5155
      %v5157 = vshrl.u32 %v4802, 16
      %v5159 = vrot.slane %v5157, 4
      %v5160 = vor.u32 %v5159, %v5155
      %v5161 = vrot.slane %v5160, 4
      %v5163 = vshll.u32 %v4803, 16
      %v5165 = vrot.slane %v5163, 5
      %v5166 = vsel %vm573, %v5161, %v5165
      %v5168 = vshrl.u32 %v4804, 16
      %v5170 = vrot.slane %v5168, 4
      %v5171 = vshll.u32 %v4804, 16
      %v5173 = vrot.slane %v5171, 5
      %v5174 = vor.u32 %v5170, %v5173
      %v5175 = vrot.slane %v5174, 4
      %v5177 = vshll.u32 %v4805, 16
      %v5179 = vrot.slane %v5177, 5
      %v5180 = vsel %vm573, %v5175, %v5179
      %v5181 = vshrl.u32 %v4805, 16
      %v5183 = vrot.slane %v5181, 4
      %v5184 = vor.u32 %v5183, %v5179
      %v5185 = vrot.slane %v5184, 4
      %v5187 = vshll.u32 %v4806, 16
      %v5189 = vrot.slane %v5187, 5
      %v5190 = vsel %vm573, %v5185, %v5189
      %v5191 = vld [vmem:[%s356] sm:$0xf]
      %v5192 = vld [vmem:[%s356 + $0x4] sm:$0xf]
      %v5193 = vld [vmem:[%s356 + $0x8] sm:$0xf]
      %v5194 = vld [vmem:[%s356 + $0xc] sm:$0xf]
      %v5195 = vld [vmem:[%s356 + $0x10] sm:$0xf]
      %v5196 = vld [vmem:[%s356 + $0x14] sm:$0xf]
      %v5197 = vld [vmem:[%s356 + $0x18] sm:$0xf]
      %v5198 = vld [vmem:[%s356 + $0x1c] sm:$0xf]
      %v5199 = vld [vmem:[%s356 + $0x20] sm:$0xf]
      %v5200 = vld [vmem:[%s356 + $0x24] sm:$0xf]
      %v5201 = vld [vmem:[%s356 + $0x28] sm:$0xf]
      %v5202 = vld [vmem:[%s356 + $0x2c] sm:$0xf]
      %v5203 = vld [vmem:[%s356 + $0x30] sm:$0xf]
      %v5204 = vld [vmem:[%s356 + $0x34] sm:$0xf]
      %v5205 = vld [vmem:[%s356 + $0x38] sm:$0xf]
      %v5206 = vld [vmem:[%s356 + $0x3c] sm:$0xf]
      %v5207 = vunpack.c.l.b16 %v4820
      %v5208 = vunpack.c.l.b16 %v4830
      %v5209 = vunpack.c.l.b16 %v4844
      %v5210 = vunpack.c.l.b16 %v4854
      %v5211 = vunpack.c.l.b16 %v4868
      %v5212 = vunpack.c.l.b16 %v4878
      %v5213 = vunpack.c.l.b16 %v4892
      %v5214 = vunpack.c.l.b16 %v4902
      %v5215 = vunpack.c.l.b16 %v4916
      %v5216 = vunpack.c.l.b16 %v4926
      %v5217 = vunpack.c.l.b16 %v4940
      %v5218 = vunpack.c.l.b16 %v4950
      %v5219 = vunpack.c.l.b16 %v4964
      %v5220 = vunpack.c.l.b16 %v4974
      %v5221 = vunpack.c.l.b16 %v4988
      %v5222 = vunpack.c.l.b16 %v4998
      %v5223 = vunpack.c.l.b16 %v5012
      %v5224 = vunpack.c.l.b16 %v5022
      %v5225 = vunpack.c.l.b16 %v5036
      %v5226 = vunpack.c.l.b16 %v5046
      %v5227 = vunpack.c.l.b16 %v5060
      %v5228 = vunpack.c.l.b16 %v5070
      %v5229 = vunpack.c.l.b16 %v5084
      %v5230 = vunpack.c.l.b16 %v5094
      %v5231 = vunpack.c.l.b16 %v5108
      %v5232 = vunpack.c.l.b16 %v5118
      %v5233 = vunpack.c.l.b16 %v5132
      %v5234 = vunpack.c.l.b16 %v5142
      %v5235 = vunpack.c.l.b16 %v5156
      %v5236 = vunpack.c.l.b16 %v5166
      %v5237 = vunpack.c.l.b16 %v5180
      %v5238 = vunpack.c.l.b16 %v5190
      %v5239 = vpack.c.b16 %v5208, %v5207
      %v5240 = vpack.c.b16 %v5210, %v5209
      %v5241 = vpack.c.b16 %v5212, %v5211
      %v5242 = vpack.c.b16 %v5214, %v5213
      %v5243 = vpack.c.b16 %v5216, %v5215
      %v5244 = vpack.c.b16 %v5218, %v5217
      %v5245 = vpack.c.b16 %v5220, %v5219
      %v5246 = vpack.c.b16 %v5222, %v5221
      %v5247 = vpack.c.b16 %v5224, %v5223
      %v5248 = vpack.c.b16 %v5226, %v5225
      %v5249 = vpack.c.b16 %v5228, %v5227
      %v5250 = vpack.c.b16 %v5230, %v5229
      %v5251 = vpack.c.b16 %v5232, %v5231
      %v5252 = vpack.c.b16 %v5234, %v5233
      %v5253 = vpack.c.b16 %v5236, %v5235
      %v5254 = vpack.c.b16 %v5238, %v5237
      %v5287 = vunpack.c.l.b16 %v5191
      %v5288 = vunpack.c.l.b16 %v5192
      %v5289 = vunpack.c.l.b16 %v5193
      %v5290 = vunpack.c.l.b16 %v5194
      %v5291 = vunpack.c.l.b16 %v5195
      %v5292 = vunpack.c.l.b16 %v5196
      %v5293 = vunpack.c.l.b16 %v5197
      %v5294 = vunpack.c.l.b16 %v5198
      %v5295 = vunpack.c.l.b16 %v5199
      %v5296 = vunpack.c.l.b16 %v5200
      %v5297 = vunpack.c.l.b16 %v5201
      %v5298 = vunpack.c.l.b16 %v5202
      %v5299 = vunpack.c.l.b16 %v5203
      %v5300 = vunpack.c.l.b16 %v5204
      %v5301 = vunpack.c.l.b16 %v5205
      %v5302 = vunpack.c.l.b16 %v5206
      %v5303 = vpack.c.b16 %v5288, %v5287
      %v5304 = vpack.c.b16 %v5290, %v5289
      %v5305 = vpack.c.b16 %v5292, %v5291
      %v5306 = vpack.c.b16 %v5294, %v5293
      %v5307 = vpack.c.b16 %v5296, %v5295
      %v5308 = vpack.c.b16 %v5298, %v5297
      %v5309 = vpack.c.b16 %v5300, %v5299
      %v5310 = vpack.c.b16 %v5302, %v5301
      %5319 = vmatprep.subr.bf16.mxu0 0
      %5320 = vmatpush1.bf16.msra.mxu0 %v5303
      %5321 = vmatprep.subr.bf16.mxu0 0
      %5322 = vmatpush1.bf16.msra.mxu0 %v5304
      %5323 = vmatprep.subr.bf16.mxu0 0
      %5324 = vmatpush1.bf16.msra.mxu0 %v5305
      %5325 = vmatprep.subr.bf16.mxu0 0
      %5326 = vmatpush1.bf16.msra.mxu0 %v5306
      %5327 = vmatprep.subr.bf16.mxu0 0
      %5328 = vmatpush1.bf16.msra.mxu0 %v5307
      %5329 = vmatprep.subr.bf16.mxu0 0
      %5330 = vmatpush1.bf16.msra.mxu0 %v5308
      %5331 = vmatprep.subr.bf16.mxu0 0
      %5332 = vmatpush1.bf16.msra.mxu0 %v5309
      %5333 = vmatprep.subr.bf16.mxu0 0
      %5334 = vmatpush1.bf16.msra.mxu0 %v5310
      %5335 = vmatprep.subr.bf16.mxu0 0
      %5336 = vmatpush1.bf16.msra.mxu0 0
      %5337 = vmatprep.subr.bf16.mxu0 0
      %5338 = vmatpush1.bf16.msra.mxu0 0
      %5339 = vmatprep.subr.bf16.mxu0 0
      %5340 = vmatpush1.bf16.msra.mxu0 0
      %5341 = vmatprep.subr.bf16.mxu0 0
      %5342 = vmatpush1.bf16.msra.mxu0 0
      %5343 = vmatprep.subr.bf16.mxu0 0
      %5344 = vmatpush1.bf16.msra.mxu0 0
      %5345 = vmatprep.subr.bf16.mxu0 0
      %5346 = vmatpush1.bf16.msra.mxu0 0
      %5347 = vmatprep.subr.bf16.mxu0 0
      %5348 = vmatpush1.bf16.msra.mxu0 0
      %5349 = vmatprep.subr.bf16.mxu0 0
      %5350 = vmatpush1.bf16.msra.mxu0 0
      %5351 = vmatprep.mubr.bf16.mxu0 0
      %5352 = vmatmul.mubr.bf16.gmra.mrb[0].mxu0 %v5239
      %v5353 = vpop.f32.mrb[0].mxu0
      %v5354 = vadd.f32 0.0, %v5353
      %v5355 = vpop.f32.mrb[0].mxu0
      %v5356 = vpop.f32.mrb[0].mxu0
      %v5357 = vadd.f32 0.0, %v5356
      %v5358 = vpop.f32.mrb[0].mxu0
      %5359 = vmatprep.mubr.bf16.mxu0 0
      %5360 = vmatmul.mubr.bf16.gmra.mrb[0].mxu0 %v5240
      %v5361 = vpop.f32.mrb[0].mxu0
      %v5362 = vadd.f32 0.0, %v5361
      %v5363 = vpop.f32.mrb[0].mxu0
      %v5364 = vpop.f32.mrb[0].mxu0
      %v5365 = vadd.f32 0.0, %v5364
      %v5366 = vpop.f32.mrb[0].mxu0
      %5367 = vmatprep.mubr.bf16.mxu0 0
      %5368 = vmatmul.mubr.bf16.gmra.mrb[0].mxu0 %v5241
      %v5369 = vpop.f32.mrb[0].mxu0
      %v5370 = vadd.f32 0.0, %v5369
      %v5371 = vpop.f32.mrb[0].mxu0
      %v5372 = vpop.f32.mrb[0].mxu0
      %v5373 = vadd.f32 0.0, %v5372
      %v5374 = vpop.f32.mrb[0].mxu0
      %5375 = vmatprep.mubr.bf16.mxu0 0
      %5376 = vmatmul.mubr.bf16.gmra.mrb[0].mxu0 %v5242
      %v5377 = vpop.f32.mrb[0].mxu0
      %v5378 = vadd.f32 0.0, %v5377
      %v5379 = vpop.f32.mrb[0].mxu0
      %v5380 = vpop.f32.mrb[0].mxu0
      %v5381 = vadd.f32 0.0, %v5380
      %v5382 = vpop.f32.mrb[0].mxu0
      %5383 = vmatprep.mubr.bf16.mxu0 0
      %5384 = vmatmul.mubr.bf16.gmra.mrb[0].mxu0 %v5243
      %v5385 = vpop.f32.mrb[0].mxu0
      %v5386 = vadd.f32 0.0, %v5385
      %v5387 = vpop.f32.mrb[0].mxu0
      %v5388 = vpop.f32.mrb[0].mxu0
      %v5389 = vadd.f32 0.0, %v5388
      %v5390 = vpop.f32.mrb[0].mxu0
      %5391 = vmatprep.mubr.bf16.mxu0 0
      %5392 = vmatmul.mubr.bf16.gmra.mrb[0].mxu0 %v5244
      %v5393 = vpop.f32.mrb[0].mxu0
      %v5394 = vadd.f32 0.0, %v5393
      %v5395 = vpop.f32.mrb[0].mxu0
      %v5396 = vpop.f32.mrb[0].mxu0
      %v5397 = vadd.f32 0.0, %v5396
      %v5398 = vpop.f32.mrb[0].mxu0
      %5399 = vmatprep.mubr.bf16.mxu0 0
      %5400 = vmatmul.mubr.bf16.gmra.mrb[0].mxu0 %v5245
      %v5401 = vpop.f32.mrb[0].mxu0
      %v5402 = vadd.f32 0.0, %v5401
      %v5403 = vpop.f32.mrb[0].mxu0
      %v5404 = vpop.f32.mrb[0].mxu0
      %v5405 = vadd.f32 0.0, %v5404
      %v5406 = vpop.f32.mrb[0].mxu0
      %5407 = vmatprep.mubr.bf16.mxu0 0
      %5408 = vmatmul.mubr.bf16.gmra.mrb[0].mxu0 %v5246
      %v5409 = vpop.f32.mrb[0].mxu0
      %v5410 = vadd.f32 0.0, %v5409
      %v5411 = vpop.f32.mrb[0].mxu0
      %v5412 = vpop.f32.mrb[0].mxu0
      %v5413 = vadd.f32 0.0, %v5412
      %v5414 = vpop.f32.mrb[0].mxu0
      %5415 = vmatprep.mubr.bf16.mxu0 0
      %5416 = vmatmul.mubr.bf16.gmra.mrb[0].mxu0 %v5247
      %v5417 = vpop.f32.mrb[0].mxu0
      %v5418 = vadd.f32 0.0, %v5417
      %v5419 = vpop.f32.mrb[0].mxu0
      %v5420 = vpop.f32.mrb[0].mxu0
      %v5421 = vadd.f32 0.0, %v5420
      %v5422 = vpop.f32.mrb[0].mxu0
      %5423 = vmatprep.mubr.bf16.mxu0 0
      %5424 = vmatmul.mubr.bf16.gmra.mrb[0].mxu0 %v5248
      %v5425 = vpop.f32.mrb[0].mxu0
      %v5426 = vadd.f32 0.0, %v5425
      %v5427 = vpop.f32.mrb[0].mxu0
      %v5428 = vpop.f32.mrb[0].mxu0
      %v5429 = vadd.f32 0.0, %v5428
      %v5430 = vpop.f32.mrb[0].mxu0
      %5431 = vmatprep.mubr.bf16.mxu0 0
      %5432 = vmatmul.mubr.bf16.gmra.mrb[0].mxu0 %v5249
      %v5433 = vpop.f32.mrb[0].mxu0
      %v5434 = vadd.f32 0.0, %v5433
      %v5435 = vpop.f32.mrb[0].mxu0
      %v5436 = vpop.f32.mrb[0].mxu0
      %v5437 = vadd.f32 0.0, %v5436
      %v5438 = vpop.f32.mrb[0].mxu0
      %5439 = vmatprep.mubr.bf16.mxu0 0
      %5440 = vmatmul.mubr.bf16.gmra.mrb[0].mxu0 %v5250
      %v5441 = vpop.f32.mrb[0].mxu0
      %v5442 = vadd.f32 0.0, %v5441
      %v5443 = vpop.f32.mrb[0].mxu0
      %v5444 = vpop.f32.mrb[0].mxu0
      %v5445 = vadd.f32 0.0, %v5444
      %v5446 = vpop.f32.mrb[0].mxu0
      %5447 = vmatprep.mubr.bf16.mxu0 0
      %5448 = vmatmul.mubr.bf16.gmra.mrb[0].mxu0 %v5251
      %v5449 = vpop.f32.mrb[0].mxu0
      %v5450 = vadd.f32 0.0, %v5449
      %v5451 = vpop.f32.mrb[0].mxu0
      %v5452 = vpop.f32.mrb[0].mxu0
      %v5453 = vadd.f32 0.0, %v5452
      %v5454 = vpop.f32.mrb[0].mxu0
      %5455 = vmatprep.mubr.bf16.mxu0 0
      %5456 = vmatmul.mubr.bf16.gmra.mrb[0].mxu0 %v5252
      %v5457 = vpop.f32.mrb[0].mxu0
      %v5458 = vadd.f32 0.0, %v5457
      %v5459 = vpop.f32.mrb[0].mxu0
      %v5460 = vpop.f32.mrb[0].mxu0
      %v5461 = vadd.f32 0.0, %v5460
      %v5462 = vpop.f32.mrb[0].mxu0
      %5463 = vmatprep.mubr.bf16.mxu0 0
      %5464 = vmatmul.mubr.bf16.gmra.mrb[0].mxu0 %v5253
      %v5465 = vpop.f32.mrb[0].mxu0
      %v5466 = vadd.f32 0.0, %v5465
      %v5467 = vpop.f32.mrb[0].mxu0
      %v5468 = vpop.f32.mrb[0].mxu0
      %v5469 = vadd.f32 0.0, %v5468
      %v5470 = vpop.f32.mrb[0].mxu0
      %5471 = vmatprep.mubr.bf16.mxu0 0
      %5472 = vmatmul.mubr.bf16.gmra.mrb[0].mxu0 %v5254
      %v5473 = vpop.f32.mrb[0].mxu0
      %v5474 = vadd.f32 0.0, %v5473
      %v5475 = vpop.f32.mrb[0].mxu0
      %v5476 = vpop.f32.mrb[0].mxu0
      %v5477 = vadd.f32 0.0, %v5476
      %v5478 = vpop.f32.mrb[0].mxu0
      %5479 = vdwg.mxu0
      %v5480 = vadd.f32 %v4631, %v5354
      %v5481 = vadd.f32 %v4634, %v5357
      %v5482 = vadd.f32 %v4639, %v5362
      %v5483 = vadd.f32 %v4642, %v5365
      %v5484 = vadd.f32 %v4647, %v5370
      %v5485 = vadd.f32 %v4650, %v5373
      %v5486 = vadd.f32 %v4655, %v5378
      %v5487 = vadd.f32 %v4658, %v5381
      %v5488 = vadd.f32 %v4663, %v5386
      %v5489 = vadd.f32 %v4666, %v5389
      %v5490 = vadd.f32 %v4671, %v5394
      %v5491 = vadd.f32 %v4674, %v5397
      %v5492 = vadd.f32 %v4679, %v5402
      %v5493 = vadd.f32 %v4682, %v5405
      %v5494 = vadd.f32 %v4687, %v5410
      %v5495 = vadd.f32 %v4690, %v5413
      %v5496 = vadd.f32 %v4695, %v5418
      %v5497 = vadd.f32 %v4698, %v5421
      %v5498 = vadd.f32 %v4703, %v5426
      %v5499 = vadd.f32 %v4706, %v5429
      %v5500 = vadd.f32 %v4711, %v5434
      %v5501 = vadd.f32 %v4714, %v5437
      %v5502 = vadd.f32 %v4719, %v5442
      %v5503 = vadd.f32 %v4722, %v5445
      %v5504 = vadd.f32 %v4727, %v5450
      %v5505 = vadd.f32 %v4730, %v5453
      %v5506 = vadd.f32 %v4735, %v5458
      %v5507 = vadd.f32 %v4738, %v5461
      %v5508 = vadd.f32 %v4743, %v5466
      %v5509 = vadd.f32 %v4746, %v5469
      %v5510 = vadd.f32 %v4751, %v5474
      %v5511 = vadd.f32 %v4754, %v5477
      %v5512 = vld [vmem:[%s359] sm:$0x1]
      %v5514 = vlaneseq
      %v5515 = vshrl.u32 %v5514, 7
      %v5516 = vsub.s32 0, %v5515
      %v5517 = vrot.slane %v5512, %v5516
      %v5519 = vadd.f32 %v5480, %v5517
      %v5520 = vadd.f32 %v5481, %v5517
      %v5521 = vadd.f32 %v5482, %v5517
      %v5522 = vadd.f32 %v5483, %v5517
      %v5523 = vadd.f32 %v5484, %v5517
      %v5524 = vadd.f32 %v5485, %v5517
      %v5525 = vadd.f32 %v5486, %v5517
      %v5526 = vadd.f32 %v5487, %v5517
      %v5527 = vadd.f32 %v5488, %v5517
      %v5528 = vadd.f32 %v5489, %v5517
      %v5529 = vadd.f32 %v5490, %v5517
      %v5530 = vadd.f32 %v5491, %v5517
      %v5531 = vadd.f32 %v5492, %v5517
      %v5532 = vadd.f32 %v5493, %v5517
      %v5533 = vadd.f32 %v5494, %v5517
      %v5534 = vadd.f32 %v5495, %v5517
      %v5535 = vadd.f32 %v5496, %v5517
      %v5536 = vadd.f32 %v5497, %v5517
      %v5537 = vadd.f32 %v5498, %v5517
      %v5538 = vadd.f32 %v5499, %v5517
      %v5539 = vadd.f32 %v5500, %v5517
      %v5540 = vadd.f32 %v5501, %v5517
      %v5541 = vadd.f32 %v5502, %v5517
      %v5542 = vadd.f32 %v5503, %v5517
      %v5543 = vadd.f32 %v5504, %v5517
      %v5544 = vadd.f32 %v5505, %v5517
      %v5545 = vadd.f32 %v5506, %v5517
      %v5546 = vadd.f32 %v5507, %v5517
      %v5547 = vadd.f32 %v5508, %v5517
      %v5548 = vadd.f32 %v5509, %v5517
      %v5549 = vadd.f32 %v5510, %v5517
      %v5550 = vadd.f32 %v5511, %v5517
      %v5551 = vmax.f32 %v5519, 0.0
      %v5552 = vmax.f32 %v5520, 0.0
      %v5553 = vmax.f32 %v5521, 0.0
      %v5554 = vmax.f32 %v5522, 0.0
      %v5555 = vmax.f32 %v5523, 0.0
      %v5556 = vmax.f32 %v5524, 0.0
      %v5557 = vmax.f32 %v5525, 0.0
      %v5558 = vmax.f32 %v5526, 0.0
      %v5559 = vmax.f32 %v5527, 0.0
      %v5560 = vmax.f32 %v5528, 0.0
      %v5561 = vmax.f32 %v5529, 0.0
      %v5562 = vmax.f32 %v5530, 0.0
      %v5563 = vmax.f32 %v5531, 0.0
      %v5564 = vmax.f32 %v5532, 0.0
      %v5565 = vmax.f32 %v5533, 0.0
      %v5566 = vmax.f32 %v5534, 0.0
      %v5567 = vmax.f32 %v5535, 0.0
      %v5568 = vmax.f32 %v5536, 0.0
      %v5569 = vmax.f32 %v5537, 0.0
      %v5570 = vmax.f32 %v5538, 0.0
      %v5571 = vmax.f32 %v5539, 0.0
      %v5572 = vmax.f32 %v5540, 0.0
      %v5573 = vmax.f32 %v5541, 0.0
      %v5574 = vmax.f32 %v5542, 0.0
      %v5575 = vmax.f32 %v5543, 0.0
      %v5576 = vmax.f32 %v5544, 0.0
      %v5577 = vmax.f32 %v5545, 0.0
      %v5578 = vmax.f32 %v5546, 0.0
      %v5579 = vmax.f32 %v5547, 0.0
      %v5580 = vmax.f32 %v5548, 0.0
      %v5581 = vmax.f32 %v5549, 0.0
      %v5582 = vmax.f32 %v5550, 0.0
      %5583 = vst [vmem:[%s372] sm:$0xff] %v5551
      %5584 = vst [vmem:[%s372 + $0x8] sm:$0xff] %v5552
      %5585 = vst [vmem:[%s372 + $0x10] sm:$0xff] %v5553
      %5586 = vst [vmem:[%s372 + $0x18] sm:$0xff] %v5554
      %5587 = vst [vmem:[%s372 + $0x20] sm:$0xff] %v5555
      %5588 = vst [vmem:[%s372 + $0x28] sm:$0xff] %v5556
      %5589 = vst [vmem:[%s372 + $0x30] sm:$0xff] %v5557
      %5590 = vst [vmem:[%s372 + $0x38] sm:$0xff] %v5558
      %5591 = vst [vmem:[%s372 + $0x40] sm:$0xff] %v5559
      %5592 = vst [vmem:[%s372 + $0x48] sm:$0xff] %v5560
      %5593 = vst [vmem:[%s372 + $0x50] sm:$0xff] %v5561
      %5594 = vst [vmem:[%s372 + $0x58] sm:$0xff] %v5562
      %5595 = vst [vmem:[%s372 + $0x60] sm:$0xff] %v5563
      %5596 = vst [vmem:[%s372 + $0x68] sm:$0xff] %v5564
      %5597 = vst [vmem:[%s372 + $0x70] sm:$0xff] %v5565
      %5598 = vst [vmem:[%s372 + $0x78] sm:$0xff] %v5566
      %5599 = vst [vmem:[%s372 + $0x80] sm:$0xff] %v5567
      %5600 = vst [vmem:[%s372 + $0x88] sm:$0xff] %v5568
      %5601 = vst [vmem:[%s372 + $0x90] sm:$0xff] %v5569
      %5602 = vst [vmem:[%s372 + $0x98] sm:$0xff] %v5570
      %5603 = vst [vmem:[%s372 + $0xa0] sm:$0xff] %v5571
      %5604 = vst [vmem:[%s372 + $0xa8] sm:$0xff] %v5572
      %5605 = vst [vmem:[%s372 + $0xb0] sm:$0xff] %v5573
      %5606 = vst [vmem:[%s372 + $0xb8] sm:$0xff] %v5574
      %5607 = vst [vmem:[%s372 + $0xc0] sm:$0xff] %v5575
      %5608 = vst [vmem:[%s372 + $0xc8] sm:$0xff] %v5576
      %5609 = vst [vmem:[%s372 + $0xd0] sm:$0xff] %v5577
      %5610 = vst [vmem:[%s372 + $0xd8] sm:$0xff] %v5578
      %5611 = vst [vmem:[%s372 + $0xe0] sm:$0xff] %v5579
      %5612 = vst [vmem:[%s372 + $0xe8] sm:$0xff] %v5580
      %5613 = vst [vmem:[%s372 + $0xf0] sm:$0xff] %v5581
      %5614 = vst [vmem:[%s372 + $0xf8] sm:$0xff] %v5582
      %s5615 = smul.u32 16, %s24
      %p5616 = scmp.lt.s32.totalorder %s23, 1
      %s5617 = scalar_select %p5616, %s23, 1
      %p5618 = scmp.lt.s32.totalorder %s5615, 15
      %s5619 = scalar_select %p5618, %s5615, 15
      %p5620 = scmp.lt.s32.totalorder %s22, 0
      %s5621 = scalar_select %p5620, %s22, 0
      %s5622 = smul.addr %s5619, 2
      %s5623 = sadd.s32 %s5621, %s5622
      %s5624 = smul.addr %s5617, 32
      %s5625 = sadd.s32 %s5623, %s5624
      %s5626 = smul.addr %s5625, 8
      %s5627 = scalar_lea.vmem %s6, %s5626
      // Predicated region
      $region45: #{basic_block_forward.3} parent=43 // pred_check
        %p5628 = pneg %p214
      $region46: #{basic_block_forward.3} parent=43 // pred_check_branch
        %5630 = sbr.rel (%p5628) target = $region48
      $region47: #{basic_block_forward.3} parent=43 // pred_region
        %s5631 = smul.u32 16, %s24
      $region48: #{basic_block_forward.3} parent=43 // pred_fallthru
        _
    $region44: #{basic_block_forward.3} parent=5 // pred_fallthru
      _
    %p5632 = scmp.le.s32.totalorder 2, %s12
    // Predicated region
    $region49: #{basic_block_forward.3} parent=5 // pred_check
      %p5633 = pneg %p5632
    $region50: #{basic_block_forward.3} parent=5 // pred_check_branch
      %5635 = sbr.rel (%p5633) target = $region52
    $region51: #{basic_block_forward.3} parent=5 // pred_region
      %s5636 = ssub.s32 %s12, 2
      // Predicated region
      $region53: #{basic_block_forward.3} parent=51 // pred_check
        %p5637 = pneg %p220
      $region54: #{basic_block_forward.3} parent=51 // pred_check_branch
        %5639 = sbr.rel (%p5637) target = $region56
      $region55: #{basic_block_forward.3} parent=51 // pred_region
        %s5640 = smul.u32 16, %s27
        %p5641 = scmp.lt.s32.totalorder %s26, 1
        %s5642 = scalar_select %p5641, %s26, 1
        %p5643 = scmp.lt.s32.totalorder %s5640, 15
        %s5644 = scalar_select %p5643, %s5640, 15
        %p5645 = scmp.lt.s32.totalorder %s25, 0
        %s5646 = scalar_select %p5645, %s25, 0
        %s5647 = smul.addr %s5644, 2
        %s5648 = sadd.s32 %s5646, %s5647
        %s5649 = smul.addr %s5642, 32
        %s5650 = sadd.s32 %s5648, %s5649
        %s5651 = smul.addr %s5650, 8
        %s5652 = scalar_lea.vmem %s6, %s5651
      $region56: #{basic_block_forward.3} parent=51 // pred_fallthru
        _
    $region52: #{basic_block_forward.3} parent=5 // pred_fallthru
      _
  $region6: #{basic_block_forward.3} parent=0 // loop_footer
    %s16 = sadd.s32 1, %s12
  $region7: #{basic_block_forward.3} parent=0 // loop_footer_branch
    %11 = sbr.rel target = $region3
  $region8: #{basic_block_forward.3} parent=0 // loop_exit
    _

</llo_original>
